<compile_context>
chip_gen: v6e
topology: v6e:2x2x1
jax: 0.10.0
libtpu: 0.0.40
codegen_flags: <defaults>
</compile_context>

<pallas_src>
import functools

import jax
import jax.numpy as jnp
from jax import lax
from jax.experimental import pallas as pl
from jax.experimental.pallas import tpu as pltpu

IN_DIM = 29          # real input / vocab size
VPAD = 32            # vocab padded to 32 lanes inside the kernel
HID = 64             # hidden size
GATES = 4 * HID      # 256
SOS = 27             # column set to 1.0 for the first decoder input


def _cell(gates, c):
    """LSTM cell update, gate layout [i, f, o, g].

    The [i, f, o] columns of the packed weights/biases carry a 0.5 pre-scale,
    so a single tanh over all 256 lanes yields tanh(z/2) for the sigmoid gates
    (recovered as 0.5*tanh + 0.5 on the VPU) and tanh(z) for the g gate.
    Two EUP launches per cell: tanh(gates) + tanh(c_new).
    """
    y = jnp.tanh(gates)                                  # one EUP pass, 256 lanes
    sig = 0.5 * y[:, :3 * HID] + 0.5                     # VPU only
    i = sig[:, 0 * HID:1 * HID]
    f = sig[:, 1 * HID:2 * HID]
    o = sig[:, 2 * HID:3 * HID]
    g = y[:, 3 * HID:4 * HID]
    c_new = f * c + i * g
    h_new = o * jnp.tanh(c_new)                          # second EUP pass, 64 lanes
    return h_new, c_new


def seq2seq_kernel(x_ref,
                   e0_wih_ref, e0_b_ref, e0_whh_ref,
                   e1_wx_ref, e1_wh_ref, e1_b_ref,
                   d1_wih_ref, d1_whh_ref, d1_b_ref, d1_sos_ref,
                   d2_wx_ref, d2_wh_ref, d2_b_ref,
                   cls_w_ref, cls_b_ref,
                   out_ref, xproj_ref, *, b_real, seq_len):
    f32 = jnp.float32
    T = seq_len
    Bp = out_ref.shape[0]
    VP = VPAD

    # Encoder layer-0 input projection, hoisted out of the recurrence and
    # parked in VMEM scratch so its 16 vregs never span the unrolled loop.
    xproj_ref[...] = (jnp.dot(x_ref[...], e0_wih_ref[...],
                              preferred_element_type=f32) + e0_b_ref[...])

    # Pre-broadcast fused biases once (JAX does not CSE broadcast_in_dim).
    e1_b = jnp.broadcast_to(e1_b_ref[...], (Bp, GATES))
    d2_b = jnp.broadcast_to(d2_b_ref[...], (Bp, GATES))
    cls_b = jnp.broadcast_to(cls_b_ref[...], (Bp, VP))
    d1_b = d1_b_ref[...]                                          # (1, 256)

    zeros_h = jnp.zeros((Bp, HID), f32)

    # --------------------- encoder (fully unrolled, T static) ---------------
    h0 = c0 = h1 = c1 = zeros_h
    for t in range(T):
        g0 = (xproj_ref[pl.ds(t * Bp, Bp), :]
              + jnp.dot(h0, e0_whh_ref[...], preferred_element_type=f32))
        h0, c0 = _cell(g0, c0)
        # Split K=64 matmuls: no per-step lane-concat on the critical path.
        g1 = (jnp.dot(h0, e1_wx_ref[...], preferred_element_type=f32)
              + jnp.dot(h1, e1_wh_ref[...], preferred_element_type=f32)
              + e1_b)
        h1, c1 = _cell(g1, c1)

    # --------------------- decoder (fully unrolled, T static) ---------------
    col_iota = lax.broadcasted_iota(jnp.int32, (Bp, VP), 1)
    row_valid = lax.broadcasted_iota(jnp.int32, (Bp, VP), 0) < b_real

    h2 = c2 = zeros_h
    # t=0 feedback projection is static (SOS one-hot) -> precomputed in
    # pack_params; skips one MXU fill/drain on the first decoder step.
    let_proj = d1_sos_ref[...]                                    # (1, 256)
    preds = []
    for t in range(T):
        # Decoder cell 1: only the tiny (1, VP) let-projection sits on the
        # argmax -> next-step critical path; h1 @ Whh can overlap earlier work.
        g1 = jnp.dot(h1, d1_whh_ref[...], preferred_element_type=f32) + let_proj
        h1, c1 = _cell(g1, c1)

        # Decoder cell 2: split K=64 matmuls.
        g2 = (jnp.dot(h1, d2_wx_ref[...], preferred_element_type=f32)
              + jnp.dot(h2, d2_wh_ref[...], preferred_element_type=f32)
              + d2_b)
        h2, c2 = _cell(g2, c2)

        # Classifier (vocab padded to 32 lanes; pad columns biased to -1e30).
        pred = jnp.dot(h2, cls_w_ref[...], preferred_element_type=f32) + cls_b
        preds.append(pred)

        if t + 1 < T:   # feedback after the last step is unused
            # torch.max(..., dim=-1).indices -> FIRST index of the maximum.
            maxv = jnp.max(pred, axis=-1, keepdims=True)
            first_idx = jnp.min(jnp.where(pred == maxv, col_iota, VP),
                                axis=-1, keepdims=True)           # (Bp, 1)
            hit = jnp.logical_and(col_iota == first_idx, row_valid)
            # Reference does `let[:, max_lets] = 1.0`: union over (real) batch
            # rows, identical for every row -> carry a single (1, VP) row.
            let_row = jnp.max(jnp.where(hit, 1.0, 0.0).astype(f32),
                              axis=0, keepdims=True)
            let_proj = (jnp.dot(let_row, d1_wih_ref[...],
                                preferred_element_type=f32) + d1_b)

    # Lane-dense single-shot output store: one unmasked (Bp, T*VP) store.
    out_ref[...] = jnp.concatenate(preds, axis=1)


# --------------------------- parameter packing -------------------------------
def pack_params(raw):
    """Convert PyTorch-layout params into the fused / padded kernel layout."""
    (e0_wih, e0_whh, e0_bih, e0_bhh,
     e1_wih, e1_whh, e1_bih, e1_bhh,
     d1_wih, d1_whh, d1_bih, d1_bhh,
     d2_wih, d2_whh, d2_bih, d2_bhh,
     cls_w, cls_b) = raw

    # 0.5 pre-scale on the sigmoid gate sections (i, f, o); g unscaled.
    gate_scale = jnp.concatenate(
        [jnp.full((3 * HID,), 0.5, jnp.float32),
         jnp.ones((HID,), jnp.float32)]).reshape(1, GATES)

    def gate_perm(m):                       # PyTorch [i, f, g, o] -> [i, f, o, g]
        i, f, g, o = jnp.split(m, 4, axis=0)
        return jnp.concatenate([i, f, o, g], axis=0)

    def in_w(wih, pad_to):                  # (4H, in) -> (pad_to, 4H), scaled
        w = gate_perm(wih).T * gate_scale
        return jnp.pad(w, ((0, pad_to - w.shape[0]), (0, 0)))

    def h_w(whh):                           # (4H, H) -> (H, 4H), scaled
        return gate_perm(whh).T * gate_scale

    def bias(bih, bhh):                     # fused bias, (1, 4H), scaled
        return gate_perm(bih + bhh).reshape(1, GATES) * gate_scale

    k_e0_wih = in_w(e0_wih, VPAD)                                   # (32, 256)
    k_e0_b = bias(e0_bih, e0_bhh)
    k_e0_whh = h_w(e0_whh)                                          # (64, 256)

    k_e1_wx = in_w(e1_wih, HID)                                     # (64, 256)
    k_e1_wh = h_w(e1_whh)                                           # (64, 256)
    k_e1_b = bias(e1_bih, e1_bhh)

    k_d1_wih = in_w(d1_wih, VPAD)                                   # (32, 256)
    k_d1_whh = h_w(d1_whh)                                          # (64, 256)
    k_d1_b = bias(d1_bih, d1_bhh)
    # t=0 decoder feedback is the SOS one-hot -> projection is just row SOS.
    k_d1_sos = k_d1_wih[SOS:SOS + 1, :] + k_d1_b                    # (1, 256)

    k_d2_wx = in_w(d2_wih, HID)                                     # (64, 256)
    k_d2_wh = h_w(d2_whh)                                           # (64, 256)
    k_d2_b = bias(d2_bih, d2_bhh)

    k_cls_w = jnp.pad(cls_w.T, ((0, 0), (0, VPAD - IN_DIM)))        # (64, 32)
    k_cls_b = jnp.concatenate(
        [cls_b, jnp.full((VPAD - IN_DIM,), -1e30, jnp.float32)]).reshape(1, VPAD)

    return (k_e0_wih, k_e0_b, k_e0_whh,
            k_e1_wx, k_e1_wh, k_e1_b,
            k_d1_wih, k_d1_whh, k_d1_b, k_d1_sos,
            k_d2_wx, k_d2_wh, k_d2_b,
            k_cls_w, k_cls_b)


def seq2seq_forward(x, raw_params):
    T, B, _ = x.shape
    Bp = ((B + 7) // 8) * 8                 # pad batch to the f32 sublane tile
    kp = pack_params(raw_params)

    x_pad = jnp.zeros((T, Bp, VPAD), jnp.float32).at[:, :B, :IN_DIM].set(x)
    x2d = x_pad.reshape(T * Bp, VPAD)

    vmem = pl.BlockSpec(memory_space=pltpu.MemorySpace.VMEM)
    out = pl.pallas_call(
        functools.partial(seq2seq_kernel, b_real=B, seq_len=T),
        out_shape=jax.ShapeDtypeStruct((Bp, T * VPAD), jnp.float32),
        in_specs=[vmem] * (1 + len(kp)),
        out_specs=vmem,
        scratch_shapes=[pltpu.VMEM((T * Bp, GATES), jnp.float32)],
    )(x2d, *kp)
    # (Bp, T*VP) lane-dense slab -> (T, B, IN_DIM)
    return out.reshape(Bp, T, VPAD).transpose(1, 0, 2)[:, :B, :IN_DIM]


# --------------------------- raw params + reference --------------------------
def init_raw_params(key):
    """PyTorch-layout params, default init U(-1/sqrt(H), 1/sqrt(H))."""
    k = 1.0 / (HID ** 0.5)
    keys = iter(jax.random.split(key, 24))

    def uni(shape):
        return jax.random.uniform(next(keys), shape, jnp.float32, -k, k)

    def lstm(in_dim):
        return (uni((4 * HID, in_dim)), uni((4 * HID, HID)),
                uni((4 * HID,)), uni((4 * HID,)))

    e0 = lstm(IN_DIM)
    e1 = lstm(HID)
    d1 = lstm(IN_DIM)
    d2 = lstm(HID)
    cls_w = uni((IN_DIM, HID))
    cls_b = uni((IN_DIM,))
    return e0 + e1 + d1 + d2 + (cls_w, cls_b)


def seq2seq_ref(x, raw):
    """Pure-JAX reference with PyTorch semantics (gate order [i, f, g, o])."""
    (e0_wih, e0_whh, e0_bih, e0_bhh,
     e1_wih, e1_whh, e1_bih, e1_bhh,
     d1_wih, d1_whh, d1_bih, d1_bhh,
     d2_wih, d2_whh, d2_bih, d2_bhh,
     cls_w, cls_b) = raw
    T, B, _ = x.shape

    def step(xv, h, c, wih, whh, bih, bhh):
        g = xv @ wih.T + bih + h @ whh.T + bhh
        i = jax.nn.sigmoid(g[:, :HID])
        f = jax.nn.sigmoid(g[:, HID:2 * HID])
        gg = jnp.tanh(g[:, 2 * HID:3 * HID])
        o = jax.nn.sigmoid(g[:, 3 * HID:])
        c = f * c + i * gg
        return o * jnp.tanh(c), c

    h0 = c0 = h1 = c1 = jnp.zeros((B, HID), jnp.float32)
    for t in range(T):
        h0, c0 = step(x[t], h0, c0, e0_wih, e0_whh, e0_bih, e0_bhh)
        h1, c1 = step(h0, h1, c1, e1_wih, e1_whh, e1_bih, e1_bhh)

    h2 = c2 = jnp.zeros((B, HID), jnp.float32)
    let = jnp.zeros((B, IN_DIM), jnp.float32).at[:, SOS].set(1.0)
    outs = []
    for _ in range(T):
        h1, c1 = step(let, h1, c1, d1_wih, d1_whh, d1_bih, d1_bhh)
        h2, c2 = step(h1, h2, c2, d2_wih, d2_whh, d2_bih, d2_bhh)
        pred = h2 @ cls_w.T + cls_b
        outs.append(pred)
        idx = jnp.argmax(pred, axis=-1)
        cols = jnp.max(jax.nn.one_hot(idx, IN_DIM, dtype=jnp.float32),
                       axis=0, keepdims=True)
        let = jnp.broadcast_to(cols, (B, IN_DIM))
    return jnp.stack(outs, axis=0)


if __name__ == "__main__":
    T, B = 8, 2
    x = jax.random.normal(jax.random.PRNGKey(0), (T, B, IN_DIM), jnp.float32)
    raw = init_raw_params(jax.random.PRNGKey(42))

    out = jax.block_until_ready(seq2seq_forward(x, raw))
    assert out.shape == (T, B, IN_DIM), out.shape
    assert bool(jnp.all(jnp.isfinite(out)))

    ref = jax.block_until_ready(seq2seq_ref(x, raw))
    max_err = float(jnp.max(jnp.abs(out - ref)))
    assert bool(jnp.allclose(out, ref, atol=1e-3, rtol=1e-3)), max_err

    print("KERNEL_OK")
</pallas_src>

<mosaic_0001>
module attributes {stable_mosaic.version = 11 : i64} {
  func.func @seq2seq_kernel(%arg0: memref<64x32xf32, #tpu.memory_space<vmem>>, %arg1: memref<32x256xf32, #tpu.memory_space<vmem>>, %arg2: memref<1x256xf32, #tpu.memory_space<vmem>>, %arg3: memref<64x256xf32, #tpu.memory_space<vmem>>, %arg4: memref<64x256xf32, #tpu.memory_space<vmem>>, %arg5: memref<64x256xf32, #tpu.memory_space<vmem>>, %arg6: memref<1x256xf32, #tpu.memory_space<vmem>>, %arg7: memref<32x256xf32, #tpu.memory_space<vmem>>, %arg8: memref<64x256xf32, #tpu.memory_space<vmem>>, %arg9: memref<1x256xf32, #tpu.memory_space<vmem>>, %arg10: memref<1x256xf32, #tpu.memory_space<vmem>>, %arg11: memref<64x256xf32, #tpu.memory_space<vmem>>, %arg12: memref<64x256xf32, #tpu.memory_space<vmem>>, %arg13: memref<1x256xf32, #tpu.memory_space<vmem>>, %arg14: memref<64x32xf32, #tpu.memory_space<vmem>>, %arg15: memref<1x32xf32, #tpu.memory_space<vmem>>, %arg16: memref<8x256xf32, #tpu.memory_space<vmem>>, %arg17: memref<64x256xf32, #tpu.memory_space<vmem>>) attributes {dimension_semantics = [], scalar_prefetch = 0 : i64, scratch_operands = 1 : i64, tpu.core_type = #tpu.core_type<tc>} {
    %c0 = arith.constant 0 : index
    %c0_0 = arith.constant 0 : index
    %0 = vector.load %arg0[%c0, %c0_0] : memref<64x32xf32, #tpu.memory_space<vmem>>, vector<64x32xf32>
    %c0_1 = arith.constant 0 : index
    %c0_2 = arith.constant 0 : index
    %1 = vector.load %arg1[%c0_1, %c0_2] : memref<32x256xf32, #tpu.memory_space<vmem>>, vector<32x256xf32>
    %cst = arith.constant dense<0.000000e+00> : vector<64x256xf32>
    %2 = tpu.matmul %0, %1, %cst {dimension_numbers = #tpu.dot_dimension_numbers<[1], [0], [0], [1], [0, 0, 1, 1], [], []>} : vector<64x32xf32>, vector<32x256xf32>, vector<64x256xf32> -> vector<64x256xf32>
    %c0_3 = arith.constant 0 : index
    %c0_4 = arith.constant 0 : index
    %3 = vector.load %arg2[%c0_3, %c0_4] : memref<1x256xf32, #tpu.memory_space<vmem>>, vector<1x256xf32>
    %4 = vector.broadcast %3 : vector<1x256xf32> to vector<64x256xf32>
    %5 = arith.addf %2, %4 : vector<64x256xf32>
    %c0_5 = arith.constant 0 : index
    %c0_6 = arith.constant 0 : index
    %6 = vector.load %arg17[%c0_5, %c0_6] : memref<64x256xf32, #tpu.memory_space<vmem>>, vector<64x256xf32>
    tpu.vector_store %arg17[%c0_5, %c0_6], %5 {strides = array<i32>} : memref<64x256xf32, #tpu.memory_space<vmem>>, vector<64x256xf32>,
    %c0_7 = arith.constant 0 : index
    %c0_8 = arith.constant 0 : index
    %7 = vector.load %arg6[%c0_7, %c0_8] : memref<1x256xf32, #tpu.memory_space<vmem>>, vector<1x256xf32>
    %8 = vector.shape_cast %7 : vector<1x256xf32> to vector<1x256xf32>
    %9 = vector.broadcast %8 : vector<1x256xf32> to vector<8x256xf32>
    %c0_9 = arith.constant 0 : index
    %c0_10 = arith.constant 0 : index
    %10 = vector.load %arg13[%c0_9, %c0_10] : memref<1x256xf32, #tpu.memory_space<vmem>>, vector<1x256xf32>
    %11 = vector.shape_cast %10 : vector<1x256xf32> to vector<1x256xf32>
    %12 = vector.broadcast %11 : vector<1x256xf32> to vector<8x256xf32>
    %c0_11 = arith.constant 0 : index
    %c0_12 = arith.constant 0 : index
    %13 = vector.load %arg15[%c0_11, %c0_12] : memref<1x32xf32, #tpu.memory_space<vmem>>, vector<1x32xf32>
    %14 = vector.shape_cast %13 : vector<1x32xf32> to vector<1x32xf32>
    %15 = vector.broadcast %14 : vector<1x32xf32> to vector<8x32xf32>
    %c0_13 = arith.constant 0 : index
    %c0_14 = arith.constant 0 : index
    %16 = vector.load %arg9[%c0_13, %c0_14] : memref<1x256xf32, #tpu.memory_space<vmem>>, vector<1x256xf32>
    %cst_15 = arith.constant 0.000000e+00 : f32
    %17 = vector.broadcast %cst_15 : f32 to vector<8x64xf32>
    %c0_16 = arith.constant 0 : index
    %c0_17 = arith.constant 0 : index
    %18 = vector.load %arg17[%c0_16, %c0_17] : memref<64x256xf32, #tpu.memory_space<vmem>>, vector<8x256xf32>
    %c0_18 = arith.constant 0 : index
    %c0_19 = arith.constant 0 : index
    %19 = vector.load %arg3[%c0_18, %c0_19] : memref<64x256xf32, #tpu.memory_space<vmem>>, vector<64x256xf32>
    %cst_20 = arith.constant dense<0.000000e+00> : vector<8x256xf32>
    %20 = tpu.matmul %17, %19, %cst_20 {dimension_numbers = #tpu.dot_dimension_numbers<[1], [0], [0], [1], [0, 0, 1, 1], [], []>} : vector<8x64xf32>, vector<64x256xf32>, vector<8x256xf32> -> vector<8x256xf32>
    %21 = arith.addf %18, %20 : vector<8x256xf32>
    %22 = math.tanh %21 : vector<8x256xf32>
    %23 = vector.extract_strided_slice %22 {offsets = [0, 0], sizes = [8, 192], strides = [1, 1]} : vector<8x256xf32> to vector<8x192xf32>
    %cst_21 = arith.constant 5.000000e-01 : f32
    %24 = vector.broadcast %cst_21 : f32 to vector<8x192xf32>
    %25 = arith.mulf %24, %23 : vector<8x192xf32>
    %cst_22 = arith.constant 5.000000e-01 : f32
    %26 = vector.broadcast %cst_22 : f32 to vector<8x192xf32>
    %27 = arith.addf %25, %26 : vector<8x192xf32>
    %28 = vector.extract_strided_slice %27 {offsets = [0, 0], sizes = [8, 64], strides = [1, 1]} : vector<8x192xf32> to vector<8x64xf32>
    %29 = vector.extract_strided_slice %27 {offsets = [0, 64], sizes = [8, 64], strides = [1, 1]} : vector<8x192xf32> to vector<8x64xf32>
    %30 = vector.extract_strided_slice %27 {offsets = [0, 128], sizes = [8, 64], strides = [1, 1]} : vector<8x192xf32> to vector<8x64xf32>
    %31 = vector.extract_strided_slice %22 {offsets = [0, 192], sizes = [8, 64], strides = [1, 1]} : vector<8x256xf32> to vector<8x64xf32>
    %32 = arith.mulf %29, %17 : vector<8x64xf32>
    %33 = arith.mulf %28, %31 : vector<8x64xf32>
    %34 = arith.addf %32, %33 : vector<8x64xf32>
    %35 = math.tanh %34 : vector<8x64xf32>
    %36 = arith.mulf %30, %35 : vector<8x64xf32>
    %c0_23 = arith.constant 0 : index
    %c0_24 = arith.constant 0 : index
    %37 = vector.load %arg4[%c0_23, %c0_24] : memref<64x256xf32, #tpu.memory_space<vmem>>, vector<64x256xf32>
    %cst_25 = arith.constant dense<0.000000e+00> : vector<8x256xf32>
    %38 = tpu.matmul %36, %37, %cst_25 {dimension_numbers = #tpu.dot_dimension_numbers<[1], [0], [0], [1], [0, 0, 1, 1], [], []>} : vector<8x64xf32>, vector<64x256xf32>, vector<8x256xf32> -> vector<8x256xf32>
    %c0_26 = arith.constant 0 : index
    %c0_27 = arith.constant 0 : index
    %39 = vector.load %arg5[%c0_26, %c0_27] : memref<64x256xf32, #tpu.memory_space<vmem>>, vector<64x256xf32>
    %cst_28 = arith.constant dense<0.000000e+00> : vector<8x256xf32>
    %40 = tpu.matmul %17, %39, %cst_28 {dimension_numbers = #tpu.dot_dimension_numbers<[1], [0], [0], [1], [0, 0, 1, 1], [], []>} : vector<8x64xf32>, vector<64x256xf32>, vector<8x256xf32> -> vector<8x256xf32>
    %41 = arith.addf %38, %40 : vector<8x256xf32>
    %42 = arith.addf %41, %9 : vector<8x256xf32>
    %43 = math.tanh %42 : vector<8x256xf32>
    %44 = vector.extract_strided_slice %43 {offsets = [0, 0], sizes = [8, 192], strides = [1, 1]} : vector<8x256xf32> to vector<8x192xf32>
    %cst_29 = arith.constant 5.000000e-01 : f32
    %45 = vector.broadcast %cst_29 : f32 to vector<8x192xf32>
    %46 = arith.mulf %45, %44 : vector<8x192xf32>
    %cst_30 = arith.constant 5.000000e-01 : f32
    %47 = vector.broadcast %cst_30 : f32 to vector<8x192xf32>
    %48 = arith.addf %46, %47 : vector<8x192xf32>
    %49 = vector.extract_strided_slice %48 {offsets = [0, 0], sizes = [8, 64], strides = [1, 1]} : vector<8x192xf32> to vector<8x64xf32>
    %50 = vector.extract_strided_slice %48 {offsets = [0, 64], sizes = [8, 64], strides = [1, 1]} : vector<8x192xf32> to vector<8x64xf32>
    %51 = vector.extract_strided_slice %48 {offsets = [0, 128], sizes = [8, 64], strides = [1, 1]} : vector<8x192xf32> to vector<8x64xf32>
    %52 = vector.extract_strided_slice %43 {offsets = [0, 192], sizes = [8, 64], strides = [1, 1]} : vector<8x256xf32> to vector<8x64xf32>
    %53 = arith.mulf %50, %17 : vector<8x64xf32>
    %54 = arith.mulf %49, %52 : vector<8x64xf32>
    %55 = arith.addf %53, %54 : vector<8x64xf32>
    %56 = math.tanh %55 : vector<8x64xf32>
    %57 = arith.mulf %51, %56 : vector<8x64xf32>
    %c8 = arith.constant 8 : index
    %c0_31 = arith.constant 0 : index
    %58 = vector.load %arg17[%c8, %c0_31] : memref<64x256xf32, #tpu.memory_space<vmem>>, vector<8x256xf32>
    %c0_32 = arith.constant 0 : index
    %c0_33 = arith.constant 0 : index
    %59 = vector.load %arg3[%c0_32, %c0_33] : memref<64x256xf32, #tpu.memory_space<vmem>>, vector<64x256xf32>
    %cst_34 = arith.constant dense<0.000000e+00> : vector<8x256xf32>
    %60 = tpu.matmul %36, %59, %cst_34 {dimension_numbers = #tpu.dot_dimension_numbers<[1], [0], [0], [1], [0, 0, 1, 1], [], []>} : vector<8x64xf32>, vector<64x256xf32>, vector<8x256xf32> -> vector<8x256xf32>
    %61 = arith.addf %58, %60 : vector<8x256xf32>
    %62 = math.tanh %61 : vector<8x256xf32>
    %63 = vector.extract_strided_slice %62 {offsets = [0, 0], sizes = [8, 192], strides = [1, 1]} : vector<8x256xf32> to vector<8x192xf32>
    %cst_35 = arith.constant 5.000000e-01 : f32
    %64 = vector.broadcast %cst_35 : f32 to vector<8x192xf32>
    %65 = arith.mulf %64, %63 : vector<8x192xf32>
    %cst_36 = arith.constant 5.000000e-01 : f32
    %66 = vector.broadcast %cst_36 : f32 to vector<8x192xf32>
    %67 = arith.addf %65, %66 : vector<8x192xf32>
    %68 = vector.extract_strided_slice %67 {offsets = [0, 0], sizes = [8, 64], strides = [1, 1]} : vector<8x192xf32> to vector<8x64xf32>
    %69 = vector.extract_strided_slice %67 {offsets = [0, 64], sizes = [8, 64], strides = [1, 1]} : vector<8x192xf32> to vector<8x64xf32>
    %70 = vector.extract_strided_slice %67 {offsets = [0, 128], sizes = [8, 64], strides = [1, 1]} : vector<8x192xf32> to vector<8x64xf32>
    %71 = vector.extract_strided_slice %62 {offsets = [0, 192], sizes = [8, 64], strides = [1, 1]} : vector<8x256xf32> to vector<8x64xf32>
    %72 = arith.mulf %69, %34 : vector<8x64xf32>
    %73 = arith.mulf %68, %71 : vector<8x64xf32>
    %74 = arith.addf %72, %73 : vector<8x64xf32>
    %75 = math.tanh %74 : vector<8x64xf32>
    %76 = arith.mulf %70, %75 : vector<8x64xf32>
    %c0_37 = arith.constant 0 : index
    %c0_38 = arith.constant 0 : index
    %77 = vector.load %arg4[%c0_37, %c0_38] : memref<64x256xf32, #tpu.memory_space<vmem>>, vector<64x256xf32>
    %cst_39 = arith.constant dense<0.000000e+00> : vector<8x256xf32>
    %78 = tpu.matmul %76, %77, %cst_39 {dimension_numbers = #tpu.dot_dimension_numbers<[1], [0], [0], [1], [0, 0, 1, 1], [], []>} : vector<8x64xf32>, vector<64x256xf32>, vector<8x256xf32> -> vector<8x256xf32>
    %c0_40 = arith.constant 0 : index
    %c0_41 = arith.constant 0 : index
    %79 = vector.load %arg5[%c0_40, %c0_41] : memref<64x256xf32, #tpu.memory_space<vmem>>, vector<64x256xf32>
    %cst_42 = arith.constant dense<0.000000e+00> : vector<8x256xf32>
    %80 = tpu.matmul %57, %79, %cst_42 {dimension_numbers = #tpu.dot_dimension_numbers<[1], [0], [0], [1], [0, 0, 1, 1], [], []>} : vector<8x64xf32>, vector<64x256xf32>, vector<8x256xf32> -> vector<8x256xf32>
    %81 = arith.addf %78, %80 : vector<8x256xf32>
    %82 = arith.addf %81, %9 : vector<8x256xf32>
    %83 = math.tanh %82 : vector<8x256xf32>
    %84 = vector.extract_strided_slice %83 {offsets = [0, 0], sizes = [8, 192], strides = [1, 1]} : vector<8x256xf32> to vector<8x192xf32>
    %cst_43 = arith.constant 5.000000e-01 : f32
    %85 = vector.broadcast %cst_43 : f32 to vector<8x192xf32>
    %86 = arith.mulf %85, %84 : vector<8x192xf32>
    %cst_44 = arith.constant 5.000000e-01 : f32
    %87 = vector.broadcast %cst_44 : f32 to vector<8x192xf32>
    %88 = arith.addf %86, %87 : vector<8x192xf32>
    %89 = vector.extract_strided_slice %88 {offsets = [0, 0], sizes = [8, 64], strides = [1, 1]} : vector<8x192xf32> to vector<8x64xf32>
    %90 = vector.extract_strided_slice %88 {offsets = [0, 64], sizes = [8, 64], strides = [1, 1]} : vector<8x192xf32> to vector<8x64xf32>
    %91 = vector.extract_strided_slice %88 {offsets = [0, 128], sizes = [8, 64], strides = [1, 1]} : vector<8x192xf32> to vector<8x64xf32>
    %92 = vector.extract_strided_slice %83 {offsets = [0, 192], sizes = [8, 64], strides = [1, 1]} : vector<8x256xf32> to vector<8x64xf32>
    %93 = arith.mulf %90, %55 : vector<8x64xf32>
    %94 = arith.mulf %89, %92 : vector<8x64xf32>
    %95 = arith.addf %93, %94 : vector<8x64xf32>
    %96 = math.tanh %95 : vector<8x64xf32>
    %97 = arith.mulf %91, %96 : vector<8x64xf32>
    %c16 = arith.constant 16 : index
    %c0_45 = arith.constant 0 : index
    %98 = vector.load %arg17[%c16, %c0_45] : memref<64x256xf32, #tpu.memory_space<vmem>>, vector<8x256xf32>
    %c0_46 = arith.constant 0 : index
    %c0_47 = arith.constant 0 : index
    %99 = vector.load %arg3[%c0_46, %c0_47] : memref<64x256xf32, #tpu.memory_space<vmem>>, vector<64x256xf32>
    %cst_48 = arith.constant dense<0.000000e+00> : vector<8x256xf32>
    %100 = tpu.matmul %76, %99, %cst_48 {dimension_numbers = #tpu.dot_dimension_numbers<[1], [0], [0], [1], [0, 0, 1, 1], [], []>} : vector<8x64xf32>, vector<64x256xf32>, vector<8x256xf32> -> vector<8x256xf32>
    %101 = arith.addf %98, %100 : vector<8x256xf32>
    %102 = math.tanh %101 : vector<8x256xf32>
    %103 = vector.extract_strided_slice %102 {offsets = [0, 0], sizes = [8, 192], strides = [1, 1]} : vector<8x256xf32> to vector<8x192xf32>
    %cst_49 = arith.constant 5.000000e-01 : f32
    %104 = vector.broadcast %cst_49 : f32 to vector<8x192xf32>
    %105 = arith.mulf %104, %103 : vector<8x192xf32>
    %cst_50 = arith.constant 5.000000e-01 : f32
    %106 = vector.broadcast %cst_50 : f32 to vector<8x192xf32>
    %107 = arith.addf %105, %106 : vector<8x192xf32>
    %108 = vector.extract_strided_slice %107 {offsets = [0, 0], sizes = [8, 64], strides = [1, 1]} : vector<8x192xf32> to vector<8x64xf32>
    %109 = vector.extract_strided_slice %107 {offsets = [0, 64], sizes = [8, 64], strides = [1, 1]} : vector<8x192xf32> to vector<8x64xf32>
    %110 = vector.extract_strided_slice %107 {offsets = [0, 128], sizes = [8, 64], strides = [1, 1]} : vector<8x192xf32> to vector<8x64xf32>
    %111 = vector.extract_strided_slice %102 {offsets = [0, 192], sizes = [8, 64], strides = [1, 1]} : vector<8x256xf32> to vector<8x64xf32>
    %112 = arith.mulf %109, %74 : vector<8x64xf32>
    %113 = arith.mulf %108, %111 : vector<8x64xf32>
    %114 = arith.addf %112, %113 : vector<8x64xf32>
    %115 = math.tanh %114 : vector<8x64xf32>
    %116 = arith.mulf %110, %115 : vector<8x64xf32>
    %c0_51 = arith.constant 0 : index
    %c0_52 = arith.constant 0 : index
    %117 = vector.load %arg4[%c0_51, %c0_52] : memref<64x256xf32, #tpu.memory_space<vmem>>, vector<64x256xf32>
    %cst_53 = arith.constant dense<0.000000e+00> : vector<8x256xf32>
    %118 = tpu.matmul %116, %117, %cst_53 {dimension_numbers = #tpu.dot_dimension_numbers<[1], [0], [0], [1], [0, 0, 1, 1], [], []>} : vector<8x64xf32>, vector<64x256xf32>, vector<8x256xf32> -> vector<8x256xf32>
    %c0_54 = arith.constant 0 : index
    %c0_55 = arith.constant 0 : index
    %119 = vector.load %arg5[%c0_54, %c0_55] : memref<64x256xf32, #tpu.memory_space<vmem>>, vector<64x256xf32>
    %cst_56 = arith.constant dense<0.000000e+00> : vector<8x256xf32>
    %120 = tpu.matmul %97, %119, %cst_56 {dimension_numbers = #tpu.dot_dimension_numbers<[1], [0], [0], [1], [0, 0, 1, 1], [], []>} : vector<8x64xf32>, vector<64x256xf32>, vector<8x256xf32> -> vector<8x256xf32>
    %121 = arith.addf %118, %120 : vector<8x256xf32>
    %122 = arith.addf %121, %9 : vector<8x256xf32>
    %123 = math.tanh %122 : vector<8x256xf32>
    %124 = vector.extract_strided_slice %123 {offsets = [0, 0], sizes = [8, 192], strides = [1, 1]} : vector<8x256xf32> to vector<8x192xf32>
    %cst_57 = arith.constant 5.000000e-01 : f32
    %125 = vector.broadcast %cst_57 : f32 to vector<8x192xf32>
    %126 = arith.mulf %125, %124 : vector<8x192xf32>
    %cst_58 = arith.constant 5.000000e-01 : f32
    %127 = vector.broadcast %cst_58 : f32 to vector<8x192xf32>
    %128 = arith.addf %126, %127 : vector<8x192xf32>
    %129 = vector.extract_strided_slice %128 {offsets = [0, 0], sizes = [8, 64], strides = [1, 1]} : vector<8x192xf32> to vector<8x64xf32>
    %130 = vector.extract_strided_slice %128 {offsets = [0, 64], sizes = [8, 64], strides = [1, 1]} : vector<8x192xf32> to vector<8x64xf32>
    %131 = vector.extract_strided_slice %128 {offsets = [0, 128], sizes = [8, 64], strides = [1, 1]} : vector<8x192xf32> to vector<8x64xf32>
    %132 = vector.extract_strided_slice %123 {offsets = [0, 192], sizes = [8, 64], strides = [1, 1]} : vector<8x256xf32> to vector<8x64xf32>
    %133 = arith.mulf %130, %95 : vector<8x64xf32>
    %134 = arith.mulf %129, %132 : vector<8x64xf32>
    %135 = arith.addf %133, %134 : vector<8x64xf32>
    %136 = math.tanh %135 : vector<8x64xf32>
    %137 = arith.mulf %131, %136 : vector<8x64xf32>
    %c24 = arith.constant 24 : index
    %c0_59 = arith.constant 0 : index
    %138 = vector.load %arg17[%c24, %c0_59] : memref<64x256xf32, #tpu.memory_space<vmem>>, vector<8x256xf32>
    %c0_60 = arith.constant 0 : index
    %c0_61 = arith.constant 0 : index
    %139 = vector.load %arg3[%c0_60, %c0_61] : memref<64x256xf32, #tpu.memory_space<vmem>>, vector<64x256xf32>
    %cst_62 = arith.constant dense<0.000000e+00> : vector<8x256xf32>
    %140 = tpu.matmul %116, %139, %cst_62 {dimension_numbers = #tpu.dot_dimension_numbers<[1], [0], [0], [1], [0, 0, 1, 1], [], []>} : vector<8x64xf32>, vector<64x256xf32>, vector<8x256xf32> -> vector<8x256xf32>
    %141 = arith.addf %138, %140 : vector<8x256xf32>
    %142 = math.tanh %141 : vector<8x256xf32>
    %143 = vector.extract_strided_slice %142 {offsets = [0, 0], sizes = [8, 192], strides = [1, 1]} : vector<8x256xf32> to vector<8x192xf32>
    %cst_63 = arith.constant 5.000000e-01 : f32
    %144 = vector.broadcast %cst_63 : f32 to vector<8x192xf32>
    %145 = arith.mulf %144, %143 : vector<8x192xf32>
    %cst_64 = arith.constant 5.000000e-01 : f32
    %146 = vector.broadcast %cst_64 : f32 to vector<8x192xf32>
    %147 = arith.addf %145, %146 : vector<8x192xf32>
    %148 = vector.extract_strided_slice %147 {offsets = [0, 0], sizes = [8, 64], strides = [1, 1]} : vector<8x192xf32> to vector<8x64xf32>
    %149 = vector.extract_strided_slice %147 {offsets = [0, 64], sizes = [8, 64], strides = [1, 1]} : vector<8x192xf32> to vector<8x64xf32>
    %150 = vector.extract_strided_slice %147 {offsets = [0, 128], sizes = [8, 64], strides = [1, 1]} : vector<8x192xf32> to vector<8x64xf32>
    %151 = vector.extract_strided_slice %142 {offsets = [0, 192], sizes = [8, 64], strides = [1, 1]} : vector<8x256xf32> to vector<8x64xf32>
    %152 = arith.mulf %149, %114 : vector<8x64xf32>
    %153 = arith.mulf %148, %151 : vector<8x64xf32>
    %154 = arith.addf %152, %153 : vector<8x64xf32>
    %155 = math.tanh %154 : vector<8x64xf32>
    %156 = arith.mulf %150, %155 : vector<8x64xf32>
    %c0_65 = arith.constant 0 : index
    %c0_66 = arith.constant 0 : index
    %157 = vector.load %arg4[%c0_65, %c0_66] : memref<64x256xf32, #tpu.memory_space<vmem>>, vector<64x256xf32>
    %cst_67 = arith.constant dense<0.000000e+00> : vector<8x256xf32>
    %158 = tpu.matmul %156, %157, %cst_67 {dimension_numbers = #tpu.dot_dimension_numbers<[1], [0], [0], [1], [0, 0, 1, 1], [], []>} : vector<8x64xf32>, vector<64x256xf32>, vector<8x256xf32> -> vector<8x256xf32>
    %c0_68 = arith.constant 0 : index
    %c0_69 = arith.constant 0 : index
    %159 = vector.load %arg5[%c0_68, %c0_69] : memref<64x256xf32, #tpu.memory_space<vmem>>, vector<64x256xf32>
    %cst_70 = arith.constant dense<0.000000e+00> : vector<8x256xf32>
    %160 = tpu.matmul %137, %159, %cst_70 {dimension_numbers = #tpu.dot_dimension_numbers<[1], [0], [0], [1], [0, 0, 1, 1], [], []>} : vector<8x64xf32>, vector<64x256xf32>, vector<8x256xf32> -> vector<8x256xf32>
    %161 = arith.addf %158, %160 : vector<8x256xf32>
    %162 = arith.addf %161, %9 : vector<8x256xf32>
    %163 = math.tanh %162 : vector<8x256xf32>
    %164 = vector.extract_strided_slice %163 {offsets = [0, 0], sizes = [8, 192], strides = [1, 1]} : vector<8x256xf32> to vector<8x192xf32>
    %cst_71 = arith.constant 5.000000e-01 : f32
    %165 = vector.broadcast %cst_71 : f32 to vector<8x192xf32>
    %166 = arith.mulf %165, %164 : vector<8x192xf32>
    %cst_72 = arith.constant 5.000000e-01 : f32
    %167 = vector.broadcast %cst_72 : f32 to vector<8x192xf32>
    %168 = arith.addf %166, %167 : vector<8x192xf32>
    %169 = vector.extract_strided_slice %168 {offsets = [0, 0], sizes = [8, 64], strides = [1, 1]} : vector<8x192xf32> to vector<8x64xf32>
    %170 = vector.extract_strided_slice %168 {offsets = [0, 64], sizes = [8, 64], strides = [1, 1]} : vector<8x192xf32> to vector<8x64xf32>
    %171 = vector.extract_strided_slice %168 {offsets = [0, 128], sizes = [8, 64], strides = [1, 1]} : vector<8x192xf32> to vector<8x64xf32>
    %172 = vector.extract_strided_slice %163 {offsets = [0, 192], sizes = [8, 64], strides = [1, 1]} : vector<8x256xf32> to vector<8x64xf32>
    %173 = arith.mulf %170, %135 : vector<8x64xf32>
    %174 = arith.mulf %169, %172 : vector<8x64xf32>
    %175 = arith.addf %173, %174 : vector<8x64xf32>
    %176 = math.tanh %175 : vector<8x64xf32>
    %177 = arith.mulf %171, %176 : vector<8x64xf32>
    %c32 = arith.constant 32 : index
    %c0_73 = arith.constant 0 : index
    %178 = vector.load %arg17[%c32, %c0_73] : memref<64x256xf32, #tpu.memory_space<vmem>>, vector<8x256xf32>
    %c0_74 = arith.constant 0 : index
    %c0_75 = arith.constant 0 : index
    %179 = vector.load %arg3[%c0_74, %c0_75] : memref<64x256xf32, #tpu.memory_space<vmem>>, vector<64x256xf32>
    %cst_76 = arith.constant dense<0.000000e+00> : vector<8x256xf32>
    %180 = tpu.matmul %156, %179, %cst_76 {dimension_numbers = #tpu.dot_dimension_numbers<[1], [0], [0], [1], [0, 0, 1, 1], [], []>} : vector<8x64xf32>, vector<64x256xf32>, vector<8x256xf32> -> vector<8x256xf32>
    %181 = arith.addf %178, %180 : vector<8x256xf32>
    %182 = math.tanh %181 : vector<8x256xf32>
    %183 = vector.extract_strided_slice %182 {offsets = [0, 0], sizes = [8, 192], strides = [1, 1]} : vector<8x256xf32> to vector<8x192xf32>
    %cst_77 = arith.constant 5.000000e-01 : f32
    %184 = vector.broadcast %cst_77 : f32 to vector<8x192xf32>
    %185 = arith.mulf %184, %183 : vector<8x192xf32>
    %cst_78 = arith.constant 5.000000e-01 : f32
    %186 = vector.broadcast %cst_78 : f32 to vector<8x192xf32>
    %187 = arith.addf %185, %186 : vector<8x192xf32>
    %188 = vector.extract_strided_slice %187 {offsets = [0, 0], sizes = [8, 64], strides = [1, 1]} : vector<8x192xf32> to vector<8x64xf32>
    %189 = vector.extract_strided_slice %187 {offsets = [0, 64], sizes = [8, 64], strides = [1, 1]} : vector<8x192xf32> to vector<8x64xf32>
    %190 = vector.extract_strided_slice %187 {offsets = [0, 128], sizes = [8, 64], strides = [1, 1]} : vector<8x192xf32> to vector<8x64xf32>
    %191 = vector.extract_strided_slice %182 {offsets = [0, 192], sizes = [8, 64], strides = [1, 1]} : vector<8x256xf32> to vector<8x64xf32>
    %192 = arith.mulf %189, %154 : vector<8x64xf32>
    %193 = arith.mulf %188, %191 : vector<8x64xf32>
    %194 = arith.addf %192, %193 : vector<8x64xf32>
    %195 = math.tanh %194 : vector<8x64xf32>
    %196 = arith.mulf %190, %195 : vector<8x64xf32>
    %c0_79 = arith.constant 0 : index
    %c0_80 = arith.constant 0 : index
    %197 = vector.load %arg4[%c0_79, %c0_80] : memref<64x256xf32, #tpu.memory_space<vmem>>, vector<64x256xf32>
    %cst_81 = arith.constant dense<0.000000e+00> : vector<8x256xf32>
    %198 = tpu.matmul %196, %197, %cst_81 {dimension_numbers = #tpu.dot_dimension_numbers<[1], [0], [0], [1], [0, 0, 1, 1], [], []>} : vector<8x64xf32>, vector<64x256xf32>, vector<8x256xf32> -> vector<8x256xf32>
    %c0_82 = arith.constant 0 : index
    %c0_83 = arith.constant 0 : index
    %199 = vector.load %arg5[%c0_82, %c0_83] : memref<64x256xf32, #tpu.memory_space<vmem>>, vector<64x256xf32>
    %cst_84 = arith.constant dense<0.000000e+00> : vector<8x256xf32>
    %200 = tpu.matmul %177, %199, %cst_84 {dimension_numbers = #tpu.dot_dimension_numbers<[1], [0], [0], [1], [0, 0, 1, 1], [], []>} : vector<8x64xf32>, vector<64x256xf32>, vector<8x256xf32> -> vector<8x256xf32>
    %201 = arith.addf %198, %200 : vector<8x256xf32>
    %202 = arith.addf %201, %9 : vector<8x256xf32>
    %203 = math.tanh %202 : vector<8x256xf32>
    %204 = vector.extract_strided_slice %203 {offsets = [0, 0], sizes = [8, 192], strides = [1, 1]} : vector<8x256xf32> to vector<8x192xf32>
    %cst_85 = arith.constant 5.000000e-01 : f32
    %205 = vector.broadcast %cst_85 : f32 to vector<8x192xf32>
    %206 = arith.mulf %205, %204 : vector<8x192xf32>
    %cst_86 = arith.constant 5.000000e-01 : f32
    %207 = vector.broadcast %cst_86 : f32 to vector<8x192xf32>
    %208 = arith.addf %206, %207 : vector<8x192xf32>
    %209 = vector.extract_strided_slice %208 {offsets = [0, 0], sizes = [8, 64], strides = [1, 1]} : vector<8x192xf32> to vector<8x64xf32>
    %210 = vector.extract_strided_slice %208 {offsets = [0, 64], sizes = [8, 64], strides = [1, 1]} : vector<8x192xf32> to vector<8x64xf32>
    %211 = vector.extract_strided_slice %208 {offsets = [0, 128], sizes = [8, 64], strides = [1, 1]} : vector<8x192xf32> to vector<8x64xf32>
    %212 = vector.extract_strided_slice %203 {offsets = [0, 192], sizes = [8, 64], strides = [1, 1]} : vector<8x256xf32> to vector<8x64xf32>
    %213 = arith.mulf %210, %175 : vector<8x64xf32>
    %214 = arith.mulf %209, %212 : vector<8x64xf32>
    %215 = arith.addf %213, %214 : vector<8x64xf32>
    %216 = math.tanh %215 : vector<8x64xf32>
    %217 = arith.mulf %211, %216 : vector<8x64xf32>
    %c40 = arith.constant 40 : index
    %c0_87 = arith.constant 0 : index
    %218 = vector.load %arg17[%c40, %c0_87] : memref<64x256xf32, #tpu.memory_space<vmem>>, vector<8x256xf32>
    %c0_88 = arith.constant 0 : index
    %c0_89 = arith.constant 0 : index
    %219 = vector.load %arg3[%c0_88, %c0_89] : memref<64x256xf32, #tpu.memory_space<vmem>>, vector<64x256xf32>
    %cst_90 = arith.constant dense<0.000000e+00> : vector<8x256xf32>
    %220 = tpu.matmul %196, %219, %cst_90 {dimension_numbers = #tpu.dot_dimension_numbers<[1], [0], [0], [1], [0, 0, 1, 1], [], []>} : vector<8x64xf32>, vector<64x256xf32>, vector<8x256xf32> -> vector<8x256xf32>
    %221 = arith.addf %218, %220 : vector<8x256xf32>
    %222 = math.tanh %221 : vector<8x256xf32>
    %223 = vector.extract_strided_slice %222 {offsets = [0, 0], sizes = [8, 192], strides = [1, 1]} : vector<8x256xf32> to vector<8x192xf32>
    %cst_91 = arith.constant 5.000000e-01 : f32
    %224 = vector.broadcast %cst_91 : f32 to vector<8x192xf32>
    %225 = arith.mulf %224, %223 : vector<8x192xf32>
    %cst_92 = arith.constant 5.000000e-01 : f32
    %226 = vector.broadcast %cst_92 : f32 to vector<8x192xf32>
    %227 = arith.addf %225, %226 : vector<8x192xf32>
    %228 = vector.extract_strided_slice %227 {offsets = [0, 0], sizes = [8, 64], strides = [1, 1]} : vector<8x192xf32> to vector<8x64xf32>
    %229 = vector.extract_strided_slice %227 {offsets = [0, 64], sizes = [8, 64], strides = [1, 1]} : vector<8x192xf32> to vector<8x64xf32>
    %230 = vector.extract_strided_slice %227 {offsets = [0, 128], sizes = [8, 64], strides = [1, 1]} : vector<8x192xf32> to vector<8x64xf32>
    %231 = vector.extract_strided_slice %222 {offsets = [0, 192], sizes = [8, 64], strides = [1, 1]} : vector<8x256xf32> to vector<8x64xf32>
    %232 = arith.mulf %229, %194 : vector<8x64xf32>
    %233 = arith.mulf %228, %231 : vector<8x64xf32>
    %234 = arith.addf %232, %233 : vector<8x64xf32>
    %235 = math.tanh %234 : vector<8x64xf32>
    %236 = arith.mulf %230, %235 : vector<8x64xf32>
    %c0_93 = arith.constant 0 : index
    %c0_94 = arith.constant 0 : index
    %237 = vector.load %arg4[%c0_93, %c0_94] : memref<64x256xf32, #tpu.memory_space<vmem>>, vector<64x256xf32>
    %cst_95 = arith.constant dense<0.000000e+00> : vector<8x256xf32>
    %238 = tpu.matmul %236, %237, %cst_95 {dimension_numbers = #tpu.dot_dimension_numbers<[1], [0], [0], [1], [0, 0, 1, 1], [], []>} : vector<8x64xf32>, vector<64x256xf32>, vector<8x256xf32> -> vector<8x256xf32>
    %c0_96 = arith.constant 0 : index
    %c0_97 = arith.constant 0 : index
    %239 = vector.load %arg5[%c0_96, %c0_97] : memref<64x256xf32, #tpu.memory_space<vmem>>, vector<64x256xf32>
    %cst_98 = arith.constant dense<0.000000e+00> : vector<8x256xf32>
    %240 = tpu.matmul %217, %239, %cst_98 {dimension_numbers = #tpu.dot_dimension_numbers<[1], [0], [0], [1], [0, 0, 1, 1], [], []>} : vector<8x64xf32>, vector<64x256xf32>, vector<8x256xf32> -> vector<8x256xf32>
    %241 = arith.addf %238, %240 : vector<8x256xf32>
    %242 = arith.addf %241, %9 : vector<8x256xf32>
    %243 = math.tanh %242 : vector<8x256xf32>
    %244 = vector.extract_strided_slice %243 {offsets = [0, 0], sizes = [8, 192], strides = [1, 1]} : vector<8x256xf32> to vector<8x192xf32>
    %cst_99 = arith.constant 5.000000e-01 : f32
    %245 = vector.broadcast %cst_99 : f32 to vector<8x192xf32>
    %246 = arith.mulf %245, %244 : vector<8x192xf32>
    %cst_100 = arith.constant 5.000000e-01 : f32
    %247 = vector.broadcast %cst_100 : f32 to vector<8x192xf32>
    %248 = arith.addf %246, %247 : vector<8x192xf32>
    %249 = vector.extract_strided_slice %248 {offsets = [0, 0], sizes = [8, 64], strides = [1, 1]} : vector<8x192xf32> to vector<8x64xf32>
    %250 = vector.extract_strided_slice %248 {offsets = [0, 64], sizes = [8, 64], strides = [1, 1]} : vector<8x192xf32> to vector<8x64xf32>
    %251 = vector.extract_strided_slice %248 {offsets = [0, 128], sizes = [8, 64], strides = [1, 1]} : vector<8x192xf32> to vector<8x64xf32>
    %252 = vector.extract_strided_slice %243 {offsets = [0, 192], sizes = [8, 64], strides = [1, 1]} : vector<8x256xf32> to vector<8x64xf32>
    %253 = arith.mulf %250, %215 : vector<8x64xf32>
    %254 = arith.mulf %249, %252 : vector<8x64xf32>
    %255 = arith.addf %253, %254 : vector<8x64xf32>
    %256 = math.tanh %255 : vector<8x64xf32>
    %257 = arith.mulf %251, %256 : vector<8x64xf32>
    %c48 = arith.constant 48 : index
    %c0_101 = arith.constant 0 : index
    %258 = vector.load %arg17[%c48, %c0_101] : memref<64x256xf32, #tpu.memory_space<vmem>>, vector<8x256xf32>
    %c0_102 = arith.constant 0 : index
    %c0_103 = arith.constant 0 : index
    %259 = vector.load %arg3[%c0_102, %c0_103] : memref<64x256xf32, #tpu.memory_space<vmem>>, vector<64x256xf32>
    %cst_104 = arith.constant dense<0.000000e+00> : vector<8x256xf32>
    %260 = tpu.matmul %236, %259, %cst_104 {dimension_numbers = #tpu.dot_dimension_numbers<[1], [0], [0], [1], [0, 0, 1, 1], [], []>} : vector<8x64xf32>, vector<64x256xf32>, vector<8x256xf32> -> vector<8x256xf32>
    %261 = arith.addf %258, %260 : vector<8x256xf32>
    %262 = math.tanh %261 : vector<8x256xf32>
    %263 = vector.extract_strided_slice %262 {offsets = [0, 0], sizes = [8, 192], strides = [1, 1]} : vector<8x256xf32> to vector<8x192xf32>
    %cst_105 = arith.constant 5.000000e-01 : f32
    %264 = vector.broadcast %cst_105 : f32 to vector<8x192xf32>
    %265 = arith.mulf %264, %263 : vector<8x192xf32>
    %cst_106 = arith.constant 5.000000e-01 : f32
    %266 = vector.broadcast %cst_106 : f32 to vector<8x192xf32>
    %267 = arith.addf %265, %266 : vector<8x192xf32>
    %268 = vector.extract_strided_slice %267 {offsets = [0, 0], sizes = [8, 64], strides = [1, 1]} : vector<8x192xf32> to vector<8x64xf32>
    %269 = vector.extract_strided_slice %267 {offsets = [0, 64], sizes = [8, 64], strides = [1, 1]} : vector<8x192xf32> to vector<8x64xf32>
    %270 = vector.extract_strided_slice %267 {offsets = [0, 128], sizes = [8, 64], strides = [1, 1]} : vector<8x192xf32> to vector<8x64xf32>
    %271 = vector.extract_strided_slice %262 {offsets = [0, 192], sizes = [8, 64], strides = [1, 1]} : vector<8x256xf32> to vector<8x64xf32>
    %272 = arith.mulf %269, %234 : vector<8x64xf32>
    %273 = arith.mulf %268, %271 : vector<8x64xf32>
    %274 = arith.addf %272, %273 : vector<8x64xf32>
    %275 = math.tanh %274 : vector<8x64xf32>
    %276 = arith.mulf %270, %275 : vector<8x64xf32>
    %c0_107 = arith.constant 0 : index
    %c0_108 = arith.constant 0 : index
    %277 = vector.load %arg4[%c0_107, %c0_108] : memref<64x256xf32, #tpu.memory_space<vmem>>, vector<64x256xf32>
    %cst_109 = arith.constant dense<0.000000e+00> : vector<8x256xf32>
    %278 = tpu.matmul %276, %277, %cst_109 {dimension_numbers = #tpu.dot_dimension_numbers<[1], [0], [0], [1], [0, 0, 1, 1], [], []>} : vector<8x64xf32>, vector<64x256xf32>, vector<8x256xf32> -> vector<8x256xf32>
    %c0_110 = arith.constant 0 : index
    %c0_111 = arith.constant 0 : index
    %279 = vector.load %arg5[%c0_110, %c0_111] : memref<64x256xf32, #tpu.memory_space<vmem>>, vector<64x256xf32>
    %cst_112 = arith.constant dense<0.000000e+00> : vector<8x256xf32>
    %280 = tpu.matmul %257, %279, %cst_112 {dimension_numbers = #tpu.dot_dimension_numbers<[1], [0], [0], [1], [0, 0, 1, 1], [], []>} : vector<8x64xf32>, vector<64x256xf32>, vector<8x256xf32> -> vector<8x256xf32>
    %281 = arith.addf %278, %280 : vector<8x256xf32>
    %282 = arith.addf %281, %9 : vector<8x256xf32>
    %283 = math.tanh %282 : vector<8x256xf32>
    %284 = vector.extract_strided_slice %283 {offsets = [0, 0], sizes = [8, 192], strides = [1, 1]} : vector<8x256xf32> to vector<8x192xf32>
    %cst_113 = arith.constant 5.000000e-01 : f32
    %285 = vector.broadcast %cst_113 : f32 to vector<8x192xf32>
    %286 = arith.mulf %285, %284 : vector<8x192xf32>
    %cst_114 = arith.constant 5.000000e-01 : f32
    %287 = vector.broadcast %cst_114 : f32 to vector<8x192xf32>
    %288 = arith.addf %286, %287 : vector<8x192xf32>
    %289 = vector.extract_strided_slice %288 {offsets = [0, 0], sizes = [8, 64], strides = [1, 1]} : vector<8x192xf32> to vector<8x64xf32>
    %290 = vector.extract_strided_slice %288 {offsets = [0, 64], sizes = [8, 64], strides = [1, 1]} : vector<8x192xf32> to vector<8x64xf32>
    %291 = vector.extract_strided_slice %288 {offsets = [0, 128], sizes = [8, 64], strides = [1, 1]} : vector<8x192xf32> to vector<8x64xf32>
    %292 = vector.extract_strided_slice %283 {offsets = [0, 192], sizes = [8, 64], strides = [1, 1]} : vector<8x256xf32> to vector<8x64xf32>
    %293 = arith.mulf %290, %255 : vector<8x64xf32>
    %294 = arith.mulf %289, %292 : vector<8x64xf32>
    %295 = arith.addf %293, %294 : vector<8x64xf32>
    %296 = math.tanh %295 : vector<8x64xf32>
    %297 = arith.mulf %291, %296 : vector<8x64xf32>
    %c56 = arith.constant 56 : index
    %c0_115 = arith.constant 0 : index
    %298 = vector.load %arg17[%c56, %c0_115] : memref<64x256xf32, #tpu.memory_space<vmem>>, vector<8x256xf32>
    %c0_116 = arith.constant 0 : index
    %c0_117 = arith.constant 0 : index
    %299 = vector.load %arg3[%c0_116, %c0_117] : memref<64x256xf32, #tpu.memory_space<vmem>>, vector<64x256xf32>
    %cst_118 = arith.constant dense<0.000000e+00> : vector<8x256xf32>
    %300 = tpu.matmul %276, %299, %cst_118 {dimension_numbers = #tpu.dot_dimension_numbers<[1], [0], [0], [1], [0, 0, 1, 1], [], []>} : vector<8x64xf32>, vector<64x256xf32>, vector<8x256xf32> -> vector<8x256xf32>
    %301 = arith.addf %298, %300 : vector<8x256xf32>
    %302 = math.tanh %301 : vector<8x256xf32>
    %303 = vector.extract_strided_slice %302 {offsets = [0, 0], sizes = [8, 192], strides = [1, 1]} : vector<8x256xf32> to vector<8x192xf32>
    %cst_119 = arith.constant 5.000000e-01 : f32
    %304 = vector.broadcast %cst_119 : f32 to vector<8x192xf32>
    %305 = arith.mulf %304, %303 : vector<8x192xf32>
    %cst_120 = arith.constant 5.000000e-01 : f32
    %306 = vector.broadcast %cst_120 : f32 to vector<8x192xf32>
    %307 = arith.addf %305, %306 : vector<8x192xf32>
    %308 = vector.extract_strided_slice %307 {offsets = [0, 0], sizes = [8, 64], strides = [1, 1]} : vector<8x192xf32> to vector<8x64xf32>
    %309 = vector.extract_strided_slice %307 {offsets = [0, 64], sizes = [8, 64], strides = [1, 1]} : vector<8x192xf32> to vector<8x64xf32>
    %310 = vector.extract_strided_slice %307 {offsets = [0, 128], sizes = [8, 64], strides = [1, 1]} : vector<8x192xf32> to vector<8x64xf32>
    %311 = vector.extract_strided_slice %302 {offsets = [0, 192], sizes = [8, 64], strides = [1, 1]} : vector<8x256xf32> to vector<8x64xf32>
    %312 = arith.mulf %309, %274 : vector<8x64xf32>
    %313 = arith.mulf %308, %311 : vector<8x64xf32>
    %314 = arith.addf %312, %313 : vector<8x64xf32>
    %315 = math.tanh %314 : vector<8x64xf32>
    %316 = arith.mulf %310, %315 : vector<8x64xf32>
    %c0_121 = arith.constant 0 : index
    %c0_122 = arith.constant 0 : index
    %317 = vector.load %arg4[%c0_121, %c0_122] : memref<64x256xf32, #tpu.memory_space<vmem>>, vector<64x256xf32>
    %cst_123 = arith.constant dense<0.000000e+00> : vector<8x256xf32>
    %318 = tpu.matmul %316, %317, %cst_123 {dimension_numbers = #tpu.dot_dimension_numbers<[1], [0], [0], [1], [0, 0, 1, 1], [], []>} : vector<8x64xf32>, vector<64x256xf32>, vector<8x256xf32> -> vector<8x256xf32>
    %c0_124 = arith.constant 0 : index
    %c0_125 = arith.constant 0 : index
    %319 = vector.load %arg5[%c0_124, %c0_125] : memref<64x256xf32, #tpu.memory_space<vmem>>, vector<64x256xf32>
    %cst_126 = arith.constant dense<0.000000e+00> : vector<8x256xf32>
    %320 = tpu.matmul %297, %319, %cst_126 {dimension_numbers = #tpu.dot_dimension_numbers<[1], [0], [0], [1], [0, 0, 1, 1], [], []>} : vector<8x64xf32>, vector<64x256xf32>, vector<8x256xf32> -> vector<8x256xf32>
    %321 = arith.addf %318, %320 : vector<8x256xf32>
    %322 = arith.addf %321, %9 : vector<8x256xf32>
    %323 = math.tanh %322 : vector<8x256xf32>
    %324 = vector.extract_strided_slice %323 {offsets = [0, 0], sizes = [8, 192], strides = [1, 1]} : vector<8x256xf32> to vector<8x192xf32>
    %cst_127 = arith.constant 5.000000e-01 : f32
    %325 = vector.broadcast %cst_127 : f32 to vector<8x192xf32>
    %326 = arith.mulf %325, %324 : vector<8x192xf32>
    %cst_128 = arith.constant 5.000000e-01 : f32
    %327 = vector.broadcast %cst_128 : f32 to vector<8x192xf32>
    %328 = arith.addf %326, %327 : vector<8x192xf32>
    %329 = vector.extract_strided_slice %328 {offsets = [0, 0], sizes = [8, 64], strides = [1, 1]} : vector<8x192xf32> to vector<8x64xf32>
    %330 = vector.extract_strided_slice %328 {offsets = [0, 64], sizes = [8, 64], strides = [1, 1]} : vector<8x192xf32> to vector<8x64xf32>
    %331 = vector.extract_strided_slice %328 {offsets = [0, 128], sizes = [8, 64], strides = [1, 1]} : vector<8x192xf32> to vector<8x64xf32>
    %332 = vector.extract_strided_slice %323 {offsets = [0, 192], sizes = [8, 64], strides = [1, 1]} : vector<8x256xf32> to vector<8x64xf32>
    %333 = arith.mulf %330, %295 : vector<8x64xf32>
    %334 = arith.mulf %329, %332 : vector<8x64xf32>
    %335 = arith.addf %333, %334 : vector<8x64xf32>
    %336 = math.tanh %335 : vector<8x64xf32>
    %337 = arith.mulf %331, %336 : vector<8x64xf32>
    %338 = tpu.iota {dimensions = array<i32: 1>} : vector<8x32xi32>
    %339 = tpu.iota {dimensions = array<i32: 0>} : vector<8x32xi32>
    %c2_i32 = arith.constant 2 : i32
    %340 = vector.broadcast %c2_i32 : i32 to vector<8x32xi32>
    %341 = arith.cmpi slt, %339, %340 : vector<8x32xi32>
    %c0_129 = arith.constant 0 : index
    %c0_130 = arith.constant 0 : index
    %342 = vector.load %arg10[%c0_129, %c0_130] : memref<1x256xf32, #tpu.memory_space<vmem>>, vector<1x256xf32>
    %c0_131 = arith.constant 0 : index
    %c0_132 = arith.constant 0 : index
    %343 = vector.load %arg8[%c0_131, %c0_132] : memref<64x256xf32, #tpu.memory_space<vmem>>, vector<64x256xf32>
    %cst_133 = arith.constant dense<0.000000e+00> : vector<8x256xf32>
    %344 = tpu.matmul %337, %343, %cst_133 {dimension_numbers = #tpu.dot_dimension_numbers<[1], [0], [0], [1], [0, 0, 1, 1], [], []>} : vector<8x64xf32>, vector<64x256xf32>, vector<8x256xf32> -> vector<8x256xf32>
    %345 = vector.broadcast %342 : vector<1x256xf32> to vector<8x256xf32>
    %346 = arith.addf %344, %345 : vector<8x256xf32>
    %347 = math.tanh %346 : vector<8x256xf32>
    %348 = vector.extract_strided_slice %347 {offsets = [0, 0], sizes = [8, 192], strides = [1, 1]} : vector<8x256xf32> to vector<8x192xf32>
    %cst_134 = arith.constant 5.000000e-01 : f32
    %349 = vector.broadcast %cst_134 : f32 to vector<8x192xf32>
    %350 = arith.mulf %349, %348 : vector<8x192xf32>
    %cst_135 = arith.constant 5.000000e-01 : f32
    %351 = vector.broadcast %cst_135 : f32 to vector<8x192xf32>
    %352 = arith.addf %350, %351 : vector<8x192xf32>
    %353 = vector.extract_strided_slice %352 {offsets = [0, 0], sizes = [8, 64], strides = [1, 1]} : vector<8x192xf32> to vector<8x64xf32>
    %354 = vector.extract_strided_slice %352 {offsets = [0, 64], sizes = [8, 64], strides = [1, 1]} : vector<8x192xf32> to vector<8x64xf32>
    %355 = vector.extract_strided_slice %352 {offsets = [0, 128], sizes = [8, 64], strides = [1, 1]} : vector<8x192xf32> to vector<8x64xf32>
    %356 = vector.extract_strided_slice %347 {offsets = [0, 192], sizes = [8, 64], strides = [1, 1]} : vector<8x256xf32> to vector<8x64xf32>
    %357 = arith.mulf %354, %335 : vector<8x64xf32>
    %358 = arith.mulf %353, %356 : vector<8x64xf32>
    %359 = arith.addf %357, %358 : vector<8x64xf32>
    %360 = math.tanh %359 : vector<8x64xf32>
    %361 = arith.mulf %355, %360 : vector<8x64xf32>
    %c0_136 = arith.constant 0 : index
    %c0_137 = arith.constant 0 : index
    %362 = vector.load %arg11[%c0_136, %c0_137] : memref<64x256xf32, #tpu.memory_space<vmem>>, vector<64x256xf32>
    %cst_138 = arith.constant dense<0.000000e+00> : vector<8x256xf32>
    %363 = tpu.matmul %361, %362, %cst_138 {dimension_numbers = #tpu.dot_dimension_numbers<[1], [0], [0], [1], [0, 0, 1, 1], [], []>} : vector<8x64xf32>, vector<64x256xf32>, vector<8x256xf32> -> vector<8x256xf32>
    %c0_139 = arith.constant 0 : index
    %c0_140 = arith.constant 0 : index
    %364 = vector.load %arg12[%c0_139, %c0_140] : memref<64x256xf32, #tpu.memory_space<vmem>>, vector<64x256xf32>
    %cst_141 = arith.constant dense<0.000000e+00> : vector<8x256xf32>
    %365 = tpu.matmul %17, %364, %cst_141 {dimension_numbers = #tpu.dot_dimension_numbers<[1], [0], [0], [1], [0, 0, 1, 1], [], []>} : vector<8x64xf32>, vector<64x256xf32>, vector<8x256xf32> -> vector<8x256xf32>
    %366 = arith.addf %363, %365 : vector<8x256xf32>
    %367 = arith.addf %366, %12 : vector<8x256xf32>
    %368 = math.tanh %367 : vector<8x256xf32>
    %369 = vector.extract_strided_slice %368 {offsets = [0, 0], sizes = [8, 192], strides = [1, 1]} : vector<8x256xf32> to vector<8x192xf32>
    %cst_142 = arith.constant 5.000000e-01 : f32
    %370 = vector.broadcast %cst_142 : f32 to vector<8x192xf32>
    %371 = arith.mulf %370, %369 : vector<8x192xf32>
    %cst_143 = arith.constant 5.000000e-01 : f32
    %372 = vector.broadcast %cst_143 : f32 to vector<8x192xf32>
    %373 = arith.addf %371, %372 : vector<8x192xf32>
    %374 = vector.extract_strided_slice %373 {offsets = [0, 0], sizes = [8, 64], strides = [1, 1]} : vector<8x192xf32> to vector<8x64xf32>
    %375 = vector.extract_strided_slice %373 {offsets = [0, 64], sizes = [8, 64], strides = [1, 1]} : vector<8x192xf32> to vector<8x64xf32>
    %376 = vector.extract_strided_slice %373 {offsets = [0, 128], sizes = [8, 64], strides = [1, 1]} : vector<8x192xf32> to vector<8x64xf32>
    %377 = vector.extract_strided_slice %368 {offsets = [0, 192], sizes = [8, 64], strides = [1, 1]} : vector<8x256xf32> to vector<8x64xf32>
    %378 = arith.mulf %375, %17 : vector<8x64xf32>
    %379 = arith.mulf %374, %377 : vector<8x64xf32>
    %380 = arith.addf %378, %379 : vector<8x64xf32>
    %381 = math.tanh %380 : vector<8x64xf32>
    %382 = arith.mulf %376, %381 : vector<8x64xf32>
    %c0_144 = arith.constant 0 : index
    %c0_145 = arith.constant 0 : index
    %383 = vector.load %arg14[%c0_144, %c0_145] : memref<64x32xf32, #tpu.memory_space<vmem>>, vector<64x32xf32>
    %cst_146 = arith.constant dense<0.000000e+00> : vector<8x32xf32>
    %384 = tpu.matmul %382, %383, %cst_146 {dimension_numbers = #tpu.dot_dimension_numbers<[1], [0], [0], [1], [0, 0, 1, 1], [], []>} : vector<8x64xf32>, vector<64x32xf32>, vector<8x32xf32> -> vector<8x32xf32>
    %385 = arith.addf %384, %15 : vector<8x32xf32>
    %cst_147 = arith.constant dense<0xFF800000> : vector<8xf32>
    %386 = vector.multi_reduction <maximumf>, %385, %cst_147 [1] : vector<8x32xf32> to vector<8xf32>
    %387 = vector.shape_cast %386 : vector<8xf32> to vector<8x1xf32>
    %388 = vector.broadcast %387 : vector<8x1xf32> to vector<8x32xf32>
    %389 = arith.cmpf oeq, %385, %388 : vector<8x32xf32>
    %c32_i32 = arith.constant 32 : i32
    %390 = vector.broadcast %c32_i32 : i32 to vector<8x32xi32>
    %391 = arith.select %389, %338, %390 : vector<8x32xi1>, vector<8x32xi32>
    %cst_148 = arith.constant dense<2147483647> : vector<8xi32>
    %392 = vector.multi_reduction <minsi>, %391, %cst_148 [1] : vector<8x32xi32> to vector<8xi32>
    %393 = vector.shape_cast %392 : vector<8xi32> to vector<8x1xi32>
    %394 = vector.broadcast %393 : vector<8x1xi32> to vector<8x32xi32>
    %395 = arith.cmpi eq, %338, %394 : vector<8x32xi32>
    %396 = arith.andi %395, %341 : vector<8x32xi1>
    %cst_149 = arith.constant 1.000000e+00 : f32
    %cst_150 = arith.constant 0.000000e+00 : f32
    %397 = vector.broadcast %cst_149 : f32 to vector<8x32xf32>
    %398 = vector.broadcast %cst_150 : f32 to vector<8x32xf32>
    %399 = arith.select %396, %397, %398 : vector<8x32xi1>, vector<8x32xf32>
    %cst_151 = arith.constant dense<0xFF800000> : vector<32xf32>
    %400 = vector.multi_reduction <maximumf>, %399, %cst_151 [0] : vector<8x32xf32> to vector<32xf32>
    %401 = vector.shape_cast %400 : vector<32xf32> to vector<1x32xf32>
    %c0_152 = arith.constant 0 : index
    %c0_153 = arith.constant 0 : index
    %402 = vector.load %arg7[%c0_152, %c0_153] : memref<32x256xf32, #tpu.memory_space<vmem>>, vector<32x256xf32>
    %cst_154 = arith.constant dense<0.000000e+00> : vector<1x256xf32>
    %403 = tpu.matmul %401, %402, %cst_154 {dimension_numbers = #tpu.dot_dimension_numbers<[1], [0], [0], [1], [0, 0, 1, 1], [], []>} : vector<1x32xf32>, vector<32x256xf32>, vector<1x256xf32> -> vector<1x256xf32>
    %404 = arith.addf %403, %16 : vector<1x256xf32>
    %c0_155 = arith.constant 0 : index
    %c0_156 = arith.constant 0 : index
    %405 = vector.load %arg8[%c0_155, %c0_156] : memref<64x256xf32, #tpu.memory_space<vmem>>, vector<64x256xf32>
    %cst_157 = arith.constant dense<0.000000e+00> : vector<8x256xf32>
    %406 = tpu.matmul %361, %405, %cst_157 {dimension_numbers = #tpu.dot_dimension_numbers<[1], [0], [0], [1], [0, 0, 1, 1], [], []>} : vector<8x64xf32>, vector<64x256xf32>, vector<8x256xf32> -> vector<8x256xf32>
    %407 = vector.broadcast %404 : vector<1x256xf32> to vector<8x256xf32>
    %408 = arith.addf %406, %407 : vector<8x256xf32>
    %409 = math.tanh %408 : vector<8x256xf32>
    %410 = vector.extract_strided_slice %409 {offsets = [0, 0], sizes = [8, 192], strides = [1, 1]} : vector<8x256xf32> to vector<8x192xf32>
    %cst_158 = arith.constant 5.000000e-01 : f32
    %411 = vector.broadcast %cst_158 : f32 to vector<8x192xf32>
    %412 = arith.mulf %411, %410 : vector<8x192xf32>
    %cst_159 = arith.constant 5.000000e-01 : f32
    %413 = vector.broadcast %cst_159 : f32 to vector<8x192xf32>
    %414 = arith.addf %412, %413 : vector<8x192xf32>
    %415 = vector.extract_strided_slice %414 {offsets = [0, 0], sizes = [8, 64], strides = [1, 1]} : vector<8x192xf32> to vector<8x64xf32>
    %416 = vector.extract_strided_slice %414 {offsets = [0, 64], sizes = [8, 64], strides = [1, 1]} : vector<8x192xf32> to vector<8x64xf32>
    %417 = vector.extract_strided_slice %414 {offsets = [0, 128], sizes = [8, 64], strides = [1, 1]} : vector<8x192xf32> to vector<8x64xf32>
    %418 = vector.extract_strided_slice %409 {offsets = [0, 192], sizes = [8, 64], strides = [1, 1]} : vector<8x256xf32> to vector<8x64xf32>
    %419 = arith.mulf %416, %359 : vector<8x64xf32>
    %420 = arith.mulf %415, %418 : vector<8x64xf32>
    %421 = arith.addf %419, %420 : vector<8x64xf32>
    %422 = math.tanh %421 : vector<8x64xf32>
    %423 = arith.mulf %417, %422 : vector<8x64xf32>
    %c0_160 = arith.constant 0 : index
    %c0_161 = arith.constant 0 : index
    %424 = vector.load %arg11[%c0_160, %c0_161] : memref<64x256xf32, #tpu.memory_space<vmem>>, vector<64x256xf32>
    %cst_162 = arith.constant dense<0.000000e+00> : vector<8x256xf32>
    %425 = tpu.matmul %423, %424, %cst_162 {dimension_numbers = #tpu.dot_dimension_numbers<[1], [0], [0], [1], [0, 0, 1, 1], [], []>} : vector<8x64xf32>, vector<64x256xf32>, vector<8x256xf32> -> vector<8x256xf32>
    %c0_163 = arith.constant 0 : index
    %c0_164 = arith.constant 0 : index
    %426 = vector.load %arg12[%c0_163, %c0_164] : memref<64x256xf32, #tpu.memory_space<vmem>>, vector<64x256xf32>
    %cst_165 = arith.constant dense<0.000000e+00> : vector<8x256xf32>
    %427 = tpu.matmul %382, %426, %cst_165 {dimension_numbers = #tpu.dot_dimension_numbers<[1], [0], [0], [1], [0, 0, 1, 1], [], []>} : vector<8x64xf32>, vector<64x256xf32>, vector<8x256xf32> -> vector<8x256xf32>
    %428 = arith.addf %425, %427 : vector<8x256xf32>
    %429 = arith.addf %428, %12 : vector<8x256xf32>
    %430 = math.tanh %429 : vector<8x256xf32>
    %431 = vector.extract_strided_slice %430 {offsets = [0, 0], sizes = [8, 192], strides = [1, 1]} : vector<8x256xf32> to vector<8x192xf32>
    %cst_166 = arith.constant 5.000000e-01 : f32
    %432 = vector.broadcast %cst_166 : f32 to vector<8x192xf32>
    %433 = arith.mulf %432, %431 : vector<8x192xf32>
    %cst_167 = arith.constant 5.000000e-01 : f32
    %434 = vector.broadcast %cst_167 : f32 to vector<8x192xf32>
    %435 = arith.addf %433, %434 : vector<8x192xf32>
    %436 = vector.extract_strided_slice %435 {offsets = [0, 0], sizes = [8, 64], strides = [1, 1]} : vector<8x192xf32> to vector<8x64xf32>
    %437 = vector.extract_strided_slice %435 {offsets = [0, 64], sizes = [8, 64], strides = [1, 1]} : vector<8x192xf32> to vector<8x64xf32>
    %438 = vector.extract_strided_slice %435 {offsets = [0, 128], sizes = [8, 64], strides = [1, 1]} : vector<8x192xf32> to vector<8x64xf32>
    %439 = vector.extract_strided_slice %430 {offsets = [0, 192], sizes = [8, 64], strides = [1, 1]} : vector<8x256xf32> to vector<8x64xf32>
    %440 = arith.mulf %437, %380 : vector<8x64xf32>
    %441 = arith.mulf %436, %439 : vector<8x64xf32>
    %442 = arith.addf %440, %441 : vector<8x64xf32>
    %443 = math.tanh %442 : vector<8x64xf32>
    %444 = arith.mulf %438, %443 : vector<8x64xf32>
    %c0_168 = arith.constant 0 : index
    %c0_169 = arith.constant 0 : index
    %445 = vector.load %arg14[%c0_168, %c0_169] : memref<64x32xf32, #tpu.memory_space<vmem>>, vector<64x32xf32>
    %cst_170 = arith.constant dense<0.000000e+00> : vector<8x32xf32>
    %446 = tpu.matmul %444, %445, %cst_170 {dimension_numbers = #tpu.dot_dimension_numbers<[1], [0], [0], [1], [0, 0, 1, 1], [], []>} : vector<8x64xf32>, vector<64x32xf32>, vector<8x32xf32> -> vector<8x32xf32>
    %447 = arith.addf %446, %15 : vector<8x32xf32>
    %cst_171 = arith.constant dense<0xFF800000> : vector<8xf32>
    %448 = vector.multi_reduction <maximumf>, %447, %cst_171 [1] : vector<8x32xf32> to vector<8xf32>
    %449 = vector.shape_cast %448 : vector<8xf32> to vector<8x1xf32>
    %450 = vector.broadcast %449 : vector<8x1xf32> to vector<8x32xf32>
    %451 = arith.cmpf oeq, %447, %450 : vector<8x32xf32>
    %c32_i32_172 = arith.constant 32 : i32
    %452 = vector.broadcast %c32_i32_172 : i32 to vector<8x32xi32>
    %453 = arith.select %451, %338, %452 : vector<8x32xi1>, vector<8x32xi32>
    %cst_173 = arith.constant dense<2147483647> : vector<8xi32>
    %454 = vector.multi_reduction <minsi>, %453, %cst_173 [1] : vector<8x32xi32> to vector<8xi32>
    %455 = vector.shape_cast %454 : vector<8xi32> to vector<8x1xi32>
    %456 = vector.broadcast %455 : vector<8x1xi32> to vector<8x32xi32>
    %457 = arith.cmpi eq, %338, %456 : vector<8x32xi32>
    %458 = arith.andi %457, %341 : vector<8x32xi1>
    %cst_174 = arith.constant 1.000000e+00 : f32
    %cst_175 = arith.constant 0.000000e+00 : f32
    %459 = vector.broadcast %cst_174 : f32 to vector<8x32xf32>
    %460 = vector.broadcast %cst_175 : f32 to vector<8x32xf32>
    %461 = arith.select %458, %459, %460 : vector<8x32xi1>, vector<8x32xf32>
    %cst_176 = arith.constant dense<0xFF800000> : vector<32xf32>
    %462 = vector.multi_reduction <maximumf>, %461, %cst_176 [0] : vector<8x32xf32> to vector<32xf32>
    %463 = vector.shape_cast %462 : vector<32xf32> to vector<1x32xf32>
    %c0_177 = arith.constant 0 : index
    %c0_178 = arith.constant 0 : index
    %464 = vector.load %arg7[%c0_177, %c0_178] : memref<32x256xf32, #tpu.memory_space<vmem>>, vector<32x256xf32>
    %cst_179 = arith.constant dense<0.000000e+00> : vector<1x256xf32>
    %465 = tpu.matmul %463, %464, %cst_179 {dimension_numbers = #tpu.dot_dimension_numbers<[1], [0], [0], [1], [0, 0, 1, 1], [], []>} : vector<1x32xf32>, vector<32x256xf32>, vector<1x256xf32> -> vector<1x256xf32>
    %466 = arith.addf %465, %16 : vector<1x256xf32>
    %c0_180 = arith.constant 0 : index
    %c0_181 = arith.constant 0 : index
    %467 = vector.load %arg8[%c0_180, %c0_181] : memref<64x256xf32, #tpu.memory_space<vmem>>, vector<64x256xf32>
    %cst_182 = arith.constant dense<0.000000e+00> : vector<8x256xf32>
    %468 = tpu.matmul %423, %467, %cst_182 {dimension_numbers = #tpu.dot_dimension_numbers<[1], [0], [0], [1], [0, 0, 1, 1], [], []>} : vector<8x64xf32>, vector<64x256xf32>, vector<8x256xf32> -> vector<8x256xf32>
    %469 = vector.broadcast %466 : vector<1x256xf32> to vector<8x256xf32>
    %470 = arith.addf %468, %469 : vector<8x256xf32>
    %471 = math.tanh %470 : vector<8x256xf32>
    %472 = vector.extract_strided_slice %471 {offsets = [0, 0], sizes = [8, 192], strides = [1, 1]} : vector<8x256xf32> to vector<8x192xf32>
    %cst_183 = arith.constant 5.000000e-01 : f32
    %473 = vector.broadcast %cst_183 : f32 to vector<8x192xf32>
    %474 = arith.mulf %473, %472 : vector<8x192xf32>
    %cst_184 = arith.constant 5.000000e-01 : f32
    %475 = vector.broadcast %cst_184 : f32 to vector<8x192xf32>
    %476 = arith.addf %474, %475 : vector<8x192xf32>
    %477 = vector.extract_strided_slice %476 {offsets = [0, 0], sizes = [8, 64], strides = [1, 1]} : vector<8x192xf32> to vector<8x64xf32>
    %478 = vector.extract_strided_slice %476 {offsets = [0, 64], sizes = [8, 64], strides = [1, 1]} : vector<8x192xf32> to vector<8x64xf32>
    %479 = vector.extract_strided_slice %476 {offsets = [0, 128], sizes = [8, 64], strides = [1, 1]} : vector<8x192xf32> to vector<8x64xf32>
    %480 = vector.extract_strided_slice %471 {offsets = [0, 192], sizes = [8, 64], strides = [1, 1]} : vector<8x256xf32> to vector<8x64xf32>
    %481 = arith.mulf %478, %421 : vector<8x64xf32>
    %482 = arith.mulf %477, %480 : vector<8x64xf32>
    %483 = arith.addf %481, %482 : vector<8x64xf32>
    %484 = math.tanh %483 : vector<8x64xf32>
    %485 = arith.mulf %479, %484 : vector<8x64xf32>
    %c0_185 = arith.constant 0 : index
    %c0_186 = arith.constant 0 : index
    %486 = vector.load %arg11[%c0_185, %c0_186] : memref<64x256xf32, #tpu.memory_space<vmem>>, vector<64x256xf32>
    %cst_187 = arith.constant dense<0.000000e+00> : vector<8x256xf32>
    %487 = tpu.matmul %485, %486, %cst_187 {dimension_numbers = #tpu.dot_dimension_numbers<[1], [0], [0], [1], [0, 0, 1, 1], [], []>} : vector<8x64xf32>, vector<64x256xf32>, vector<8x256xf32> -> vector<8x256xf32>
    %c0_188 = arith.constant 0 : index
    %c0_189 = arith.constant 0 : index
    %488 = vector.load %arg12[%c0_188, %c0_189] : memref<64x256xf32, #tpu.memory_space<vmem>>, vector<64x256xf32>
    %cst_190 = arith.constant dense<0.000000e+00> : vector<8x256xf32>
    %489 = tpu.matmul %444, %488, %cst_190 {dimension_numbers = #tpu.dot_dimension_numbers<[1], [0], [0], [1], [0, 0, 1, 1], [], []>} : vector<8x64xf32>, vector<64x256xf32>, vector<8x256xf32> -> vector<8x256xf32>
    %490 = arith.addf %487, %489 : vector<8x256xf32>
    %491 = arith.addf %490, %12 : vector<8x256xf32>
    %492 = math.tanh %491 : vector<8x256xf32>
    %493 = vector.extract_strided_slice %492 {offsets = [0, 0], sizes = [8, 192], strides = [1, 1]} : vector<8x256xf32> to vector<8x192xf32>
    %cst_191 = arith.constant 5.000000e-01 : f32
    %494 = vector.broadcast %cst_191 : f32 to vector<8x192xf32>
    %495 = arith.mulf %494, %493 : vector<8x192xf32>
    %cst_192 = arith.constant 5.000000e-01 : f32
    %496 = vector.broadcast %cst_192 : f32 to vector<8x192xf32>
    %497 = arith.addf %495, %496 : vector<8x192xf32>
    %498 = vector.extract_strided_slice %497 {offsets = [0, 0], sizes = [8, 64], strides = [1, 1]} : vector<8x192xf32> to vector<8x64xf32>
    %499 = vector.extract_strided_slice %497 {offsets = [0, 64], sizes = [8, 64], strides = [1, 1]} : vector<8x192xf32> to vector<8x64xf32>
    %500 = vector.extract_strided_slice %497 {offsets = [0, 128], sizes = [8, 64], strides = [1, 1]} : vector<8x192xf32> to vector<8x64xf32>
    %501 = vector.extract_strided_slice %492 {offsets = [0, 192], sizes = [8, 64], strides = [1, 1]} : vector<8x256xf32> to vector<8x64xf32>
    %502 = arith.mulf %499, %442 : vector<8x64xf32>
    %503 = arith.mulf %498, %501 : vector<8x64xf32>
    %504 = arith.addf %502, %503 : vector<8x64xf32>
    %505 = math.tanh %504 : vector<8x64xf32>
    %506 = arith.mulf %500, %505 : vector<8x64xf32>
    %c0_193 = arith.constant 0 : index
    %c0_194 = arith.constant 0 : index
    %507 = vector.load %arg14[%c0_193, %c0_194] : memref<64x32xf32, #tpu.memory_space<vmem>>, vector<64x32xf32>
    %cst_195 = arith.constant dense<0.000000e+00> : vector<8x32xf32>
    %508 = tpu.matmul %506, %507, %cst_195 {dimension_numbers = #tpu.dot_dimension_numbers<[1], [0], [0], [1], [0, 0, 1, 1], [], []>} : vector<8x64xf32>, vector<64x32xf32>, vector<8x32xf32> -> vector<8x32xf32>
    %509 = arith.addf %508, %15 : vector<8x32xf32>
    %cst_196 = arith.constant dense<0xFF800000> : vector<8xf32>
    %510 = vector.multi_reduction <maximumf>, %509, %cst_196 [1] : vector<8x32xf32> to vector<8xf32>
    %511 = vector.shape_cast %510 : vector<8xf32> to vector<8x1xf32>
    %512 = vector.broadcast %511 : vector<8x1xf32> to vector<8x32xf32>
    %513 = arith.cmpf oeq, %509, %512 : vector<8x32xf32>
    %c32_i32_197 = arith.constant 32 : i32
    %514 = vector.broadcast %c32_i32_197 : i32 to vector<8x32xi32>
    %515 = arith.select %513, %338, %514 : vector<8x32xi1>, vector<8x32xi32>
    %cst_198 = arith.constant dense<2147483647> : vector<8xi32>
    %516 = vector.multi_reduction <minsi>, %515, %cst_198 [1] : vector<8x32xi32> to vector<8xi32>
    %517 = vector.shape_cast %516 : vector<8xi32> to vector<8x1xi32>
    %518 = vector.broadcast %517 : vector<8x1xi32> to vector<8x32xi32>
    %519 = arith.cmpi eq, %338, %518 : vector<8x32xi32>
    %520 = arith.andi %519, %341 : vector<8x32xi1>
    %cst_199 = arith.constant 1.000000e+00 : f32
    %cst_200 = arith.constant 0.000000e+00 : f32
    %521 = vector.broadcast %cst_199 : f32 to vector<8x32xf32>
    %522 = vector.broadcast %cst_200 : f32 to vector<8x32xf32>
    %523 = arith.select %520, %521, %522 : vector<8x32xi1>, vector<8x32xf32>
    %cst_201 = arith.constant dense<0xFF800000> : vector<32xf32>
    %524 = vector.multi_reduction <maximumf>, %523, %cst_201 [0] : vector<8x32xf32> to vector<32xf32>
    %525 = vector.shape_cast %524 : vector<32xf32> to vector<1x32xf32>
    %c0_202 = arith.constant 0 : index
    %c0_203 = arith.constant 0 : index
    %526 = vector.load %arg7[%c0_202, %c0_203] : memref<32x256xf32, #tpu.memory_space<vmem>>, vector<32x256xf32>
    %cst_204 = arith.constant dense<0.000000e+00> : vector<1x256xf32>
    %527 = tpu.matmul %525, %526, %cst_204 {dimension_numbers = #tpu.dot_dimension_numbers<[1], [0], [0], [1], [0, 0, 1, 1], [], []>} : vector<1x32xf32>, vector<32x256xf32>, vector<1x256xf32> -> vector<1x256xf32>
    %528 = arith.addf %527, %16 : vector<1x256xf32>
    %c0_205 = arith.constant 0 : index
    %c0_206 = arith.constant 0 : index
    %529 = vector.load %arg8[%c0_205, %c0_206] : memref<64x256xf32, #tpu.memory_space<vmem>>, vector<64x256xf32>
    %cst_207 = arith.constant dense<0.000000e+00> : vector<8x256xf32>
    %530 = tpu.matmul %485, %529, %cst_207 {dimension_numbers = #tpu.dot_dimension_numbers<[1], [0], [0], [1], [0, 0, 1, 1], [], []>} : vector<8x64xf32>, vector<64x256xf32>, vector<8x256xf32> -> vector<8x256xf32>
    %531 = vector.broadcast %528 : vector<1x256xf32> to vector<8x256xf32>
    %532 = arith.addf %530, %531 : vector<8x256xf32>
    %533 = math.tanh %532 : vector<8x256xf32>
    %534 = vector.extract_strided_slice %533 {offsets = [0, 0], sizes = [8, 192], strides = [1, 1]} : vector<8x256xf32> to vector<8x192xf32>
    %cst_208 = arith.constant 5.000000e-01 : f32
    %535 = vector.broadcast %cst_208 : f32 to vector<8x192xf32>
    %536 = arith.mulf %535, %534 : vector<8x192xf32>
    %cst_209 = arith.constant 5.000000e-01 : f32
    %537 = vector.broadcast %cst_209 : f32 to vector<8x192xf32>
    %538 = arith.addf %536, %537 : vector<8x192xf32>
    %539 = vector.extract_strided_slice %538 {offsets = [0, 0], sizes = [8, 64], strides = [1, 1]} : vector<8x192xf32> to vector<8x64xf32>
    %540 = vector.extract_strided_slice %538 {offsets = [0, 64], sizes = [8, 64], strides = [1, 1]} : vector<8x192xf32> to vector<8x64xf32>
    %541 = vector.extract_strided_slice %538 {offsets = [0, 128], sizes = [8, 64], strides = [1, 1]} : vector<8x192xf32> to vector<8x64xf32>
    %542 = vector.extract_strided_slice %533 {offsets = [0, 192], sizes = [8, 64], strides = [1, 1]} : vector<8x256xf32> to vector<8x64xf32>
    %543 = arith.mulf %540, %483 : vector<8x64xf32>
    %544 = arith.mulf %539, %542 : vector<8x64xf32>
    %545 = arith.addf %543, %544 : vector<8x64xf32>
    %546 = math.tanh %545 : vector<8x64xf32>
    %547 = arith.mulf %541, %546 : vector<8x64xf32>
    %c0_210 = arith.constant 0 : index
    %c0_211 = arith.constant 0 : index
    %548 = vector.load %arg11[%c0_210, %c0_211] : memref<64x256xf32, #tpu.memory_space<vmem>>, vector<64x256xf32>
    %cst_212 = arith.constant dense<0.000000e+00> : vector<8x256xf32>
    %549 = tpu.matmul %547, %548, %cst_212 {dimension_numbers = #tpu.dot_dimension_numbers<[1], [0], [0], [1], [0, 0, 1, 1], [], []>} : vector<8x64xf32>, vector<64x256xf32>, vector<8x256xf32> -> vector<8x256xf32>
    %c0_213 = arith.constant 0 : index
    %c0_214 = arith.constant 0 : index
    %550 = vector.load %arg12[%c0_213, %c0_214] : memref<64x256xf32, #tpu.memory_space<vmem>>, vector<64x256xf32>
    %cst_215 = arith.constant dense<0.000000e+00> : vector<8x256xf32>
    %551 = tpu.matmul %506, %550, %cst_215 {dimension_numbers = #tpu.dot_dimension_numbers<[1], [0], [0], [1], [0, 0, 1, 1], [], []>} : vector<8x64xf32>, vector<64x256xf32>, vector<8x256xf32> -> vector<8x256xf32>
    %552 = arith.addf %549, %551 : vector<8x256xf32>
    %553 = arith.addf %552, %12 : vector<8x256xf32>
    %554 = math.tanh %553 : vector<8x256xf32>
    %555 = vector.extract_strided_slice %554 {offsets = [0, 0], sizes = [8, 192], strides = [1, 1]} : vector<8x256xf32> to vector<8x192xf32>
    %cst_216 = arith.constant 5.000000e-01 : f32
    %556 = vector.broadcast %cst_216 : f32 to vector<8x192xf32>
    %557 = arith.mulf %556, %555 : vector<8x192xf32>
    %cst_217 = arith.constant 5.000000e-01 : f32
    %558 = vector.broadcast %cst_217 : f32 to vector<8x192xf32>
    %559 = arith.addf %557, %558 : vector<8x192xf32>
    %560 = vector.extract_strided_slice %559 {offsets = [0, 0], sizes = [8, 64], strides = [1, 1]} : vector<8x192xf32> to vector<8x64xf32>
    %561 = vector.extract_strided_slice %559 {offsets = [0, 64], sizes = [8, 64], strides = [1, 1]} : vector<8x192xf32> to vector<8x64xf32>
    %562 = vector.extract_strided_slice %559 {offsets = [0, 128], sizes = [8, 64], strides = [1, 1]} : vector<8x192xf32> to vector<8x64xf32>
    %563 = vector.extract_strided_slice %554 {offsets = [0, 192], sizes = [8, 64], strides = [1, 1]} : vector<8x256xf32> to vector<8x64xf32>
    %564 = arith.mulf %561, %504 : vector<8x64xf32>
    %565 = arith.mulf %560, %563 : vector<8x64xf32>
    %566 = arith.addf %564, %565 : vector<8x64xf32>
    %567 = math.tanh %566 : vector<8x64xf32>
    %568 = arith.mulf %562, %567 : vector<8x64xf32>
    %c0_218 = arith.constant 0 : index
    %c0_219 = arith.constant 0 : index
    %569 = vector.load %arg14[%c0_218, %c0_219] : memref<64x32xf32, #tpu.memory_space<vmem>>, vector<64x32xf32>
    %cst_220 = arith.constant dense<0.000000e+00> : vector<8x32xf32>
    %570 = tpu.matmul %568, %569, %cst_220 {dimension_numbers = #tpu.dot_dimension_numbers<[1], [0], [0], [1], [0, 0, 1, 1], [], []>} : vector<8x64xf32>, vector<64x32xf32>, vector<8x32xf32> -> vector<8x32xf32>
    %571 = arith.addf %570, %15 : vector<8x32xf32>
    %cst_221 = arith.constant dense<0xFF800000> : vector<8xf32>
    %572 = vector.multi_reduction <maximumf>, %571, %cst_221 [1] : vector<8x32xf32> to vector<8xf32>
    %573 = vector.shape_cast %572 : vector<8xf32> to vector<8x1xf32>
    %574 = vector.broadcast %573 : vector<8x1xf32> to vector<8x32xf32>
    %575 = arith.cmpf oeq, %571, %574 : vector<8x32xf32>
    %c32_i32_222 = arith.constant 32 : i32
    %576 = vector.broadcast %c32_i32_222 : i32 to vector<8x32xi32>
    %577 = arith.select %575, %338, %576 : vector<8x32xi1>, vector<8x32xi32>
    %cst_223 = arith.constant dense<2147483647> : vector<8xi32>
    %578 = vector.multi_reduction <minsi>, %577, %cst_223 [1] : vector<8x32xi32> to vector<8xi32>
    %579 = vector.shape_cast %578 : vector<8xi32> to vector<8x1xi32>
    %580 = vector.broadcast %579 : vector<8x1xi32> to vector<8x32xi32>
    %581 = arith.cmpi eq, %338, %580 : vector<8x32xi32>
    %582 = arith.andi %581, %341 : vector<8x32xi1>
    %cst_224 = arith.constant 1.000000e+00 : f32
    %cst_225 = arith.constant 0.000000e+00 : f32
    %583 = vector.broadcast %cst_224 : f32 to vector<8x32xf32>
    %584 = vector.broadcast %cst_225 : f32 to vector<8x32xf32>
    %585 = arith.select %582, %583, %584 : vector<8x32xi1>, vector<8x32xf32>
    %cst_226 = arith.constant dense<0xFF800000> : vector<32xf32>
    %586 = vector.multi_reduction <maximumf>, %585, %cst_226 [0] : vector<8x32xf32> to vector<32xf32>
    %587 = vector.shape_cast %586 : vector<32xf32> to vector<1x32xf32>
    %c0_227 = arith.constant 0 : index
    %c0_228 = arith.constant 0 : index
    %588 = vector.load %arg7[%c0_227, %c0_228] : memref<32x256xf32, #tpu.memory_space<vmem>>, vector<32x256xf32>
    %cst_229 = arith.constant dense<0.000000e+00> : vector<1x256xf32>
    %589 = tpu.matmul %587, %588, %cst_229 {dimension_numbers = #tpu.dot_dimension_numbers<[1], [0], [0], [1], [0, 0, 1, 1], [], []>} : vector<1x32xf32>, vector<32x256xf32>, vector<1x256xf32> -> vector<1x256xf32>
    %590 = arith.addf %589, %16 : vector<1x256xf32>
    %c0_230 = arith.constant 0 : index
    %c0_231 = arith.constant 0 : index
    %591 = vector.load %arg8[%c0_230, %c0_231] : memref<64x256xf32, #tpu.memory_space<vmem>>, vector<64x256xf32>
    %cst_232 = arith.constant dense<0.000000e+00> : vector<8x256xf32>
    %592 = tpu.matmul %547, %591, %cst_232 {dimension_numbers = #tpu.dot_dimension_numbers<[1], [0], [0], [1], [0, 0, 1, 1], [], []>} : vector<8x64xf32>, vector<64x256xf32>, vector<8x256xf32> -> vector<8x256xf32>
    %593 = vector.broadcast %590 : vector<1x256xf32> to vector<8x256xf32>
    %594 = arith.addf %592, %593 : vector<8x256xf32>
    %595 = math.tanh %594 : vector<8x256xf32>
    %596 = vector.extract_strided_slice %595 {offsets = [0, 0], sizes = [8, 192], strides = [1, 1]} : vector<8x256xf32> to vector<8x192xf32>
    %cst_233 = arith.constant 5.000000e-01 : f32
    %597 = vector.broadcast %cst_233 : f32 to vector<8x192xf32>
    %598 = arith.mulf %597, %596 : vector<8x192xf32>
    %cst_234 = arith.constant 5.000000e-01 : f32
    %599 = vector.broadcast %cst_234 : f32 to vector<8x192xf32>
    %600 = arith.addf %598, %599 : vector<8x192xf32>
    %601 = vector.extract_strided_slice %600 {offsets = [0, 0], sizes = [8, 64], strides = [1, 1]} : vector<8x192xf32> to vector<8x64xf32>
    %602 = vector.extract_strided_slice %600 {offsets = [0, 64], sizes = [8, 64], strides = [1, 1]} : vector<8x192xf32> to vector<8x64xf32>
    %603 = vector.extract_strided_slice %600 {offsets = [0, 128], sizes = [8, 64], strides = [1, 1]} : vector<8x192xf32> to vector<8x64xf32>
    %604 = vector.extract_strided_slice %595 {offsets = [0, 192], sizes = [8, 64], strides = [1, 1]} : vector<8x256xf32> to vector<8x64xf32>
    %605 = arith.mulf %602, %545 : vector<8x64xf32>
    %606 = arith.mulf %601, %604 : vector<8x64xf32>
    %607 = arith.addf %605, %606 : vector<8x64xf32>
    %608 = math.tanh %607 : vector<8x64xf32>
    %609 = arith.mulf %603, %608 : vector<8x64xf32>
    %c0_235 = arith.constant 0 : index
    %c0_236 = arith.constant 0 : index
    %610 = vector.load %arg11[%c0_235, %c0_236] : memref<64x256xf32, #tpu.memory_space<vmem>>, vector<64x256xf32>
    %cst_237 = arith.constant dense<0.000000e+00> : vector<8x256xf32>
    %611 = tpu.matmul %609, %610, %cst_237 {dimension_numbers = #tpu.dot_dimension_numbers<[1], [0], [0], [1], [0, 0, 1, 1], [], []>} : vector<8x64xf32>, vector<64x256xf32>, vector<8x256xf32> -> vector<8x256xf32>
    %c0_238 = arith.constant 0 : index
    %c0_239 = arith.constant 0 : index
    %612 = vector.load %arg12[%c0_238, %c0_239] : memref<64x256xf32, #tpu.memory_space<vmem>>, vector<64x256xf32>
    %cst_240 = arith.constant dense<0.000000e+00> : vector<8x256xf32>
    %613 = tpu.matmul %568, %612, %cst_240 {dimension_numbers = #tpu.dot_dimension_numbers<[1], [0], [0], [1], [0, 0, 1, 1], [], []>} : vector<8x64xf32>, vector<64x256xf32>, vector<8x256xf32> -> vector<8x256xf32>
    %614 = arith.addf %611, %613 : vector<8x256xf32>
    %615 = arith.addf %614, %12 : vector<8x256xf32>
    %616 = math.tanh %615 : vector<8x256xf32>
    %617 = vector.extract_strided_slice %616 {offsets = [0, 0], sizes = [8, 192], strides = [1, 1]} : vector<8x256xf32> to vector<8x192xf32>
    %cst_241 = arith.constant 5.000000e-01 : f32
    %618 = vector.broadcast %cst_241 : f32 to vector<8x192xf32>
    %619 = arith.mulf %618, %617 : vector<8x192xf32>
    %cst_242 = arith.constant 5.000000e-01 : f32
    %620 = vector.broadcast %cst_242 : f32 to vector<8x192xf32>
    %621 = arith.addf %619, %620 : vector<8x192xf32>
    %622 = vector.extract_strided_slice %621 {offsets = [0, 0], sizes = [8, 64], strides = [1, 1]} : vector<8x192xf32> to vector<8x64xf32>
    %623 = vector.extract_strided_slice %621 {offsets = [0, 64], sizes = [8, 64], strides = [1, 1]} : vector<8x192xf32> to vector<8x64xf32>
    %624 = vector.extract_strided_slice %621 {offsets = [0, 128], sizes = [8, 64], strides = [1, 1]} : vector<8x192xf32> to vector<8x64xf32>
    %625 = vector.extract_strided_slice %616 {offsets = [0, 192], sizes = [8, 64], strides = [1, 1]} : vector<8x256xf32> to vector<8x64xf32>
    %626 = arith.mulf %623, %566 : vector<8x64xf32>
    %627 = arith.mulf %622, %625 : vector<8x64xf32>
    %628 = arith.addf %626, %627 : vector<8x64xf32>
    %629 = math.tanh %628 : vector<8x64xf32>
    %630 = arith.mulf %624, %629 : vector<8x64xf32>
    %c0_243 = arith.constant 0 : index
    %c0_244 = arith.constant 0 : index
    %631 = vector.load %arg14[%c0_243, %c0_244] : memref<64x32xf32, #tpu.memory_space<vmem>>, vector<64x32xf32>
    %cst_245 = arith.constant dense<0.000000e+00> : vector<8x32xf32>
    %632 = tpu.matmul %630, %631, %cst_245 {dimension_numbers = #tpu.dot_dimension_numbers<[1], [0], [0], [1], [0, 0, 1, 1], [], []>} : vector<8x64xf32>, vector<64x32xf32>, vector<8x32xf32> -> vector<8x32xf32>
    %633 = arith.addf %632, %15 : vector<8x32xf32>
    %cst_246 = arith.constant dense<0xFF800000> : vector<8xf32>
    %634 = vector.multi_reduction <maximumf>, %633, %cst_246 [1] : vector<8x32xf32> to vector<8xf32>
    %635 = vector.shape_cast %634 : vector<8xf32> to vector<8x1xf32>
    %636 = vector.broadcast %635 : vector<8x1xf32> to vector<8x32xf32>
    %637 = arith.cmpf oeq, %633, %636 : vector<8x32xf32>
    %c32_i32_247 = arith.constant 32 : i32
    %638 = vector.broadcast %c32_i32_247 : i32 to vector<8x32xi32>
    %639 = arith.select %637, %338, %638 : vector<8x32xi1>, vector<8x32xi32>
    %cst_248 = arith.constant dense<2147483647> : vector<8xi32>
    %640 = vector.multi_reduction <minsi>, %639, %cst_248 [1] : vector<8x32xi32> to vector<8xi32>
    %641 = vector.shape_cast %640 : vector<8xi32> to vector<8x1xi32>
    %642 = vector.broadcast %641 : vector<8x1xi32> to vector<8x32xi32>
    %643 = arith.cmpi eq, %338, %642 : vector<8x32xi32>
    %644 = arith.andi %643, %341 : vector<8x32xi1>
    %cst_249 = arith.constant 1.000000e+00 : f32
    %cst_250 = arith.constant 0.000000e+00 : f32
    %645 = vector.broadcast %cst_249 : f32 to vector<8x32xf32>
    %646 = vector.broadcast %cst_250 : f32 to vector<8x32xf32>
    %647 = arith.select %644, %645, %646 : vector<8x32xi1>, vector<8x32xf32>
    %cst_251 = arith.constant dense<0xFF800000> : vector<32xf32>
    %648 = vector.multi_reduction <maximumf>, %647, %cst_251 [0] : vector<8x32xf32> to vector<32xf32>
    %649 = vector.shape_cast %648 : vector<32xf32> to vector<1x32xf32>
    %c0_252 = arith.constant 0 : index
    %c0_253 = arith.constant 0 : index
    %650 = vector.load %arg7[%c0_252, %c0_253] : memref<32x256xf32, #tpu.memory_space<vmem>>, vector<32x256xf32>
    %cst_254 = arith.constant dense<0.000000e+00> : vector<1x256xf32>
    %651 = tpu.matmul %649, %650, %cst_254 {dimension_numbers = #tpu.dot_dimension_numbers<[1], [0], [0], [1], [0, 0, 1, 1], [], []>} : vector<1x32xf32>, vector<32x256xf32>, vector<1x256xf32> -> vector<1x256xf32>
    %652 = arith.addf %651, %16 : vector<1x256xf32>
    %c0_255 = arith.constant 0 : index
    %c0_256 = arith.constant 0 : index
    %653 = vector.load %arg8[%c0_255, %c0_256] : memref<64x256xf32, #tpu.memory_space<vmem>>, vector<64x256xf32>
    %cst_257 = arith.constant dense<0.000000e+00> : vector<8x256xf32>
    %654 = tpu.matmul %609, %653, %cst_257 {dimension_numbers = #tpu.dot_dimension_numbers<[1], [0], [0], [1], [0, 0, 1, 1], [], []>} : vector<8x64xf32>, vector<64x256xf32>, vector<8x256xf32> -> vector<8x256xf32>
    %655 = vector.broadcast %652 : vector<1x256xf32> to vector<8x256xf32>
    %656 = arith.addf %654, %655 : vector<8x256xf32>
    %657 = math.tanh %656 : vector<8x256xf32>
    %658 = vector.extract_strided_slice %657 {offsets = [0, 0], sizes = [8, 192], strides = [1, 1]} : vector<8x256xf32> to vector<8x192xf32>
    %cst_258 = arith.constant 5.000000e-01 : f32
    %659 = vector.broadcast %cst_258 : f32 to vector<8x192xf32>
    %660 = arith.mulf %659, %658 : vector<8x192xf32>
    %cst_259 = arith.constant 5.000000e-01 : f32
    %661 = vector.broadcast %cst_259 : f32 to vector<8x192xf32>
    %662 = arith.addf %660, %661 : vector<8x192xf32>
    %663 = vector.extract_strided_slice %662 {offsets = [0, 0], sizes = [8, 64], strides = [1, 1]} : vector<8x192xf32> to vector<8x64xf32>
    %664 = vector.extract_strided_slice %662 {offsets = [0, 64], sizes = [8, 64], strides = [1, 1]} : vector<8x192xf32> to vector<8x64xf32>
    %665 = vector.extract_strided_slice %662 {offsets = [0, 128], sizes = [8, 64], strides = [1, 1]} : vector<8x192xf32> to vector<8x64xf32>
    %666 = vector.extract_strided_slice %657 {offsets = [0, 192], sizes = [8, 64], strides = [1, 1]} : vector<8x256xf32> to vector<8x64xf32>
    %667 = arith.mulf %664, %607 : vector<8x64xf32>
    %668 = arith.mulf %663, %666 : vector<8x64xf32>
    %669 = arith.addf %667, %668 : vector<8x64xf32>
    %670 = math.tanh %669 : vector<8x64xf32>
    %671 = arith.mulf %665, %670 : vector<8x64xf32>
    %c0_260 = arith.constant 0 : index
    %c0_261 = arith.constant 0 : index
    %672 = vector.load %arg11[%c0_260, %c0_261] : memref<64x256xf32, #tpu.memory_space<vmem>>, vector<64x256xf32>
    %cst_262 = arith.constant dense<0.000000e+00> : vector<8x256xf32>
    %673 = tpu.matmul %671, %672, %cst_262 {dimension_numbers = #tpu.dot_dimension_numbers<[1], [0], [0], [1], [0, 0, 1, 1], [], []>} : vector<8x64xf32>, vector<64x256xf32>, vector<8x256xf32> -> vector<8x256xf32>
    %c0_263 = arith.constant 0 : index
    %c0_264 = arith.constant 0 : index
    %674 = vector.load %arg12[%c0_263, %c0_264] : memref<64x256xf32, #tpu.memory_space<vmem>>, vector<64x256xf32>
    %cst_265 = arith.constant dense<0.000000e+00> : vector<8x256xf32>
    %675 = tpu.matmul %630, %674, %cst_265 {dimension_numbers = #tpu.dot_dimension_numbers<[1], [0], [0], [1], [0, 0, 1, 1], [], []>} : vector<8x64xf32>, vector<64x256xf32>, vector<8x256xf32> -> vector<8x256xf32>
    %676 = arith.addf %673, %675 : vector<8x256xf32>
    %677 = arith.addf %676, %12 : vector<8x256xf32>
    %678 = math.tanh %677 : vector<8x256xf32>
    %679 = vector.extract_strided_slice %678 {offsets = [0, 0], sizes = [8, 192], strides = [1, 1]} : vector<8x256xf32> to vector<8x192xf32>
    %cst_266 = arith.constant 5.000000e-01 : f32
    %680 = vector.broadcast %cst_266 : f32 to vector<8x192xf32>
    %681 = arith.mulf %680, %679 : vector<8x192xf32>
    %cst_267 = arith.constant 5.000000e-01 : f32
    %682 = vector.broadcast %cst_267 : f32 to vector<8x192xf32>
    %683 = arith.addf %681, %682 : vector<8x192xf32>
    %684 = vector.extract_strided_slice %683 {offsets = [0, 0], sizes = [8, 64], strides = [1, 1]} : vector<8x192xf32> to vector<8x64xf32>
    %685 = vector.extract_strided_slice %683 {offsets = [0, 64], sizes = [8, 64], strides = [1, 1]} : vector<8x192xf32> to vector<8x64xf32>
    %686 = vector.extract_strided_slice %683 {offsets = [0, 128], sizes = [8, 64], strides = [1, 1]} : vector<8x192xf32> to vector<8x64xf32>
    %687 = vector.extract_strided_slice %678 {offsets = [0, 192], sizes = [8, 64], strides = [1, 1]} : vector<8x256xf32> to vector<8x64xf32>
    %688 = arith.mulf %685, %628 : vector<8x64xf32>
    %689 = arith.mulf %684, %687 : vector<8x64xf32>
    %690 = arith.addf %688, %689 : vector<8x64xf32>
    %691 = math.tanh %690 : vector<8x64xf32>
    %692 = arith.mulf %686, %691 : vector<8x64xf32>
    %c0_268 = arith.constant 0 : index
    %c0_269 = arith.constant 0 : index
    %693 = vector.load %arg14[%c0_268, %c0_269] : memref<64x32xf32, #tpu.memory_space<vmem>>, vector<64x32xf32>
    %cst_270 = arith.constant dense<0.000000e+00> : vector<8x32xf32>
    %694 = tpu.matmul %692, %693, %cst_270 {dimension_numbers = #tpu.dot_dimension_numbers<[1], [0], [0], [1], [0, 0, 1, 1], [], []>} : vector<8x64xf32>, vector<64x32xf32>, vector<8x32xf32> -> vector<8x32xf32>
    %695 = arith.addf %694, %15 : vector<8x32xf32>
    %cst_271 = arith.constant dense<0xFF800000> : vector<8xf32>
    %696 = vector.multi_reduction <maximumf>, %695, %cst_271 [1] : vector<8x32xf32> to vector<8xf32>
    %697 = vector.shape_cast %696 : vector<8xf32> to vector<8x1xf32>
    %698 = vector.broadcast %697 : vector<8x1xf32> to vector<8x32xf32>
    %699 = arith.cmpf oeq, %695, %698 : vector<8x32xf32>
    %c32_i32_272 = arith.constant 32 : i32
    %700 = vector.broadcast %c32_i32_272 : i32 to vector<8x32xi32>
    %701 = arith.select %699, %338, %700 : vector<8x32xi1>, vector<8x32xi32>
    %cst_273 = arith.constant dense<2147483647> : vector<8xi32>
    %702 = vector.multi_reduction <minsi>, %701, %cst_273 [1] : vector<8x32xi32> to vector<8xi32>
    %703 = vector.shape_cast %702 : vector<8xi32> to vector<8x1xi32>
    %704 = vector.broadcast %703 : vector<8x1xi32> to vector<8x32xi32>
    %705 = arith.cmpi eq, %338, %704 : vector<8x32xi32>
    %706 = arith.andi %705, %341 : vector<8x32xi1>
    %cst_274 = arith.constant 1.000000e+00 : f32
    %cst_275 = arith.constant 0.000000e+00 : f32
    %707 = vector.broadcast %cst_274 : f32 to vector<8x32xf32>
    %708 = vector.broadcast %cst_275 : f32 to vector<8x32xf32>
    %709 = arith.select %706, %707, %708 : vector<8x32xi1>, vector<8x32xf32>
    %cst_276 = arith.constant dense<0xFF800000> : vector<32xf32>
    %710 = vector.multi_reduction <maximumf>, %709, %cst_276 [0] : vector<8x32xf32> to vector<32xf32>
    %711 = vector.shape_cast %710 : vector<32xf32> to vector<1x32xf32>
    %c0_277 = arith.constant 0 : index
    %c0_278 = arith.constant 0 : index
    %712 = vector.load %arg7[%c0_277, %c0_278] : memref<32x256xf32, #tpu.memory_space<vmem>>, vector<32x256xf32>
    %cst_279 = arith.constant dense<0.000000e+00> : vector<1x256xf32>
    %713 = tpu.matmul %711, %712, %cst_279 {dimension_numbers = #tpu.dot_dimension_numbers<[1], [0], [0], [1], [0, 0, 1, 1], [], []>} : vector<1x32xf32>, vector<32x256xf32>, vector<1x256xf32> -> vector<1x256xf32>
    %714 = arith.addf %713, %16 : vector<1x256xf32>
    %c0_280 = arith.constant 0 : index
    %c0_281 = arith.constant 0 : index
    %715 = vector.load %arg8[%c0_280, %c0_281] : memref<64x256xf32, #tpu.memory_space<vmem>>, vector<64x256xf32>
    %cst_282 = arith.constant dense<0.000000e+00> : vector<8x256xf32>
    %716 = tpu.matmul %671, %715, %cst_282 {dimension_numbers = #tpu.dot_dimension_numbers<[1], [0], [0], [1], [0, 0, 1, 1], [], []>} : vector<8x64xf32>, vector<64x256xf32>, vector<8x256xf32> -> vector<8x256xf32>
    %717 = vector.broadcast %714 : vector<1x256xf32> to vector<8x256xf32>
    %718 = arith.addf %716, %717 : vector<8x256xf32>
    %719 = math.tanh %718 : vector<8x256xf32>
    %720 = vector.extract_strided_slice %719 {offsets = [0, 0], sizes = [8, 192], strides = [1, 1]} : vector<8x256xf32> to vector<8x192xf32>
    %cst_283 = arith.constant 5.000000e-01 : f32
    %721 = vector.broadcast %cst_283 : f32 to vector<8x192xf32>
    %722 = arith.mulf %721, %720 : vector<8x192xf32>
    %cst_284 = arith.constant 5.000000e-01 : f32
    %723 = vector.broadcast %cst_284 : f32 to vector<8x192xf32>
    %724 = arith.addf %722, %723 : vector<8x192xf32>
    %725 = vector.extract_strided_slice %724 {offsets = [0, 0], sizes = [8, 64], strides = [1, 1]} : vector<8x192xf32> to vector<8x64xf32>
    %726 = vector.extract_strided_slice %724 {offsets = [0, 64], sizes = [8, 64], strides = [1, 1]} : vector<8x192xf32> to vector<8x64xf32>
    %727 = vector.extract_strided_slice %724 {offsets = [0, 128], sizes = [8, 64], strides = [1, 1]} : vector<8x192xf32> to vector<8x64xf32>
    %728 = vector.extract_strided_slice %719 {offsets = [0, 192], sizes = [8, 64], strides = [1, 1]} : vector<8x256xf32> to vector<8x64xf32>
    %729 = arith.mulf %726, %669 : vector<8x64xf32>
    %730 = arith.mulf %725, %728 : vector<8x64xf32>
    %731 = arith.addf %729, %730 : vector<8x64xf32>
    %732 = math.tanh %731 : vector<8x64xf32>
    %733 = arith.mulf %727, %732 : vector<8x64xf32>
    %c0_285 = arith.constant 0 : index
    %c0_286 = arith.constant 0 : index
    %734 = vector.load %arg11[%c0_285, %c0_286] : memref<64x256xf32, #tpu.memory_space<vmem>>, vector<64x256xf32>
    %cst_287 = arith.constant dense<0.000000e+00> : vector<8x256xf32>
    %735 = tpu.matmul %733, %734, %cst_287 {dimension_numbers = #tpu.dot_dimension_numbers<[1], [0], [0], [1], [0, 0, 1, 1], [], []>} : vector<8x64xf32>, vector<64x256xf32>, vector<8x256xf32> -> vector<8x256xf32>
    %c0_288 = arith.constant 0 : index
    %c0_289 = arith.constant 0 : index
    %736 = vector.load %arg12[%c0_288, %c0_289] : memref<64x256xf32, #tpu.memory_space<vmem>>, vector<64x256xf32>
    %cst_290 = arith.constant dense<0.000000e+00> : vector<8x256xf32>
    %737 = tpu.matmul %692, %736, %cst_290 {dimension_numbers = #tpu.dot_dimension_numbers<[1], [0], [0], [1], [0, 0, 1, 1], [], []>} : vector<8x64xf32>, vector<64x256xf32>, vector<8x256xf32> -> vector<8x256xf32>
    %738 = arith.addf %735, %737 : vector<8x256xf32>
    %739 = arith.addf %738, %12 : vector<8x256xf32>
    %740 = math.tanh %739 : vector<8x256xf32>
    %741 = vector.extract_strided_slice %740 {offsets = [0, 0], sizes = [8, 192], strides = [1, 1]} : vector<8x256xf32> to vector<8x192xf32>
    %cst_291 = arith.constant 5.000000e-01 : f32
    %742 = vector.broadcast %cst_291 : f32 to vector<8x192xf32>
    %743 = arith.mulf %742, %741 : vector<8x192xf32>
    %cst_292 = arith.constant 5.000000e-01 : f32
    %744 = vector.broadcast %cst_292 : f32 to vector<8x192xf32>
    %745 = arith.addf %743, %744 : vector<8x192xf32>
    %746 = vector.extract_strided_slice %745 {offsets = [0, 0], sizes = [8, 64], strides = [1, 1]} : vector<8x192xf32> to vector<8x64xf32>
    %747 = vector.extract_strided_slice %745 {offsets = [0, 64], sizes = [8, 64], strides = [1, 1]} : vector<8x192xf32> to vector<8x64xf32>
    %748 = vector.extract_strided_slice %745 {offsets = [0, 128], sizes = [8, 64], strides = [1, 1]} : vector<8x192xf32> to vector<8x64xf32>
    %749 = vector.extract_strided_slice %740 {offsets = [0, 192], sizes = [8, 64], strides = [1, 1]} : vector<8x256xf32> to vector<8x64xf32>
    %750 = arith.mulf %747, %690 : vector<8x64xf32>
    %751 = arith.mulf %746, %749 : vector<8x64xf32>
    %752 = arith.addf %750, %751 : vector<8x64xf32>
    %753 = math.tanh %752 : vector<8x64xf32>
    %754 = arith.mulf %748, %753 : vector<8x64xf32>
    %c0_293 = arith.constant 0 : index
    %c0_294 = arith.constant 0 : index
    %755 = vector.load %arg14[%c0_293, %c0_294] : memref<64x32xf32, #tpu.memory_space<vmem>>, vector<64x32xf32>
    %cst_295 = arith.constant dense<0.000000e+00> : vector<8x32xf32>
    %756 = tpu.matmul %754, %755, %cst_295 {dimension_numbers = #tpu.dot_dimension_numbers<[1], [0], [0], [1], [0, 0, 1, 1], [], []>} : vector<8x64xf32>, vector<64x32xf32>, vector<8x32xf32> -> vector<8x32xf32>
    %757 = arith.addf %756, %15 : vector<8x32xf32>
    %cst_296 = arith.constant dense<0xFF800000> : vector<8xf32>
    %758 = vector.multi_reduction <maximumf>, %757, %cst_296 [1] : vector<8x32xf32> to vector<8xf32>
    %759 = vector.shape_cast %758 : vector<8xf32> to vector<8x1xf32>
    %760 = vector.broadcast %759 : vector<8x1xf32> to vector<8x32xf32>
    %761 = arith.cmpf oeq, %757, %760 : vector<8x32xf32>
    %c32_i32_297 = arith.constant 32 : i32
    %762 = vector.broadcast %c32_i32_297 : i32 to vector<8x32xi32>
    %763 = arith.select %761, %338, %762 : vector<8x32xi1>, vector<8x32xi32>
    %cst_298 = arith.constant dense<2147483647> : vector<8xi32>
    %764 = vector.multi_reduction <minsi>, %763, %cst_298 [1] : vector<8x32xi32> to vector<8xi32>
    %765 = vector.shape_cast %764 : vector<8xi32> to vector<8x1xi32>
    %766 = vector.broadcast %765 : vector<8x1xi32> to vector<8x32xi32>
    %767 = arith.cmpi eq, %338, %766 : vector<8x32xi32>
    %768 = arith.andi %767, %341 : vector<8x32xi1>
    %cst_299 = arith.constant 1.000000e+00 : f32
    %cst_300 = arith.constant 0.000000e+00 : f32
    %769 = vector.broadcast %cst_299 : f32 to vector<8x32xf32>
    %770 = vector.broadcast %cst_300 : f32 to vector<8x32xf32>
    %771 = arith.select %768, %769, %770 : vector<8x32xi1>, vector<8x32xf32>
    %cst_301 = arith.constant dense<0xFF800000> : vector<32xf32>
    %772 = vector.multi_reduction <maximumf>, %771, %cst_301 [0] : vector<8x32xf32> to vector<32xf32>
    %773 = vector.shape_cast %772 : vector<32xf32> to vector<1x32xf32>
    %c0_302 = arith.constant 0 : index
    %c0_303 = arith.constant 0 : index
    %774 = vector.load %arg7[%c0_302, %c0_303] : memref<32x256xf32, #tpu.memory_space<vmem>>, vector<32x256xf32>
    %cst_304 = arith.constant dense<0.000000e+00> : vector<1x256xf32>
    %775 = tpu.matmul %773, %774, %cst_304 {dimension_numbers = #tpu.dot_dimension_numbers<[1], [0], [0], [1], [0, 0, 1, 1], [], []>} : vector<1x32xf32>, vector<32x256xf32>, vector<1x256xf32> -> vector<1x256xf32>
    %776 = arith.addf %775, %16 : vector<1x256xf32>
    %c0_305 = arith.constant 0 : index
    %c0_306 = arith.constant 0 : index
    %777 = vector.load %arg8[%c0_305, %c0_306] : memref<64x256xf32, #tpu.memory_space<vmem>>, vector<64x256xf32>
    %cst_307 = arith.constant dense<0.000000e+00> : vector<8x256xf32>
    %778 = tpu.matmul %733, %777, %cst_307 {dimension_numbers = #tpu.dot_dimension_numbers<[1], [0], [0], [1], [0, 0, 1, 1], [], []>} : vector<8x64xf32>, vector<64x256xf32>, vector<8x256xf32> -> vector<8x256xf32>
    %779 = vector.broadcast %776 : vector<1x256xf32> to vector<8x256xf32>
    %780 = arith.addf %778, %779 : vector<8x256xf32>
    %781 = math.tanh %780 : vector<8x256xf32>
    %782 = vector.extract_strided_slice %781 {offsets = [0, 0], sizes = [8, 192], strides = [1, 1]} : vector<8x256xf32> to vector<8x192xf32>
    %cst_308 = arith.constant 5.000000e-01 : f32
    %783 = vector.broadcast %cst_308 : f32 to vector<8x192xf32>
    %784 = arith.mulf %783, %782 : vector<8x192xf32>
    %cst_309 = arith.constant 5.000000e-01 : f32
    %785 = vector.broadcast %cst_309 : f32 to vector<8x192xf32>
    %786 = arith.addf %784, %785 : vector<8x192xf32>
    %787 = vector.extract_strided_slice %786 {offsets = [0, 0], sizes = [8, 64], strides = [1, 1]} : vector<8x192xf32> to vector<8x64xf32>
    %788 = vector.extract_strided_slice %786 {offsets = [0, 64], sizes = [8, 64], strides = [1, 1]} : vector<8x192xf32> to vector<8x64xf32>
    %789 = vector.extract_strided_slice %786 {offsets = [0, 128], sizes = [8, 64], strides = [1, 1]} : vector<8x192xf32> to vector<8x64xf32>
    %790 = vector.extract_strided_slice %781 {offsets = [0, 192], sizes = [8, 64], strides = [1, 1]} : vector<8x256xf32> to vector<8x64xf32>
    %791 = arith.mulf %788, %731 : vector<8x64xf32>
    %792 = arith.mulf %787, %790 : vector<8x64xf32>
    %793 = arith.addf %791, %792 : vector<8x64xf32>
    %794 = math.tanh %793 : vector<8x64xf32>
    %795 = arith.mulf %789, %794 : vector<8x64xf32>
    %c0_310 = arith.constant 0 : index
    %c0_311 = arith.constant 0 : index
    %796 = vector.load %arg11[%c0_310, %c0_311] : memref<64x256xf32, #tpu.memory_space<vmem>>, vector<64x256xf32>
    %cst_312 = arith.constant dense<0.000000e+00> : vector<8x256xf32>
    %797 = tpu.matmul %795, %796, %cst_312 {dimension_numbers = #tpu.dot_dimension_numbers<[1], [0], [0], [1], [0, 0, 1, 1], [], []>} : vector<8x64xf32>, vector<64x256xf32>, vector<8x256xf32> -> vector<8x256xf32>
    %c0_313 = arith.constant 0 : index
    %c0_314 = arith.constant 0 : index
    %798 = vector.load %arg12[%c0_313, %c0_314] : memref<64x256xf32, #tpu.memory_space<vmem>>, vector<64x256xf32>
    %cst_315 = arith.constant dense<0.000000e+00> : vector<8x256xf32>
    %799 = tpu.matmul %754, %798, %cst_315 {dimension_numbers = #tpu.dot_dimension_numbers<[1], [0], [0], [1], [0, 0, 1, 1], [], []>} : vector<8x64xf32>, vector<64x256xf32>, vector<8x256xf32> -> vector<8x256xf32>
    %800 = arith.addf %797, %799 : vector<8x256xf32>
    %801 = arith.addf %800, %12 : vector<8x256xf32>
    %802 = math.tanh %801 : vector<8x256xf32>
    %803 = vector.extract_strided_slice %802 {offsets = [0, 0], sizes = [8, 192], strides = [1, 1]} : vector<8x256xf32> to vector<8x192xf32>
    %cst_316 = arith.constant 5.000000e-01 : f32
    %804 = vector.broadcast %cst_316 : f32 to vector<8x192xf32>
    %805 = arith.mulf %804, %803 : vector<8x192xf32>
    %cst_317 = arith.constant 5.000000e-01 : f32
    %806 = vector.broadcast %cst_317 : f32 to vector<8x192xf32>
    %807 = arith.addf %805, %806 : vector<8x192xf32>
    %808 = vector.extract_strided_slice %807 {offsets = [0, 0], sizes = [8, 64], strides = [1, 1]} : vector<8x192xf32> to vector<8x64xf32>
    %809 = vector.extract_strided_slice %807 {offsets = [0, 64], sizes = [8, 64], strides = [1, 1]} : vector<8x192xf32> to vector<8x64xf32>
    %810 = vector.extract_strided_slice %807 {offsets = [0, 128], sizes = [8, 64], strides = [1, 1]} : vector<8x192xf32> to vector<8x64xf32>
    %811 = vector.extract_strided_slice %802 {offsets = [0, 192], sizes = [8, 64], strides = [1, 1]} : vector<8x256xf32> to vector<8x64xf32>
    %812 = arith.mulf %809, %752 : vector<8x64xf32>
    %813 = arith.mulf %808, %811 : vector<8x64xf32>
    %814 = arith.addf %812, %813 : vector<8x64xf32>
    %815 = math.tanh %814 : vector<8x64xf32>
    %816 = arith.mulf %810, %815 : vector<8x64xf32>
    %c0_318 = arith.constant 0 : index
    %c0_319 = arith.constant 0 : index
    %817 = vector.load %arg14[%c0_318, %c0_319] : memref<64x32xf32, #tpu.memory_space<vmem>>, vector<64x32xf32>
    %cst_320 = arith.constant dense<0.000000e+00> : vector<8x32xf32>
    %818 = tpu.matmul %816, %817, %cst_320 {dimension_numbers = #tpu.dot_dimension_numbers<[1], [0], [0], [1], [0, 0, 1, 1], [], []>} : vector<8x64xf32>, vector<64x32xf32>, vector<8x32xf32> -> vector<8x32xf32>
    %819 = arith.addf %818, %15 : vector<8x32xf32>
    %820 = tpu.concatenate %385, %447, %509, %571, %633, %695, %757, %819 in 1 : vector<8x32xf32>, vector<8x32xf32>, vector<8x32xf32>, vector<8x32xf32>, vector<8x32xf32>, vector<8x32xf32>, vector<8x32xf32>, vector<8x32xf32> -> vector<8x256xf32>
    %c0_321 = arith.constant 0 : index
    %c0_322 = arith.constant 0 : index
    %821 = vector.load %arg16[%c0_321, %c0_322] : memref<8x256xf32, #tpu.memory_space<vmem>>, vector<8x256xf32>
    tpu.vector_store %arg16[%c0_321, %c0_322], %820 {strides = array<i32>} : memref<8x256xf32, #tpu.memory_space<vmem>>, vector<8x256xf32>,
    return
  }
}

</mosaic_0001>

<llo_original>
// kernel: tpu_custom_call.1
$region0: #{tpu_custom_call.1}
  #allocation0 [shape = 'u32[]', space=smem, size = 0x4, offset = 0x4, fixed_abs, tag = 'smem constant byte address 0x4 - core index']
  #allocation1 [shape = 'u32[144,128]{1,0:T(1,128)}', space=vmem, size = 0x12000, scoped, tag = 'internal scratch']
  #allocation2 [shape = 'f32[64,256]{1,0:T(8,128)}', space=vmem, size = 0x10000, scoped, tag = 'scratch operand']
  %s0 = inlined_call_operand.vmem [shape: f32[64,32], index: 0, kind: input, shape index: {}]
  %s1 = inlined_call_operand.vmem [shape: f32[32,256], index: 1, kind: input, shape index: {}]
  %s2 = inlined_call_operand.vmem [shape: f32[1,256], index: 2, kind: input, shape index: {}]
  %s3 = inlined_call_operand.vmem [shape: f32[64,256], index: 3, kind: input, shape index: {}]
  %s4 = inlined_call_operand.hbm [shape: f32[64,256], index: 4, kind: input, shape index: {}]
  %s5 = inlined_call_operand.hbm [shape: f32[64,256], index: 5, kind: input, shape index: {}]
  %s6 = inlined_call_operand.vmem [shape: f32[1,256], index: 6, kind: input, shape index: {}]
  %s7 = inlined_call_operand.hbm [shape: f32[32,256], index: 7, kind: input, shape index: {}]
  %s8 = inlined_call_operand.hbm [shape: f32[64,256], index: 8, kind: input, shape index: {}]
  %s9 = inlined_call_operand.vmem [shape: f32[1,256], index: 9, kind: input, shape index: {}]
  %s10 = inlined_call_operand.vmem [shape: f32[1,256], index: 10, kind: input, shape index: {}]
  %s11 = inlined_call_operand.hbm [shape: f32[64,256], index: 11, kind: input, shape index: {}]
  %s12 = inlined_call_operand.hbm [shape: f32[64,256], index: 12, kind: input, shape index: {}]
  %s13 = inlined_call_operand.vmem [shape: f32[1,256], index: 13, kind: input, shape index: {}]
  %s14 = inlined_call_operand.vmem [shape: f32[64,32], index: 14, kind: input, shape index: {}]
  %s15 = inlined_call_operand.vmem [shape: f32[1,32], index: 15, kind: input, shape index: {}]
  %s16 = inlined_call_operand.hbm [shape: f32[8,256], index: 16, kind: output, shape index: {}]
  %s17 = sld [smem:[#allocation0]]
  $region98: #{tpu_custom_call.1} parent=0
    _
  %s19 = ssub.s32 1, %s17
  %s20 = scalar_select 0, %s19, %s17
  $region1: #{tpu_custom_call.1} parent=0
    #allocation3 [shape = 'u8[65536]{0}', space=vmem, size = 0x10000, scoped, tag = 'input window, operand 4, single buffered']
    #allocation4 [shape = 's32[1]{0}', space=sflag, size = 0x4, scoped, tag = 'scoped memory for tpu_custom_call.1']
    #allocation5 [shape = 's32[1]{0}', space=sflag, size = 0x4, scoped, tag = 'scoped memory for tpu_custom_call.1']
    #allocation6 [shape = 'u8[65536]{0}', space=vmem, size = 0x10000, scoped, tag = 'input window, operand 5, single buffered']
    #allocation7 [shape = 's32[1]{0}', space=sflag, size = 0x4, scoped, tag = 'scoped memory for tpu_custom_call.1']
    #allocation8 [shape = 'u8[32768]{0}', space=vmem, size = 0x8000, scoped, tag = 'input window, operand 7, single buffered']
    #allocation9 [shape = 'u8[65536]{0}', space=vmem, size = 0x10000, scoped, tag = 'input window, operand 8, single buffered']
    #allocation10 [shape = 's32[1]{0}', space=sflag, size = 0x4, scoped, tag = 'scoped memory for tpu_custom_call.1']
    #allocation11 [shape = 'u8[65536]{0}', space=vmem, size = 0x10000, scoped, tag = 'input window, operand 11, single buffered']
    #allocation12 [shape = 'u8[65536]{0}', space=vmem, size = 0x10000, scoped, tag = 'input window, operand 12, single buffered']
    #allocation13 [shape = 's32[1]{0}', space=sflag, size = 0x4, scoped, tag = 'scoped memory for tpu_custom_call.1']
    #allocation14 [shape = 'u8[8192]{0}', space=vmem, size = 0x2000, scoped, tag = 'output window, operand 0, single buffered']
    %21 = vsyncpa [#allocation4], 0
    %22 = vsyncpa [#allocation7], 0
    %23 = vsyncpa [#allocation10], 0
    %24 = vsyncpa [#allocation13], 0
    %25 = vsyncpa [#allocation5], 0
    // Predicated region
    $region2: #{tpu_custom_call.1} parent=1 // pred_check
      _
    $region3: #{tpu_custom_call.1} parent=1 // pred_check_branch
      %27 = sbr.rel (0) target = $region5
    $region4: #{tpu_custom_call.1} parent=1 // pred_region
      _
    $region5: #{tpu_custom_call.1} parent=1 // pred_fallthru
      _
    // Predicated region
    $region6: #{tpu_custom_call.1} parent=1 // pred_check
      _
    $region7: #{tpu_custom_call.1} parent=1 // pred_check_branch
      %29 = sbr.rel (0) target = $region9
    $region8: #{tpu_custom_call.1} parent=1 // pred_region
      _
    $region9: #{tpu_custom_call.1} parent=1 // pred_fallthru
      _
    // Predicated region
    $region10: #{tpu_custom_call.1} parent=1 // pred_check
      _
    $region11: #{tpu_custom_call.1} parent=1 // pred_check_branch
      %31 = sbr.rel (0) target = $region13
    $region12: #{tpu_custom_call.1} parent=1 // pred_region
      _
    $region13: #{tpu_custom_call.1} parent=1 // pred_fallthru
      _
    // Predicated region
    $region14: #{tpu_custom_call.1} parent=1 // pred_check
      _
    $region15: #{tpu_custom_call.1} parent=1 // pred_check_branch
      %33 = sbr.rel (0) target = $region17
    $region16: #{tpu_custom_call.1} parent=1 // pred_region
      _
    $region17: #{tpu_custom_call.1} parent=1 // pred_fallthru
      _
    // Predicated region
    $region18: #{tpu_custom_call.1} parent=1 // pred_check
      _
    $region19: #{tpu_custom_call.1} parent=1 // pred_check_branch
      %35 = sbr.rel (0) target = $region21
    $region20: #{tpu_custom_call.1} parent=1 // pred_region
      %s37 = ssub.s32 2048, 2048
      %38 = vsyncadd [#allocation4], %s37
      %s39 = sshll.u32 [#allocation3], 4
      %s40 = int_to_ptr.vmem [resolvable:$true] %s39
      %45 = dma.hbm_to_vmem [thread:$0]  %s4, 2048, %s40, [#allocation4], 256, 256, 16
    $region21: #{tpu_custom_call.1} parent=1 // pred_fallthru
      _
    // Predicated region
    $region22: #{tpu_custom_call.1} parent=1 // pred_check
      _
    $region23: #{tpu_custom_call.1} parent=1 // pred_check_branch
      %47 = sbr.rel (0) target = $region25
    $region24: #{tpu_custom_call.1} parent=1 // pred_region
      %s49 = ssub.s32 2048, 2048
      %50 = vsyncadd [#allocation7], %s49
      %s51 = sshll.u32 [#allocation6], 4
      %s52 = int_to_ptr.vmem [resolvable:$true] %s51
      %57 = dma.hbm_to_vmem [thread:$0]  %s5, 2048, %s52, [#allocation7], 256, 256, 16
    $region25: #{tpu_custom_call.1} parent=1 // pred_fallthru
      _
    // Predicated region
    $region26: #{tpu_custom_call.1} parent=1 // pred_check
      _
    $region27: #{tpu_custom_call.1} parent=1 // pred_check_branch
      %59 = sbr.rel (0) target = $region29
    $region28: #{tpu_custom_call.1} parent=1 // pred_region
      _
    $region29: #{tpu_custom_call.1} parent=1 // pred_fallthru
      _
    // Predicated region
    $region30: #{tpu_custom_call.1} parent=1 // pred_check
      _
    $region31: #{tpu_custom_call.1} parent=1 // pred_check_branch
      %61 = sbr.rel (0) target = $region33
    $region32: #{tpu_custom_call.1} parent=1 // pred_region
      %s63 = ssub.s32 1024, 1024
      %64 = vsyncadd [#allocation7], %s63
      %s65 = sshll.u32 [#allocation8], 4
      %s66 = int_to_ptr.vmem [resolvable:$true] %s65
      %71 = dma.hbm_to_vmem [thread:$0]  %s7, 1024, %s66, [#allocation7], 256, 256, 16
    $region33: #{tpu_custom_call.1} parent=1 // pred_fallthru
      _
    // Predicated region
    $region34: #{tpu_custom_call.1} parent=1 // pred_check
      _
    $region35: #{tpu_custom_call.1} parent=1 // pred_check_branch
      %73 = sbr.rel (0) target = $region37
    $region36: #{tpu_custom_call.1} parent=1 // pred_region
      %s75 = ssub.s32 2048, 2048
      %76 = vsyncadd [#allocation10], %s75
      %s77 = sshll.u32 [#allocation9], 4
      %s78 = int_to_ptr.vmem [resolvable:$true] %s77
      %83 = dma.hbm_to_vmem [thread:$0]  %s8, 2048, %s78, [#allocation10], 256, 256, 16
    $region37: #{tpu_custom_call.1} parent=1 // pred_fallthru
      _
    // Predicated region
    $region38: #{tpu_custom_call.1} parent=1 // pred_check
      _
    $region39: #{tpu_custom_call.1} parent=1 // pred_check_branch
      %85 = sbr.rel (0) target = $region41
    $region40: #{tpu_custom_call.1} parent=1 // pred_region
      _
    $region41: #{tpu_custom_call.1} parent=1 // pred_fallthru
      _
    // Predicated region
    $region42: #{tpu_custom_call.1} parent=1 // pred_check
      _
    $region43: #{tpu_custom_call.1} parent=1 // pred_check_branch
      %87 = sbr.rel (0) target = $region45
    $region44: #{tpu_custom_call.1} parent=1 // pred_region
      _
    $region45: #{tpu_custom_call.1} parent=1 // pred_fallthru
      _
    // Predicated region
    $region46: #{tpu_custom_call.1} parent=1 // pred_check
      _
    $region47: #{tpu_custom_call.1} parent=1 // pred_check_branch
      %89 = sbr.rel (0) target = $region49
    $region48: #{tpu_custom_call.1} parent=1 // pred_region
      %s91 = ssub.s32 2048, 2048
      %92 = vsyncadd [#allocation10], %s91
      %s93 = sshll.u32 [#allocation11], 4
      %s94 = int_to_ptr.vmem [resolvable:$true] %s93
      %99 = dma.hbm_to_vmem [thread:$0]  %s11, 2048, %s94, [#allocation10], 256, 256, 16
    $region49: #{tpu_custom_call.1} parent=1 // pred_fallthru
      _
    // Predicated region
    $region50: #{tpu_custom_call.1} parent=1 // pred_check
      _
    $region51: #{tpu_custom_call.1} parent=1 // pred_check_branch
      %101 = sbr.rel (0) target = $region53
    $region52: #{tpu_custom_call.1} parent=1 // pred_region
      %s103 = ssub.s32 2048, 2048
      %104 = vsyncadd [#allocation13], %s103
      %s105 = sshll.u32 [#allocation12], 4
      %s106 = int_to_ptr.vmem [resolvable:$true] %s105
      %111 = dma.hbm_to_vmem [thread:$0]  %s12, 2048, %s106, [#allocation13], 256, 256, 16
    $region53: #{tpu_custom_call.1} parent=1 // pred_fallthru
      _
    // Predicated region
    $region54: #{tpu_custom_call.1} parent=1 // pred_check
      _
    $region55: #{tpu_custom_call.1} parent=1 // pred_check_branch
      %113 = sbr.rel (0) target = $region57
    $region56: #{tpu_custom_call.1} parent=1 // pred_region
      _
    $region57: #{tpu_custom_call.1} parent=1 // pred_fallthru
      _
    // Predicated region
    $region58: #{tpu_custom_call.1} parent=1 // pred_check
      _
    $region59: #{tpu_custom_call.1} parent=1 // pred_check_branch
      %115 = sbr.rel (0) target = $region61
    $region60: #{tpu_custom_call.1} parent=1 // pred_region
      _
    $region61: #{tpu_custom_call.1} parent=1 // pred_fallthru
      _
    // Predicated region
    $region62: #{tpu_custom_call.1} parent=1 // pred_check
      _
    $region63: #{tpu_custom_call.1} parent=1 // pred_check_branch
      %117 = sbr.rel (0) target = $region65
    $region64: #{tpu_custom_call.1} parent=1 // pred_region
      _
    $region65: #{tpu_custom_call.1} parent=1 // pred_fallthru
      _
    // Predicated region
    $region66: #{tpu_custom_call.1} parent=1 // pred_check
      _
    $region67: #{tpu_custom_call.1} parent=1 // pred_check_branch
      %119 = sbr.rel (0) target = $region69
    $region68: #{tpu_custom_call.1} parent=1 // pred_region
      %120 = dma.done [#allocation4], 2048
    $region69: #{tpu_custom_call.1} parent=1 // pred_fallthru
      _
    // Predicated region
    $region70: #{tpu_custom_call.1} parent=1 // pred_check
      _
    $region71: #{tpu_custom_call.1} parent=1 // pred_check_branch
      %122 = sbr.rel (0) target = $region73
    $region72: #{tpu_custom_call.1} parent=1 // pred_region
      %123 = dma.done [#allocation7], 2048
    $region73: #{tpu_custom_call.1} parent=1 // pred_fallthru
      _
    // Predicated region
    $region74: #{tpu_custom_call.1} parent=1 // pred_check
      _
    $region75: #{tpu_custom_call.1} parent=1 // pred_check_branch
      %125 = sbr.rel (0) target = $region77
    $region76: #{tpu_custom_call.1} parent=1 // pred_region
      %126 = dma.done [#allocation7], 1024
    $region77: #{tpu_custom_call.1} parent=1 // pred_fallthru
      _
    // Predicated region
    $region78: #{tpu_custom_call.1} parent=1 // pred_check
      _
    $region79: #{tpu_custom_call.1} parent=1 // pred_check_branch
      %128 = sbr.rel (0) target = $region81
    $region80: #{tpu_custom_call.1} parent=1 // pred_region
      %129 = dma.done [#allocation10], 2048
    $region81: #{tpu_custom_call.1} parent=1 // pred_fallthru
      _
    // Predicated region
    $region82: #{tpu_custom_call.1} parent=1 // pred_check
      _
    $region83: #{tpu_custom_call.1} parent=1 // pred_check_branch
      %131 = sbr.rel (0) target = $region85
    $region84: #{tpu_custom_call.1} parent=1 // pred_region
      %132 = dma.done [#allocation10], 2048
    $region85: #{tpu_custom_call.1} parent=1 // pred_fallthru
      _
    // Predicated region
    $region86: #{tpu_custom_call.1} parent=1 // pred_check
      _
    $region87: #{tpu_custom_call.1} parent=1 // pred_check_branch
      %134 = sbr.rel (0) target = $region89
    $region88: #{tpu_custom_call.1} parent=1 // pred_region
      %135 = dma.done [#allocation13], 2048
    $region89: #{tpu_custom_call.1} parent=1 // pred_fallthru
      _
    %v136 = vld [vmem:[%s0] sm:$0xff]
    %v137 = vld [vmem:[%s0 + $0x8] sm:$0xff]
    %v138 = vld [vmem:[%s0 + $0x10] sm:$0xff]
    %v139 = vld [vmem:[%s0 + $0x18] sm:$0xff]
    %v140 = vld [vmem:[%s0 + $0x20] sm:$0xff]
    %v141 = vld [vmem:[%s0 + $0x28] sm:$0xff]
    %v142 = vld [vmem:[%s0 + $0x30] sm:$0xff]
    %v143 = vld [vmem:[%s0 + $0x38] sm:$0xff]
    %v144 = vld [vmem:[%s1] sm:$0xff]
    %v145 = vld [vmem:[%s1 + $0x8] sm:$0xff]
    %v146 = vld [vmem:[%s1 + $0x10] sm:$0xff]
    %v147 = vld [vmem:[%s1 + $0x18] sm:$0xff]
    %v148 = vld [vmem:[%s1 + $0x20] sm:$0xff]
    %v149 = vld [vmem:[%s1 + $0x28] sm:$0xff]
    %v150 = vld [vmem:[%s1 + $0x30] sm:$0xff]
    %v151 = vld [vmem:[%s1 + $0x38] sm:$0xff]
    %v152 = vld [vmem:[%s2] sm:$0x3]
    %v154 = vlaneseq
    %v155 = vshrl.u32 %v154, 7
    %v156 = vsub.s32 0, %v155
    %v157 = vrot.slane %v152, %v156
    %v158 = vlaneseq
    %v159 = vshrl.u32 %v158, 7
    %v160 = vsub.s32 1, %v159
    %v161 = vrot.slane %v152, %v160
    %vm164 = vcmask 261120
    %v166 = vsel %vm164, %v136, 0
    %v169 = vsel %vm164, %v137, 0
    %v172 = vsel %vm164, %v138, 0
    %v175 = vsel %vm164, %v139, 0
    %v178 = vsel %vm164, %v140, 0
    %v181 = vsel %vm164, %v141, 0
    %v184 = vsel %vm164, %v142, 0
    %v187 = vsel %vm164, %v143, 0
    %189 = vmatprep.subr.mxu0 0.0
    %190 = vmatpush1.msra.mxu0 0.0
    %191 = vmatprep.subr.mxu0 0.0
    %192 = vmatpush1.msra.mxu0 0.0
    %193 = vmatprep.subr.mxu0 0.0
    %194 = vmatpush1.msra.mxu0 0.0
    %195 = vmatprep.subr.mxu0 0.0
    %196 = vmatpush1.msra.mxu0 0.0
    %197 = vmatprep.subr.mxu0 0.0
    %198 = vmatpush1.msra.mxu0 0.0
    %199 = vmatprep.subr.mxu0 0.0
    %200 = vmatpush1.msra.mxu0 0.0
    %201 = vmatprep.subr.mxu0 0.0
    %202 = vmatpush1.msra.mxu0 0.0
    %203 = vmatprep.subr.mxu0 0.0
    %204 = vmatpush1.msra.mxu0 0.0
    %205 = vmatprep.subr.mxu0 0.0
    %206 = vmatpush1.msra.mxu0 0.0
    %207 = vmatprep.subr.mxu0 0.0
    %208 = vmatpush1.msra.mxu0 0.0
    %209 = vmatprep.subr.mxu0 0.0
    %210 = vmatpush1.msra.mxu0 0.0
    %211 = vmatprep.subr.mxu0 0.0
    %212 = vmatpush1.msra.mxu0 0.0
    %213 = vmatprep.subr.mxu0 %v151
    %214 = vmatpush1.msra.mxu0 %v150
    %215 = vmatprep.subr.mxu0 %v149
    %216 = vmatpush1.msra.mxu0 %v148
    %217 = vmatprep.subr.mxu0 %v147
    %218 = vmatpush1.msra.mxu0 %v146
    %219 = vmatprep.subr.mxu0 %v145
    %220 = vmatpush1.msra.mxu0 %v144
    %221 = vmatprep.subr.mxu0 0.0
    %222 = vmatpush2.msra.mxu0 0.0
    %223 = vmatprep.subr.mxu0 0.0
    %224 = vmatpush2.msra.mxu0 0.0
    %225 = vmatprep.subr.mxu0 0.0
    %226 = vmatpush2.msra.mxu0 0.0
    %227 = vmatprep.subr.mxu0 0.0
    %228 = vmatpush2.msra.mxu0 0.0
    %229 = vmatprep.subr.mxu0 0.0
    %230 = vmatpush2.msra.mxu0 0.0
    %231 = vmatprep.subr.mxu0 0.0
    %232 = vmatpush2.msra.mxu0 0.0
    %233 = vmatprep.subr.mxu0 0.0
    %234 = vmatpush2.msra.mxu0 0.0
    %235 = vmatprep.subr.mxu0 0.0
    %236 = vmatpush2.msra.mxu0 0.0
    %237 = vmatprep.subr.mxu0 0.0
    %238 = vmatpush2.msra.mxu0 0.0
    %239 = vmatprep.subr.mxu0 0.0
    %240 = vmatpush2.msra.mxu0 0.0
    %241 = vmatprep.subr.mxu0 0.0
    %242 = vmatpush2.msra.mxu0 0.0
    %243 = vmatprep.subr.mxu0 0.0
    %244 = vmatpush2.msra.mxu0 0.0
    %245 = vmatprep.subr.mxu0 0.0
    %246 = vmatpush2.msra.mxu0 0.0
    %247 = vmatprep.subr.mxu0 0.0
    %248 = vmatpush2.msra.mxu0 0.0
    %249 = vmatprep.subr.mxu0 0.0
    %250 = vmatpush2.msra.mxu0 0.0
    %251 = vmatprep.subr.mxu0 0.0
    %252 = vmatpush2.msra.mxu0 0.0
    %253 = vmatprep.mubr.f32.mxu0 0.0
    %254 = vmatmul.mubr.f32.gmra.mxu0 %v166
    %v255 = vpop.f32.mrf.mxu0
    %v256 = vadd.f32 %v157, %v255
    %v257 = vpop.f32.mrf.mxu0
    %v258 = vadd.f32 %v161, %v257
    %259 = vmatprep.mubr.f32.mxu0 0.0
    %260 = vmatmul.mubr.f32.gmra.mxu0 %v169
    %v261 = vpop.f32.mrf.mxu0
    %v262 = vadd.f32 %v157, %v261
    %v263 = vpop.f32.mrf.mxu0
    %v264 = vadd.f32 %v161, %v263
    %265 = vmatprep.mubr.f32.mxu0 0.0
    %266 = vmatmul.mubr.f32.gmra.mxu0 %v172
    %v267 = vpop.f32.mrf.mxu0
    %v268 = vadd.f32 %v157, %v267
    %v269 = vpop.f32.mrf.mxu0
    %v270 = vadd.f32 %v161, %v269
    %271 = vmatprep.mubr.f32.mxu0 0.0
    %272 = vmatmul.mubr.f32.gmra.mxu0 %v175
    %v273 = vpop.f32.mrf.mxu0
    %v274 = vadd.f32 %v157, %v273
    %v275 = vpop.f32.mrf.mxu0
    %v276 = vadd.f32 %v161, %v275
    %277 = vmatprep.mubr.f32.mxu0 0.0
    %278 = vmatmul.mubr.f32.gmra.mxu0 %v178
    %v279 = vpop.f32.mrf.mxu0
    %v280 = vadd.f32 %v157, %v279
    %v281 = vpop.f32.mrf.mxu0
    %v282 = vadd.f32 %v161, %v281
    %283 = vmatprep.mubr.f32.mxu0 0.0
    %284 = vmatmul.mubr.f32.gmra.mxu0 %v181
    %v285 = vpop.f32.mrf.mxu0
    %v286 = vadd.f32 %v157, %v285
    %v287 = vpop.f32.mrf.mxu0
    %v288 = vadd.f32 %v161, %v287
    %289 = vmatprep.mubr.f32.mxu0 0.0
    %290 = vmatmul.mubr.f32.gmra.mxu0 %v184
    %v291 = vpop.f32.mrf.mxu0
    %v292 = vadd.f32 %v157, %v291
    %v293 = vpop.f32.mrf.mxu0
    %v294 = vadd.f32 %v161, %v293
    %295 = vmatprep.mubr.f32.mxu0 0.0
    %296 = vmatmul.mubr.f32.gmra.mxu0 %v187
    %v297 = vpop.f32.mrf.mxu0
    %v298 = vadd.f32 %v157, %v297
    %v299 = vpop.f32.mrf.mxu0
    %v300 = vadd.f32 %v161, %v299
    %301 = vdwg.mxu0
    %302 = vst [vmem:[#allocation2] sm:$0xff] %v256
    %303 = vst [vmem:[#allocation2 + $0x8] sm:$0xff] %v258
    %304 = vst [vmem:[#allocation2 + $0x10] sm:$0xff] %v262
    %305 = vst [vmem:[#allocation2 + $0x18] sm:$0xff] %v264
    %306 = vst [vmem:[#allocation2 + $0x20] sm:$0xff] %v268
    %307 = vst [vmem:[#allocation2 + $0x28] sm:$0xff] %v270
    %308 = vst [vmem:[#allocation2 + $0x30] sm:$0xff] %v274
    %309 = vst [vmem:[#allocation2 + $0x38] sm:$0xff] %v276
    %310 = vst [vmem:[#allocation2 + $0x40] sm:$0xff] %v280
    %311 = vst [vmem:[#allocation2 + $0x48] sm:$0xff] %v282
    %312 = vst [vmem:[#allocation2 + $0x50] sm:$0xff] %v286
    %313 = vst [vmem:[#allocation2 + $0x58] sm:$0xff] %v288
    %314 = vst [vmem:[#allocation2 + $0x60] sm:$0xff] %v292
    %315 = vst [vmem:[#allocation2 + $0x68] sm:$0xff] %v294
    %316 = vst [vmem:[#allocation2 + $0x70] sm:$0xff] %v298
    %317 = vst [vmem:[#allocation2 + $0x78] sm:$0xff] %v300
    %v318 = vld [vmem:[%s6] sm:$0x3]
    %v320 = vlaneseq
    %v321 = vshrl.u32 %v320, 7
    %v322 = vsub.s32 0, %v321
    %v323 = vrot.slane %v318, %v322
    %v324 = vlaneseq
    %v325 = vshrl.u32 %v324, 7
    %v326 = vsub.s32 1, %v325
    %v327 = vrot.slane %v318, %v326
    %v330 = vld [vmem:[%s13] sm:$0x3]
    %v332 = vlaneseq
    %v333 = vshrl.u32 %v332, 7
    %v334 = vsub.s32 0, %v333
    %v335 = vrot.slane %v330, %v334
    %v336 = vlaneseq
    %v337 = vshrl.u32 %v336, 7
    %v338 = vsub.s32 1, %v337
    %v339 = vrot.slane %v330, %v338
    %v342 = vld [vmem:[%s15] sm:$0x1]
    %v344 = vlaneseq
    %v345 = vshrl.u32 %v344, 7
    %v346 = vsub.s32 0, %v345
    %v347 = vrot.slane %v342, %v346
    %v349 = vld [vmem:[%s9] sm:$0x3]
    %v350 = vld [vmem:[#allocation2] sm:$0xff]
    %v351 = vld [vmem:[#allocation2 + $0x8] sm:$0xff]
    %v352 = vld [vmem:[%s3] sm:$0xff]
    %v353 = vld [vmem:[%s3 + $0x8] sm:$0xff]
    %v354 = vld [vmem:[%s3 + $0x10] sm:$0xff]
    %v355 = vld [vmem:[%s3 + $0x18] sm:$0xff]
    %v356 = vld [vmem:[%s3 + $0x20] sm:$0xff]
    %v357 = vld [vmem:[%s3 + $0x28] sm:$0xff]
    %v358 = vld [vmem:[%s3 + $0x30] sm:$0xff]
    %v359 = vld [vmem:[%s3 + $0x38] sm:$0xff]
    %v360 = vld [vmem:[%s3 + $0x40] sm:$0xff]
    %v361 = vld [vmem:[%s3 + $0x48] sm:$0xff]
    %v362 = vld [vmem:[%s3 + $0x50] sm:$0xff]
    %v363 = vld [vmem:[%s3 + $0x58] sm:$0xff]
    %v364 = vld [vmem:[%s3 + $0x60] sm:$0xff]
    %v365 = vld [vmem:[%s3 + $0x68] sm:$0xff]
    %v366 = vld [vmem:[%s3 + $0x70] sm:$0xff]
    %v367 = vld [vmem:[%s3 + $0x78] sm:$0xff]
    %vm368 = vcmask 523264
    %v370 = vsel %vm368, 0.0, 0
    %372 = vmatprep.subr.mxu0 0.0
    %373 = vmatpush1.msra.mxu0 0.0
    %374 = vmatprep.subr.mxu0 0.0
    %375 = vmatpush1.msra.mxu0 0.0
    %376 = vmatprep.subr.mxu0 0.0
    %377 = vmatpush1.msra.mxu0 0.0
    %378 = vmatprep.subr.mxu0 0.0
    %379 = vmatpush1.msra.mxu0 0.0
    %380 = vmatprep.subr.mxu0 0.0
    %381 = vmatpush1.msra.mxu0 0.0
    %382 = vmatprep.subr.mxu0 0.0
    %383 = vmatpush1.msra.mxu0 0.0
    %384 = vmatprep.subr.mxu0 0.0
    %385 = vmatpush1.msra.mxu0 0.0
    %386 = vmatprep.subr.mxu0 0.0
    %387 = vmatpush1.msra.mxu0 0.0
    %388 = vmatprep.subr.mxu0 %v367
    %389 = vmatpush1.msra.mxu0 %v366
    %390 = vmatprep.subr.mxu0 %v365
    %391 = vmatpush1.msra.mxu0 %v364
    %392 = vmatprep.subr.mxu0 %v363
    %393 = vmatpush1.msra.mxu0 %v362
    %394 = vmatprep.subr.mxu0 %v361
    %395 = vmatpush1.msra.mxu0 %v360
    %396 = vmatprep.subr.mxu0 %v359
    %397 = vmatpush1.msra.mxu0 %v358
    %398 = vmatprep.subr.mxu0 %v357
    %399 = vmatpush1.msra.mxu0 %v356
    %400 = vmatprep.subr.mxu0 %v355
    %401 = vmatpush1.msra.mxu0 %v354
    %402 = vmatprep.subr.mxu0 %v353
    %403 = vmatpush1.msra.mxu0 %v352
    %404 = vmatprep.subr.mxu0 0.0
    %405 = vmatpush2.msra.mxu0 0.0
    %406 = vmatprep.subr.mxu0 0.0
    %407 = vmatpush2.msra.mxu0 0.0
    %408 = vmatprep.subr.mxu0 0.0
    %409 = vmatpush2.msra.mxu0 0.0
    %410 = vmatprep.subr.mxu0 0.0
    %411 = vmatpush2.msra.mxu0 0.0
    %412 = vmatprep.subr.mxu0 0.0
    %413 = vmatpush2.msra.mxu0 0.0
    %414 = vmatprep.subr.mxu0 0.0
    %415 = vmatpush2.msra.mxu0 0.0
    %416 = vmatprep.subr.mxu0 0.0
    %417 = vmatpush2.msra.mxu0 0.0
    %418 = vmatprep.subr.mxu0 0.0
    %419 = vmatpush2.msra.mxu0 0.0
    %420 = vmatprep.subr.mxu0 0.0
    %421 = vmatpush2.msra.mxu0 0.0
    %422 = vmatprep.subr.mxu0 0.0
    %423 = vmatpush2.msra.mxu0 0.0
    %424 = vmatprep.subr.mxu0 0.0
    %425 = vmatpush2.msra.mxu0 0.0
    %426 = vmatprep.subr.mxu0 0.0
    %427 = vmatpush2.msra.mxu0 0.0
    %428 = vmatprep.subr.mxu0 0.0
    %429 = vmatpush2.msra.mxu0 0.0
    %430 = vmatprep.subr.mxu0 0.0
    %431 = vmatpush2.msra.mxu0 0.0
    %432 = vmatprep.subr.mxu0 0.0
    %433 = vmatpush2.msra.mxu0 0.0
    %434 = vmatprep.subr.mxu0 0.0
    %435 = vmatpush2.msra.mxu0 0.0
    %436 = vmatprep.mubr.f32.mxu0 0.0
    %437 = vmatmul.mubr.f32.gmra.mxu0 %v370
    %v438 = vpop.f32.mrf.mxu0
    %v439 = vadd.f32 0.0, %v438
    %v440 = vpop.f32.mrf.mxu0
    %v441 = vadd.f32 0.0, %v440
    %442 = vdwg.mxu0
    %v443 = vadd.f32 %v350, %v439
    %v444 = vadd.f32 %v351, %v441
    %v445 = vtanh.pop %v443
    %v446 = vtanh.pop %v444
    %v447 = vmul.f32 %v445, 0.5
    %v448 = vmul.f32 %v446, 0.5
    %v449 = vadd.f32 %v447, 0.5
    %v450 = vadd.f32 %v448, 0.5
    %v451 = vmul.f32 %v449, 0.0
    %453 = vrot.lane.b32.xlu0 %v446, 64
    %v454 = vpop.permute.xlu0 %453
    %v456 = vmul.f32 %v449, %v454
    %458 = vrot.lane.b32.xlu0 %v456, 64
    %v459 = vpop.permute.xlu0 %458
    %v461 = vadd.f32 %v451, %v459
    %v462 = vtanh.pop %v461
    %464 = vrot.lane.b32.xlu0 %v462, 64
    %v465 = vpop.permute.xlu0 %464
    %v467 = vmul.f32 %v450, %v465
    %v468 = vld [vmem:[#allocation3] sm:$0xff]
    %v469 = vld [vmem:[#allocation3 + $0x8] sm:$0xff]
    %v470 = vld [vmem:[#allocation3 + $0x10] sm:$0xff]
    %v471 = vld [vmem:[#allocation3 + $0x18] sm:$0xff]
    %v472 = vld [vmem:[#allocation3 + $0x20] sm:$0xff]
    %v473 = vld [vmem:[#allocation3 + $0x28] sm:$0xff]
    %v474 = vld [vmem:[#allocation3 + $0x30] sm:$0xff]
    %v475 = vld [vmem:[#allocation3 + $0x38] sm:$0xff]
    %v476 = vld [vmem:[#allocation3 + $0x40] sm:$0xff]
    %v477 = vld [vmem:[#allocation3 + $0x48] sm:$0xff]
    %v478 = vld [vmem:[#allocation3 + $0x50] sm:$0xff]
    %v479 = vld [vmem:[#allocation3 + $0x58] sm:$0xff]
    %v480 = vld [vmem:[#allocation3 + $0x60] sm:$0xff]
    %v481 = vld [vmem:[#allocation3 + $0x68] sm:$0xff]
    %v482 = vld [vmem:[#allocation3 + $0x70] sm:$0xff]
    %v483 = vld [vmem:[#allocation3 + $0x78] sm:$0xff]
    %v484 = vld [vmem:[#allocation6] sm:$0xff]
    %v485 = vld [vmem:[#allocation6 + $0x8] sm:$0xff]
    %v486 = vld [vmem:[#allocation6 + $0x10] sm:$0xff]
    %v487 = vld [vmem:[#allocation6 + $0x18] sm:$0xff]
    %v488 = vld [vmem:[#allocation6 + $0x20] sm:$0xff]
    %v489 = vld [vmem:[#allocation6 + $0x28] sm:$0xff]
    %v490 = vld [vmem:[#allocation6 + $0x30] sm:$0xff]
    %v491 = vld [vmem:[#allocation6 + $0x38] sm:$0xff]
    %v492 = vld [vmem:[#allocation6 + $0x40] sm:$0xff]
    %v493 = vld [vmem:[#allocation6 + $0x48] sm:$0xff]
    %v494 = vld [vmem:[#allocation6 + $0x50] sm:$0xff]
    %v495 = vld [vmem:[#allocation6 + $0x58] sm:$0xff]
    %v496 = vld [vmem:[#allocation6 + $0x60] sm:$0xff]
    %v497 = vld [vmem:[#allocation6 + $0x68] sm:$0xff]
    %v498 = vld [vmem:[#allocation6 + $0x70] sm:$0xff]
    %v499 = vld [vmem:[#allocation6 + $0x78] sm:$0xff]
    %500 = vmatprep.subr.mxu0 0.0
    %501 = vmatpush1.msra.mxu0 0.0
    %502 = vmatprep.subr.mxu0 0.0
    %503 = vmatpush1.msra.mxu0 0.0
    %504 = vmatprep.subr.mxu0 0.0
    %505 = vmatpush1.msra.mxu0 0.0
    %506 = vmatprep.subr.mxu0 0.0
    %507 = vmatpush1.msra.mxu0 0.0
    %508 = vmatprep.subr.mxu0 0.0
    %509 = vmatpush1.msra.mxu0 0.0
    %510 = vmatprep.subr.mxu0 0.0
    %511 = vmatpush1.msra.mxu0 0.0
    %512 = vmatprep.subr.mxu0 0.0
    %513 = vmatpush1.msra.mxu0 0.0
    %514 = vmatprep.subr.mxu0 0.0
    %515 = vmatpush1.msra.mxu0 0.0
    %516 = vmatprep.subr.mxu0 %v499
    %517 = vmatpush1.msra.mxu0 %v498
    %518 = vmatprep.subr.mxu0 %v497
    %519 = vmatpush1.msra.mxu0 %v496
    %520 = vmatprep.subr.mxu0 %v495
    %521 = vmatpush1.msra.mxu0 %v494
    %522 = vmatprep.subr.mxu0 %v493
    %523 = vmatpush1.msra.mxu0 %v492
    %524 = vmatprep.subr.mxu0 %v491
    %525 = vmatpush1.msra.mxu0 %v490
    %526 = vmatprep.subr.mxu0 %v489
    %527 = vmatpush1.msra.mxu0 %v488
    %528 = vmatprep.subr.mxu0 %v487
    %529 = vmatpush1.msra.mxu0 %v486
    %530 = vmatprep.subr.mxu0 %v485
    %531 = vmatpush1.msra.mxu0 %v484
    %532 = vmatprep.subr.mxu0 0.0
    %533 = vmatpush2.msra.mxu0 0.0
    %534 = vmatprep.subr.mxu0 0.0
    %535 = vmatpush2.msra.mxu0 0.0
    %536 = vmatprep.subr.mxu0 0.0
    %537 = vmatpush2.msra.mxu0 0.0
    %538 = vmatprep.subr.mxu0 0.0
    %539 = vmatpush2.msra.mxu0 0.0
    %540 = vmatprep.subr.mxu0 0.0
    %541 = vmatpush2.msra.mxu0 0.0
    %542 = vmatprep.subr.mxu0 0.0
    %543 = vmatpush2.msra.mxu0 0.0
    %544 = vmatprep.subr.mxu0 0.0
    %545 = vmatpush2.msra.mxu0 0.0
    %546 = vmatprep.subr.mxu0 0.0
    %547 = vmatpush2.msra.mxu0 0.0
    %548 = vmatprep.subr.mxu0 0.0
    %549 = vmatpush2.msra.mxu0 0.0
    %550 = vmatprep.subr.mxu0 0.0
    %551 = vmatpush2.msra.mxu0 0.0
    %552 = vmatprep.subr.mxu0 0.0
    %553 = vmatpush2.msra.mxu0 0.0
    %554 = vmatprep.subr.mxu0 0.0
    %555 = vmatpush2.msra.mxu0 0.0
    %556 = vmatprep.subr.mxu0 0.0
    %557 = vmatpush2.msra.mxu0 0.0
    %558 = vmatprep.subr.mxu0 0.0
    %559 = vmatpush2.msra.mxu0 0.0
    %560 = vmatprep.subr.mxu0 0.0
    %561 = vmatpush2.msra.mxu0 0.0
    %562 = vmatprep.subr.mxu0 0.0
    %563 = vmatpush2.msra.mxu0 0.0
    %564 = vmatprep.mubr.f32.mxu0 0.0
    %565 = vmatmul.mubr.f32.gmra.mxu0 %v370
    %v566 = vpop.f32.mrf.mxu0
    %v567 = vadd.f32 0.0, %v566
    %v568 = vpop.f32.mrf.mxu0
    %v569 = vadd.f32 0.0, %v568
    %570 = vdwg.mxu0
    %v572 = vsel %vm368, %v467, 0
    %574 = vmatprep.subr.mxu0 0.0
    %575 = vmatpush1.msra.mxu0 0.0
    %576 = vmatprep.subr.mxu0 0.0
    %577 = vmatpush1.msra.mxu0 0.0
    %578 = vmatprep.subr.mxu0 0.0
    %579 = vmatpush1.msra.mxu0 0.0
    %580 = vmatprep.subr.mxu0 0.0
    %581 = vmatpush1.msra.mxu0 0.0
    %582 = vmatprep.subr.mxu0 0.0
    %583 = vmatpush1.msra.mxu0 0.0
    %584 = vmatprep.subr.mxu0 0.0
    %585 = vmatpush1.msra.mxu0 0.0
    %586 = vmatprep.subr.mxu0 0.0
    %587 = vmatpush1.msra.mxu0 0.0
    %588 = vmatprep.subr.mxu0 0.0
    %589 = vmatpush1.msra.mxu0 0.0
    %590 = vmatprep.subr.mxu0 %v483
    %591 = vmatpush1.msra.mxu0 %v482
    %592 = vmatprep.subr.mxu0 %v481
    %593 = vmatpush1.msra.mxu0 %v480
    %594 = vmatprep.subr.mxu0 %v479
    %595 = vmatpush1.msra.mxu0 %v478
    %596 = vmatprep.subr.mxu0 %v477
    %597 = vmatpush1.msra.mxu0 %v476
    %598 = vmatprep.subr.mxu0 %v475
    %599 = vmatpush1.msra.mxu0 %v474
    %600 = vmatprep.subr.mxu0 %v473
    %601 = vmatpush1.msra.mxu0 %v472
    %602 = vmatprep.subr.mxu0 %v471
    %603 = vmatpush1.msra.mxu0 %v470
    %604 = vmatprep.subr.mxu0 %v469
    %605 = vmatpush1.msra.mxu0 %v468
    %606 = vmatprep.subr.mxu0 0.0
    %607 = vmatpush2.msra.mxu0 0.0
    %608 = vmatprep.subr.mxu0 0.0
    %609 = vmatpush2.msra.mxu0 0.0
    %610 = vmatprep.subr.mxu0 0.0
    %611 = vmatpush2.msra.mxu0 0.0
    %612 = vmatprep.subr.mxu0 0.0
    %613 = vmatpush2.msra.mxu0 0.0
    %614 = vmatprep.subr.mxu0 0.0
    %615 = vmatpush2.msra.mxu0 0.0
    %616 = vmatprep.subr.mxu0 0.0
    %617 = vmatpush2.msra.mxu0 0.0
    %618 = vmatprep.subr.mxu0 0.0
    %619 = vmatpush2.msra.mxu0 0.0
    %620 = vmatprep.subr.mxu0 0.0
    %621 = vmatpush2.msra.mxu0 0.0
    %622 = vmatprep.subr.mxu0 0.0
    %623 = vmatpush2.msra.mxu0 0.0
    %624 = vmatprep.subr.mxu0 0.0
    %625 = vmatpush2.msra.mxu0 0.0
    %626 = vmatprep.subr.mxu0 0.0
    %627 = vmatpush2.msra.mxu0 0.0
    %628 = vmatprep.subr.mxu0 0.0
    %629 = vmatpush2.msra.mxu0 0.0
    %630 = vmatprep.subr.mxu0 0.0
    %631 = vmatpush2.msra.mxu0 0.0
    %632 = vmatprep.subr.mxu0 0.0
    %633 = vmatpush2.msra.mxu0 0.0
    %634 = vmatprep.subr.mxu0 0.0
    %635 = vmatpush2.msra.mxu0 0.0
    %636 = vmatprep.subr.mxu0 0.0
    %637 = vmatpush2.msra.mxu0 0.0
    %638 = vmatprep.mubr.f32.mxu0 0.0
    %639 = vmatmul.mubr.f32.gmra.mxu0 %v572
    %v640 = vpop.f32.mrf.mxu0
    %v641 = vadd.f32 %v567, %v640
    %v642 = vpop.f32.mrf.mxu0
    %v643 = vadd.f32 %v569, %v642
    %644 = vdwg.mxu0
    %v645 = vadd.f32 %v641, %v323
    %v646 = vadd.f32 %v643, %v327
    %v647 = vtanh.pop %v645
    %v648 = vtanh.pop %v646
    %v649 = vmul.f32 %v647, 0.5
    %v650 = vmul.f32 %v648, 0.5
    %v651 = vadd.f32 %v649, 0.5
    %v652 = vadd.f32 %v650, 0.5
    %v653 = vmul.f32 %v651, 0.0
    %655 = vrot.lane.b32.xlu0 %v648, 64
    %v656 = vpop.permute.xlu0 %655
    %v658 = vmul.f32 %v651, %v656
    %660 = vrot.lane.b32.xlu0 %v658, 64
    %v661 = vpop.permute.xlu0 %660
    %v663 = vadd.f32 %v653, %v661
    %v664 = vtanh.pop %v663
    %666 = vrot.lane.b32.xlu0 %v664, 64
    %v667 = vpop.permute.xlu0 %666
    %v669 = vmul.f32 %v652, %v667
    %v670 = vld [vmem:[#allocation2 + $0x10] sm:$0xff]
    %v671 = vld [vmem:[#allocation2 + $0x18] sm:$0xff]
    %672 = vmatprep.subr.mxu0 0.0
    %673 = vmatpush1.msra.mxu0 0.0
    %674 = vmatprep.subr.mxu0 0.0
    %675 = vmatpush1.msra.mxu0 0.0
    %676 = vmatprep.subr.mxu0 0.0
    %677 = vmatpush1.msra.mxu0 0.0
    %678 = vmatprep.subr.mxu0 0.0
    %679 = vmatpush1.msra.mxu0 0.0
    %680 = vmatprep.subr.mxu0 0.0
    %681 = vmatpush1.msra.mxu0 0.0
    %682 = vmatprep.subr.mxu0 0.0
    %683 = vmatpush1.msra.mxu0 0.0
    %684 = vmatprep.subr.mxu0 0.0
    %685 = vmatpush1.msra.mxu0 0.0
    %686 = vmatprep.subr.mxu0 0.0
    %687 = vmatpush1.msra.mxu0 0.0
    %688 = vmatprep.subr.mxu0 %v367
    %689 = vmatpush1.msra.mxu0 %v366
    %690 = vmatprep.subr.mxu0 %v365
    %691 = vmatpush1.msra.mxu0 %v364
    %692 = vmatprep.subr.mxu0 %v363
    %693 = vmatpush1.msra.mxu0 %v362
    %694 = vmatprep.subr.mxu0 %v361
    %695 = vmatpush1.msra.mxu0 %v360
    %696 = vmatprep.subr.mxu0 %v359
    %697 = vmatpush1.msra.mxu0 %v358
    %698 = vmatprep.subr.mxu0 %v357
    %699 = vmatpush1.msra.mxu0 %v356
    %700 = vmatprep.subr.mxu0 %v355
    %701 = vmatpush1.msra.mxu0 %v354
    %702 = vmatprep.subr.mxu0 %v353
    %703 = vmatpush1.msra.mxu0 %v352
    %704 = vmatprep.subr.mxu0 0.0
    %705 = vmatpush2.msra.mxu0 0.0
    %706 = vmatprep.subr.mxu0 0.0
    %707 = vmatpush2.msra.mxu0 0.0
    %708 = vmatprep.subr.mxu0 0.0
    %709 = vmatpush2.msra.mxu0 0.0
    %710 = vmatprep.subr.mxu0 0.0
    %711 = vmatpush2.msra.mxu0 0.0
    %712 = vmatprep.subr.mxu0 0.0
    %713 = vmatpush2.msra.mxu0 0.0
    %714 = vmatprep.subr.mxu0 0.0
    %715 = vmatpush2.msra.mxu0 0.0
    %716 = vmatprep.subr.mxu0 0.0
    %717 = vmatpush2.msra.mxu0 0.0
    %718 = vmatprep.subr.mxu0 0.0
    %719 = vmatpush2.msra.mxu0 0.0
    %720 = vmatprep.subr.mxu0 0.0
    %721 = vmatpush2.msra.mxu0 0.0
    %722 = vmatprep.subr.mxu0 0.0
    %723 = vmatpush2.msra.mxu0 0.0
    %724 = vmatprep.subr.mxu0 0.0
    %725 = vmatpush2.msra.mxu0 0.0
    %726 = vmatprep.subr.mxu0 0.0
    %727 = vmatpush2.msra.mxu0 0.0
    %728 = vmatprep.subr.mxu0 0.0
    %729 = vmatpush2.msra.mxu0 0.0
    %730 = vmatprep.subr.mxu0 0.0
    %731 = vmatpush2.msra.mxu0 0.0
    %732 = vmatprep.subr.mxu0 0.0
    %733 = vmatpush2.msra.mxu0 0.0
    %734 = vmatprep.subr.mxu0 0.0
    %735 = vmatpush2.msra.mxu0 0.0
    %736 = vmatprep.mubr.f32.mxu0 0.0
    %737 = vmatmul.mubr.f32.gmra.mxu0 %v572
    %v738 = vpop.f32.mrf.mxu0
    %v739 = vadd.f32 0.0, %v738
    %v740 = vpop.f32.mrf.mxu0
    %v741 = vadd.f32 0.0, %v740
    %742 = vdwg.mxu0
    %v743 = vadd.f32 %v670, %v739
    %v744 = vadd.f32 %v671, %v741
    %v745 = vtanh.pop %v743
    %v746 = vtanh.pop %v744
    %v747 = vmul.f32 %v745, 0.5
    %v748 = vmul.f32 %v746, 0.5
    %v749 = vadd.f32 %v747, 0.5
    %v750 = vadd.f32 %v748, 0.5
    %v751 = vmul.f32 %v749, %v461
    %753 = vrot.lane.b32.xlu0 %v746, 64
    %v754 = vpop.permute.xlu0 %753
    %v756 = vmul.f32 %v749, %v754
    %758 = vrot.lane.b32.xlu0 %v756, 64
    %v759 = vpop.permute.xlu0 %758
    %v761 = vadd.f32 %v751, %v759
    %v762 = vtanh.pop %v761
    %764 = vrot.lane.b32.xlu0 %v762, 64
    %v765 = vpop.permute.xlu0 %764
    %v767 = vmul.f32 %v750, %v765
    %v769 = vsel %vm368, %v669, 0
    %771 = vmatprep.subr.mxu0 0.0
    %772 = vmatpush1.msra.mxu0 0.0
    %773 = vmatprep.subr.mxu0 0.0
    %774 = vmatpush1.msra.mxu0 0.0
    %775 = vmatprep.subr.mxu0 0.0
    %776 = vmatpush1.msra.mxu0 0.0
    %777 = vmatprep.subr.mxu0 0.0
    %778 = vmatpush1.msra.mxu0 0.0
    %779 = vmatprep.subr.mxu0 0.0
    %780 = vmatpush1.msra.mxu0 0.0
    %781 = vmatprep.subr.mxu0 0.0
    %782 = vmatpush1.msra.mxu0 0.0
    %783 = vmatprep.subr.mxu0 0.0
    %784 = vmatpush1.msra.mxu0 0.0
    %785 = vmatprep.subr.mxu0 0.0
    %786 = vmatpush1.msra.mxu0 0.0
    %787 = vmatprep.subr.mxu0 %v499
    %788 = vmatpush1.msra.mxu0 %v498
    %789 = vmatprep.subr.mxu0 %v497
    %790 = vmatpush1.msra.mxu0 %v496
    %791 = vmatprep.subr.mxu0 %v495
    %792 = vmatpush1.msra.mxu0 %v494
    %793 = vmatprep.subr.mxu0 %v493
    %794 = vmatpush1.msra.mxu0 %v492
    %795 = vmatprep.subr.mxu0 %v491
    %796 = vmatpush1.msra.mxu0 %v490
    %797 = vmatprep.subr.mxu0 %v489
    %798 = vmatpush1.msra.mxu0 %v488
    %799 = vmatprep.subr.mxu0 %v487
    %800 = vmatpush1.msra.mxu0 %v486
    %801 = vmatprep.subr.mxu0 %v485
    %802 = vmatpush1.msra.mxu0 %v484
    %803 = vmatprep.subr.mxu0 0.0
    %804 = vmatpush2.msra.mxu0 0.0
    %805 = vmatprep.subr.mxu0 0.0
    %806 = vmatpush2.msra.mxu0 0.0
    %807 = vmatprep.subr.mxu0 0.0
    %808 = vmatpush2.msra.mxu0 0.0
    %809 = vmatprep.subr.mxu0 0.0
    %810 = vmatpush2.msra.mxu0 0.0
    %811 = vmatprep.subr.mxu0 0.0
    %812 = vmatpush2.msra.mxu0 0.0
    %813 = vmatprep.subr.mxu0 0.0
    %814 = vmatpush2.msra.mxu0 0.0
    %815 = vmatprep.subr.mxu0 0.0
    %816 = vmatpush2.msra.mxu0 0.0
    %817 = vmatprep.subr.mxu0 0.0
    %818 = vmatpush2.msra.mxu0 0.0
    %819 = vmatprep.subr.mxu0 0.0
    %820 = vmatpush2.msra.mxu0 0.0
    %821 = vmatprep.subr.mxu0 0.0
    %822 = vmatpush2.msra.mxu0 0.0
    %823 = vmatprep.subr.mxu0 0.0
    %824 = vmatpush2.msra.mxu0 0.0
    %825 = vmatprep.subr.mxu0 0.0
    %826 = vmatpush2.msra.mxu0 0.0
    %827 = vmatprep.subr.mxu0 0.0
    %828 = vmatpush2.msra.mxu0 0.0
    %829 = vmatprep.subr.mxu0 0.0
    %830 = vmatpush2.msra.mxu0 0.0
    %831 = vmatprep.subr.mxu0 0.0
    %832 = vmatpush2.msra.mxu0 0.0
    %833 = vmatprep.subr.mxu0 0.0
    %834 = vmatpush2.msra.mxu0 0.0
    %835 = vmatprep.mubr.f32.mxu0 0.0
    %836 = vmatmul.mubr.f32.gmra.mxu0 %v769
    %v837 = vpop.f32.mrf.mxu0
    %v838 = vadd.f32 0.0, %v837
    %v839 = vpop.f32.mrf.mxu0
    %v840 = vadd.f32 0.0, %v839
    %841 = vdwg.mxu0
    %v843 = vsel %vm368, %v767, 0
    %845 = vmatprep.subr.mxu0 0.0
    %846 = vmatpush1.msra.mxu0 0.0
    %847 = vmatprep.subr.mxu0 0.0
    %848 = vmatpush1.msra.mxu0 0.0
    %849 = vmatprep.subr.mxu0 0.0
    %850 = vmatpush1.msra.mxu0 0.0
    %851 = vmatprep.subr.mxu0 0.0
    %852 = vmatpush1.msra.mxu0 0.0
    %853 = vmatprep.subr.mxu0 0.0
    %854 = vmatpush1.msra.mxu0 0.0
    %855 = vmatprep.subr.mxu0 0.0
    %856 = vmatpush1.msra.mxu0 0.0
    %857 = vmatprep.subr.mxu0 0.0
    %858 = vmatpush1.msra.mxu0 0.0
    %859 = vmatprep.subr.mxu0 0.0
    %860 = vmatpush1.msra.mxu0 0.0
    %861 = vmatprep.subr.mxu0 %v483
    %862 = vmatpush1.msra.mxu0 %v482
    %863 = vmatprep.subr.mxu0 %v481
    %864 = vmatpush1.msra.mxu0 %v480
    %865 = vmatprep.subr.mxu0 %v479
    %866 = vmatpush1.msra.mxu0 %v478
    %867 = vmatprep.subr.mxu0 %v477
    %868 = vmatpush1.msra.mxu0 %v476
    %869 = vmatprep.subr.mxu0 %v475
    %870 = vmatpush1.msra.mxu0 %v474
    %871 = vmatprep.subr.mxu0 %v473
    %872 = vmatpush1.msra.mxu0 %v472
    %873 = vmatprep.subr.mxu0 %v471
    %874 = vmatpush1.msra.mxu0 %v470
    %875 = vmatprep.subr.mxu0 %v469
    %876 = vmatpush1.msra.mxu0 %v468
    %877 = vmatprep.subr.mxu0 0.0
    %878 = vmatpush2.msra.mxu0 0.0
    %879 = vmatprep.subr.mxu0 0.0
    %880 = vmatpush2.msra.mxu0 0.0
    %881 = vmatprep.subr.mxu0 0.0
    %882 = vmatpush2.msra.mxu0 0.0
    %883 = vmatprep.subr.mxu0 0.0
    %884 = vmatpush2.msra.mxu0 0.0
    %885 = vmatprep.subr.mxu0 0.0
    %886 = vmatpush2.msra.mxu0 0.0
    %887 = vmatprep.subr.mxu0 0.0
    %888 = vmatpush2.msra.mxu0 0.0
    %889 = vmatprep.subr.mxu0 0.0
    %890 = vmatpush2.msra.mxu0 0.0
    %891 = vmatprep.subr.mxu0 0.0
    %892 = vmatpush2.msra.mxu0 0.0
    %893 = vmatprep.subr.mxu0 0.0
    %894 = vmatpush2.msra.mxu0 0.0
    %895 = vmatprep.subr.mxu0 0.0
    %896 = vmatpush2.msra.mxu0 0.0
    %897 = vmatprep.subr.mxu0 0.0
    %898 = vmatpush2.msra.mxu0 0.0
    %899 = vmatprep.subr.mxu0 0.0
    %900 = vmatpush2.msra.mxu0 0.0
    %901 = vmatprep.subr.mxu0 0.0
    %902 = vmatpush2.msra.mxu0 0.0
    %903 = vmatprep.subr.mxu0 0.0
    %904 = vmatpush2.msra.mxu0 0.0
    %905 = vmatprep.subr.mxu0 0.0
    %906 = vmatpush2.msra.mxu0 0.0
    %907 = vmatprep.subr.mxu0 0.0
    %908 = vmatpush2.msra.mxu0 0.0
    %909 = vmatprep.mubr.f32.mxu0 0.0
    %910 = vmatmul.mubr.f32.gmra.mxu0 %v843
    %v911 = vpop.f32.mrf.mxu0
    %v912 = vadd.f32 %v838, %v911
    %v913 = vpop.f32.mrf.mxu0
    %v914 = vadd.f32 %v840, %v913
    %915 = vdwg.mxu0
    %v916 = vadd.f32 %v912, %v323
    %v917 = vadd.f32 %v914, %v327
    %v918 = vtanh.pop %v916
    %v919 = vtanh.pop %v917
    %v920 = vmul.f32 %v918, 0.5
    %v921 = vmul.f32 %v919, 0.5
    %v922 = vadd.f32 %v920, 0.5
    %v923 = vadd.f32 %v921, 0.5
    %v924 = vmul.f32 %v922, %v663
    %926 = vrot.lane.b32.xlu0 %v919, 64
    %v927 = vpop.permute.xlu0 %926
    %v929 = vmul.f32 %v922, %v927
    %931 = vrot.lane.b32.xlu0 %v929, 64
    %v932 = vpop.permute.xlu0 %931
    %v934 = vadd.f32 %v924, %v932
    %v935 = vtanh.pop %v934
    %937 = vrot.lane.b32.xlu0 %v935, 64
    %v938 = vpop.permute.xlu0 %937
    %v940 = vmul.f32 %v923, %v938
    %v941 = vld [vmem:[#allocation2 + $0x20] sm:$0xff]
    %v942 = vld [vmem:[#allocation2 + $0x28] sm:$0xff]
    %943 = vmatprep.subr.mxu0 0.0
    %944 = vmatpush1.msra.mxu0 0.0
    %945 = vmatprep.subr.mxu0 0.0
    %946 = vmatpush1.msra.mxu0 0.0
    %947 = vmatprep.subr.mxu0 0.0
    %948 = vmatpush1.msra.mxu0 0.0
    %949 = vmatprep.subr.mxu0 0.0
    %950 = vmatpush1.msra.mxu0 0.0
    %951 = vmatprep.subr.mxu0 0.0
    %952 = vmatpush1.msra.mxu0 0.0
    %953 = vmatprep.subr.mxu0 0.0
    %954 = vmatpush1.msra.mxu0 0.0
    %955 = vmatprep.subr.mxu0 0.0
    %956 = vmatpush1.msra.mxu0 0.0
    %957 = vmatprep.subr.mxu0 0.0
    %958 = vmatpush1.msra.mxu0 0.0
    %959 = vmatprep.subr.mxu0 %v367
    %960 = vmatpush1.msra.mxu0 %v366
    %961 = vmatprep.subr.mxu0 %v365
    %962 = vmatpush1.msra.mxu0 %v364
    %963 = vmatprep.subr.mxu0 %v363
    %964 = vmatpush1.msra.mxu0 %v362
    %965 = vmatprep.subr.mxu0 %v361
    %966 = vmatpush1.msra.mxu0 %v360
    %967 = vmatprep.subr.mxu0 %v359
    %968 = vmatpush1.msra.mxu0 %v358
    %969 = vmatprep.subr.mxu0 %v357
    %970 = vmatpush1.msra.mxu0 %v356
    %971 = vmatprep.subr.mxu0 %v355
    %972 = vmatpush1.msra.mxu0 %v354
    %973 = vmatprep.subr.mxu0 %v353
    %974 = vmatpush1.msra.mxu0 %v352
    %975 = vmatprep.subr.mxu0 0.0
    %976 = vmatpush2.msra.mxu0 0.0
    %977 = vmatprep.subr.mxu0 0.0
    %978 = vmatpush2.msra.mxu0 0.0
    %979 = vmatprep.subr.mxu0 0.0
    %980 = vmatpush2.msra.mxu0 0.0
    %981 = vmatprep.subr.mxu0 0.0
    %982 = vmatpush2.msra.mxu0 0.0
    %983 = vmatprep.subr.mxu0 0.0
    %984 = vmatpush2.msra.mxu0 0.0
    %985 = vmatprep.subr.mxu0 0.0
    %986 = vmatpush2.msra.mxu0 0.0
    %987 = vmatprep.subr.mxu0 0.0
    %988 = vmatpush2.msra.mxu0 0.0
    %989 = vmatprep.subr.mxu0 0.0
    %990 = vmatpush2.msra.mxu0 0.0
    %991 = vmatprep.subr.mxu0 0.0
    %992 = vmatpush2.msra.mxu0 0.0
    %993 = vmatprep.subr.mxu0 0.0
    %994 = vmatpush2.msra.mxu0 0.0
    %995 = vmatprep.subr.mxu0 0.0
    %996 = vmatpush2.msra.mxu0 0.0
    %997 = vmatprep.subr.mxu0 0.0
    %998 = vmatpush2.msra.mxu0 0.0
    %999 = vmatprep.subr.mxu0 0.0
    %1000 = vmatpush2.msra.mxu0 0.0
    %1001 = vmatprep.subr.mxu0 0.0
    %1002 = vmatpush2.msra.mxu0 0.0
    %1003 = vmatprep.subr.mxu0 0.0
    %1004 = vmatpush2.msra.mxu0 0.0
    %1005 = vmatprep.subr.mxu0 0.0
    %1006 = vmatpush2.msra.mxu0 0.0
    %1007 = vmatprep.mubr.f32.mxu0 0.0
    %1008 = vmatmul.mubr.f32.gmra.mxu0 %v843
    %v1009 = vpop.f32.mrf.mxu0
    %v1010 = vadd.f32 0.0, %v1009
    %v1011 = vpop.f32.mrf.mxu0
    %v1012 = vadd.f32 0.0, %v1011
    %1013 = vdwg.mxu0
    %v1014 = vadd.f32 %v941, %v1010
    %v1015 = vadd.f32 %v942, %v1012
    %v1016 = vtanh.pop %v1014
    %v1017 = vtanh.pop %v1015
    %v1018 = vmul.f32 %v1016, 0.5
    %v1019 = vmul.f32 %v1017, 0.5
    %v1020 = vadd.f32 %v1018, 0.5
    %v1021 = vadd.f32 %v1019, 0.5
    %v1022 = vmul.f32 %v1020, %v761
    %1024 = vrot.lane.b32.xlu0 %v1017, 64
    %v1025 = vpop.permute.xlu0 %1024
    %v1027 = vmul.f32 %v1020, %v1025
    %1029 = vrot.lane.b32.xlu0 %v1027, 64
    %v1030 = vpop.permute.xlu0 %1029
    %v1032 = vadd.f32 %v1022, %v1030
    %v1033 = vtanh.pop %v1032
    %1035 = vrot.lane.b32.xlu0 %v1033, 64
    %v1036 = vpop.permute.xlu0 %1035
    %v1038 = vmul.f32 %v1021, %v1036
    %v1040 = vsel %vm368, %v940, 0
    %1042 = vmatprep.subr.mxu0 0.0
    %1043 = vmatpush1.msra.mxu0 0.0
    %1044 = vmatprep.subr.mxu0 0.0
    %1045 = vmatpush1.msra.mxu0 0.0
    %1046 = vmatprep.subr.mxu0 0.0
    %1047 = vmatpush1.msra.mxu0 0.0
    %1048 = vmatprep.subr.mxu0 0.0
    %1049 = vmatpush1.msra.mxu0 0.0
    %1050 = vmatprep.subr.mxu0 0.0
    %1051 = vmatpush1.msra.mxu0 0.0
    %1052 = vmatprep.subr.mxu0 0.0
    %1053 = vmatpush1.msra.mxu0 0.0
    %1054 = vmatprep.subr.mxu0 0.0
    %1055 = vmatpush1.msra.mxu0 0.0
    %1056 = vmatprep.subr.mxu0 0.0
    %1057 = vmatpush1.msra.mxu0 0.0
    %1058 = vmatprep.subr.mxu0 %v499
    %1059 = vmatpush1.msra.mxu0 %v498
    %1060 = vmatprep.subr.mxu0 %v497
    %1061 = vmatpush1.msra.mxu0 %v496
    %1062 = vmatprep.subr.mxu0 %v495
    %1063 = vmatpush1.msra.mxu0 %v494
    %1064 = vmatprep.subr.mxu0 %v493
    %1065 = vmatpush1.msra.mxu0 %v492
    %1066 = vmatprep.subr.mxu0 %v491
    %1067 = vmatpush1.msra.mxu0 %v490
    %1068 = vmatprep.subr.mxu0 %v489
    %1069 = vmatpush1.msra.mxu0 %v488
    %1070 = vmatprep.subr.mxu0 %v487
    %1071 = vmatpush1.msra.mxu0 %v486
    %1072 = vmatprep.subr.mxu0 %v485
    %1073 = vmatpush1.msra.mxu0 %v484
    %1074 = vmatprep.subr.mxu0 0.0
    %1075 = vmatpush2.msra.mxu0 0.0
    %1076 = vmatprep.subr.mxu0 0.0
    %1077 = vmatpush2.msra.mxu0 0.0
    %1078 = vmatprep.subr.mxu0 0.0
    %1079 = vmatpush2.msra.mxu0 0.0
    %1080 = vmatprep.subr.mxu0 0.0
    %1081 = vmatpush2.msra.mxu0 0.0
    %1082 = vmatprep.subr.mxu0 0.0
    %1083 = vmatpush2.msra.mxu0 0.0
    %1084 = vmatprep.subr.mxu0 0.0
    %1085 = vmatpush2.msra.mxu0 0.0
    %1086 = vmatprep.subr.mxu0 0.0
    %1087 = vmatpush2.msra.mxu0 0.0
    %1088 = vmatprep.subr.mxu0 0.0
    %1089 = vmatpush2.msra.mxu0 0.0
    %1090 = vmatprep.subr.mxu0 0.0
    %1091 = vmatpush2.msra.mxu0 0.0
    %1092 = vmatprep.subr.mxu0 0.0
    %1093 = vmatpush2.msra.mxu0 0.0
    %1094 = vmatprep.subr.mxu0 0.0
    %1095 = vmatpush2.msra.mxu0 0.0
    %1096 = vmatprep.subr.mxu0 0.0
    %1097 = vmatpush2.msra.mxu0 0.0
    %1098 = vmatprep.subr.mxu0 0.0
    %1099 = vmatpush2.msra.mxu0 0.0
    %1100 = vmatprep.subr.mxu0 0.0
    %1101 = vmatpush2.msra.mxu0 0.0
    %1102 = vmatprep.subr.mxu0 0.0
    %1103 = vmatpush2.msra.mxu0 0.0
    %1104 = vmatprep.subr.mxu0 0.0
    %1105 = vmatpush2.msra.mxu0 0.0
    %1106 = vmatprep.mubr.f32.mxu0 0.0
    %1107 = vmatmul.mubr.f32.gmra.mxu0 %v1040
    %v1108 = vpop.f32.mrf.mxu0
    %v1109 = vadd.f32 0.0, %v1108
    %v1110 = vpop.f32.mrf.mxu0
    %v1111 = vadd.f32 0.0, %v1110
    %1112 = vdwg.mxu0
    %v1114 = vsel %vm368, %v1038, 0
    %1116 = vmatprep.subr.mxu0 0.0
    %1117 = vmatpush1.msra.mxu0 0.0
    %1118 = vmatprep.subr.mxu0 0.0
    %1119 = vmatpush1.msra.mxu0 0.0
    %1120 = vmatprep.subr.mxu0 0.0
    %1121 = vmatpush1.msra.mxu0 0.0
    %1122 = vmatprep.subr.mxu0 0.0
    %1123 = vmatpush1.msra.mxu0 0.0
    %1124 = vmatprep.subr.mxu0 0.0
    %1125 = vmatpush1.msra.mxu0 0.0
    %1126 = vmatprep.subr.mxu0 0.0
    %1127 = vmatpush1.msra.mxu0 0.0
    %1128 = vmatprep.subr.mxu0 0.0
    %1129 = vmatpush1.msra.mxu0 0.0
    %1130 = vmatprep.subr.mxu0 0.0
    %1131 = vmatpush1.msra.mxu0 0.0
    %1132 = vmatprep.subr.mxu0 %v483
    %1133 = vmatpush1.msra.mxu0 %v482
    %1134 = vmatprep.subr.mxu0 %v481
    %1135 = vmatpush1.msra.mxu0 %v480
    %1136 = vmatprep.subr.mxu0 %v479
    %1137 = vmatpush1.msra.mxu0 %v478
    %1138 = vmatprep.subr.mxu0 %v477
    %1139 = vmatpush1.msra.mxu0 %v476
    %1140 = vmatprep.subr.mxu0 %v475
    %1141 = vmatpush1.msra.mxu0 %v474
    %1142 = vmatprep.subr.mxu0 %v473
    %1143 = vmatpush1.msra.mxu0 %v472
    %1144 = vmatprep.subr.mxu0 %v471
    %1145 = vmatpush1.msra.mxu0 %v470
    %1146 = vmatprep.subr.mxu0 %v469
    %1147 = vmatpush1.msra.mxu0 %v468
    %1148 = vmatprep.subr.mxu0 0.0
    %1149 = vmatpush2.msra.mxu0 0.0
    %1150 = vmatprep.subr.mxu0 0.0
    %1151 = vmatpush2.msra.mxu0 0.0
    %1152 = vmatprep.subr.mxu0 0.0
    %1153 = vmatpush2.msra.mxu0 0.0
    %1154 = vmatprep.subr.mxu0 0.0
    %1155 = vmatpush2.msra.mxu0 0.0
    %1156 = vmatprep.subr.mxu0 0.0
    %1157 = vmatpush2.msra.mxu0 0.0
    %1158 = vmatprep.subr.mxu0 0.0
    %1159 = vmatpush2.msra.mxu0 0.0
    %1160 = vmatprep.subr.mxu0 0.0
    %1161 = vmatpush2.msra.mxu0 0.0
    %1162 = vmatprep.subr.mxu0 0.0
    %1163 = vmatpush2.msra.mxu0 0.0
    %1164 = vmatprep.subr.mxu0 0.0
    %1165 = vmatpush2.msra.mxu0 0.0
    %1166 = vmatprep.subr.mxu0 0.0
    %1167 = vmatpush2.msra.mxu0 0.0
    %1168 = vmatprep.subr.mxu0 0.0
    %1169 = vmatpush2.msra.mxu0 0.0
    %1170 = vmatprep.subr.mxu0 0.0
    %1171 = vmatpush2.msra.mxu0 0.0
    %1172 = vmatprep.subr.mxu0 0.0
    %1173 = vmatpush2.msra.mxu0 0.0
    %1174 = vmatprep.subr.mxu0 0.0
    %1175 = vmatpush2.msra.mxu0 0.0
    %1176 = vmatprep.subr.mxu0 0.0
    %1177 = vmatpush2.msra.mxu0 0.0
    %1178 = vmatprep.subr.mxu0 0.0
    %1179 = vmatpush2.msra.mxu0 0.0
    %1180 = vmatprep.mubr.f32.mxu0 0.0
    %1181 = vmatmul.mubr.f32.gmra.mxu0 %v1114
    %v1182 = vpop.f32.mrf.mxu0
    %v1183 = vadd.f32 %v1109, %v1182
    %v1184 = vpop.f32.mrf.mxu0
    %v1185 = vadd.f32 %v1111, %v1184
    %1186 = vdwg.mxu0
    %v1187 = vadd.f32 %v1183, %v323
    %v1188 = vadd.f32 %v1185, %v327
    %v1189 = vtanh.pop %v1187
    %v1190 = vtanh.pop %v1188
    %v1191 = vmul.f32 %v1189, 0.5
    %v1192 = vmul.f32 %v1190, 0.5
    %v1193 = vadd.f32 %v1191, 0.5
    %v1194 = vadd.f32 %v1192, 0.5
    %v1195 = vmul.f32 %v1193, %v934
    %1197 = vrot.lane.b32.xlu0 %v1190, 64
    %v1198 = vpop.permute.xlu0 %1197
    %v1200 = vmul.f32 %v1193, %v1198
    %1202 = vrot.lane.b32.xlu0 %v1200, 64
    %v1203 = vpop.permute.xlu0 %1202
    %v1205 = vadd.f32 %v1195, %v1203
    %v1206 = vtanh.pop %v1205
    %1208 = vrot.lane.b32.xlu0 %v1206, 64
    %v1209 = vpop.permute.xlu0 %1208
    %v1211 = vmul.f32 %v1194, %v1209
    %v1212 = vld [vmem:[#allocation2 + $0x30] sm:$0xff]
    %v1213 = vld [vmem:[#allocation2 + $0x38] sm:$0xff]
    %1214 = vmatprep.subr.mxu0 0.0
    %1215 = vmatpush1.msra.mxu0 0.0
    %1216 = vmatprep.subr.mxu0 0.0
    %1217 = vmatpush1.msra.mxu0 0.0
    %1218 = vmatprep.subr.mxu0 0.0
    %1219 = vmatpush1.msra.mxu0 0.0
    %1220 = vmatprep.subr.mxu0 0.0
    %1221 = vmatpush1.msra.mxu0 0.0
    %1222 = vmatprep.subr.mxu0 0.0
    %1223 = vmatpush1.msra.mxu0 0.0
    %1224 = vmatprep.subr.mxu0 0.0
    %1225 = vmatpush1.msra.mxu0 0.0
    %1226 = vmatprep.subr.mxu0 0.0
    %1227 = vmatpush1.msra.mxu0 0.0
    %1228 = vmatprep.subr.mxu0 0.0
    %1229 = vmatpush1.msra.mxu0 0.0
    %1230 = vmatprep.subr.mxu0 %v367
    %1231 = vmatpush1.msra.mxu0 %v366
    %1232 = vmatprep.subr.mxu0 %v365
    %1233 = vmatpush1.msra.mxu0 %v364
    %1234 = vmatprep.subr.mxu0 %v363
    %1235 = vmatpush1.msra.mxu0 %v362
    %1236 = vmatprep.subr.mxu0 %v361
    %1237 = vmatpush1.msra.mxu0 %v360
    %1238 = vmatprep.subr.mxu0 %v359
    %1239 = vmatpush1.msra.mxu0 %v358
    %1240 = vmatprep.subr.mxu0 %v357
    %1241 = vmatpush1.msra.mxu0 %v356
    %1242 = vmatprep.subr.mxu0 %v355
    %1243 = vmatpush1.msra.mxu0 %v354
    %1244 = vmatprep.subr.mxu0 %v353
    %1245 = vmatpush1.msra.mxu0 %v352
    %1246 = vmatprep.subr.mxu0 0.0
    %1247 = vmatpush2.msra.mxu0 0.0
    %1248 = vmatprep.subr.mxu0 0.0
    %1249 = vmatpush2.msra.mxu0 0.0
    %1250 = vmatprep.subr.mxu0 0.0
    %1251 = vmatpush2.msra.mxu0 0.0
    %1252 = vmatprep.subr.mxu0 0.0
    %1253 = vmatpush2.msra.mxu0 0.0
    %1254 = vmatprep.subr.mxu0 0.0
    %1255 = vmatpush2.msra.mxu0 0.0
    %1256 = vmatprep.subr.mxu0 0.0
    %1257 = vmatpush2.msra.mxu0 0.0
    %1258 = vmatprep.subr.mxu0 0.0
    %1259 = vmatpush2.msra.mxu0 0.0
    %1260 = vmatprep.subr.mxu0 0.0
    %1261 = vmatpush2.msra.mxu0 0.0
    %1262 = vmatprep.subr.mxu0 0.0
    %1263 = vmatpush2.msra.mxu0 0.0
    %1264 = vmatprep.subr.mxu0 0.0
    %1265 = vmatpush2.msra.mxu0 0.0
    %1266 = vmatprep.subr.mxu0 0.0
    %1267 = vmatpush2.msra.mxu0 0.0
    %1268 = vmatprep.subr.mxu0 0.0
    %1269 = vmatpush2.msra.mxu0 0.0
    %1270 = vmatprep.subr.mxu0 0.0
    %1271 = vmatpush2.msra.mxu0 0.0
    %1272 = vmatprep.subr.mxu0 0.0
    %1273 = vmatpush2.msra.mxu0 0.0
    %1274 = vmatprep.subr.mxu0 0.0
    %1275 = vmatpush2.msra.mxu0 0.0
    %1276 = vmatprep.subr.mxu0 0.0
    %1277 = vmatpush2.msra.mxu0 0.0
    %1278 = vmatprep.mubr.f32.mxu0 0.0
    %1279 = vmatmul.mubr.f32.gmra.mxu0 %v1114
    %v1280 = vpop.f32.mrf.mxu0
    %v1281 = vadd.f32 0.0, %v1280
    %v1282 = vpop.f32.mrf.mxu0
    %v1283 = vadd.f32 0.0, %v1282
    %1284 = vdwg.mxu0
    %v1285 = vadd.f32 %v1212, %v1281
    %v1286 = vadd.f32 %v1213, %v1283
    %v1287 = vtanh.pop %v1285
    %v1288 = vtanh.pop %v1286
    %v1289 = vmul.f32 %v1287, 0.5
    %v1290 = vmul.f32 %v1288, 0.5
    %v1291 = vadd.f32 %v1289, 0.5
    %v1292 = vadd.f32 %v1290, 0.5
    %v1293 = vmul.f32 %v1291, %v1032
    %1295 = vrot.lane.b32.xlu0 %v1288, 64
    %v1296 = vpop.permute.xlu0 %1295
    %v1298 = vmul.f32 %v1291, %v1296
    %1300 = vrot.lane.b32.xlu0 %v1298, 64
    %v1301 = vpop.permute.xlu0 %1300
    %v1303 = vadd.f32 %v1293, %v1301
    %v1304 = vtanh.pop %v1303
    %1306 = vrot.lane.b32.xlu0 %v1304, 64
    %v1307 = vpop.permute.xlu0 %1306
    %v1309 = vmul.f32 %v1292, %v1307
    %v1311 = vsel %vm368, %v1211, 0
    %1313 = vmatprep.subr.mxu0 0.0
    %1314 = vmatpush1.msra.mxu0 0.0
    %1315 = vmatprep.subr.mxu0 0.0
    %1316 = vmatpush1.msra.mxu0 0.0
    %1317 = vmatprep.subr.mxu0 0.0
    %1318 = vmatpush1.msra.mxu0 0.0
    %1319 = vmatprep.subr.mxu0 0.0
    %1320 = vmatpush1.msra.mxu0 0.0
    %1321 = vmatprep.subr.mxu0 0.0
    %1322 = vmatpush1.msra.mxu0 0.0
    %1323 = vmatprep.subr.mxu0 0.0
    %1324 = vmatpush1.msra.mxu0 0.0
    %1325 = vmatprep.subr.mxu0 0.0
    %1326 = vmatpush1.msra.mxu0 0.0
    %1327 = vmatprep.subr.mxu0 0.0
    %1328 = vmatpush1.msra.mxu0 0.0
    %1329 = vmatprep.subr.mxu0 %v499
    %1330 = vmatpush1.msra.mxu0 %v498
    %1331 = vmatprep.subr.mxu0 %v497
    %1332 = vmatpush1.msra.mxu0 %v496
    %1333 = vmatprep.subr.mxu0 %v495
    %1334 = vmatpush1.msra.mxu0 %v494
    %1335 = vmatprep.subr.mxu0 %v493
    %1336 = vmatpush1.msra.mxu0 %v492
    %1337 = vmatprep.subr.mxu0 %v491
    %1338 = vmatpush1.msra.mxu0 %v490
    %1339 = vmatprep.subr.mxu0 %v489
    %1340 = vmatpush1.msra.mxu0 %v488
    %1341 = vmatprep.subr.mxu0 %v487
    %1342 = vmatpush1.msra.mxu0 %v486
    %1343 = vmatprep.subr.mxu0 %v485
    %1344 = vmatpush1.msra.mxu0 %v484
    %1345 = vmatprep.subr.mxu0 0.0
    %1346 = vmatpush2.msra.mxu0 0.0
    %1347 = vmatprep.subr.mxu0 0.0
    %1348 = vmatpush2.msra.mxu0 0.0
    %1349 = vmatprep.subr.mxu0 0.0
    %1350 = vmatpush2.msra.mxu0 0.0
    %1351 = vmatprep.subr.mxu0 0.0
    %1352 = vmatpush2.msra.mxu0 0.0
    %1353 = vmatprep.subr.mxu0 0.0
    %1354 = vmatpush2.msra.mxu0 0.0
    %1355 = vmatprep.subr.mxu0 0.0
    %1356 = vmatpush2.msra.mxu0 0.0
    %1357 = vmatprep.subr.mxu0 0.0
    %1358 = vmatpush2.msra.mxu0 0.0
    %1359 = vmatprep.subr.mxu0 0.0
    %1360 = vmatpush2.msra.mxu0 0.0
    %1361 = vmatprep.subr.mxu0 0.0
    %1362 = vmatpush2.msra.mxu0 0.0
    %1363 = vmatprep.subr.mxu0 0.0
    %1364 = vmatpush2.msra.mxu0 0.0
    %1365 = vmatprep.subr.mxu0 0.0
    %1366 = vmatpush2.msra.mxu0 0.0
    %1367 = vmatprep.subr.mxu0 0.0
    %1368 = vmatpush2.msra.mxu0 0.0
    %1369 = vmatprep.subr.mxu0 0.0
    %1370 = vmatpush2.msra.mxu0 0.0
    %1371 = vmatprep.subr.mxu0 0.0
    %1372 = vmatpush2.msra.mxu0 0.0
    %1373 = vmatprep.subr.mxu0 0.0
    %1374 = vmatpush2.msra.mxu0 0.0
    %1375 = vmatprep.subr.mxu0 0.0
    %1376 = vmatpush2.msra.mxu0 0.0
    %1377 = vmatprep.mubr.f32.mxu0 0.0
    %1378 = vmatmul.mubr.f32.gmra.mxu0 %v1311
    %v1379 = vpop.f32.mrf.mxu0
    %v1380 = vadd.f32 0.0, %v1379
    %v1381 = vpop.f32.mrf.mxu0
    %v1382 = vadd.f32 0.0, %v1381
    %1383 = vdwg.mxu0
    %v1385 = vsel %vm368, %v1309, 0
    %1387 = vmatprep.subr.mxu0 0.0
    %1388 = vmatpush1.msra.mxu0 0.0
    %1389 = vmatprep.subr.mxu0 0.0
    %1390 = vmatpush1.msra.mxu0 0.0
    %1391 = vmatprep.subr.mxu0 0.0
    %1392 = vmatpush1.msra.mxu0 0.0
    %1393 = vmatprep.subr.mxu0 0.0
    %1394 = vmatpush1.msra.mxu0 0.0
    %1395 = vmatprep.subr.mxu0 0.0
    %1396 = vmatpush1.msra.mxu0 0.0
    %1397 = vmatprep.subr.mxu0 0.0
    %1398 = vmatpush1.msra.mxu0 0.0
    %1399 = vmatprep.subr.mxu0 0.0
    %1400 = vmatpush1.msra.mxu0 0.0
    %1401 = vmatprep.subr.mxu0 0.0
    %1402 = vmatpush1.msra.mxu0 0.0
    %1403 = vmatprep.subr.mxu0 %v483
    %1404 = vmatpush1.msra.mxu0 %v482
    %1405 = vmatprep.subr.mxu0 %v481
    %1406 = vmatpush1.msra.mxu0 %v480
    %1407 = vmatprep.subr.mxu0 %v479
    %1408 = vmatpush1.msra.mxu0 %v478
    %1409 = vmatprep.subr.mxu0 %v477
    %1410 = vmatpush1.msra.mxu0 %v476
    %1411 = vmatprep.subr.mxu0 %v475
    %1412 = vmatpush1.msra.mxu0 %v474
    %1413 = vmatprep.subr.mxu0 %v473
    %1414 = vmatpush1.msra.mxu0 %v472
    %1415 = vmatprep.subr.mxu0 %v471
    %1416 = vmatpush1.msra.mxu0 %v470
    %1417 = vmatprep.subr.mxu0 %v469
    %1418 = vmatpush1.msra.mxu0 %v468
    %1419 = vmatprep.subr.mxu0 0.0
    %1420 = vmatpush2.msra.mxu0 0.0
    %1421 = vmatprep.subr.mxu0 0.0
    %1422 = vmatpush2.msra.mxu0 0.0
    %1423 = vmatprep.subr.mxu0 0.0
    %1424 = vmatpush2.msra.mxu0 0.0
    %1425 = vmatprep.subr.mxu0 0.0
    %1426 = vmatpush2.msra.mxu0 0.0
    %1427 = vmatprep.subr.mxu0 0.0
    %1428 = vmatpush2.msra.mxu0 0.0
    %1429 = vmatprep.subr.mxu0 0.0
    %1430 = vmatpush2.msra.mxu0 0.0
    %1431 = vmatprep.subr.mxu0 0.0
    %1432 = vmatpush2.msra.mxu0 0.0
    %1433 = vmatprep.subr.mxu0 0.0
    %1434 = vmatpush2.msra.mxu0 0.0
    %1435 = vmatprep.subr.mxu0 0.0
    %1436 = vmatpush2.msra.mxu0 0.0
    %1437 = vmatprep.subr.mxu0 0.0
    %1438 = vmatpush2.msra.mxu0 0.0
    %1439 = vmatprep.subr.mxu0 0.0
    %1440 = vmatpush2.msra.mxu0 0.0
    %1441 = vmatprep.subr.mxu0 0.0
    %1442 = vmatpush2.msra.mxu0 0.0
    %1443 = vmatprep.subr.mxu0 0.0
    %1444 = vmatpush2.msra.mxu0 0.0
    %1445 = vmatprep.subr.mxu0 0.0
    %1446 = vmatpush2.msra.mxu0 0.0
    %1447 = vmatprep.subr.mxu0 0.0
    %1448 = vmatpush2.msra.mxu0 0.0
    %1449 = vmatprep.subr.mxu0 0.0
    %1450 = vmatpush2.msra.mxu0 0.0
    %1451 = vmatprep.mubr.f32.mxu0 0.0
    %1452 = vmatmul.mubr.f32.gmra.mxu0 %v1385
    %v1453 = vpop.f32.mrf.mxu0
    %v1454 = vadd.f32 %v1380, %v1453
    %v1455 = vpop.f32.mrf.mxu0
    %v1456 = vadd.f32 %v1382, %v1455
    %1457 = vdwg.mxu0
    %v1458 = vadd.f32 %v1454, %v323
    %v1459 = vadd.f32 %v1456, %v327
    %v1460 = vtanh.pop %v1458
    %v1461 = vtanh.pop %v1459
    %v1462 = vmul.f32 %v1460, 0.5
    %v1463 = vmul.f32 %v1461, 0.5
    %v1464 = vadd.f32 %v1462, 0.5
    %v1465 = vadd.f32 %v1463, 0.5
    %v1466 = vmul.f32 %v1464, %v1205
    %1468 = vrot.lane.b32.xlu0 %v1461, 64
    %v1469 = vpop.permute.xlu0 %1468
    %v1471 = vmul.f32 %v1464, %v1469
    %1473 = vrot.lane.b32.xlu0 %v1471, 64
    %v1474 = vpop.permute.xlu0 %1473
    %v1476 = vadd.f32 %v1466, %v1474
    %v1477 = vtanh.pop %v1476
    %1479 = vrot.lane.b32.xlu0 %v1477, 64
    %v1480 = vpop.permute.xlu0 %1479
    %v1482 = vmul.f32 %v1465, %v1480
    %v1483 = vld [vmem:[#allocation2 + $0x40] sm:$0xff]
    %v1484 = vld [vmem:[#allocation2 + $0x48] sm:$0xff]
    %1485 = vmatprep.subr.mxu0 0.0
    %1486 = vmatpush1.msra.mxu0 0.0
    %1487 = vmatprep.subr.mxu0 0.0
    %1488 = vmatpush1.msra.mxu0 0.0
    %1489 = vmatprep.subr.mxu0 0.0
    %1490 = vmatpush1.msra.mxu0 0.0
    %1491 = vmatprep.subr.mxu0 0.0
    %1492 = vmatpush1.msra.mxu0 0.0
    %1493 = vmatprep.subr.mxu0 0.0
    %1494 = vmatpush1.msra.mxu0 0.0
    %1495 = vmatprep.subr.mxu0 0.0
    %1496 = vmatpush1.msra.mxu0 0.0
    %1497 = vmatprep.subr.mxu0 0.0
    %1498 = vmatpush1.msra.mxu0 0.0
    %1499 = vmatprep.subr.mxu0 0.0
    %1500 = vmatpush1.msra.mxu0 0.0
    %1501 = vmatprep.subr.mxu0 %v367
    %1502 = vmatpush1.msra.mxu0 %v366
    %1503 = vmatprep.subr.mxu0 %v365
    %1504 = vmatpush1.msra.mxu0 %v364
    %1505 = vmatprep.subr.mxu0 %v363
    %1506 = vmatpush1.msra.mxu0 %v362
    %1507 = vmatprep.subr.mxu0 %v361
    %1508 = vmatpush1.msra.mxu0 %v360
    %1509 = vmatprep.subr.mxu0 %v359
    %1510 = vmatpush1.msra.mxu0 %v358
    %1511 = vmatprep.subr.mxu0 %v357
    %1512 = vmatpush1.msra.mxu0 %v356
    %1513 = vmatprep.subr.mxu0 %v355
    %1514 = vmatpush1.msra.mxu0 %v354
    %1515 = vmatprep.subr.mxu0 %v353
    %1516 = vmatpush1.msra.mxu0 %v352
    %1517 = vmatprep.subr.mxu0 0.0
    %1518 = vmatpush2.msra.mxu0 0.0
    %1519 = vmatprep.subr.mxu0 0.0
    %1520 = vmatpush2.msra.mxu0 0.0
    %1521 = vmatprep.subr.mxu0 0.0
    %1522 = vmatpush2.msra.mxu0 0.0
    %1523 = vmatprep.subr.mxu0 0.0
    %1524 = vmatpush2.msra.mxu0 0.0
    %1525 = vmatprep.subr.mxu0 0.0
    %1526 = vmatpush2.msra.mxu0 0.0
    %1527 = vmatprep.subr.mxu0 0.0
    %1528 = vmatpush2.msra.mxu0 0.0
    %1529 = vmatprep.subr.mxu0 0.0
    %1530 = vmatpush2.msra.mxu0 0.0
    %1531 = vmatprep.subr.mxu0 0.0
    %1532 = vmatpush2.msra.mxu0 0.0
    %1533 = vmatprep.subr.mxu0 0.0
    %1534 = vmatpush2.msra.mxu0 0.0
    %1535 = vmatprep.subr.mxu0 0.0
    %1536 = vmatpush2.msra.mxu0 0.0
    %1537 = vmatprep.subr.mxu0 0.0
    %1538 = vmatpush2.msra.mxu0 0.0
    %1539 = vmatprep.subr.mxu0 0.0
    %1540 = vmatpush2.msra.mxu0 0.0
    %1541 = vmatprep.subr.mxu0 0.0
    %1542 = vmatpush2.msra.mxu0 0.0
    %1543 = vmatprep.subr.mxu0 0.0
    %1544 = vmatpush2.msra.mxu0 0.0
    %1545 = vmatprep.subr.mxu0 0.0
    %1546 = vmatpush2.msra.mxu0 0.0
    %1547 = vmatprep.subr.mxu0 0.0
    %1548 = vmatpush2.msra.mxu0 0.0
    %1549 = vmatprep.mubr.f32.mxu0 0.0
    %1550 = vmatmul.mubr.f32.gmra.mxu0 %v1385
    %v1551 = vpop.f32.mrf.mxu0
    %v1552 = vadd.f32 0.0, %v1551
    %v1553 = vpop.f32.mrf.mxu0
    %v1554 = vadd.f32 0.0, %v1553
    %1555 = vdwg.mxu0
    %v1556 = vadd.f32 %v1483, %v1552
    %v1557 = vadd.f32 %v1484, %v1554
    %v1558 = vtanh.pop %v1556
    %v1559 = vtanh.pop %v1557
    %v1560 = vmul.f32 %v1558, 0.5
    %v1561 = vmul.f32 %v1559, 0.5
    %v1562 = vadd.f32 %v1560, 0.5
    %v1563 = vadd.f32 %v1561, 0.5
    %v1564 = vmul.f32 %v1562, %v1303
    %1566 = vrot.lane.b32.xlu0 %v1559, 64
    %v1567 = vpop.permute.xlu0 %1566
    %v1569 = vmul.f32 %v1562, %v1567
    %1571 = vrot.lane.b32.xlu0 %v1569, 64
    %v1572 = vpop.permute.xlu0 %1571
    %v1574 = vadd.f32 %v1564, %v1572
    %v1575 = vtanh.pop %v1574
    %1577 = vrot.lane.b32.xlu0 %v1575, 64
    %v1578 = vpop.permute.xlu0 %1577
    %v1580 = vmul.f32 %v1563, %v1578
    %v1582 = vsel %vm368, %v1482, 0
    %1584 = vmatprep.subr.mxu0 0.0
    %1585 = vmatpush1.msra.mxu0 0.0
    %1586 = vmatprep.subr.mxu0 0.0
    %1587 = vmatpush1.msra.mxu0 0.0
    %1588 = vmatprep.subr.mxu0 0.0
    %1589 = vmatpush1.msra.mxu0 0.0
    %1590 = vmatprep.subr.mxu0 0.0
    %1591 = vmatpush1.msra.mxu0 0.0
    %1592 = vmatprep.subr.mxu0 0.0
    %1593 = vmatpush1.msra.mxu0 0.0
    %1594 = vmatprep.subr.mxu0 0.0
    %1595 = vmatpush1.msra.mxu0 0.0
    %1596 = vmatprep.subr.mxu0 0.0
    %1597 = vmatpush1.msra.mxu0 0.0
    %1598 = vmatprep.subr.mxu0 0.0
    %1599 = vmatpush1.msra.mxu0 0.0
    %1600 = vmatprep.subr.mxu0 %v499
    %1601 = vmatpush1.msra.mxu0 %v498
    %1602 = vmatprep.subr.mxu0 %v497
    %1603 = vmatpush1.msra.mxu0 %v496
    %1604 = vmatprep.subr.mxu0 %v495
    %1605 = vmatpush1.msra.mxu0 %v494
    %1606 = vmatprep.subr.mxu0 %v493
    %1607 = vmatpush1.msra.mxu0 %v492
    %1608 = vmatprep.subr.mxu0 %v491
    %1609 = vmatpush1.msra.mxu0 %v490
    %1610 = vmatprep.subr.mxu0 %v489
    %1611 = vmatpush1.msra.mxu0 %v488
    %1612 = vmatprep.subr.mxu0 %v487
    %1613 = vmatpush1.msra.mxu0 %v486
    %1614 = vmatprep.subr.mxu0 %v485
    %1615 = vmatpush1.msra.mxu0 %v484
    %1616 = vmatprep.subr.mxu0 0.0
    %1617 = vmatpush2.msra.mxu0 0.0
    %1618 = vmatprep.subr.mxu0 0.0
    %1619 = vmatpush2.msra.mxu0 0.0
    %1620 = vmatprep.subr.mxu0 0.0
    %1621 = vmatpush2.msra.mxu0 0.0
    %1622 = vmatprep.subr.mxu0 0.0
    %1623 = vmatpush2.msra.mxu0 0.0
    %1624 = vmatprep.subr.mxu0 0.0
    %1625 = vmatpush2.msra.mxu0 0.0
    %1626 = vmatprep.subr.mxu0 0.0
    %1627 = vmatpush2.msra.mxu0 0.0
    %1628 = vmatprep.subr.mxu0 0.0
    %1629 = vmatpush2.msra.mxu0 0.0
    %1630 = vmatprep.subr.mxu0 0.0
    %1631 = vmatpush2.msra.mxu0 0.0
    %1632 = vmatprep.subr.mxu0 0.0
    %1633 = vmatpush2.msra.mxu0 0.0
    %1634 = vmatprep.subr.mxu0 0.0
    %1635 = vmatpush2.msra.mxu0 0.0
    %1636 = vmatprep.subr.mxu0 0.0
    %1637 = vmatpush2.msra.mxu0 0.0
    %1638 = vmatprep.subr.mxu0 0.0
    %1639 = vmatpush2.msra.mxu0 0.0
    %1640 = vmatprep.subr.mxu0 0.0
    %1641 = vmatpush2.msra.mxu0 0.0
    %1642 = vmatprep.subr.mxu0 0.0
    %1643 = vmatpush2.msra.mxu0 0.0
    %1644 = vmatprep.subr.mxu0 0.0
    %1645 = vmatpush2.msra.mxu0 0.0
    %1646 = vmatprep.subr.mxu0 0.0
    %1647 = vmatpush2.msra.mxu0 0.0
    %1648 = vmatprep.mubr.f32.mxu0 0.0
    %1649 = vmatmul.mubr.f32.gmra.mxu0 %v1582
    %v1650 = vpop.f32.mrf.mxu0
    %v1651 = vadd.f32 0.0, %v1650
    %v1652 = vpop.f32.mrf.mxu0
    %v1653 = vadd.f32 0.0, %v1652
    %1654 = vdwg.mxu0
    %v1656 = vsel %vm368, %v1580, 0
    %1658 = vmatprep.subr.mxu0 0.0
    %1659 = vmatpush1.msra.mxu0 0.0
    %1660 = vmatprep.subr.mxu0 0.0
    %1661 = vmatpush1.msra.mxu0 0.0
    %1662 = vmatprep.subr.mxu0 0.0
    %1663 = vmatpush1.msra.mxu0 0.0
    %1664 = vmatprep.subr.mxu0 0.0
    %1665 = vmatpush1.msra.mxu0 0.0
    %1666 = vmatprep.subr.mxu0 0.0
    %1667 = vmatpush1.msra.mxu0 0.0
    %1668 = vmatprep.subr.mxu0 0.0
    %1669 = vmatpush1.msra.mxu0 0.0
    %1670 = vmatprep.subr.mxu0 0.0
    %1671 = vmatpush1.msra.mxu0 0.0
    %1672 = vmatprep.subr.mxu0 0.0
    %1673 = vmatpush1.msra.mxu0 0.0
    %1674 = vmatprep.subr.mxu0 %v483
    %1675 = vmatpush1.msra.mxu0 %v482
    %1676 = vmatprep.subr.mxu0 %v481
    %1677 = vmatpush1.msra.mxu0 %v480
    %1678 = vmatprep.subr.mxu0 %v479
    %1679 = vmatpush1.msra.mxu0 %v478
    %1680 = vmatprep.subr.mxu0 %v477
    %1681 = vmatpush1.msra.mxu0 %v476
    %1682 = vmatprep.subr.mxu0 %v475
    %1683 = vmatpush1.msra.mxu0 %v474
    %1684 = vmatprep.subr.mxu0 %v473
    %1685 = vmatpush1.msra.mxu0 %v472
    %1686 = vmatprep.subr.mxu0 %v471
    %1687 = vmatpush1.msra.mxu0 %v470
    %1688 = vmatprep.subr.mxu0 %v469
    %1689 = vmatpush1.msra.mxu0 %v468
    %1690 = vmatprep.subr.mxu0 0.0
    %1691 = vmatpush2.msra.mxu0 0.0
    %1692 = vmatprep.subr.mxu0 0.0
    %1693 = vmatpush2.msra.mxu0 0.0
    %1694 = vmatprep.subr.mxu0 0.0
    %1695 = vmatpush2.msra.mxu0 0.0
    %1696 = vmatprep.subr.mxu0 0.0
    %1697 = vmatpush2.msra.mxu0 0.0
    %1698 = vmatprep.subr.mxu0 0.0
    %1699 = vmatpush2.msra.mxu0 0.0
    %1700 = vmatprep.subr.mxu0 0.0
    %1701 = vmatpush2.msra.mxu0 0.0
    %1702 = vmatprep.subr.mxu0 0.0
    %1703 = vmatpush2.msra.mxu0 0.0
    %1704 = vmatprep.subr.mxu0 0.0
    %1705 = vmatpush2.msra.mxu0 0.0
    %1706 = vmatprep.subr.mxu0 0.0
    %1707 = vmatpush2.msra.mxu0 0.0
    %1708 = vmatprep.subr.mxu0 0.0
    %1709 = vmatpush2.msra.mxu0 0.0
    %1710 = vmatprep.subr.mxu0 0.0
    %1711 = vmatpush2.msra.mxu0 0.0
    %1712 = vmatprep.subr.mxu0 0.0
    %1713 = vmatpush2.msra.mxu0 0.0
    %1714 = vmatprep.subr.mxu0 0.0
    %1715 = vmatpush2.msra.mxu0 0.0
    %1716 = vmatprep.subr.mxu0 0.0
    %1717 = vmatpush2.msra.mxu0 0.0
    %1718 = vmatprep.subr.mxu0 0.0
    %1719 = vmatpush2.msra.mxu0 0.0
    %1720 = vmatprep.subr.mxu0 0.0
    %1721 = vmatpush2.msra.mxu0 0.0
    %1722 = vmatprep.mubr.f32.mxu0 0.0
    %1723 = vmatmul.mubr.f32.gmra.mxu0 %v1656
    %v1724 = vpop.f32.mrf.mxu0
    %v1725 = vadd.f32 %v1651, %v1724
    %v1726 = vpop.f32.mrf.mxu0
    %v1727 = vadd.f32 %v1653, %v1726
    %1728 = vdwg.mxu0
    %v1729 = vadd.f32 %v1725, %v323
    %v1730 = vadd.f32 %v1727, %v327
    %v1731 = vtanh.pop %v1729
    %v1732 = vtanh.pop %v1730
    %v1733 = vmul.f32 %v1731, 0.5
    %v1734 = vmul.f32 %v1732, 0.5
    %v1735 = vadd.f32 %v1733, 0.5
    %v1736 = vadd.f32 %v1734, 0.5
    %v1737 = vmul.f32 %v1735, %v1476
    %1739 = vrot.lane.b32.xlu0 %v1732, 64
    %v1740 = vpop.permute.xlu0 %1739
    %v1742 = vmul.f32 %v1735, %v1740
    %1744 = vrot.lane.b32.xlu0 %v1742, 64
    %v1745 = vpop.permute.xlu0 %1744
    %v1747 = vadd.f32 %v1737, %v1745
    %v1748 = vtanh.pop %v1747
    %1750 = vrot.lane.b32.xlu0 %v1748, 64
    %v1751 = vpop.permute.xlu0 %1750
    %v1753 = vmul.f32 %v1736, %v1751
    %v1754 = vld [vmem:[#allocation2 + $0x50] sm:$0xff]
    %v1755 = vld [vmem:[#allocation2 + $0x58] sm:$0xff]
    %1756 = vmatprep.subr.mxu0 0.0
    %1757 = vmatpush1.msra.mxu0 0.0
    %1758 = vmatprep.subr.mxu0 0.0
    %1759 = vmatpush1.msra.mxu0 0.0
    %1760 = vmatprep.subr.mxu0 0.0
    %1761 = vmatpush1.msra.mxu0 0.0
    %1762 = vmatprep.subr.mxu0 0.0
    %1763 = vmatpush1.msra.mxu0 0.0
    %1764 = vmatprep.subr.mxu0 0.0
    %1765 = vmatpush1.msra.mxu0 0.0
    %1766 = vmatprep.subr.mxu0 0.0
    %1767 = vmatpush1.msra.mxu0 0.0
    %1768 = vmatprep.subr.mxu0 0.0
    %1769 = vmatpush1.msra.mxu0 0.0
    %1770 = vmatprep.subr.mxu0 0.0
    %1771 = vmatpush1.msra.mxu0 0.0
    %1772 = vmatprep.subr.mxu0 %v367
    %1773 = vmatpush1.msra.mxu0 %v366
    %1774 = vmatprep.subr.mxu0 %v365
    %1775 = vmatpush1.msra.mxu0 %v364
    %1776 = vmatprep.subr.mxu0 %v363
    %1777 = vmatpush1.msra.mxu0 %v362
    %1778 = vmatprep.subr.mxu0 %v361
    %1779 = vmatpush1.msra.mxu0 %v360
    %1780 = vmatprep.subr.mxu0 %v359
    %1781 = vmatpush1.msra.mxu0 %v358
    %1782 = vmatprep.subr.mxu0 %v357
    %1783 = vmatpush1.msra.mxu0 %v356
    %1784 = vmatprep.subr.mxu0 %v355
    %1785 = vmatpush1.msra.mxu0 %v354
    %1786 = vmatprep.subr.mxu0 %v353
    %1787 = vmatpush1.msra.mxu0 %v352
    %1788 = vmatprep.subr.mxu0 0.0
    %1789 = vmatpush2.msra.mxu0 0.0
    %1790 = vmatprep.subr.mxu0 0.0
    %1791 = vmatpush2.msra.mxu0 0.0
    %1792 = vmatprep.subr.mxu0 0.0
    %1793 = vmatpush2.msra.mxu0 0.0
    %1794 = vmatprep.subr.mxu0 0.0
    %1795 = vmatpush2.msra.mxu0 0.0
    %1796 = vmatprep.subr.mxu0 0.0
    %1797 = vmatpush2.msra.mxu0 0.0
    %1798 = vmatprep.subr.mxu0 0.0
    %1799 = vmatpush2.msra.mxu0 0.0
    %1800 = vmatprep.subr.mxu0 0.0
    %1801 = vmatpush2.msra.mxu0 0.0
    %1802 = vmatprep.subr.mxu0 0.0
    %1803 = vmatpush2.msra.mxu0 0.0
    %1804 = vmatprep.subr.mxu0 0.0
    %1805 = vmatpush2.msra.mxu0 0.0
    %1806 = vmatprep.subr.mxu0 0.0
    %1807 = vmatpush2.msra.mxu0 0.0
    %1808 = vmatprep.subr.mxu0 0.0
    %1809 = vmatpush2.msra.mxu0 0.0
    %1810 = vmatprep.subr.mxu0 0.0
    %1811 = vmatpush2.msra.mxu0 0.0
    %1812 = vmatprep.subr.mxu0 0.0
    %1813 = vmatpush2.msra.mxu0 0.0
    %1814 = vmatprep.subr.mxu0 0.0
    %1815 = vmatpush2.msra.mxu0 0.0
    %1816 = vmatprep.subr.mxu0 0.0
    %1817 = vmatpush2.msra.mxu0 0.0
    %1818 = vmatprep.subr.mxu0 0.0
    %1819 = vmatpush2.msra.mxu0 0.0
    %1820 = vmatprep.mubr.f32.mxu0 0.0
    %1821 = vmatmul.mubr.f32.gmra.mxu0 %v1656
    %v1822 = vpop.f32.mrf.mxu0
    %v1823 = vadd.f32 0.0, %v1822
    %v1824 = vpop.f32.mrf.mxu0
    %v1825 = vadd.f32 0.0, %v1824
    %1826 = vdwg.mxu0
    %v1827 = vadd.f32 %v1754, %v1823
    %v1828 = vadd.f32 %v1755, %v1825
    %v1829 = vtanh.pop %v1827
    %v1830 = vtanh.pop %v1828
    %v1831 = vmul.f32 %v1829, 0.5
    %v1832 = vmul.f32 %v1830, 0.5
    %v1833 = vadd.f32 %v1831, 0.5
    %v1834 = vadd.f32 %v1832, 0.5
    %v1835 = vmul.f32 %v1833, %v1574
    %1837 = vrot.lane.b32.xlu0 %v1830, 64
    %v1838 = vpop.permute.xlu0 %1837
    %v1840 = vmul.f32 %v1833, %v1838
    %1842 = vrot.lane.b32.xlu0 %v1840, 64
    %v1843 = vpop.permute.xlu0 %1842
    %v1845 = vadd.f32 %v1835, %v1843
    %v1846 = vtanh.pop %v1845
    %1848 = vrot.lane.b32.xlu0 %v1846, 64
    %v1849 = vpop.permute.xlu0 %1848
    %v1851 = vmul.f32 %v1834, %v1849
    %v1853 = vsel %vm368, %v1753, 0
    %1855 = vmatprep.subr.mxu0 0.0
    %1856 = vmatpush1.msra.mxu0 0.0
    %1857 = vmatprep.subr.mxu0 0.0
    %1858 = vmatpush1.msra.mxu0 0.0
    %1859 = vmatprep.subr.mxu0 0.0
    %1860 = vmatpush1.msra.mxu0 0.0
    %1861 = vmatprep.subr.mxu0 0.0
    %1862 = vmatpush1.msra.mxu0 0.0
    %1863 = vmatprep.subr.mxu0 0.0
    %1864 = vmatpush1.msra.mxu0 0.0
    %1865 = vmatprep.subr.mxu0 0.0
    %1866 = vmatpush1.msra.mxu0 0.0
    %1867 = vmatprep.subr.mxu0 0.0
    %1868 = vmatpush1.msra.mxu0 0.0
    %1869 = vmatprep.subr.mxu0 0.0
    %1870 = vmatpush1.msra.mxu0 0.0
    %1871 = vmatprep.subr.mxu0 %v499
    %1872 = vmatpush1.msra.mxu0 %v498
    %1873 = vmatprep.subr.mxu0 %v497
    %1874 = vmatpush1.msra.mxu0 %v496
    %1875 = vmatprep.subr.mxu0 %v495
    %1876 = vmatpush1.msra.mxu0 %v494
    %1877 = vmatprep.subr.mxu0 %v493
    %1878 = vmatpush1.msra.mxu0 %v492
    %1879 = vmatprep.subr.mxu0 %v491
    %1880 = vmatpush1.msra.mxu0 %v490
    %1881 = vmatprep.subr.mxu0 %v489
    %1882 = vmatpush1.msra.mxu0 %v488
    %1883 = vmatprep.subr.mxu0 %v487
    %1884 = vmatpush1.msra.mxu0 %v486
    %1885 = vmatprep.subr.mxu0 %v485
    %1886 = vmatpush1.msra.mxu0 %v484
    %1887 = vmatprep.subr.mxu0 0.0
    %1888 = vmatpush2.msra.mxu0 0.0
    %1889 = vmatprep.subr.mxu0 0.0
    %1890 = vmatpush2.msra.mxu0 0.0
    %1891 = vmatprep.subr.mxu0 0.0
    %1892 = vmatpush2.msra.mxu0 0.0
    %1893 = vmatprep.subr.mxu0 0.0
    %1894 = vmatpush2.msra.mxu0 0.0
    %1895 = vmatprep.subr.mxu0 0.0
    %1896 = vmatpush2.msra.mxu0 0.0
    %1897 = vmatprep.subr.mxu0 0.0
    %1898 = vmatpush2.msra.mxu0 0.0
    %1899 = vmatprep.subr.mxu0 0.0
    %1900 = vmatpush2.msra.mxu0 0.0
    %1901 = vmatprep.subr.mxu0 0.0
    %1902 = vmatpush2.msra.mxu0 0.0
    %1903 = vmatprep.subr.mxu0 0.0
    %1904 = vmatpush2.msra.mxu0 0.0
    %1905 = vmatprep.subr.mxu0 0.0
    %1906 = vmatpush2.msra.mxu0 0.0
    %1907 = vmatprep.subr.mxu0 0.0
    %1908 = vmatpush2.msra.mxu0 0.0
    %1909 = vmatprep.subr.mxu0 0.0
    %1910 = vmatpush2.msra.mxu0 0.0
    %1911 = vmatprep.subr.mxu0 0.0
    %1912 = vmatpush2.msra.mxu0 0.0
    %1913 = vmatprep.subr.mxu0 0.0
    %1914 = vmatpush2.msra.mxu0 0.0
    %1915 = vmatprep.subr.mxu0 0.0
    %1916 = vmatpush2.msra.mxu0 0.0
    %1917 = vmatprep.subr.mxu0 0.0
    %1918 = vmatpush2.msra.mxu0 0.0
    %1919 = vmatprep.mubr.f32.mxu0 0.0
    %1920 = vmatmul.mubr.f32.gmra.mxu0 %v1853
    %v1921 = vpop.f32.mrf.mxu0
    %v1922 = vadd.f32 0.0, %v1921
    %v1923 = vpop.f32.mrf.mxu0
    %v1924 = vadd.f32 0.0, %v1923
    %1925 = vdwg.mxu0
    %v1927 = vsel %vm368, %v1851, 0
    %1929 = vmatprep.subr.mxu0 0.0
    %1930 = vmatpush1.msra.mxu0 0.0
    %1931 = vmatprep.subr.mxu0 0.0
    %1932 = vmatpush1.msra.mxu0 0.0
    %1933 = vmatprep.subr.mxu0 0.0
    %1934 = vmatpush1.msra.mxu0 0.0
    %1935 = vmatprep.subr.mxu0 0.0
    %1936 = vmatpush1.msra.mxu0 0.0
    %1937 = vmatprep.subr.mxu0 0.0
    %1938 = vmatpush1.msra.mxu0 0.0
    %1939 = vmatprep.subr.mxu0 0.0
    %1940 = vmatpush1.msra.mxu0 0.0
    %1941 = vmatprep.subr.mxu0 0.0
    %1942 = vmatpush1.msra.mxu0 0.0
    %1943 = vmatprep.subr.mxu0 0.0
    %1944 = vmatpush1.msra.mxu0 0.0
    %1945 = vmatprep.subr.mxu0 %v483
    %1946 = vmatpush1.msra.mxu0 %v482
    %1947 = vmatprep.subr.mxu0 %v481
    %1948 = vmatpush1.msra.mxu0 %v480
    %1949 = vmatprep.subr.mxu0 %v479
    %1950 = vmatpush1.msra.mxu0 %v478
    %1951 = vmatprep.subr.mxu0 %v477
    %1952 = vmatpush1.msra.mxu0 %v476
    %1953 = vmatprep.subr.mxu0 %v475
    %1954 = vmatpush1.msra.mxu0 %v474
    %1955 = vmatprep.subr.mxu0 %v473
    %1956 = vmatpush1.msra.mxu0 %v472
    %1957 = vmatprep.subr.mxu0 %v471
    %1958 = vmatpush1.msra.mxu0 %v470
    %1959 = vmatprep.subr.mxu0 %v469
    %1960 = vmatpush1.msra.mxu0 %v468
    %1961 = vmatprep.subr.mxu0 0.0
    %1962 = vmatpush2.msra.mxu0 0.0
    %1963 = vmatprep.subr.mxu0 0.0
    %1964 = vmatpush2.msra.mxu0 0.0
    %1965 = vmatprep.subr.mxu0 0.0
    %1966 = vmatpush2.msra.mxu0 0.0
    %1967 = vmatprep.subr.mxu0 0.0
    %1968 = vmatpush2.msra.mxu0 0.0
    %1969 = vmatprep.subr.mxu0 0.0
    %1970 = vmatpush2.msra.mxu0 0.0
    %1971 = vmatprep.subr.mxu0 0.0
    %1972 = vmatpush2.msra.mxu0 0.0
    %1973 = vmatprep.subr.mxu0 0.0
    %1974 = vmatpush2.msra.mxu0 0.0
    %1975 = vmatprep.subr.mxu0 0.0
    %1976 = vmatpush2.msra.mxu0 0.0
    %1977 = vmatprep.subr.mxu0 0.0
    %1978 = vmatpush2.msra.mxu0 0.0
    %1979 = vmatprep.subr.mxu0 0.0
    %1980 = vmatpush2.msra.mxu0 0.0
    %1981 = vmatprep.subr.mxu0 0.0
    %1982 = vmatpush2.msra.mxu0 0.0
    %1983 = vmatprep.subr.mxu0 0.0
    %1984 = vmatpush2.msra.mxu0 0.0
    %1985 = vmatprep.subr.mxu0 0.0
    %1986 = vmatpush2.msra.mxu0 0.0
    %1987 = vmatprep.subr.mxu0 0.0
    %1988 = vmatpush2.msra.mxu0 0.0
    %1989 = vmatprep.subr.mxu0 0.0
    %1990 = vmatpush2.msra.mxu0 0.0
    %1991 = vmatprep.subr.mxu0 0.0
    %1992 = vmatpush2.msra.mxu0 0.0
    %1993 = vmatprep.mubr.f32.mxu0 0.0
    %1994 = vmatmul.mubr.f32.gmra.mxu0 %v1927
    %v1995 = vpop.f32.mrf.mxu0
    %v1996 = vadd.f32 %v1922, %v1995
    %v1997 = vpop.f32.mrf.mxu0
    %v1998 = vadd.f32 %v1924, %v1997
    %1999 = vdwg.mxu0
    %v2000 = vadd.f32 %v1996, %v323
    %v2001 = vadd.f32 %v1998, %v327
    %v2002 = vtanh.pop %v2000
    %v2003 = vtanh.pop %v2001
    %v2004 = vmul.f32 %v2002, 0.5
    %v2005 = vmul.f32 %v2003, 0.5
    %v2006 = vadd.f32 %v2004, 0.5
    %v2007 = vadd.f32 %v2005, 0.5
    %v2008 = vmul.f32 %v2006, %v1747
    %2010 = vrot.lane.b32.xlu0 %v2003, 64
    %v2011 = vpop.permute.xlu0 %2010
    %v2013 = vmul.f32 %v2006, %v2011
    %2015 = vrot.lane.b32.xlu0 %v2013, 64
    %v2016 = vpop.permute.xlu0 %2015
    %v2018 = vadd.f32 %v2008, %v2016
    %v2019 = vtanh.pop %v2018
    %2021 = vrot.lane.b32.xlu0 %v2019, 64
    %v2022 = vpop.permute.xlu0 %2021
    %v2024 = vmul.f32 %v2007, %v2022
    %v2025 = vld [vmem:[#allocation2 + $0x60] sm:$0xff]
    %v2026 = vld [vmem:[#allocation2 + $0x68] sm:$0xff]
    %2027 = vmatprep.subr.mxu0 0.0
    %2028 = vmatpush1.msra.mxu0 0.0
    %2029 = vmatprep.subr.mxu0 0.0
    %2030 = vmatpush1.msra.mxu0 0.0
    %2031 = vmatprep.subr.mxu0 0.0
    %2032 = vmatpush1.msra.mxu0 0.0
    %2033 = vmatprep.subr.mxu0 0.0
    %2034 = vmatpush1.msra.mxu0 0.0
    %2035 = vmatprep.subr.mxu0 0.0
    %2036 = vmatpush1.msra.mxu0 0.0
    %2037 = vmatprep.subr.mxu0 0.0
    %2038 = vmatpush1.msra.mxu0 0.0
    %2039 = vmatprep.subr.mxu0 0.0
    %2040 = vmatpush1.msra.mxu0 0.0
    %2041 = vmatprep.subr.mxu0 0.0
    %2042 = vmatpush1.msra.mxu0 0.0
    %2043 = vmatprep.subr.mxu0 %v367
    %2044 = vmatpush1.msra.mxu0 %v366
    %2045 = vmatprep.subr.mxu0 %v365
    %2046 = vmatpush1.msra.mxu0 %v364
    %2047 = vmatprep.subr.mxu0 %v363
    %2048 = vmatpush1.msra.mxu0 %v362
    %2049 = vmatprep.subr.mxu0 %v361
    %2050 = vmatpush1.msra.mxu0 %v360
    %2051 = vmatprep.subr.mxu0 %v359
    %2052 = vmatpush1.msra.mxu0 %v358
    %2053 = vmatprep.subr.mxu0 %v357
    %2054 = vmatpush1.msra.mxu0 %v356
    %2055 = vmatprep.subr.mxu0 %v355
    %2056 = vmatpush1.msra.mxu0 %v354
    %2057 = vmatprep.subr.mxu0 %v353
    %2058 = vmatpush1.msra.mxu0 %v352
    %2059 = vmatprep.subr.mxu0 0.0
    %2060 = vmatpush2.msra.mxu0 0.0
    %2061 = vmatprep.subr.mxu0 0.0
    %2062 = vmatpush2.msra.mxu0 0.0
    %2063 = vmatprep.subr.mxu0 0.0
    %2064 = vmatpush2.msra.mxu0 0.0
    %2065 = vmatprep.subr.mxu0 0.0
    %2066 = vmatpush2.msra.mxu0 0.0
    %2067 = vmatprep.subr.mxu0 0.0
    %2068 = vmatpush2.msra.mxu0 0.0
    %2069 = vmatprep.subr.mxu0 0.0
    %2070 = vmatpush2.msra.mxu0 0.0
    %2071 = vmatprep.subr.mxu0 0.0
    %2072 = vmatpush2.msra.mxu0 0.0
    %2073 = vmatprep.subr.mxu0 0.0
    %2074 = vmatpush2.msra.mxu0 0.0
    %2075 = vmatprep.subr.mxu0 0.0
    %2076 = vmatpush2.msra.mxu0 0.0
    %2077 = vmatprep.subr.mxu0 0.0
    %2078 = vmatpush2.msra.mxu0 0.0
    %2079 = vmatprep.subr.mxu0 0.0
    %2080 = vmatpush2.msra.mxu0 0.0
    %2081 = vmatprep.subr.mxu0 0.0
    %2082 = vmatpush2.msra.mxu0 0.0
    %2083 = vmatprep.subr.mxu0 0.0
    %2084 = vmatpush2.msra.mxu0 0.0
    %2085 = vmatprep.subr.mxu0 0.0
    %2086 = vmatpush2.msra.mxu0 0.0
    %2087 = vmatprep.subr.mxu0 0.0
    %2088 = vmatpush2.msra.mxu0 0.0
    %2089 = vmatprep.subr.mxu0 0.0
    %2090 = vmatpush2.msra.mxu0 0.0
    %2091 = vmatprep.mubr.f32.mxu0 0.0
    %2092 = vmatmul.mubr.f32.gmra.mxu0 %v1927
    %v2093 = vpop.f32.mrf.mxu0
    %v2094 = vadd.f32 0.0, %v2093
    %v2095 = vpop.f32.mrf.mxu0
    %v2096 = vadd.f32 0.0, %v2095
    %2097 = vdwg.mxu0
    %v2098 = vadd.f32 %v2025, %v2094
    %v2099 = vadd.f32 %v2026, %v2096
    %v2100 = vtanh.pop %v2098
    %v2101 = vtanh.pop %v2099
    %v2102 = vmul.f32 %v2100, 0.5
    %v2103 = vmul.f32 %v2101, 0.5
    %v2104 = vadd.f32 %v2102, 0.5
    %v2105 = vadd.f32 %v2103, 0.5
    %v2106 = vmul.f32 %v2104, %v1845
    %2108 = vrot.lane.b32.xlu0 %v2101, 64
    %v2109 = vpop.permute.xlu0 %2108
    %v2111 = vmul.f32 %v2104, %v2109
    %2113 = vrot.lane.b32.xlu0 %v2111, 64
    %v2114 = vpop.permute.xlu0 %2113
    %v2116 = vadd.f32 %v2106, %v2114
    %v2117 = vtanh.pop %v2116
    %2119 = vrot.lane.b32.xlu0 %v2117, 64
    %v2120 = vpop.permute.xlu0 %2119
    %v2122 = vmul.f32 %v2105, %v2120
    %v2124 = vsel %vm368, %v2024, 0
    %2126 = vmatprep.subr.mxu0 0.0
    %2127 = vmatpush1.msra.mxu0 0.0
    %2128 = vmatprep.subr.mxu0 0.0
    %2129 = vmatpush1.msra.mxu0 0.0
    %2130 = vmatprep.subr.mxu0 0.0
    %2131 = vmatpush1.msra.mxu0 0.0
    %2132 = vmatprep.subr.mxu0 0.0
    %2133 = vmatpush1.msra.mxu0 0.0
    %2134 = vmatprep.subr.mxu0 0.0
    %2135 = vmatpush1.msra.mxu0 0.0
    %2136 = vmatprep.subr.mxu0 0.0
    %2137 = vmatpush1.msra.mxu0 0.0
    %2138 = vmatprep.subr.mxu0 0.0
    %2139 = vmatpush1.msra.mxu0 0.0
    %2140 = vmatprep.subr.mxu0 0.0
    %2141 = vmatpush1.msra.mxu0 0.0
    %2142 = vmatprep.subr.mxu0 %v499
    %2143 = vmatpush1.msra.mxu0 %v498
    %2144 = vmatprep.subr.mxu0 %v497
    %2145 = vmatpush1.msra.mxu0 %v496
    %2146 = vmatprep.subr.mxu0 %v495
    %2147 = vmatpush1.msra.mxu0 %v494
    %2148 = vmatprep.subr.mxu0 %v493
    %2149 = vmatpush1.msra.mxu0 %v492
    %2150 = vmatprep.subr.mxu0 %v491
    %2151 = vmatpush1.msra.mxu0 %v490
    %2152 = vmatprep.subr.mxu0 %v489
    %2153 = vmatpush1.msra.mxu0 %v488
    %2154 = vmatprep.subr.mxu0 %v487
    %2155 = vmatpush1.msra.mxu0 %v486
    %2156 = vmatprep.subr.mxu0 %v485
    %2157 = vmatpush1.msra.mxu0 %v484
    %2158 = vmatprep.subr.mxu0 0.0
    %2159 = vmatpush2.msra.mxu0 0.0
    %2160 = vmatprep.subr.mxu0 0.0
    %2161 = vmatpush2.msra.mxu0 0.0
    %2162 = vmatprep.subr.mxu0 0.0
    %2163 = vmatpush2.msra.mxu0 0.0
    %2164 = vmatprep.subr.mxu0 0.0
    %2165 = vmatpush2.msra.mxu0 0.0
    %2166 = vmatprep.subr.mxu0 0.0
    %2167 = vmatpush2.msra.mxu0 0.0
    %2168 = vmatprep.subr.mxu0 0.0
    %2169 = vmatpush2.msra.mxu0 0.0
    %2170 = vmatprep.subr.mxu0 0.0
    %2171 = vmatpush2.msra.mxu0 0.0
    %2172 = vmatprep.subr.mxu0 0.0
    %2173 = vmatpush2.msra.mxu0 0.0
    %2174 = vmatprep.subr.mxu0 0.0
    %2175 = vmatpush2.msra.mxu0 0.0
    %2176 = vmatprep.subr.mxu0 0.0
    %2177 = vmatpush2.msra.mxu0 0.0
    %2178 = vmatprep.subr.mxu0 0.0
    %2179 = vmatpush2.msra.mxu0 0.0
    %2180 = vmatprep.subr.mxu0 0.0
    %2181 = vmatpush2.msra.mxu0 0.0
    %2182 = vmatprep.subr.mxu0 0.0
    %2183 = vmatpush2.msra.mxu0 0.0
    %2184 = vmatprep.subr.mxu0 0.0
    %2185 = vmatpush2.msra.mxu0 0.0
    %2186 = vmatprep.subr.mxu0 0.0
    %2187 = vmatpush2.msra.mxu0 0.0
    %2188 = vmatprep.subr.mxu0 0.0
    %2189 = vmatpush2.msra.mxu0 0.0
    %2190 = vmatprep.mubr.f32.mxu0 0.0
    %2191 = vmatmul.mubr.f32.gmra.mxu0 %v2124
    %v2192 = vpop.f32.mrf.mxu0
    %v2193 = vadd.f32 0.0, %v2192
    %v2194 = vpop.f32.mrf.mxu0
    %v2195 = vadd.f32 0.0, %v2194
    %2196 = vdwg.mxu0
    %v2198 = vsel %vm368, %v2122, 0
    %2200 = vmatprep.subr.mxu0 0.0
    %2201 = vmatpush1.msra.mxu0 0.0
    %2202 = vmatprep.subr.mxu0 0.0
    %2203 = vmatpush1.msra.mxu0 0.0
    %2204 = vmatprep.subr.mxu0 0.0
    %2205 = vmatpush1.msra.mxu0 0.0
    %2206 = vmatprep.subr.mxu0 0.0
    %2207 = vmatpush1.msra.mxu0 0.0
    %2208 = vmatprep.subr.mxu0 0.0
    %2209 = vmatpush1.msra.mxu0 0.0
    %2210 = vmatprep.subr.mxu0 0.0
    %2211 = vmatpush1.msra.mxu0 0.0
    %2212 = vmatprep.subr.mxu0 0.0
    %2213 = vmatpush1.msra.mxu0 0.0
    %2214 = vmatprep.subr.mxu0 0.0
    %2215 = vmatpush1.msra.mxu0 0.0
    %2216 = vmatprep.subr.mxu0 %v483
    %2217 = vmatpush1.msra.mxu0 %v482
    %2218 = vmatprep.subr.mxu0 %v481
    %2219 = vmatpush1.msra.mxu0 %v480
    %2220 = vmatprep.subr.mxu0 %v479
    %2221 = vmatpush1.msra.mxu0 %v478
    %2222 = vmatprep.subr.mxu0 %v477
    %2223 = vmatpush1.msra.mxu0 %v476
    %2224 = vmatprep.subr.mxu0 %v475
    %2225 = vmatpush1.msra.mxu0 %v474
    %2226 = vmatprep.subr.mxu0 %v473
    %2227 = vmatpush1.msra.mxu0 %v472
    %2228 = vmatprep.subr.mxu0 %v471
    %2229 = vmatpush1.msra.mxu0 %v470
    %2230 = vmatprep.subr.mxu0 %v469
    %2231 = vmatpush1.msra.mxu0 %v468
    %2232 = vmatprep.subr.mxu0 0.0
    %2233 = vmatpush2.msra.mxu0 0.0
    %2234 = vmatprep.subr.mxu0 0.0
    %2235 = vmatpush2.msra.mxu0 0.0
    %2236 = vmatprep.subr.mxu0 0.0
    %2237 = vmatpush2.msra.mxu0 0.0
    %2238 = vmatprep.subr.mxu0 0.0
    %2239 = vmatpush2.msra.mxu0 0.0
    %2240 = vmatprep.subr.mxu0 0.0
    %2241 = vmatpush2.msra.mxu0 0.0
    %2242 = vmatprep.subr.mxu0 0.0
    %2243 = vmatpush2.msra.mxu0 0.0
    %2244 = vmatprep.subr.mxu0 0.0
    %2245 = vmatpush2.msra.mxu0 0.0
    %2246 = vmatprep.subr.mxu0 0.0
    %2247 = vmatpush2.msra.mxu0 0.0
    %2248 = vmatprep.subr.mxu0 0.0
    %2249 = vmatpush2.msra.mxu0 0.0
    %2250 = vmatprep.subr.mxu0 0.0
    %2251 = vmatpush2.msra.mxu0 0.0
    %2252 = vmatprep.subr.mxu0 0.0
    %2253 = vmatpush2.msra.mxu0 0.0
    %2254 = vmatprep.subr.mxu0 0.0
    %2255 = vmatpush2.msra.mxu0 0.0
    %2256 = vmatprep.subr.mxu0 0.0
    %2257 = vmatpush2.msra.mxu0 0.0
    %2258 = vmatprep.subr.mxu0 0.0
    %2259 = vmatpush2.msra.mxu0 0.0
    %2260 = vmatprep.subr.mxu0 0.0
    %2261 = vmatpush2.msra.mxu0 0.0
    %2262 = vmatprep.subr.mxu0 0.0
    %2263 = vmatpush2.msra.mxu0 0.0
    %2264 = vmatprep.mubr.f32.mxu0 0.0
    %2265 = vmatmul.mubr.f32.gmra.mxu0 %v2198
    %v2266 = vpop.f32.mrf.mxu0
    %v2267 = vadd.f32 %v2193, %v2266
    %v2268 = vpop.f32.mrf.mxu0
    %v2269 = vadd.f32 %v2195, %v2268
    %2270 = vdwg.mxu0
    %v2271 = vadd.f32 %v2267, %v323
    %v2272 = vadd.f32 %v2269, %v327
    %v2273 = vtanh.pop %v2271
    %v2274 = vtanh.pop %v2272
    %v2275 = vmul.f32 %v2273, 0.5
    %v2276 = vmul.f32 %v2274, 0.5
    %v2277 = vadd.f32 %v2275, 0.5
    %v2278 = vadd.f32 %v2276, 0.5
    %v2279 = vmul.f32 %v2277, %v2018
    %2281 = vrot.lane.b32.xlu0 %v2274, 64
    %v2282 = vpop.permute.xlu0 %2281
    %v2284 = vmul.f32 %v2277, %v2282
    %2286 = vrot.lane.b32.xlu0 %v2284, 64
    %v2287 = vpop.permute.xlu0 %2286
    %v2289 = vadd.f32 %v2279, %v2287
    %v2290 = vtanh.pop %v2289
    %2292 = vrot.lane.b32.xlu0 %v2290, 64
    %v2293 = vpop.permute.xlu0 %2292
    %v2295 = vmul.f32 %v2278, %v2293
    %v2296 = vld [vmem:[#allocation2 + $0x70] sm:$0xff]
    %v2297 = vld [vmem:[#allocation2 + $0x78] sm:$0xff]
    %2298 = vmatprep.subr.mxu0 0.0
    %2299 = vmatpush1.msra.mxu0 0.0
    %2300 = vmatprep.subr.mxu0 0.0
    %2301 = vmatpush1.msra.mxu0 0.0
    %2302 = vmatprep.subr.mxu0 0.0
    %2303 = vmatpush1.msra.mxu0 0.0
    %2304 = vmatprep.subr.mxu0 0.0
    %2305 = vmatpush1.msra.mxu0 0.0
    %2306 = vmatprep.subr.mxu0 0.0
    %2307 = vmatpush1.msra.mxu0 0.0
    %2308 = vmatprep.subr.mxu0 0.0
    %2309 = vmatpush1.msra.mxu0 0.0
    %2310 = vmatprep.subr.mxu0 0.0
    %2311 = vmatpush1.msra.mxu0 0.0
    %2312 = vmatprep.subr.mxu0 0.0
    %2313 = vmatpush1.msra.mxu0 0.0
    %2314 = vmatprep.subr.mxu0 %v367
    %2315 = vmatpush1.msra.mxu0 %v366
    %2316 = vmatprep.subr.mxu0 %v365
    %2317 = vmatpush1.msra.mxu0 %v364
    %2318 = vmatprep.subr.mxu0 %v363
    %2319 = vmatpush1.msra.mxu0 %v362
    %2320 = vmatprep.subr.mxu0 %v361
    %2321 = vmatpush1.msra.mxu0 %v360
    %2322 = vmatprep.subr.mxu0 %v359
    %2323 = vmatpush1.msra.mxu0 %v358
    %2324 = vmatprep.subr.mxu0 %v357
    %2325 = vmatpush1.msra.mxu0 %v356
    %2326 = vmatprep.subr.mxu0 %v355
    %2327 = vmatpush1.msra.mxu0 %v354
    %2328 = vmatprep.subr.mxu0 %v353
    %2329 = vmatpush1.msra.mxu0 %v352
    %2330 = vmatprep.subr.mxu0 0.0
    %2331 = vmatpush2.msra.mxu0 0.0
    %2332 = vmatprep.subr.mxu0 0.0
    %2333 = vmatpush2.msra.mxu0 0.0
    %2334 = vmatprep.subr.mxu0 0.0
    %2335 = vmatpush2.msra.mxu0 0.0
    %2336 = vmatprep.subr.mxu0 0.0
    %2337 = vmatpush2.msra.mxu0 0.0
    %2338 = vmatprep.subr.mxu0 0.0
    %2339 = vmatpush2.msra.mxu0 0.0
    %2340 = vmatprep.subr.mxu0 0.0
    %2341 = vmatpush2.msra.mxu0 0.0
    %2342 = vmatprep.subr.mxu0 0.0
    %2343 = vmatpush2.msra.mxu0 0.0
    %2344 = vmatprep.subr.mxu0 0.0
    %2345 = vmatpush2.msra.mxu0 0.0
    %2346 = vmatprep.subr.mxu0 0.0
    %2347 = vmatpush2.msra.mxu0 0.0
    %2348 = vmatprep.subr.mxu0 0.0
    %2349 = vmatpush2.msra.mxu0 0.0
    %2350 = vmatprep.subr.mxu0 0.0
    %2351 = vmatpush2.msra.mxu0 0.0
    %2352 = vmatprep.subr.mxu0 0.0
    %2353 = vmatpush2.msra.mxu0 0.0
    %2354 = vmatprep.subr.mxu0 0.0
    %2355 = vmatpush2.msra.mxu0 0.0
    %2356 = vmatprep.subr.mxu0 0.0
    %2357 = vmatpush2.msra.mxu0 0.0
    %2358 = vmatprep.subr.mxu0 0.0
    %2359 = vmatpush2.msra.mxu0 0.0
    %2360 = vmatprep.subr.mxu0 0.0
    %2361 = vmatpush2.msra.mxu0 0.0
    %2362 = vmatprep.mubr.f32.mxu0 0.0
    %2363 = vmatmul.mubr.f32.gmra.mxu0 %v2198
    %v2364 = vpop.f32.mrf.mxu0
    %v2365 = vadd.f32 0.0, %v2364
    %v2366 = vpop.f32.mrf.mxu0
    %v2367 = vadd.f32 0.0, %v2366
    %2368 = vdwg.mxu0
    %v2369 = vadd.f32 %v2296, %v2365
    %v2370 = vadd.f32 %v2297, %v2367
    %v2371 = vtanh.pop %v2369
    %v2372 = vtanh.pop %v2370
    %v2373 = vmul.f32 %v2371, 0.5
    %v2374 = vmul.f32 %v2372, 0.5
    %v2375 = vadd.f32 %v2373, 0.5
    %v2376 = vadd.f32 %v2374, 0.5
    %v2377 = vmul.f32 %v2375, %v2116
    %2379 = vrot.lane.b32.xlu0 %v2372, 64
    %v2380 = vpop.permute.xlu0 %2379
    %v2382 = vmul.f32 %v2375, %v2380
    %2384 = vrot.lane.b32.xlu0 %v2382, 64
    %v2385 = vpop.permute.xlu0 %2384
    %v2387 = vadd.f32 %v2377, %v2385
    %v2388 = vtanh.pop %v2387
    %2390 = vrot.lane.b32.xlu0 %v2388, 64
    %v2391 = vpop.permute.xlu0 %2390
    %v2393 = vmul.f32 %v2376, %v2391
    %v2395 = vsel %vm368, %v2295, 0
    %2397 = vmatprep.subr.mxu0 0.0
    %2398 = vmatpush1.msra.mxu0 0.0
    %2399 = vmatprep.subr.mxu0 0.0
    %2400 = vmatpush1.msra.mxu0 0.0
    %2401 = vmatprep.subr.mxu0 0.0
    %2402 = vmatpush1.msra.mxu0 0.0
    %2403 = vmatprep.subr.mxu0 0.0
    %2404 = vmatpush1.msra.mxu0 0.0
    %2405 = vmatprep.subr.mxu0 0.0
    %2406 = vmatpush1.msra.mxu0 0.0
    %2407 = vmatprep.subr.mxu0 0.0
    %2408 = vmatpush1.msra.mxu0 0.0
    %2409 = vmatprep.subr.mxu0 0.0
    %2410 = vmatpush1.msra.mxu0 0.0
    %2411 = vmatprep.subr.mxu0 0.0
    %2412 = vmatpush1.msra.mxu0 0.0
    %2413 = vmatprep.subr.mxu0 %v499
    %2414 = vmatpush1.msra.mxu0 %v498
    %2415 = vmatprep.subr.mxu0 %v497
    %2416 = vmatpush1.msra.mxu0 %v496
    %2417 = vmatprep.subr.mxu0 %v495
    %2418 = vmatpush1.msra.mxu0 %v494
    %2419 = vmatprep.subr.mxu0 %v493
    %2420 = vmatpush1.msra.mxu0 %v492
    %2421 = vmatprep.subr.mxu0 %v491
    %2422 = vmatpush1.msra.mxu0 %v490
    %2423 = vmatprep.subr.mxu0 %v489
    %2424 = vmatpush1.msra.mxu0 %v488
    %2425 = vmatprep.subr.mxu0 %v487
    %2426 = vmatpush1.msra.mxu0 %v486
    %2427 = vmatprep.subr.mxu0 %v485
    %2428 = vmatpush1.msra.mxu0 %v484
    %2429 = vmatprep.subr.mxu0 0.0
    %2430 = vmatpush2.msra.mxu0 0.0
    %2431 = vmatprep.subr.mxu0 0.0
    %2432 = vmatpush2.msra.mxu0 0.0
    %2433 = vmatprep.subr.mxu0 0.0
    %2434 = vmatpush2.msra.mxu0 0.0
    %2435 = vmatprep.subr.mxu0 0.0
    %2436 = vmatpush2.msra.mxu0 0.0
    %2437 = vmatprep.subr.mxu0 0.0
    %2438 = vmatpush2.msra.mxu0 0.0
    %2439 = vmatprep.subr.mxu0 0.0
    %2440 = vmatpush2.msra.mxu0 0.0
    %2441 = vmatprep.subr.mxu0 0.0
    %2442 = vmatpush2.msra.mxu0 0.0
    %2443 = vmatprep.subr.mxu0 0.0
    %2444 = vmatpush2.msra.mxu0 0.0
    %2445 = vmatprep.subr.mxu0 0.0
    %2446 = vmatpush2.msra.mxu0 0.0
    %2447 = vmatprep.subr.mxu0 0.0
    %2448 = vmatpush2.msra.mxu0 0.0
    %2449 = vmatprep.subr.mxu0 0.0
    %2450 = vmatpush2.msra.mxu0 0.0
    %2451 = vmatprep.subr.mxu0 0.0
    %2452 = vmatpush2.msra.mxu0 0.0
    %2453 = vmatprep.subr.mxu0 0.0
    %2454 = vmatpush2.msra.mxu0 0.0
    %2455 = vmatprep.subr.mxu0 0.0
    %2456 = vmatpush2.msra.mxu0 0.0
    %2457 = vmatprep.subr.mxu0 0.0
    %2458 = vmatpush2.msra.mxu0 0.0
    %2459 = vmatprep.subr.mxu0 0.0
    %2460 = vmatpush2.msra.mxu0 0.0
    %2461 = vmatprep.mubr.f32.mxu0 0.0
    %2462 = vmatmul.mubr.f32.gmra.mxu0 %v2395
    %v2463 = vpop.f32.mrf.mxu0
    %v2464 = vadd.f32 0.0, %v2463
    %v2465 = vpop.f32.mrf.mxu0
    %v2466 = vadd.f32 0.0, %v2465
    %2467 = vdwg.mxu0
    %v2469 = vsel %vm368, %v2393, 0
    %2471 = vmatprep.subr.mxu0 0.0
    %2472 = vmatpush1.msra.mxu0 0.0
    %2473 = vmatprep.subr.mxu0 0.0
    %2474 = vmatpush1.msra.mxu0 0.0
    %2475 = vmatprep.subr.mxu0 0.0
    %2476 = vmatpush1.msra.mxu0 0.0
    %2477 = vmatprep.subr.mxu0 0.0
    %2478 = vmatpush1.msra.mxu0 0.0
    %2479 = vmatprep.subr.mxu0 0.0
    %2480 = vmatpush1.msra.mxu0 0.0
    %2481 = vmatprep.subr.mxu0 0.0
    %2482 = vmatpush1.msra.mxu0 0.0
    %2483 = vmatprep.subr.mxu0 0.0
    %2484 = vmatpush1.msra.mxu0 0.0
    %2485 = vmatprep.subr.mxu0 0.0
    %2486 = vmatpush1.msra.mxu0 0.0
    %2487 = vmatprep.subr.mxu0 %v483
    %2488 = vmatpush1.msra.mxu0 %v482
    %2489 = vmatprep.subr.mxu0 %v481
    %2490 = vmatpush1.msra.mxu0 %v480
    %2491 = vmatprep.subr.mxu0 %v479
    %2492 = vmatpush1.msra.mxu0 %v478
    %2493 = vmatprep.subr.mxu0 %v477
    %2494 = vmatpush1.msra.mxu0 %v476
    %2495 = vmatprep.subr.mxu0 %v475
    %2496 = vmatpush1.msra.mxu0 %v474
    %2497 = vmatprep.subr.mxu0 %v473
    %2498 = vmatpush1.msra.mxu0 %v472
    %2499 = vmatprep.subr.mxu0 %v471
    %2500 = vmatpush1.msra.mxu0 %v470
    %2501 = vmatprep.subr.mxu0 %v469
    %2502 = vmatpush1.msra.mxu0 %v468
    %2503 = vmatprep.subr.mxu0 0.0
    %2504 = vmatpush2.msra.mxu0 0.0
    %2505 = vmatprep.subr.mxu0 0.0
    %2506 = vmatpush2.msra.mxu0 0.0
    %2507 = vmatprep.subr.mxu0 0.0
    %2508 = vmatpush2.msra.mxu0 0.0
    %2509 = vmatprep.subr.mxu0 0.0
    %2510 = vmatpush2.msra.mxu0 0.0
    %2511 = vmatprep.subr.mxu0 0.0
    %2512 = vmatpush2.msra.mxu0 0.0
    %2513 = vmatprep.subr.mxu0 0.0
    %2514 = vmatpush2.msra.mxu0 0.0
    %2515 = vmatprep.subr.mxu0 0.0
    %2516 = vmatpush2.msra.mxu0 0.0
    %2517 = vmatprep.subr.mxu0 0.0
    %2518 = vmatpush2.msra.mxu0 0.0
    %2519 = vmatprep.subr.mxu0 0.0
    %2520 = vmatpush2.msra.mxu0 0.0
    %2521 = vmatprep.subr.mxu0 0.0
    %2522 = vmatpush2.msra.mxu0 0.0
    %2523 = vmatprep.subr.mxu0 0.0
    %2524 = vmatpush2.msra.mxu0 0.0
    %2525 = vmatprep.subr.mxu0 0.0
    %2526 = vmatpush2.msra.mxu0 0.0
    %2527 = vmatprep.subr.mxu0 0.0
    %2528 = vmatpush2.msra.mxu0 0.0
    %2529 = vmatprep.subr.mxu0 0.0
    %2530 = vmatpush2.msra.mxu0 0.0
    %2531 = vmatprep.subr.mxu0 0.0
    %2532 = vmatpush2.msra.mxu0 0.0
    %2533 = vmatprep.subr.mxu0 0.0
    %2534 = vmatpush2.msra.mxu0 0.0
    %2535 = vmatprep.mubr.f32.mxu0 0.0
    %2536 = vmatmul.mubr.f32.gmra.mxu0 %v2469
    %v2537 = vpop.f32.mrf.mxu0
    %v2538 = vadd.f32 %v2464, %v2537
    %v2539 = vpop.f32.mrf.mxu0
    %v2540 = vadd.f32 %v2466, %v2539
    %2541 = vdwg.mxu0
    %v2542 = vadd.f32 %v2538, %v323
    %v2543 = vadd.f32 %v2540, %v327
    %v2544 = vtanh.pop %v2542
    %v2545 = vtanh.pop %v2543
    %v2546 = vmul.f32 %v2544, 0.5
    %v2547 = vmul.f32 %v2545, 0.5
    %v2548 = vadd.f32 %v2546, 0.5
    %v2549 = vadd.f32 %v2547, 0.5
    %v2550 = vmul.f32 %v2548, %v2289
    %2552 = vrot.lane.b32.xlu0 %v2545, 64
    %v2553 = vpop.permute.xlu0 %2552
    %v2555 = vmul.f32 %v2548, %v2553
    %2557 = vrot.lane.b32.xlu0 %v2555, 64
    %v2558 = vpop.permute.xlu0 %2557
    %v2560 = vadd.f32 %v2550, %v2558
    %v2561 = vtanh.pop %v2560
    %2563 = vrot.lane.b32.xlu0 %v2561, 64
    %v2564 = vpop.permute.xlu0 %2563
    %v2566 = vmul.f32 %v2549, %v2564
    %v2567 = vlaneseq
    %v2568 = vand.u32 %v2567, 127
    %v2569 = vlaneseq
    %v2570 = vshrl.u32 %v2569, 7
    %vm2571 = vcmp.lt.s32.totalorder %v2570, 2
    %v2572 = vld [vmem:[%s10] sm:$0x3]
    %v2573 = vld [vmem:[#allocation9] sm:$0xff]
    %v2574 = vld [vmem:[#allocation9 + $0x8] sm:$0xff]
    %v2575 = vld [vmem:[#allocation9 + $0x10] sm:$0xff]
    %v2576 = vld [vmem:[#allocation9 + $0x18] sm:$0xff]
    %v2577 = vld [vmem:[#allocation9 + $0x20] sm:$0xff]
    %v2578 = vld [vmem:[#allocation9 + $0x28] sm:$0xff]
    %v2579 = vld [vmem:[#allocation9 + $0x30] sm:$0xff]
    %v2580 = vld [vmem:[#allocation9 + $0x38] sm:$0xff]
    %v2581 = vld [vmem:[#allocation9 + $0x40] sm:$0xff]
    %v2582 = vld [vmem:[#allocation9 + $0x48] sm:$0xff]
    %v2583 = vld [vmem:[#allocation9 + $0x50] sm:$0xff]
    %v2584 = vld [vmem:[#allocation9 + $0x58] sm:$0xff]
    %v2585 = vld [vmem:[#allocation9 + $0x60] sm:$0xff]
    %v2586 = vld [vmem:[#allocation9 + $0x68] sm:$0xff]
    %v2587 = vld [vmem:[#allocation9 + $0x70] sm:$0xff]
    %v2588 = vld [vmem:[#allocation9 + $0x78] sm:$0xff]
    %v2590 = vlaneseq
    %v2591 = vshrl.u32 %v2590, 7
    %v2592 = vsub.s32 0, %v2591
    %v2593 = vrot.slane %v2572, %v2592
    %v2594 = vlaneseq
    %v2595 = vshrl.u32 %v2594, 7
    %v2596 = vsub.s32 1, %v2595
    %v2597 = vrot.slane %v2572, %v2596
    %v2601 = vsel %vm368, %v2566, 0
    %2603 = vmatprep.subr.mxu0 0.0
    %2604 = vmatpush1.msra.mxu0 0.0
    %2605 = vmatprep.subr.mxu0 0.0
    %2606 = vmatpush1.msra.mxu0 0.0
    %2607 = vmatprep.subr.mxu0 0.0
    %2608 = vmatpush1.msra.mxu0 0.0
    %2609 = vmatprep.subr.mxu0 0.0
    %2610 = vmatpush1.msra.mxu0 0.0
    %2611 = vmatprep.subr.mxu0 0.0
    %2612 = vmatpush1.msra.mxu0 0.0
    %2613 = vmatprep.subr.mxu0 0.0
    %2614 = vmatpush1.msra.mxu0 0.0
    %2615 = vmatprep.subr.mxu0 0.0
    %2616 = vmatpush1.msra.mxu0 0.0
    %2617 = vmatprep.subr.mxu0 0.0
    %2618 = vmatpush1.msra.mxu0 0.0
    %2619 = vmatprep.subr.mxu0 %v2588
    %2620 = vmatpush1.msra.mxu0 %v2587
    %2621 = vmatprep.subr.mxu0 %v2586
    %2622 = vmatpush1.msra.mxu0 %v2585
    %2623 = vmatprep.subr.mxu0 %v2584
    %2624 = vmatpush1.msra.mxu0 %v2583
    %2625 = vmatprep.subr.mxu0 %v2582
    %2626 = vmatpush1.msra.mxu0 %v2581
    %2627 = vmatprep.subr.mxu0 %v2580
    %2628 = vmatpush1.msra.mxu0 %v2579
    %2629 = vmatprep.subr.mxu0 %v2578
    %2630 = vmatpush1.msra.mxu0 %v2577
    %2631 = vmatprep.subr.mxu0 %v2576
    %2632 = vmatpush1.msra.mxu0 %v2575
    %2633 = vmatprep.subr.mxu0 %v2574
    %2634 = vmatpush1.msra.mxu0 %v2573
    %2635 = vmatprep.subr.mxu0 0.0
    %2636 = vmatpush2.msra.mxu0 0.0
    %2637 = vmatprep.subr.mxu0 0.0
    %2638 = vmatpush2.msra.mxu0 0.0
    %2639 = vmatprep.subr.mxu0 0.0
    %2640 = vmatpush2.msra.mxu0 0.0
    %2641 = vmatprep.subr.mxu0 0.0
    %2642 = vmatpush2.msra.mxu0 0.0
    %2643 = vmatprep.subr.mxu0 0.0
    %2644 = vmatpush2.msra.mxu0 0.0
    %2645 = vmatprep.subr.mxu0 0.0
    %2646 = vmatpush2.msra.mxu0 0.0
    %2647 = vmatprep.subr.mxu0 0.0
    %2648 = vmatpush2.msra.mxu0 0.0
    %2649 = vmatprep.subr.mxu0 0.0
    %2650 = vmatpush2.msra.mxu0 0.0
    %2651 = vmatprep.subr.mxu0 0.0
    %2652 = vmatpush2.msra.mxu0 0.0
    %2653 = vmatprep.subr.mxu0 0.0
    %2654 = vmatpush2.msra.mxu0 0.0
    %2655 = vmatprep.subr.mxu0 0.0
    %2656 = vmatpush2.msra.mxu0 0.0
    %2657 = vmatprep.subr.mxu0 0.0
    %2658 = vmatpush2.msra.mxu0 0.0
    %2659 = vmatprep.subr.mxu0 0.0
    %2660 = vmatpush2.msra.mxu0 0.0
    %2661 = vmatprep.subr.mxu0 0.0
    %2662 = vmatpush2.msra.mxu0 0.0
    %2663 = vmatprep.subr.mxu0 0.0
    %2664 = vmatpush2.msra.mxu0 0.0
    %2665 = vmatprep.subr.mxu0 0.0
    %2666 = vmatpush2.msra.mxu0 0.0
    %2667 = vmatprep.mubr.f32.mxu0 0.0
    %2668 = vmatmul.mubr.f32.gmra.mxu0 %v2601
    %v2669 = vpop.f32.mrf.mxu0
    %v2670 = vadd.f32 %v2593, %v2669
    %v2671 = vpop.f32.mrf.mxu0
    %v2672 = vadd.f32 %v2597, %v2671
    %2673 = vdwg.mxu0
    %v2674 = vtanh.pop %v2670
    %v2675 = vtanh.pop %v2672
    %v2676 = vmul.f32 %v2674, 0.5
    %v2677 = vmul.f32 %v2675, 0.5
    %v2678 = vadd.f32 %v2676, 0.5
    %v2679 = vadd.f32 %v2677, 0.5
    %v2680 = vmul.f32 %v2678, %v2560
    %2682 = vrot.lane.b32.xlu0 %v2675, 64
    %v2683 = vpop.permute.xlu0 %2682
    %v2685 = vmul.f32 %v2678, %v2683
    %2687 = vrot.lane.b32.xlu0 %v2685, 64
    %v2688 = vpop.permute.xlu0 %2687
    %v2690 = vadd.f32 %v2680, %v2688
    %v2691 = vtanh.pop %v2690
    %2693 = vrot.lane.b32.xlu0 %v2691, 64
    %v2694 = vpop.permute.xlu0 %2693
    %v2696 = vmul.f32 %v2679, %v2694
    %v2697 = vld [vmem:[#allocation11] sm:$0xff]
    %v2698 = vld [vmem:[#allocation11 + $0x8] sm:$0xff]
    %v2699 = vld [vmem:[#allocation11 + $0x10] sm:$0xff]
    %v2700 = vld [vmem:[#allocation11 + $0x18] sm:$0xff]
    %v2701 = vld [vmem:[#allocation11 + $0x20] sm:$0xff]
    %v2702 = vld [vmem:[#allocation11 + $0x28] sm:$0xff]
    %v2703 = vld [vmem:[#allocation11 + $0x30] sm:$0xff]
    %v2704 = vld [vmem:[#allocation11 + $0x38] sm:$0xff]
    %v2705 = vld [vmem:[#allocation11 + $0x40] sm:$0xff]
    %v2706 = vld [vmem:[#allocation11 + $0x48] sm:$0xff]
    %v2707 = vld [vmem:[#allocation11 + $0x50] sm:$0xff]
    %v2708 = vld [vmem:[#allocation11 + $0x58] sm:$0xff]
    %v2709 = vld [vmem:[#allocation11 + $0x60] sm:$0xff]
    %v2710 = vld [vmem:[#allocation11 + $0x68] sm:$0xff]
    %v2711 = vld [vmem:[#allocation11 + $0x70] sm:$0xff]
    %v2712 = vld [vmem:[#allocation11 + $0x78] sm:$0xff]
    %v2713 = vld [vmem:[#allocation12] sm:$0xff]
    %v2714 = vld [vmem:[#allocation12 + $0x8] sm:$0xff]
    %v2715 = vld [vmem:[#allocation12 + $0x10] sm:$0xff]
    %v2716 = vld [vmem:[#allocation12 + $0x18] sm:$0xff]
    %v2717 = vld [vmem:[#allocation12 + $0x20] sm:$0xff]
    %v2718 = vld [vmem:[#allocation12 + $0x28] sm:$0xff]
    %v2719 = vld [vmem:[#allocation12 + $0x30] sm:$0xff]
    %v2720 = vld [vmem:[#allocation12 + $0x38] sm:$0xff]
    %v2721 = vld [vmem:[#allocation12 + $0x40] sm:$0xff]
    %v2722 = vld [vmem:[#allocation12 + $0x48] sm:$0xff]
    %v2723 = vld [vmem:[#allocation12 + $0x50] sm:$0xff]
    %v2724 = vld [vmem:[#allocation12 + $0x58] sm:$0xff]
    %v2725 = vld [vmem:[#allocation12 + $0x60] sm:$0xff]
    %v2726 = vld [vmem:[#allocation12 + $0x68] sm:$0xff]
    %v2727 = vld [vmem:[#allocation12 + $0x70] sm:$0xff]
    %v2728 = vld [vmem:[#allocation12 + $0x78] sm:$0xff]
    %2729 = vmatprep.subr.mxu0 0.0
    %2730 = vmatpush1.msra.mxu0 0.0
    %2731 = vmatprep.subr.mxu0 0.0
    %2732 = vmatpush1.msra.mxu0 0.0
    %2733 = vmatprep.subr.mxu0 0.0
    %2734 = vmatpush1.msra.mxu0 0.0
    %2735 = vmatprep.subr.mxu0 0.0
    %2736 = vmatpush1.msra.mxu0 0.0
    %2737 = vmatprep.subr.mxu0 0.0
    %2738 = vmatpush1.msra.mxu0 0.0
    %2739 = vmatprep.subr.mxu0 0.0
    %2740 = vmatpush1.msra.mxu0 0.0
    %2741 = vmatprep.subr.mxu0 0.0
    %2742 = vmatpush1.msra.mxu0 0.0
    %2743 = vmatprep.subr.mxu0 0.0
    %2744 = vmatpush1.msra.mxu0 0.0
    %2745 = vmatprep.subr.mxu0 %v2728
    %2746 = vmatpush1.msra.mxu0 %v2727
    %2747 = vmatprep.subr.mxu0 %v2726
    %2748 = vmatpush1.msra.mxu0 %v2725
    %2749 = vmatprep.subr.mxu0 %v2724
    %2750 = vmatpush1.msra.mxu0 %v2723
    %2751 = vmatprep.subr.mxu0 %v2722
    %2752 = vmatpush1.msra.mxu0 %v2721
    %2753 = vmatprep.subr.mxu0 %v2720
    %2754 = vmatpush1.msra.mxu0 %v2719
    %2755 = vmatprep.subr.mxu0 %v2718
    %2756 = vmatpush1.msra.mxu0 %v2717
    %2757 = vmatprep.subr.mxu0 %v2716
    %2758 = vmatpush1.msra.mxu0 %v2715
    %2759 = vmatprep.subr.mxu0 %v2714
    %2760 = vmatpush1.msra.mxu0 %v2713
    %2761 = vmatprep.subr.mxu0 0.0
    %2762 = vmatpush2.msra.mxu0 0.0
    %2763 = vmatprep.subr.mxu0 0.0
    %2764 = vmatpush2.msra.mxu0 0.0
    %2765 = vmatprep.subr.mxu0 0.0
    %2766 = vmatpush2.msra.mxu0 0.0
    %2767 = vmatprep.subr.mxu0 0.0
    %2768 = vmatpush2.msra.mxu0 0.0
    %2769 = vmatprep.subr.mxu0 0.0
    %2770 = vmatpush2.msra.mxu0 0.0
    %2771 = vmatprep.subr.mxu0 0.0
    %2772 = vmatpush2.msra.mxu0 0.0
    %2773 = vmatprep.subr.mxu0 0.0
    %2774 = vmatpush2.msra.mxu0 0.0
    %2775 = vmatprep.subr.mxu0 0.0
    %2776 = vmatpush2.msra.mxu0 0.0
    %2777 = vmatprep.subr.mxu0 0.0
    %2778 = vmatpush2.msra.mxu0 0.0
    %2779 = vmatprep.subr.mxu0 0.0
    %2780 = vmatpush2.msra.mxu0 0.0
    %2781 = vmatprep.subr.mxu0 0.0
    %2782 = vmatpush2.msra.mxu0 0.0
    %2783 = vmatprep.subr.mxu0 0.0
    %2784 = vmatpush2.msra.mxu0 0.0
    %2785 = vmatprep.subr.mxu0 0.0
    %2786 = vmatpush2.msra.mxu0 0.0
    %2787 = vmatprep.subr.mxu0 0.0
    %2788 = vmatpush2.msra.mxu0 0.0
    %2789 = vmatprep.subr.mxu0 0.0
    %2790 = vmatpush2.msra.mxu0 0.0
    %2791 = vmatprep.subr.mxu0 0.0
    %2792 = vmatpush2.msra.mxu0 0.0
    %2793 = vmatprep.mubr.f32.mxu0 0.0
    %2794 = vmatmul.mubr.f32.gmra.mxu0 %v370
    %v2795 = vpop.f32.mrf.mxu0
    %v2796 = vadd.f32 0.0, %v2795
    %v2797 = vpop.f32.mrf.mxu0
    %v2798 = vadd.f32 0.0, %v2797
    %2799 = vdwg.mxu0
    %v2801 = vsel %vm368, %v2696, 0
    %2803 = vmatprep.subr.mxu0 0.0
    %2804 = vmatpush1.msra.mxu0 0.0
    %2805 = vmatprep.subr.mxu0 0.0
    %2806 = vmatpush1.msra.mxu0 0.0
    %2807 = vmatprep.subr.mxu0 0.0
    %2808 = vmatpush1.msra.mxu0 0.0
    %2809 = vmatprep.subr.mxu0 0.0
    %2810 = vmatpush1.msra.mxu0 0.0
    %2811 = vmatprep.subr.mxu0 0.0
    %2812 = vmatpush1.msra.mxu0 0.0
    %2813 = vmatprep.subr.mxu0 0.0
    %2814 = vmatpush1.msra.mxu0 0.0
    %2815 = vmatprep.subr.mxu0 0.0
    %2816 = vmatpush1.msra.mxu0 0.0
    %2817 = vmatprep.subr.mxu0 0.0
    %2818 = vmatpush1.msra.mxu0 0.0
    %2819 = vmatprep.subr.mxu0 %v2712
    %2820 = vmatpush1.msra.mxu0 %v2711
    %2821 = vmatprep.subr.mxu0 %v2710
    %2822 = vmatpush1.msra.mxu0 %v2709
    %2823 = vmatprep.subr.mxu0 %v2708
    %2824 = vmatpush1.msra.mxu0 %v2707
    %2825 = vmatprep.subr.mxu0 %v2706
    %2826 = vmatpush1.msra.mxu0 %v2705
    %2827 = vmatprep.subr.mxu0 %v2704
    %2828 = vmatpush1.msra.mxu0 %v2703
    %2829 = vmatprep.subr.mxu0 %v2702
    %2830 = vmatpush1.msra.mxu0 %v2701
    %2831 = vmatprep.subr.mxu0 %v2700
    %2832 = vmatpush1.msra.mxu0 %v2699
    %2833 = vmatprep.subr.mxu0 %v2698
    %2834 = vmatpush1.msra.mxu0 %v2697
    %2835 = vmatprep.subr.mxu0 0.0
    %2836 = vmatpush2.msra.mxu0 0.0
    %2837 = vmatprep.subr.mxu0 0.0
    %2838 = vmatpush2.msra.mxu0 0.0
    %2839 = vmatprep.subr.mxu0 0.0
    %2840 = vmatpush2.msra.mxu0 0.0
    %2841 = vmatprep.subr.mxu0 0.0
    %2842 = vmatpush2.msra.mxu0 0.0
    %2843 = vmatprep.subr.mxu0 0.0
    %2844 = vmatpush2.msra.mxu0 0.0
    %2845 = vmatprep.subr.mxu0 0.0
    %2846 = vmatpush2.msra.mxu0 0.0
    %2847 = vmatprep.subr.mxu0 0.0
    %2848 = vmatpush2.msra.mxu0 0.0
    %2849 = vmatprep.subr.mxu0 0.0
    %2850 = vmatpush2.msra.mxu0 0.0
    %2851 = vmatprep.subr.mxu0 0.0
    %2852 = vmatpush2.msra.mxu0 0.0
    %2853 = vmatprep.subr.mxu0 0.0
    %2854 = vmatpush2.msra.mxu0 0.0
    %2855 = vmatprep.subr.mxu0 0.0
    %2856 = vmatpush2.msra.mxu0 0.0
    %2857 = vmatprep.subr.mxu0 0.0
    %2858 = vmatpush2.msra.mxu0 0.0
    %2859 = vmatprep.subr.mxu0 0.0
    %2860 = vmatpush2.msra.mxu0 0.0
    %2861 = vmatprep.subr.mxu0 0.0
    %2862 = vmatpush2.msra.mxu0 0.0
    %2863 = vmatprep.subr.mxu0 0.0
    %2864 = vmatpush2.msra.mxu0 0.0
    %2865 = vmatprep.subr.mxu0 0.0
    %2866 = vmatpush2.msra.mxu0 0.0
    %2867 = vmatprep.mubr.f32.mxu0 0.0
    %2868 = vmatmul.mubr.f32.gmra.mxu0 %v2801
    %v2869 = vpop.f32.mrf.mxu0
    %v2870 = vadd.f32 %v2796, %v2869
    %v2871 = vpop.f32.mrf.mxu0
    %v2872 = vadd.f32 %v2798, %v2871
    %2873 = vdwg.mxu0
    %v2874 = vadd.f32 %v2870, %v335
    %v2875 = vadd.f32 %v2872, %v339
    %v2876 = vtanh.pop %v2874
    %v2877 = vtanh.pop %v2875
    %v2878 = vmul.f32 %v2876, 0.5
    %v2879 = vmul.f32 %v2877, 0.5
    %v2880 = vadd.f32 %v2878, 0.5
    %v2881 = vadd.f32 %v2879, 0.5
    %v2882 = vmul.f32 %v2880, 0.0
    %2884 = vrot.lane.b32.xlu0 %v2877, 64
    %v2885 = vpop.permute.xlu0 %2884
    %v2887 = vmul.f32 %v2880, %v2885
    %2889 = vrot.lane.b32.xlu0 %v2887, 64
    %v2890 = vpop.permute.xlu0 %2889
    %v2892 = vadd.f32 %v2882, %v2890
    %v2893 = vtanh.pop %v2892
    %2895 = vrot.lane.b32.xlu0 %v2893, 64
    %v2896 = vpop.permute.xlu0 %2895
    %v2898 = vmul.f32 %v2881, %v2896
    %v2899 = vld [vmem:[%s14] sm:$0xff]
    %v2900 = vld [vmem:[%s14 + $0x8] sm:$0xff]
    %v2901 = vld [vmem:[%s14 + $0x10] sm:$0xff]
    %v2902 = vld [vmem:[%s14 + $0x18] sm:$0xff]
    %v2903 = vld [vmem:[%s14 + $0x20] sm:$0xff]
    %v2904 = vld [vmem:[%s14 + $0x28] sm:$0xff]
    %v2905 = vld [vmem:[%s14 + $0x30] sm:$0xff]
    %v2906 = vld [vmem:[%s14 + $0x38] sm:$0xff]
    %v2908 = vsel %vm368, %v2898, 0
    %2910 = vmatprep.subr.mxu0 0.0
    %2911 = vmatpush1.msra.mxu0 0.0
    %2912 = vmatprep.subr.mxu0 0.0
    %2913 = vmatpush1.msra.mxu0 0.0
    %2914 = vmatprep.subr.mxu0 0.0
    %2915 = vmatpush1.msra.mxu0 0.0
    %2916 = vmatprep.subr.mxu0 0.0
    %2917 = vmatpush1.msra.mxu0 0.0
    %2918 = vmatprep.subr.mxu0 0.0
    %2919 = vmatpush1.msra.mxu0 0.0
    %2920 = vmatprep.subr.mxu0 0.0
    %2921 = vmatpush1.msra.mxu0 0.0
    %2922 = vmatprep.subr.mxu0 0.0
    %2923 = vmatpush1.msra.mxu0 0.0
    %2924 = vmatprep.subr.mxu0 0.0
    %2925 = vmatpush1.msra.mxu0 0.0
    %2926 = vmatprep.subr.mxu0 0.0
    %2927 = vmatpush1.msra.mxu0 %v2906
    %2928 = vmatprep.subr.mxu0 0.0
    %2929 = vmatpush1.msra.mxu0 %v2905
    %2930 = vmatprep.subr.mxu0 0.0
    %2931 = vmatpush1.msra.mxu0 %v2904
    %2932 = vmatprep.subr.mxu0 0.0
    %2933 = vmatpush1.msra.mxu0 %v2903
    %2934 = vmatprep.subr.mxu0 0.0
    %2935 = vmatpush1.msra.mxu0 %v2902
    %2936 = vmatprep.subr.mxu0 0.0
    %2937 = vmatpush1.msra.mxu0 %v2901
    %2938 = vmatprep.subr.mxu0 0.0
    %2939 = vmatpush1.msra.mxu0 %v2900
    %2940 = vmatprep.subr.mxu0 0.0
    %2941 = vmatpush1.msra.mxu0 %v2899
    %2942 = vmatprep.subr.mxu0 0.0
    %2943 = vmatpush2.msra.mxu0 0.0
    %2944 = vmatprep.subr.mxu0 0.0
    %2945 = vmatpush2.msra.mxu0 0.0
    %2946 = vmatprep.subr.mxu0 0.0
    %2947 = vmatpush2.msra.mxu0 0.0
    %2948 = vmatprep.subr.mxu0 0.0
    %2949 = vmatpush2.msra.mxu0 0.0
    %2950 = vmatprep.subr.mxu0 0.0
    %2951 = vmatpush2.msra.mxu0 0.0
    %2952 = vmatprep.subr.mxu0 0.0
    %2953 = vmatpush2.msra.mxu0 0.0
    %2954 = vmatprep.subr.mxu0 0.0
    %2955 = vmatpush2.msra.mxu0 0.0
    %2956 = vmatprep.subr.mxu0 0.0
    %2957 = vmatpush2.msra.mxu0 0.0
    %2958 = vmatprep.subr.mxu0 0.0
    %2959 = vmatpush2.msra.mxu0 0.0
    %2960 = vmatprep.subr.mxu0 0.0
    %2961 = vmatpush2.msra.mxu0 0.0
    %2962 = vmatprep.subr.mxu0 0.0
    %2963 = vmatpush2.msra.mxu0 0.0
    %2964 = vmatprep.subr.mxu0 0.0
    %2965 = vmatpush2.msra.mxu0 0.0
    %2966 = vmatprep.subr.mxu0 0.0
    %2967 = vmatpush2.msra.mxu0 0.0
    %2968 = vmatprep.subr.mxu0 0.0
    %2969 = vmatpush2.msra.mxu0 0.0
    %2970 = vmatprep.subr.mxu0 0.0
    %2971 = vmatpush2.msra.mxu0 0.0
    %2972 = vmatprep.subr.mxu0 0.0
    %2973 = vmatpush2.msra.mxu0 0.0
    %2974 = vmatprep.mubr.f32.mxu0 0.0
    %2975 = vmatmul.mubr.f32.gmra.mxu0 %v2908
    %v2976 = vpop.f32.mrf.mxu0
    %v2977 = vadd.f32 %v347, %v2976
    %v2978 = vpop.f32.mrf.mxu0
    %2979 = vdwg.mxu0
    %v2980 = vsel %vm164, %v2977, -inf
    %2981 = vmax.xlane.f32.xlu0 %v2980
    %v2982 = vpop.xlane.xlu0 %2981
    %vm2983 = vcmp.eq.f32.partialorder %v2977, %v2982
    %v2984 = vsel %vm2983, %v2568, 32
    %v2985 = vsel %vm164, %v2984, 2147483647
    %v2986 = vand.u32 %v2985, 65535
    %v2987 = vshra.s32 %v2985, 16
    %v2988 = vcvt.s32.f32 %v2986
    %v2989 = vcvt.s32.f32 %v2987
    %2990 = vmin.xlane.f32.xlu0 %v2989
    %v2991 = vpop.xlane.xlu0 %2990
    %vm2992 = vcmp.eq.f32.partialorder %v2989, %v2991
    %v2993 = vsel %vm2992, %v2988, inf
    %2994 = vmin.xlane.f32.xlu0 %v2993
    %v2995 = vpop.xlane.xlu0 %2994
    %v2996 = vcvt.f32.s32 %v2995
    %v2997 = vcvt.f32.s32 %v2991
    %v2998 = vshll.u32 %v2997, 16
    %v2999 = vadd.s32 %v2998, %v2996
    %vm3000 = vcmp.eq.s32.totalorder %v2568, %v2999
    %vm3001 = vmand %vm3000, %vm2571
    %v3002 = vsel %vm3001, 1.0, 0.0
    %v3003 = vsel %vm164, %v3002, -inf
    %v3004 = vrot.slane %v3003, 4
    %v3005 = vmax.f32 %v3003, %v3004
    %v3006 = vrot.slane %v3005, 2
    %v3007 = vmax.f32 %v3005, %v3006
    %v3008 = vrot.slane %v3007, 1
    %v3009 = vmax.f32 %v3007, %v3008
    %v3010 = vld [vmem:[#allocation8] sm:$0xff]
    %v3011 = vld [vmem:[#allocation8 + $0x8] sm:$0xff]
    %v3012 = vld [vmem:[#allocation8 + $0x10] sm:$0xff]
    %v3013 = vld [vmem:[#allocation8 + $0x18] sm:$0xff]
    %v3014 = vld [vmem:[#allocation8 + $0x20] sm:$0xff]
    %v3015 = vld [vmem:[#allocation8 + $0x28] sm:$0xff]
    %v3016 = vld [vmem:[#allocation8 + $0x30] sm:$0xff]
    %v3017 = vld [vmem:[#allocation8 + $0x38] sm:$0xff]
    %v3019 = vlaneseq
    %v3020 = vshrl.u32 %v3019, 7
    %v3021 = vsub.s32 0, %v3020
    %v3022 = vrot.slane %v349, %v3021
    %v3023 = vlaneseq
    %v3024 = vshrl.u32 %v3023, 7
    %v3025 = vsub.s32 1, %v3024
    %v3026 = vrot.slane %v349, %v3025
    %v3030 = vsel %vm164, %v3009, 0
    %3032 = vmatprep.subr.mxu0 0.0
    %3033 = vmatpush1.msra.mxu0 0.0
    %3034 = vmatprep.subr.mxu0 0.0
    %3035 = vmatpush1.msra.mxu0 0.0
    %3036 = vmatprep.subr.mxu0 0.0
    %3037 = vmatpush1.msra.mxu0 0.0
    %3038 = vmatprep.subr.mxu0 0.0
    %3039 = vmatpush1.msra.mxu0 0.0
    %3040 = vmatprep.subr.mxu0 0.0
    %3041 = vmatpush1.msra.mxu0 0.0
    %3042 = vmatprep.subr.mxu0 0.0
    %3043 = vmatpush1.msra.mxu0 0.0
    %3044 = vmatprep.subr.mxu0 0.0
    %3045 = vmatpush1.msra.mxu0 0.0
    %3046 = vmatprep.subr.mxu0 0.0
    %3047 = vmatpush1.msra.mxu0 0.0
    %3048 = vmatprep.subr.mxu0 0.0
    %3049 = vmatpush1.msra.mxu0 0.0
    %3050 = vmatprep.subr.mxu0 0.0
    %3051 = vmatpush1.msra.mxu0 0.0
    %3052 = vmatprep.subr.mxu0 0.0
    %3053 = vmatpush1.msra.mxu0 0.0
    %3054 = vmatprep.subr.mxu0 0.0
    %3055 = vmatpush1.msra.mxu0 0.0
    %3056 = vmatprep.subr.mxu0 %v3017
    %3057 = vmatpush1.msra.mxu0 %v3016
    %3058 = vmatprep.subr.mxu0 %v3015
    %3059 = vmatpush1.msra.mxu0 %v3014
    %3060 = vmatprep.subr.mxu0 %v3013
    %3061 = vmatpush1.msra.mxu0 %v3012
    %3062 = vmatprep.subr.mxu0 %v3011
    %3063 = vmatpush1.msra.mxu0 %v3010
    %3064 = vmatprep.subr.mxu0 0.0
    %3065 = vmatpush2.msra.mxu0 0.0
    %3066 = vmatprep.subr.mxu0 0.0
    %3067 = vmatpush2.msra.mxu0 0.0
    %3068 = vmatprep.subr.mxu0 0.0
    %3069 = vmatpush2.msra.mxu0 0.0
    %3070 = vmatprep.subr.mxu0 0.0
    %3071 = vmatpush2.msra.mxu0 0.0
    %3072 = vmatprep.subr.mxu0 0.0
    %3073 = vmatpush2.msra.mxu0 0.0
    %3074 = vmatprep.subr.mxu0 0.0
    %3075 = vmatpush2.msra.mxu0 0.0
    %3076 = vmatprep.subr.mxu0 0.0
    %3077 = vmatpush2.msra.mxu0 0.0
    %3078 = vmatprep.subr.mxu0 0.0
    %3079 = vmatpush2.msra.mxu0 0.0
    %3080 = vmatprep.subr.mxu0 0.0
    %3081 = vmatpush2.msra.mxu0 0.0
    %3082 = vmatprep.subr.mxu0 0.0
    %3083 = vmatpush2.msra.mxu0 0.0
    %3084 = vmatprep.subr.mxu0 0.0
    %3085 = vmatpush2.msra.mxu0 0.0
    %3086 = vmatprep.subr.mxu0 0.0
    %3087 = vmatpush2.msra.mxu0 0.0
    %3088 = vmatprep.subr.mxu0 0.0
    %3089 = vmatpush2.msra.mxu0 0.0
    %3090 = vmatprep.subr.mxu0 0.0
    %3091 = vmatpush2.msra.mxu0 0.0
    %3092 = vmatprep.subr.mxu0 0.0
    %3093 = vmatpush2.msra.mxu0 0.0
    %3094 = vmatprep.subr.mxu0 0.0
    %3095 = vmatpush2.msra.mxu0 0.0
    %3096 = vmatprep.mubr.f32.mxu0 0.0
    %3097 = vmatmul.mubr.f32.gmra.mxu0 %v3030
    %v3098 = vpop.f32.mrf.mxu0
    %v3099 = vadd.f32 %v3022, %v3098
    %v3100 = vpop.f32.mrf.mxu0
    %v3101 = vadd.f32 %v3026, %v3100
    %3102 = vdwg.mxu0
    %v3103 = vlaneseq
    %v3104 = vshrl.u32 %v3103, 7
    %v3105 = vsub.s32 0, %v3104
    %v3106 = vrot.slane %v3099, %v3105
    %v3107 = vlaneseq
    %v3108 = vshrl.u32 %v3107, 7
    %v3109 = vsub.s32 0, %v3108
    %v3110 = vrot.slane %v3101, %v3109
    %3111 = vmatprep.subr.mxu0 0.0
    %3112 = vmatpush1.msra.mxu0 0.0
    %3113 = vmatprep.subr.mxu0 0.0
    %3114 = vmatpush1.msra.mxu0 0.0
    %3115 = vmatprep.subr.mxu0 0.0
    %3116 = vmatpush1.msra.mxu0 0.0
    %3117 = vmatprep.subr.mxu0 0.0
    %3118 = vmatpush1.msra.mxu0 0.0
    %3119 = vmatprep.subr.mxu0 0.0
    %3120 = vmatpush1.msra.mxu0 0.0
    %3121 = vmatprep.subr.mxu0 0.0
    %3122 = vmatpush1.msra.mxu0 0.0
    %3123 = vmatprep.subr.mxu0 0.0
    %3124 = vmatpush1.msra.mxu0 0.0
    %3125 = vmatprep.subr.mxu0 0.0
    %3126 = vmatpush1.msra.mxu0 0.0
    %3127 = vmatprep.subr.mxu0 %v2588
    %3128 = vmatpush1.msra.mxu0 %v2587
    %3129 = vmatprep.subr.mxu0 %v2586
    %3130 = vmatpush1.msra.mxu0 %v2585
    %3131 = vmatprep.subr.mxu0 %v2584
    %3132 = vmatpush1.msra.mxu0 %v2583
    %3133 = vmatprep.subr.mxu0 %v2582
    %3134 = vmatpush1.msra.mxu0 %v2581
    %3135 = vmatprep.subr.mxu0 %v2580
    %3136 = vmatpush1.msra.mxu0 %v2579
    %3137 = vmatprep.subr.mxu0 %v2578
    %3138 = vmatpush1.msra.mxu0 %v2577
    %3139 = vmatprep.subr.mxu0 %v2576
    %3140 = vmatpush1.msra.mxu0 %v2575
    %3141 = vmatprep.subr.mxu0 %v2574
    %3142 = vmatpush1.msra.mxu0 %v2573
    %3143 = vmatprep.subr.mxu0 0.0
    %3144 = vmatpush2.msra.mxu0 0.0
    %3145 = vmatprep.subr.mxu0 0.0
    %3146 = vmatpush2.msra.mxu0 0.0
    %3147 = vmatprep.subr.mxu0 0.0
    %3148 = vmatpush2.msra.mxu0 0.0
    %3149 = vmatprep.subr.mxu0 0.0
    %3150 = vmatpush2.msra.mxu0 0.0
    %3151 = vmatprep.subr.mxu0 0.0
    %3152 = vmatpush2.msra.mxu0 0.0
    %3153 = vmatprep.subr.mxu0 0.0
    %3154 = vmatpush2.msra.mxu0 0.0
    %3155 = vmatprep.subr.mxu0 0.0
    %3156 = vmatpush2.msra.mxu0 0.0
    %3157 = vmatprep.subr.mxu0 0.0
    %3158 = vmatpush2.msra.mxu0 0.0
    %3159 = vmatprep.subr.mxu0 0.0
    %3160 = vmatpush2.msra.mxu0 0.0
    %3161 = vmatprep.subr.mxu0 0.0
    %3162 = vmatpush2.msra.mxu0 0.0
    %3163 = vmatprep.subr.mxu0 0.0
    %3164 = vmatpush2.msra.mxu0 0.0
    %3165 = vmatprep.subr.mxu0 0.0
    %3166 = vmatpush2.msra.mxu0 0.0
    %3167 = vmatprep.subr.mxu0 0.0
    %3168 = vmatpush2.msra.mxu0 0.0
    %3169 = vmatprep.subr.mxu0 0.0
    %3170 = vmatpush2.msra.mxu0 0.0
    %3171 = vmatprep.subr.mxu0 0.0
    %3172 = vmatpush2.msra.mxu0 0.0
    %3173 = vmatprep.subr.mxu0 0.0
    %3174 = vmatpush2.msra.mxu0 0.0
    %3175 = vmatprep.mubr.f32.mxu0 0.0
    %3176 = vmatmul.mubr.f32.gmra.mxu0 %v2801
    %v3177 = vpop.f32.mrf.mxu0
    %v3178 = vadd.f32 %v3106, %v3177
    %v3179 = vpop.f32.mrf.mxu0
    %v3180 = vadd.f32 %v3110, %v3179
    %3181 = vdwg.mxu0
    %v3182 = vtanh.pop %v3178
    %v3183 = vtanh.pop %v3180
    %v3184 = vmul.f32 %v3182, 0.5
    %v3185 = vmul.f32 %v3183, 0.5
    %v3186 = vadd.f32 %v3184, 0.5
    %v3187 = vadd.f32 %v3185, 0.5
    %v3188 = vmul.f32 %v3186, %v2690
    %3190 = vrot.lane.b32.xlu0 %v3183, 64
    %v3191 = vpop.permute.xlu0 %3190
    %v3193 = vmul.f32 %v3186, %v3191
    %3195 = vrot.lane.b32.xlu0 %v3193, 64
    %v3196 = vpop.permute.xlu0 %3195
    %v3198 = vadd.f32 %v3188, %v3196
    %v3199 = vtanh.pop %v3198
    %3201 = vrot.lane.b32.xlu0 %v3199, 64
    %v3202 = vpop.permute.xlu0 %3201
    %v3204 = vmul.f32 %v3187, %v3202
    %3205 = vmatprep.subr.mxu0 0.0
    %3206 = vmatpush1.msra.mxu0 0.0
    %3207 = vmatprep.subr.mxu0 0.0
    %3208 = vmatpush1.msra.mxu0 0.0
    %3209 = vmatprep.subr.mxu0 0.0
    %3210 = vmatpush1.msra.mxu0 0.0
    %3211 = vmatprep.subr.mxu0 0.0
    %3212 = vmatpush1.msra.mxu0 0.0
    %3213 = vmatprep.subr.mxu0 0.0
    %3214 = vmatpush1.msra.mxu0 0.0
    %3215 = vmatprep.subr.mxu0 0.0
    %3216 = vmatpush1.msra.mxu0 0.0
    %3217 = vmatprep.subr.mxu0 0.0
    %3218 = vmatpush1.msra.mxu0 0.0
    %3219 = vmatprep.subr.mxu0 0.0
    %3220 = vmatpush1.msra.mxu0 0.0
    %3221 = vmatprep.subr.mxu0 %v2728
    %3222 = vmatpush1.msra.mxu0 %v2727
    %3223 = vmatprep.subr.mxu0 %v2726
    %3224 = vmatpush1.msra.mxu0 %v2725
    %3225 = vmatprep.subr.mxu0 %v2724
    %3226 = vmatpush1.msra.mxu0 %v2723
    %3227 = vmatprep.subr.mxu0 %v2722
    %3228 = vmatpush1.msra.mxu0 %v2721
    %3229 = vmatprep.subr.mxu0 %v2720
    %3230 = vmatpush1.msra.mxu0 %v2719
    %3231 = vmatprep.subr.mxu0 %v2718
    %3232 = vmatpush1.msra.mxu0 %v2717
    %3233 = vmatprep.subr.mxu0 %v2716
    %3234 = vmatpush1.msra.mxu0 %v2715
    %3235 = vmatprep.subr.mxu0 %v2714
    %3236 = vmatpush1.msra.mxu0 %v2713
    %3237 = vmatprep.subr.mxu0 0.0
    %3238 = vmatpush2.msra.mxu0 0.0
    %3239 = vmatprep.subr.mxu0 0.0
    %3240 = vmatpush2.msra.mxu0 0.0
    %3241 = vmatprep.subr.mxu0 0.0
    %3242 = vmatpush2.msra.mxu0 0.0
    %3243 = vmatprep.subr.mxu0 0.0
    %3244 = vmatpush2.msra.mxu0 0.0
    %3245 = vmatprep.subr.mxu0 0.0
    %3246 = vmatpush2.msra.mxu0 0.0
    %3247 = vmatprep.subr.mxu0 0.0
    %3248 = vmatpush2.msra.mxu0 0.0
    %3249 = vmatprep.subr.mxu0 0.0
    %3250 = vmatpush2.msra.mxu0 0.0
    %3251 = vmatprep.subr.mxu0 0.0
    %3252 = vmatpush2.msra.mxu0 0.0
    %3253 = vmatprep.subr.mxu0 0.0
    %3254 = vmatpush2.msra.mxu0 0.0
    %3255 = vmatprep.subr.mxu0 0.0
    %3256 = vmatpush2.msra.mxu0 0.0
    %3257 = vmatprep.subr.mxu0 0.0
    %3258 = vmatpush2.msra.mxu0 0.0
    %3259 = vmatprep.subr.mxu0 0.0
    %3260 = vmatpush2.msra.mxu0 0.0
    %3261 = vmatprep.subr.mxu0 0.0
    %3262 = vmatpush2.msra.mxu0 0.0
    %3263 = vmatprep.subr.mxu0 0.0
    %3264 = vmatpush2.msra.mxu0 0.0
    %3265 = vmatprep.subr.mxu0 0.0
    %3266 = vmatpush2.msra.mxu0 0.0
    %3267 = vmatprep.subr.mxu0 0.0
    %3268 = vmatpush2.msra.mxu0 0.0
    %3269 = vmatprep.mubr.f32.mxu0 0.0
    %3270 = vmatmul.mubr.f32.gmra.mxu0 %v2908
    %v3271 = vpop.f32.mrf.mxu0
    %v3272 = vadd.f32 0.0, %v3271
    %v3273 = vpop.f32.mrf.mxu0
    %v3274 = vadd.f32 0.0, %v3273
    %3275 = vdwg.mxu0
    %v3277 = vsel %vm368, %v3204, 0
    %3279 = vmatprep.subr.mxu0 0.0
    %3280 = vmatpush1.msra.mxu0 0.0
    %3281 = vmatprep.subr.mxu0 0.0
    %3282 = vmatpush1.msra.mxu0 0.0
    %3283 = vmatprep.subr.mxu0 0.0
    %3284 = vmatpush1.msra.mxu0 0.0
    %3285 = vmatprep.subr.mxu0 0.0
    %3286 = vmatpush1.msra.mxu0 0.0
    %3287 = vmatprep.subr.mxu0 0.0
    %3288 = vmatpush1.msra.mxu0 0.0
    %3289 = vmatprep.subr.mxu0 0.0
    %3290 = vmatpush1.msra.mxu0 0.0
    %3291 = vmatprep.subr.mxu0 0.0
    %3292 = vmatpush1.msra.mxu0 0.0
    %3293 = vmatprep.subr.mxu0 0.0
    %3294 = vmatpush1.msra.mxu0 0.0
    %3295 = vmatprep.subr.mxu0 %v2712
    %3296 = vmatpush1.msra.mxu0 %v2711
    %3297 = vmatprep.subr.mxu0 %v2710
    %3298 = vmatpush1.msra.mxu0 %v2709
    %3299 = vmatprep.subr.mxu0 %v2708
    %3300 = vmatpush1.msra.mxu0 %v2707
    %3301 = vmatprep.subr.mxu0 %v2706
    %3302 = vmatpush1.msra.mxu0 %v2705
    %3303 = vmatprep.subr.mxu0 %v2704
    %3304 = vmatpush1.msra.mxu0 %v2703
    %3305 = vmatprep.subr.mxu0 %v2702
    %3306 = vmatpush1.msra.mxu0 %v2701
    %3307 = vmatprep.subr.mxu0 %v2700
    %3308 = vmatpush1.msra.mxu0 %v2699
    %3309 = vmatprep.subr.mxu0 %v2698
    %3310 = vmatpush1.msra.mxu0 %v2697
    %3311 = vmatprep.subr.mxu0 0.0
    %3312 = vmatpush2.msra.mxu0 0.0
    %3313 = vmatprep.subr.mxu0 0.0
    %3314 = vmatpush2.msra.mxu0 0.0
    %3315 = vmatprep.subr.mxu0 0.0
    %3316 = vmatpush2.msra.mxu0 0.0
    %3317 = vmatprep.subr.mxu0 0.0
    %3318 = vmatpush2.msra.mxu0 0.0
    %3319 = vmatprep.subr.mxu0 0.0
    %3320 = vmatpush2.msra.mxu0 0.0
    %3321 = vmatprep.subr.mxu0 0.0
    %3322 = vmatpush2.msra.mxu0 0.0
    %3323 = vmatprep.subr.mxu0 0.0
    %3324 = vmatpush2.msra.mxu0 0.0
    %3325 = vmatprep.subr.mxu0 0.0
    %3326 = vmatpush2.msra.mxu0 0.0
    %3327 = vmatprep.subr.mxu0 0.0
    %3328 = vmatpush2.msra.mxu0 0.0
    %3329 = vmatprep.subr.mxu0 0.0
    %3330 = vmatpush2.msra.mxu0 0.0
    %3331 = vmatprep.subr.mxu0 0.0
    %3332 = vmatpush2.msra.mxu0 0.0
    %3333 = vmatprep.subr.mxu0 0.0
    %3334 = vmatpush2.msra.mxu0 0.0
    %3335 = vmatprep.subr.mxu0 0.0
    %3336 = vmatpush2.msra.mxu0 0.0
    %3337 = vmatprep.subr.mxu0 0.0
    %3338 = vmatpush2.msra.mxu0 0.0
    %3339 = vmatprep.subr.mxu0 0.0
    %3340 = vmatpush2.msra.mxu0 0.0
    %3341 = vmatprep.subr.mxu0 0.0
    %3342 = vmatpush2.msra.mxu0 0.0
    %3343 = vmatprep.mubr.f32.mxu0 0.0
    %3344 = vmatmul.mubr.f32.gmra.mxu0 %v3277
    %v3345 = vpop.f32.mrf.mxu0
    %v3346 = vadd.f32 %v3272, %v3345
    %v3347 = vpop.f32.mrf.mxu0
    %v3348 = vadd.f32 %v3274, %v3347
    %3349 = vdwg.mxu0
    %v3350 = vadd.f32 %v3346, %v335
    %v3351 = vadd.f32 %v3348, %v339
    %v3352 = vtanh.pop %v3350
    %v3353 = vtanh.pop %v3351
    %v3354 = vmul.f32 %v3352, 0.5
    %v3355 = vmul.f32 %v3353, 0.5
    %v3356 = vadd.f32 %v3354, 0.5
    %v3357 = vadd.f32 %v3355, 0.5
    %v3358 = vmul.f32 %v3356, %v2892
    %3360 = vrot.lane.b32.xlu0 %v3353, 64
    %v3361 = vpop.permute.xlu0 %3360
    %v3363 = vmul.f32 %v3356, %v3361
    %3365 = vrot.lane.b32.xlu0 %v3363, 64
    %v3366 = vpop.permute.xlu0 %3365
    %v3368 = vadd.f32 %v3358, %v3366
    %v3369 = vtanh.pop %v3368
    %3371 = vrot.lane.b32.xlu0 %v3369, 64
    %v3372 = vpop.permute.xlu0 %3371
    %v3374 = vmul.f32 %v3357, %v3372
    %v3376 = vsel %vm368, %v3374, 0
    %3378 = vmatprep.subr.mxu0 0.0
    %3379 = vmatpush1.msra.mxu0 0.0
    %3380 = vmatprep.subr.mxu0 0.0
    %3381 = vmatpush1.msra.mxu0 0.0
    %3382 = vmatprep.subr.mxu0 0.0
    %3383 = vmatpush1.msra.mxu0 0.0
    %3384 = vmatprep.subr.mxu0 0.0
    %3385 = vmatpush1.msra.mxu0 0.0
    %3386 = vmatprep.subr.mxu0 0.0
    %3387 = vmatpush1.msra.mxu0 0.0
    %3388 = vmatprep.subr.mxu0 0.0
    %3389 = vmatpush1.msra.mxu0 0.0
    %3390 = vmatprep.subr.mxu0 0.0
    %3391 = vmatpush1.msra.mxu0 0.0
    %3392 = vmatprep.subr.mxu0 0.0
    %3393 = vmatpush1.msra.mxu0 0.0
    %3394 = vmatprep.subr.mxu0 0.0
    %3395 = vmatpush1.msra.mxu0 %v2906
    %3396 = vmatprep.subr.mxu0 0.0
    %3397 = vmatpush1.msra.mxu0 %v2905
    %3398 = vmatprep.subr.mxu0 0.0
    %3399 = vmatpush1.msra.mxu0 %v2904
    %3400 = vmatprep.subr.mxu0 0.0
    %3401 = vmatpush1.msra.mxu0 %v2903
    %3402 = vmatprep.subr.mxu0 0.0
    %3403 = vmatpush1.msra.mxu0 %v2902
    %3404 = vmatprep.subr.mxu0 0.0
    %3405 = vmatpush1.msra.mxu0 %v2901
    %3406 = vmatprep.subr.mxu0 0.0
    %3407 = vmatpush1.msra.mxu0 %v2900
    %3408 = vmatprep.subr.mxu0 0.0
    %3409 = vmatpush1.msra.mxu0 %v2899
    %3410 = vmatprep.subr.mxu0 0.0
    %3411 = vmatpush2.msra.mxu0 0.0
    %3412 = vmatprep.subr.mxu0 0.0
    %3413 = vmatpush2.msra.mxu0 0.0
    %3414 = vmatprep.subr.mxu0 0.0
    %3415 = vmatpush2.msra.mxu0 0.0
    %3416 = vmatprep.subr.mxu0 0.0
    %3417 = vmatpush2.msra.mxu0 0.0
    %3418 = vmatprep.subr.mxu0 0.0
    %3419 = vmatpush2.msra.mxu0 0.0
    %3420 = vmatprep.subr.mxu0 0.0
    %3421 = vmatpush2.msra.mxu0 0.0
    %3422 = vmatprep.subr.mxu0 0.0
    %3423 = vmatpush2.msra.mxu0 0.0
    %3424 = vmatprep.subr.mxu0 0.0
    %3425 = vmatpush2.msra.mxu0 0.0
    %3426 = vmatprep.subr.mxu0 0.0
    %3427 = vmatpush2.msra.mxu0 0.0
    %3428 = vmatprep.subr.mxu0 0.0
    %3429 = vmatpush2.msra.mxu0 0.0
    %3430 = vmatprep.subr.mxu0 0.0
    %3431 = vmatpush2.msra.mxu0 0.0
    %3432 = vmatprep.subr.mxu0 0.0
    %3433 = vmatpush2.msra.mxu0 0.0
    %3434 = vmatprep.subr.mxu0 0.0
    %3435 = vmatpush2.msra.mxu0 0.0
    %3436 = vmatprep.subr.mxu0 0.0
    %3437 = vmatpush2.msra.mxu0 0.0
    %3438 = vmatprep.subr.mxu0 0.0
    %3439 = vmatpush2.msra.mxu0 0.0
    %3440 = vmatprep.subr.mxu0 0.0
    %3441 = vmatpush2.msra.mxu0 0.0
    %3442 = vmatprep.mubr.f32.mxu0 0.0
    %3443 = vmatmul.mubr.f32.gmra.mxu0 %v3376
    %v3444 = vpop.f32.mrf.mxu0
    %v3445 = vadd.f32 %v347, %v3444
    %v3446 = vpop.f32.mrf.mxu0
    %3447 = vdwg.mxu0
    %v3448 = vsel %vm164, %v3445, -inf
    %3449 = vmax.xlane.f32.xlu0 %v3448
    %v3450 = vpop.xlane.xlu0 %3449
    %vm3451 = vcmp.eq.f32.partialorder %v3445, %v3450
    %v3452 = vsel %vm3451, %v2568, 32
    %v3453 = vsel %vm164, %v3452, 2147483647
    %v3454 = vand.u32 %v3453, 65535
    %v3455 = vshra.s32 %v3453, 16
    %v3456 = vcvt.s32.f32 %v3454
    %v3457 = vcvt.s32.f32 %v3455
    %3458 = vmin.xlane.f32.xlu0 %v3457
    %v3459 = vpop.xlane.xlu0 %3458
    %vm3460 = vcmp.eq.f32.partialorder %v3457, %v3459
    %v3461 = vsel %vm3460, %v3456, inf
    %3462 = vmin.xlane.f32.xlu0 %v3461
    %v3463 = vpop.xlane.xlu0 %3462
    %v3464 = vcvt.f32.s32 %v3463
    %v3465 = vcvt.f32.s32 %v3459
    %v3466 = vshll.u32 %v3465, 16
    %v3467 = vadd.s32 %v3466, %v3464
    %vm3468 = vcmp.eq.s32.totalorder %v2568, %v3467
    %vm3469 = vmand %vm3468, %vm2571
    %v3470 = vsel %vm3469, 1.0, 0.0
    %v3471 = vsel %vm164, %v3470, -inf
    %v3472 = vrot.slane %v3471, 4
    %v3473 = vmax.f32 %v3471, %v3472
    %v3474 = vrot.slane %v3473, 2
    %v3475 = vmax.f32 %v3473, %v3474
    %v3476 = vrot.slane %v3475, 1
    %v3477 = vmax.f32 %v3475, %v3476
    %v3479 = vsel %vm164, %v3477, 0
    %3481 = vmatprep.subr.mxu0 0.0
    %3482 = vmatpush1.msra.mxu0 0.0
    %3483 = vmatprep.subr.mxu0 0.0
    %3484 = vmatpush1.msra.mxu0 0.0
    %3485 = vmatprep.subr.mxu0 0.0
    %3486 = vmatpush1.msra.mxu0 0.0
    %3487 = vmatprep.subr.mxu0 0.0
    %3488 = vmatpush1.msra.mxu0 0.0
    %3489 = vmatprep.subr.mxu0 0.0
    %3490 = vmatpush1.msra.mxu0 0.0
    %3491 = vmatprep.subr.mxu0 0.0
    %3492 = vmatpush1.msra.mxu0 0.0
    %3493 = vmatprep.subr.mxu0 0.0
    %3494 = vmatpush1.msra.mxu0 0.0
    %3495 = vmatprep.subr.mxu0 0.0
    %3496 = vmatpush1.msra.mxu0 0.0
    %3497 = vmatprep.subr.mxu0 0.0
    %3498 = vmatpush1.msra.mxu0 0.0
    %3499 = vmatprep.subr.mxu0 0.0
    %3500 = vmatpush1.msra.mxu0 0.0
    %3501 = vmatprep.subr.mxu0 0.0
    %3502 = vmatpush1.msra.mxu0 0.0
    %3503 = vmatprep.subr.mxu0 0.0
    %3504 = vmatpush1.msra.mxu0 0.0
    %3505 = vmatprep.subr.mxu0 %v3017
    %3506 = vmatpush1.msra.mxu0 %v3016
    %3507 = vmatprep.subr.mxu0 %v3015
    %3508 = vmatpush1.msra.mxu0 %v3014
    %3509 = vmatprep.subr.mxu0 %v3013
    %3510 = vmatpush1.msra.mxu0 %v3012
    %3511 = vmatprep.subr.mxu0 %v3011
    %3512 = vmatpush1.msra.mxu0 %v3010
    %3513 = vmatprep.subr.mxu0 0.0
    %3514 = vmatpush2.msra.mxu0 0.0
    %3515 = vmatprep.subr.mxu0 0.0
    %3516 = vmatpush2.msra.mxu0 0.0
    %3517 = vmatprep.subr.mxu0 0.0
    %3518 = vmatpush2.msra.mxu0 0.0
    %3519 = vmatprep.subr.mxu0 0.0
    %3520 = vmatpush2.msra.mxu0 0.0
    %3521 = vmatprep.subr.mxu0 0.0
    %3522 = vmatpush2.msra.mxu0 0.0
    %3523 = vmatprep.subr.mxu0 0.0
    %3524 = vmatpush2.msra.mxu0 0.0
    %3525 = vmatprep.subr.mxu0 0.0
    %3526 = vmatpush2.msra.mxu0 0.0
    %3527 = vmatprep.subr.mxu0 0.0
    %3528 = vmatpush2.msra.mxu0 0.0
    %3529 = vmatprep.subr.mxu0 0.0
    %3530 = vmatpush2.msra.mxu0 0.0
    %3531 = vmatprep.subr.mxu0 0.0
    %3532 = vmatpush2.msra.mxu0 0.0
    %3533 = vmatprep.subr.mxu0 0.0
    %3534 = vmatpush2.msra.mxu0 0.0
    %3535 = vmatprep.subr.mxu0 0.0
    %3536 = vmatpush2.msra.mxu0 0.0
    %3537 = vmatprep.subr.mxu0 0.0
    %3538 = vmatpush2.msra.mxu0 0.0
    %3539 = vmatprep.subr.mxu0 0.0
    %3540 = vmatpush2.msra.mxu0 0.0
    %3541 = vmatprep.subr.mxu0 0.0
    %3542 = vmatpush2.msra.mxu0 0.0
    %3543 = vmatprep.subr.mxu0 0.0
    %3544 = vmatpush2.msra.mxu0 0.0
    %3545 = vmatprep.mubr.f32.mxu0 0.0
    %3546 = vmatmul.mubr.f32.gmra.mxu0 %v3479
    %v3547 = vpop.f32.mrf.mxu0
    %v3548 = vadd.f32 %v3022, %v3547
    %v3549 = vpop.f32.mrf.mxu0
    %v3550 = vadd.f32 %v3026, %v3549
    %3551 = vdwg.mxu0
    %v3552 = vlaneseq
    %v3553 = vshrl.u32 %v3552, 7
    %v3554 = vsub.s32 0, %v3553
    %v3555 = vrot.slane %v3548, %v3554
    %v3556 = vlaneseq
    %v3557 = vshrl.u32 %v3556, 7
    %v3558 = vsub.s32 0, %v3557
    %v3559 = vrot.slane %v3550, %v3558
    %3560 = vmatprep.subr.mxu0 0.0
    %3561 = vmatpush1.msra.mxu0 0.0
    %3562 = vmatprep.subr.mxu0 0.0
    %3563 = vmatpush1.msra.mxu0 0.0
    %3564 = vmatprep.subr.mxu0 0.0
    %3565 = vmatpush1.msra.mxu0 0.0
    %3566 = vmatprep.subr.mxu0 0.0
    %3567 = vmatpush1.msra.mxu0 0.0
    %3568 = vmatprep.subr.mxu0 0.0
    %3569 = vmatpush1.msra.mxu0 0.0
    %3570 = vmatprep.subr.mxu0 0.0
    %3571 = vmatpush1.msra.mxu0 0.0
    %3572 = vmatprep.subr.mxu0 0.0
    %3573 = vmatpush1.msra.mxu0 0.0
    %3574 = vmatprep.subr.mxu0 0.0
    %3575 = vmatpush1.msra.mxu0 0.0
    %3576 = vmatprep.subr.mxu0 %v2588
    %3577 = vmatpush1.msra.mxu0 %v2587
    %3578 = vmatprep.subr.mxu0 %v2586
    %3579 = vmatpush1.msra.mxu0 %v2585
    %3580 = vmatprep.subr.mxu0 %v2584
    %3581 = vmatpush1.msra.mxu0 %v2583
    %3582 = vmatprep.subr.mxu0 %v2582
    %3583 = vmatpush1.msra.mxu0 %v2581
    %3584 = vmatprep.subr.mxu0 %v2580
    %3585 = vmatpush1.msra.mxu0 %v2579
    %3586 = vmatprep.subr.mxu0 %v2578
    %3587 = vmatpush1.msra.mxu0 %v2577
    %3588 = vmatprep.subr.mxu0 %v2576
    %3589 = vmatpush1.msra.mxu0 %v2575
    %3590 = vmatprep.subr.mxu0 %v2574
    %3591 = vmatpush1.msra.mxu0 %v2573
    %3592 = vmatprep.subr.mxu0 0.0
    %3593 = vmatpush2.msra.mxu0 0.0
    %3594 = vmatprep.subr.mxu0 0.0
    %3595 = vmatpush2.msra.mxu0 0.0
    %3596 = vmatprep.subr.mxu0 0.0
    %3597 = vmatpush2.msra.mxu0 0.0
    %3598 = vmatprep.subr.mxu0 0.0
    %3599 = vmatpush2.msra.mxu0 0.0
    %3600 = vmatprep.subr.mxu0 0.0
    %3601 = vmatpush2.msra.mxu0 0.0
    %3602 = vmatprep.subr.mxu0 0.0
    %3603 = vmatpush2.msra.mxu0 0.0
    %3604 = vmatprep.subr.mxu0 0.0
    %3605 = vmatpush2.msra.mxu0 0.0
    %3606 = vmatprep.subr.mxu0 0.0
    %3607 = vmatpush2.msra.mxu0 0.0
    %3608 = vmatprep.subr.mxu0 0.0
    %3609 = vmatpush2.msra.mxu0 0.0
    %3610 = vmatprep.subr.mxu0 0.0
    %3611 = vmatpush2.msra.mxu0 0.0
    %3612 = vmatprep.subr.mxu0 0.0
    %3613 = vmatpush2.msra.mxu0 0.0
    %3614 = vmatprep.subr.mxu0 0.0
    %3615 = vmatpush2.msra.mxu0 0.0
    %3616 = vmatprep.subr.mxu0 0.0
    %3617 = vmatpush2.msra.mxu0 0.0
    %3618 = vmatprep.subr.mxu0 0.0
    %3619 = vmatpush2.msra.mxu0 0.0
    %3620 = vmatprep.subr.mxu0 0.0
    %3621 = vmatpush2.msra.mxu0 0.0
    %3622 = vmatprep.subr.mxu0 0.0
    %3623 = vmatpush2.msra.mxu0 0.0
    %3624 = vmatprep.mubr.f32.mxu0 0.0
    %3625 = vmatmul.mubr.f32.gmra.mxu0 %v3277
    %v3626 = vpop.f32.mrf.mxu0
    %v3627 = vadd.f32 %v3555, %v3626
    %v3628 = vpop.f32.mrf.mxu0
    %v3629 = vadd.f32 %v3559, %v3628
    %3630 = vdwg.mxu0
    %v3631 = vtanh.pop %v3627
    %v3632 = vtanh.pop %v3629
    %v3633 = vmul.f32 %v3631, 0.5
    %v3634 = vmul.f32 %v3632, 0.5
    %v3635 = vadd.f32 %v3633, 0.5
    %v3636 = vadd.f32 %v3634, 0.5
    %v3637 = vmul.f32 %v3635, %v3198
    %3639 = vrot.lane.b32.xlu0 %v3632, 64
    %v3640 = vpop.permute.xlu0 %3639
    %v3642 = vmul.f32 %v3635, %v3640
    %3644 = vrot.lane.b32.xlu0 %v3642, 64
    %v3645 = vpop.permute.xlu0 %3644
    %v3647 = vadd.f32 %v3637, %v3645
    %v3648 = vtanh.pop %v3647
    %3650 = vrot.lane.b32.xlu0 %v3648, 64
    %v3651 = vpop.permute.xlu0 %3650
    %v3653 = vmul.f32 %v3636, %v3651
    %3654 = vmatprep.subr.mxu0 0.0
    %3655 = vmatpush1.msra.mxu0 0.0
    %3656 = vmatprep.subr.mxu0 0.0
    %3657 = vmatpush1.msra.mxu0 0.0
    %3658 = vmatprep.subr.mxu0 0.0
    %3659 = vmatpush1.msra.mxu0 0.0
    %3660 = vmatprep.subr.mxu0 0.0
    %3661 = vmatpush1.msra.mxu0 0.0
    %3662 = vmatprep.subr.mxu0 0.0
    %3663 = vmatpush1.msra.mxu0 0.0
    %3664 = vmatprep.subr.mxu0 0.0
    %3665 = vmatpush1.msra.mxu0 0.0
    %3666 = vmatprep.subr.mxu0 0.0
    %3667 = vmatpush1.msra.mxu0 0.0
    %3668 = vmatprep.subr.mxu0 0.0
    %3669 = vmatpush1.msra.mxu0 0.0
    %3670 = vmatprep.subr.mxu0 %v2728
    %3671 = vmatpush1.msra.mxu0 %v2727
    %3672 = vmatprep.subr.mxu0 %v2726
    %3673 = vmatpush1.msra.mxu0 %v2725
    %3674 = vmatprep.subr.mxu0 %v2724
    %3675 = vmatpush1.msra.mxu0 %v2723
    %3676 = vmatprep.subr.mxu0 %v2722
    %3677 = vmatpush1.msra.mxu0 %v2721
    %3678 = vmatprep.subr.mxu0 %v2720
    %3679 = vmatpush1.msra.mxu0 %v2719
    %3680 = vmatprep.subr.mxu0 %v2718
    %3681 = vmatpush1.msra.mxu0 %v2717
    %3682 = vmatprep.subr.mxu0 %v2716
    %3683 = vmatpush1.msra.mxu0 %v2715
    %3684 = vmatprep.subr.mxu0 %v2714
    %3685 = vmatpush1.msra.mxu0 %v2713
    %3686 = vmatprep.subr.mxu0 0.0
    %3687 = vmatpush2.msra.mxu0 0.0
    %3688 = vmatprep.subr.mxu0 0.0
    %3689 = vmatpush2.msra.mxu0 0.0
    %3690 = vmatprep.subr.mxu0 0.0
    %3691 = vmatpush2.msra.mxu0 0.0
    %3692 = vmatprep.subr.mxu0 0.0
    %3693 = vmatpush2.msra.mxu0 0.0
    %3694 = vmatprep.subr.mxu0 0.0
    %3695 = vmatpush2.msra.mxu0 0.0
    %3696 = vmatprep.subr.mxu0 0.0
    %3697 = vmatpush2.msra.mxu0 0.0
    %3698 = vmatprep.subr.mxu0 0.0
    %3699 = vmatpush2.msra.mxu0 0.0
    %3700 = vmatprep.subr.mxu0 0.0
    %3701 = vmatpush2.msra.mxu0 0.0
    %3702 = vmatprep.subr.mxu0 0.0
    %3703 = vmatpush2.msra.mxu0 0.0
    %3704 = vmatprep.subr.mxu0 0.0
    %3705 = vmatpush2.msra.mxu0 0.0
    %3706 = vmatprep.subr.mxu0 0.0
    %3707 = vmatpush2.msra.mxu0 0.0
    %3708 = vmatprep.subr.mxu0 0.0
    %3709 = vmatpush2.msra.mxu0 0.0
    %3710 = vmatprep.subr.mxu0 0.0
    %3711 = vmatpush2.msra.mxu0 0.0
    %3712 = vmatprep.subr.mxu0 0.0
    %3713 = vmatpush2.msra.mxu0 0.0
    %3714 = vmatprep.subr.mxu0 0.0
    %3715 = vmatpush2.msra.mxu0 0.0
    %3716 = vmatprep.subr.mxu0 0.0
    %3717 = vmatpush2.msra.mxu0 0.0
    %3718 = vmatprep.mubr.f32.mxu0 0.0
    %3719 = vmatmul.mubr.f32.gmra.mxu0 %v3376
    %v3720 = vpop.f32.mrf.mxu0
    %v3721 = vadd.f32 0.0, %v3720
    %v3722 = vpop.f32.mrf.mxu0
    %v3723 = vadd.f32 0.0, %v3722
    %3724 = vdwg.mxu0
    %v3726 = vsel %vm368, %v3653, 0
    %3728 = vmatprep.subr.mxu0 0.0
    %3729 = vmatpush1.msra.mxu0 0.0
    %3730 = vmatprep.subr.mxu0 0.0
    %3731 = vmatpush1.msra.mxu0 0.0
    %3732 = vmatprep.subr.mxu0 0.0
    %3733 = vmatpush1.msra.mxu0 0.0
    %3734 = vmatprep.subr.mxu0 0.0
    %3735 = vmatpush1.msra.mxu0 0.0
    %3736 = vmatprep.subr.mxu0 0.0
    %3737 = vmatpush1.msra.mxu0 0.0
    %3738 = vmatprep.subr.mxu0 0.0
    %3739 = vmatpush1.msra.mxu0 0.0
    %3740 = vmatprep.subr.mxu0 0.0
    %3741 = vmatpush1.msra.mxu0 0.0
    %3742 = vmatprep.subr.mxu0 0.0
    %3743 = vmatpush1.msra.mxu0 0.0
    %3744 = vmatprep.subr.mxu0 %v2712
    %3745 = vmatpush1.msra.mxu0 %v2711
    %3746 = vmatprep.subr.mxu0 %v2710
    %3747 = vmatpush1.msra.mxu0 %v2709
    %3748 = vmatprep.subr.mxu0 %v2708
    %3749 = vmatpush1.msra.mxu0 %v2707
    %3750 = vmatprep.subr.mxu0 %v2706
    %3751 = vmatpush1.msra.mxu0 %v2705
    %3752 = vmatprep.subr.mxu0 %v2704
    %3753 = vmatpush1.msra.mxu0 %v2703
    %3754 = vmatprep.subr.mxu0 %v2702
    %3755 = vmatpush1.msra.mxu0 %v2701
    %3756 = vmatprep.subr.mxu0 %v2700
    %3757 = vmatpush1.msra.mxu0 %v2699
    %3758 = vmatprep.subr.mxu0 %v2698
    %3759 = vmatpush1.msra.mxu0 %v2697
    %3760 = vmatprep.subr.mxu0 0.0
    %3761 = vmatpush2.msra.mxu0 0.0
    %3762 = vmatprep.subr.mxu0 0.0
    %3763 = vmatpush2.msra.mxu0 0.0
    %3764 = vmatprep.subr.mxu0 0.0
    %3765 = vmatpush2.msra.mxu0 0.0
    %3766 = vmatprep.subr.mxu0 0.0
    %3767 = vmatpush2.msra.mxu0 0.0
    %3768 = vmatprep.subr.mxu0 0.0
    %3769 = vmatpush2.msra.mxu0 0.0
    %3770 = vmatprep.subr.mxu0 0.0
    %3771 = vmatpush2.msra.mxu0 0.0
    %3772 = vmatprep.subr.mxu0 0.0
    %3773 = vmatpush2.msra.mxu0 0.0
    %3774 = vmatprep.subr.mxu0 0.0
    %3775 = vmatpush2.msra.mxu0 0.0
    %3776 = vmatprep.subr.mxu0 0.0
    %3777 = vmatpush2.msra.mxu0 0.0
    %3778 = vmatprep.subr.mxu0 0.0
    %3779 = vmatpush2.msra.mxu0 0.0
    %3780 = vmatprep.subr.mxu0 0.0
    %3781 = vmatpush2.msra.mxu0 0.0
    %3782 = vmatprep.subr.mxu0 0.0
    %3783 = vmatpush2.msra.mxu0 0.0
    %3784 = vmatprep.subr.mxu0 0.0
    %3785 = vmatpush2.msra.mxu0 0.0
    %3786 = vmatprep.subr.mxu0 0.0
    %3787 = vmatpush2.msra.mxu0 0.0
    %3788 = vmatprep.subr.mxu0 0.0
    %3789 = vmatpush2.msra.mxu0 0.0
    %3790 = vmatprep.subr.mxu0 0.0
    %3791 = vmatpush2.msra.mxu0 0.0
    %3792 = vmatprep.mubr.f32.mxu0 0.0
    %3793 = vmatmul.mubr.f32.gmra.mxu0 %v3726
    %v3794 = vpop.f32.mrf.mxu0
    %v3795 = vadd.f32 %v3721, %v3794
    %v3796 = vpop.f32.mrf.mxu0
    %v3797 = vadd.f32 %v3723, %v3796
    %3798 = vdwg.mxu0
    %v3799 = vadd.f32 %v3795, %v335
    %v3800 = vadd.f32 %v3797, %v339
    %v3801 = vtanh.pop %v3799
    %v3802 = vtanh.pop %v3800
    %v3803 = vmul.f32 %v3801, 0.5
    %v3804 = vmul.f32 %v3802, 0.5
    %v3805 = vadd.f32 %v3803, 0.5
    %v3806 = vadd.f32 %v3804, 0.5
    %v3807 = vmul.f32 %v3805, %v3368
    %3809 = vrot.lane.b32.xlu0 %v3802, 64
    %v3810 = vpop.permute.xlu0 %3809
    %v3812 = vmul.f32 %v3805, %v3810
    %3814 = vrot.lane.b32.xlu0 %v3812, 64
    %v3815 = vpop.permute.xlu0 %3814
    %v3817 = vadd.f32 %v3807, %v3815
    %v3818 = vtanh.pop %v3817
    %3820 = vrot.lane.b32.xlu0 %v3818, 64
    %v3821 = vpop.permute.xlu0 %3820
    %v3823 = vmul.f32 %v3806, %v3821
    %v3825 = vsel %vm368, %v3823, 0
    %3827 = vmatprep.subr.mxu0 0.0
    %3828 = vmatpush1.msra.mxu0 0.0
    %3829 = vmatprep.subr.mxu0 0.0
    %3830 = vmatpush1.msra.mxu0 0.0
    %3831 = vmatprep.subr.mxu0 0.0
    %3832 = vmatpush1.msra.mxu0 0.0
    %3833 = vmatprep.subr.mxu0 0.0
    %3834 = vmatpush1.msra.mxu0 0.0
    %3835 = vmatprep.subr.mxu0 0.0
    %3836 = vmatpush1.msra.mxu0 0.0
    %3837 = vmatprep.subr.mxu0 0.0
    %3838 = vmatpush1.msra.mxu0 0.0
    %3839 = vmatprep.subr.mxu0 0.0
    %3840 = vmatpush1.msra.mxu0 0.0
    %3841 = vmatprep.subr.mxu0 0.0
    %3842 = vmatpush1.msra.mxu0 0.0
    %3843 = vmatprep.subr.mxu0 0.0
    %3844 = vmatpush1.msra.mxu0 %v2906
    %3845 = vmatprep.subr.mxu0 0.0
    %3846 = vmatpush1.msra.mxu0 %v2905
    %3847 = vmatprep.subr.mxu0 0.0
    %3848 = vmatpush1.msra.mxu0 %v2904
    %3849 = vmatprep.subr.mxu0 0.0
    %3850 = vmatpush1.msra.mxu0 %v2903
    %3851 = vmatprep.subr.mxu0 0.0
    %3852 = vmatpush1.msra.mxu0 %v2902
    %3853 = vmatprep.subr.mxu0 0.0
    %3854 = vmatpush1.msra.mxu0 %v2901
    %3855 = vmatprep.subr.mxu0 0.0
    %3856 = vmatpush1.msra.mxu0 %v2900
    %3857 = vmatprep.subr.mxu0 0.0
    %3858 = vmatpush1.msra.mxu0 %v2899
    %3859 = vmatprep.subr.mxu0 0.0
    %3860 = vmatpush2.msra.mxu0 0.0
    %3861 = vmatprep.subr.mxu0 0.0
    %3862 = vmatpush2.msra.mxu0 0.0
    %3863 = vmatprep.subr.mxu0 0.0
    %3864 = vmatpush2.msra.mxu0 0.0
    %3865 = vmatprep.subr.mxu0 0.0
    %3866 = vmatpush2.msra.mxu0 0.0
    %3867 = vmatprep.subr.mxu0 0.0
    %3868 = vmatpush2.msra.mxu0 0.0
    %3869 = vmatprep.subr.mxu0 0.0
    %3870 = vmatpush2.msra.mxu0 0.0
    %3871 = vmatprep.subr.mxu0 0.0
    %3872 = vmatpush2.msra.mxu0 0.0
    %3873 = vmatprep.subr.mxu0 0.0
    %3874 = vmatpush2.msra.mxu0 0.0
    %3875 = vmatprep.subr.mxu0 0.0
    %3876 = vmatpush2.msra.mxu0 0.0
    %3877 = vmatprep.subr.mxu0 0.0
    %3878 = vmatpush2.msra.mxu0 0.0
    %3879 = vmatprep.subr.mxu0 0.0
    %3880 = vmatpush2.msra.mxu0 0.0
    %3881 = vmatprep.subr.mxu0 0.0
    %3882 = vmatpush2.msra.mxu0 0.0
    %3883 = vmatprep.subr.mxu0 0.0
    %3884 = vmatpush2.msra.mxu0 0.0
    %3885 = vmatprep.subr.mxu0 0.0
    %3886 = vmatpush2.msra.mxu0 0.0
    %3887 = vmatprep.subr.mxu0 0.0
    %3888 = vmatpush2.msra.mxu0 0.0
    %3889 = vmatprep.subr.mxu0 0.0
    %3890 = vmatpush2.msra.mxu0 0.0
    %3891 = vmatprep.mubr.f32.mxu0 0.0
    %3892 = vmatmul.mubr.f32.gmra.mxu0 %v3825
    %v3893 = vpop.f32.mrf.mxu0
    %v3894 = vadd.f32 %v347, %v3893
    %v3895 = vpop.f32.mrf.mxu0
    %3896 = vdwg.mxu0
    %v3897 = vsel %vm164, %v3894, -inf
    %3898 = vmax.xlane.f32.xlu0 %v3897
    %v3899 = vpop.xlane.xlu0 %3898
    %vm3900 = vcmp.eq.f32.partialorder %v3894, %v3899
    %v3901 = vsel %vm3900, %v2568, 32
    %v3902 = vsel %vm164, %v3901, 2147483647
    %v3903 = vand.u32 %v3902, 65535
    %v3904 = vshra.s32 %v3902, 16
    %v3905 = vcvt.s32.f32 %v3903
    %v3906 = vcvt.s32.f32 %v3904
    %3907 = vmin.xlane.f32.xlu0 %v3906
    %v3908 = vpop.xlane.xlu0 %3907
    %vm3909 = vcmp.eq.f32.partialorder %v3906, %v3908
    %v3910 = vsel %vm3909, %v3905, inf
    %3911 = vmin.xlane.f32.xlu0 %v3910
    %v3912 = vpop.xlane.xlu0 %3911
    %v3913 = vcvt.f32.s32 %v3912
    %v3914 = vcvt.f32.s32 %v3908
    %v3915 = vshll.u32 %v3914, 16
    %v3916 = vadd.s32 %v3915, %v3913
    %vm3917 = vcmp.eq.s32.totalorder %v2568, %v3916
    %vm3918 = vmand %vm3917, %vm2571
    %v3919 = vsel %vm3918, 1.0, 0.0
    %v3920 = vsel %vm164, %v3919, -inf
    %v3921 = vrot.slane %v3920, 4
    %v3922 = vmax.f32 %v3920, %v3921
    %v3923 = vrot.slane %v3922, 2
    %v3924 = vmax.f32 %v3922, %v3923
    %v3925 = vrot.slane %v3924, 1
    %v3926 = vmax.f32 %v3924, %v3925
    %v3928 = vsel %vm164, %v3926, 0
    %3930 = vmatprep.subr.mxu0 0.0
    %3931 = vmatpush1.msra.mxu0 0.0
    %3932 = vmatprep.subr.mxu0 0.0
    %3933 = vmatpush1.msra.mxu0 0.0
    %3934 = vmatprep.subr.mxu0 0.0
    %3935 = vmatpush1.msra.mxu0 0.0
    %3936 = vmatprep.subr.mxu0 0.0
    %3937 = vmatpush1.msra.mxu0 0.0
    %3938 = vmatprep.subr.mxu0 0.0
    %3939 = vmatpush1.msra.mxu0 0.0
    %3940 = vmatprep.subr.mxu0 0.0
    %3941 = vmatpush1.msra.mxu0 0.0
    %3942 = vmatprep.subr.mxu0 0.0
    %3943 = vmatpush1.msra.mxu0 0.0
    %3944 = vmatprep.subr.mxu0 0.0
    %3945 = vmatpush1.msra.mxu0 0.0
    %3946 = vmatprep.subr.mxu0 0.0
    %3947 = vmatpush1.msra.mxu0 0.0
    %3948 = vmatprep.subr.mxu0 0.0
    %3949 = vmatpush1.msra.mxu0 0.0
    %3950 = vmatprep.subr.mxu0 0.0
    %3951 = vmatpush1.msra.mxu0 0.0
    %3952 = vmatprep.subr.mxu0 0.0
    %3953 = vmatpush1.msra.mxu0 0.0
    %3954 = vmatprep.subr.mxu0 %v3017
    %3955 = vmatpush1.msra.mxu0 %v3016
    %3956 = vmatprep.subr.mxu0 %v3015
    %3957 = vmatpush1.msra.mxu0 %v3014
    %3958 = vmatprep.subr.mxu0 %v3013
    %3959 = vmatpush1.msra.mxu0 %v3012
    %3960 = vmatprep.subr.mxu0 %v3011
    %3961 = vmatpush1.msra.mxu0 %v3010
    %3962 = vmatprep.subr.mxu0 0.0
    %3963 = vmatpush2.msra.mxu0 0.0
    %3964 = vmatprep.subr.mxu0 0.0
    %3965 = vmatpush2.msra.mxu0 0.0
    %3966 = vmatprep.subr.mxu0 0.0
    %3967 = vmatpush2.msra.mxu0 0.0
    %3968 = vmatprep.subr.mxu0 0.0
    %3969 = vmatpush2.msra.mxu0 0.0
    %3970 = vmatprep.subr.mxu0 0.0
    %3971 = vmatpush2.msra.mxu0 0.0
    %3972 = vmatprep.subr.mxu0 0.0
    %3973 = vmatpush2.msra.mxu0 0.0
    %3974 = vmatprep.subr.mxu0 0.0
    %3975 = vmatpush2.msra.mxu0 0.0
    %3976 = vmatprep.subr.mxu0 0.0
    %3977 = vmatpush2.msra.mxu0 0.0
    %3978 = vmatprep.subr.mxu0 0.0
    %3979 = vmatpush2.msra.mxu0 0.0
    %3980 = vmatprep.subr.mxu0 0.0
    %3981 = vmatpush2.msra.mxu0 0.0
    %3982 = vmatprep.subr.mxu0 0.0
    %3983 = vmatpush2.msra.mxu0 0.0
    %3984 = vmatprep.subr.mxu0 0.0
    %3985 = vmatpush2.msra.mxu0 0.0
    %3986 = vmatprep.subr.mxu0 0.0
    %3987 = vmatpush2.msra.mxu0 0.0
    %3988 = vmatprep.subr.mxu0 0.0
    %3989 = vmatpush2.msra.mxu0 0.0
    %3990 = vmatprep.subr.mxu0 0.0
    %3991 = vmatpush2.msra.mxu0 0.0
    %3992 = vmatprep.subr.mxu0 0.0
    %3993 = vmatpush2.msra.mxu0 0.0
    %3994 = vmatprep.mubr.f32.mxu0 0.0
    %3995 = vmatmul.mubr.f32.gmra.mxu0 %v3928
    %v3996 = vpop.f32.mrf.mxu0
    %v3997 = vadd.f32 %v3022, %v3996
    %v3998 = vpop.f32.mrf.mxu0
    %v3999 = vadd.f32 %v3026, %v3998
    %4000 = vdwg.mxu0
    %v4001 = vlaneseq
    %v4002 = vshrl.u32 %v4001, 7
    %v4003 = vsub.s32 0, %v4002
    %v4004 = vrot.slane %v3997, %v4003
    %v4005 = vlaneseq
    %v4006 = vshrl.u32 %v4005, 7
    %v4007 = vsub.s32 0, %v4006
    %v4008 = vrot.slane %v3999, %v4007
    %4009 = vmatprep.subr.mxu0 0.0
    %4010 = vmatpush1.msra.mxu0 0.0
    %4011 = vmatprep.subr.mxu0 0.0
    %4012 = vmatpush1.msra.mxu0 0.0
    %4013 = vmatprep.subr.mxu0 0.0
    %4014 = vmatpush1.msra.mxu0 0.0
    %4015 = vmatprep.subr.mxu0 0.0
    %4016 = vmatpush1.msra.mxu0 0.0
    %4017 = vmatprep.subr.mxu0 0.0
    %4018 = vmatpush1.msra.mxu0 0.0
    %4019 = vmatprep.subr.mxu0 0.0
    %4020 = vmatpush1.msra.mxu0 0.0
    %4021 = vmatprep.subr.mxu0 0.0
    %4022 = vmatpush1.msra.mxu0 0.0
    %4023 = vmatprep.subr.mxu0 0.0
    %4024 = vmatpush1.msra.mxu0 0.0
    %4025 = vmatprep.subr.mxu0 %v2588
    %4026 = vmatpush1.msra.mxu0 %v2587
    %4027 = vmatprep.subr.mxu0 %v2586
    %4028 = vmatpush1.msra.mxu0 %v2585
    %4029 = vmatprep.subr.mxu0 %v2584
    %4030 = vmatpush1.msra.mxu0 %v2583
    %4031 = vmatprep.subr.mxu0 %v2582
    %4032 = vmatpush1.msra.mxu0 %v2581
    %4033 = vmatprep.subr.mxu0 %v2580
    %4034 = vmatpush1.msra.mxu0 %v2579
    %4035 = vmatprep.subr.mxu0 %v2578
    %4036 = vmatpush1.msra.mxu0 %v2577
    %4037 = vmatprep.subr.mxu0 %v2576
    %4038 = vmatpush1.msra.mxu0 %v2575
    %4039 = vmatprep.subr.mxu0 %v2574
    %4040 = vmatpush1.msra.mxu0 %v2573
    %4041 = vmatprep.subr.mxu0 0.0
    %4042 = vmatpush2.msra.mxu0 0.0
    %4043 = vmatprep.subr.mxu0 0.0
    %4044 = vmatpush2.msra.mxu0 0.0
    %4045 = vmatprep.subr.mxu0 0.0
    %4046 = vmatpush2.msra.mxu0 0.0
    %4047 = vmatprep.subr.mxu0 0.0
    %4048 = vmatpush2.msra.mxu0 0.0
    %4049 = vmatprep.subr.mxu0 0.0
    %4050 = vmatpush2.msra.mxu0 0.0
    %4051 = vmatprep.subr.mxu0 0.0
    %4052 = vmatpush2.msra.mxu0 0.0
    %4053 = vmatprep.subr.mxu0 0.0
    %4054 = vmatpush2.msra.mxu0 0.0
    %4055 = vmatprep.subr.mxu0 0.0
    %4056 = vmatpush2.msra.mxu0 0.0
    %4057 = vmatprep.subr.mxu0 0.0
    %4058 = vmatpush2.msra.mxu0 0.0
    %4059 = vmatprep.subr.mxu0 0.0
    %4060 = vmatpush2.msra.mxu0 0.0
    %4061 = vmatprep.subr.mxu0 0.0
    %4062 = vmatpush2.msra.mxu0 0.0
    %4063 = vmatprep.subr.mxu0 0.0
    %4064 = vmatpush2.msra.mxu0 0.0
    %4065 = vmatprep.subr.mxu0 0.0
    %4066 = vmatpush2.msra.mxu0 0.0
    %4067 = vmatprep.subr.mxu0 0.0
    %4068 = vmatpush2.msra.mxu0 0.0
    %4069 = vmatprep.subr.mxu0 0.0
    %4070 = vmatpush2.msra.mxu0 0.0
    %4071 = vmatprep.subr.mxu0 0.0
    %4072 = vmatpush2.msra.mxu0 0.0
    %4073 = vmatprep.mubr.f32.mxu0 0.0
    %4074 = vmatmul.mubr.f32.gmra.mxu0 %v3726
    %v4075 = vpop.f32.mrf.mxu0
    %v4076 = vadd.f32 %v4004, %v4075
    %v4077 = vpop.f32.mrf.mxu0
    %v4078 = vadd.f32 %v4008, %v4077
    %4079 = vdwg.mxu0
    %v4080 = vtanh.pop %v4076
    %v4081 = vtanh.pop %v4078
    %v4082 = vmul.f32 %v4080, 0.5
    %v4083 = vmul.f32 %v4081, 0.5
    %v4084 = vadd.f32 %v4082, 0.5
    %v4085 = vadd.f32 %v4083, 0.5
    %v4086 = vmul.f32 %v4084, %v3647
    %4088 = vrot.lane.b32.xlu0 %v4081, 64
    %v4089 = vpop.permute.xlu0 %4088
    %v4091 = vmul.f32 %v4084, %v4089
    %4093 = vrot.lane.b32.xlu0 %v4091, 64
    %v4094 = vpop.permute.xlu0 %4093
    %v4096 = vadd.f32 %v4086, %v4094
    %v4097 = vtanh.pop %v4096
    %4099 = vrot.lane.b32.xlu0 %v4097, 64
    %v4100 = vpop.permute.xlu0 %4099
    %v4102 = vmul.f32 %v4085, %v4100
    %4103 = vmatprep.subr.mxu0 0.0
    %4104 = vmatpush1.msra.mxu0 0.0
    %4105 = vmatprep.subr.mxu0 0.0
    %4106 = vmatpush1.msra.mxu0 0.0
    %4107 = vmatprep.subr.mxu0 0.0
    %4108 = vmatpush1.msra.mxu0 0.0
    %4109 = vmatprep.subr.mxu0 0.0
    %4110 = vmatpush1.msra.mxu0 0.0
    %4111 = vmatprep.subr.mxu0 0.0
    %4112 = vmatpush1.msra.mxu0 0.0
    %4113 = vmatprep.subr.mxu0 0.0
    %4114 = vmatpush1.msra.mxu0 0.0
    %4115 = vmatprep.subr.mxu0 0.0
    %4116 = vmatpush1.msra.mxu0 0.0
    %4117 = vmatprep.subr.mxu0 0.0
    %4118 = vmatpush1.msra.mxu0 0.0
    %4119 = vmatprep.subr.mxu0 %v2728
    %4120 = vmatpush1.msra.mxu0 %v2727
    %4121 = vmatprep.subr.mxu0 %v2726
    %4122 = vmatpush1.msra.mxu0 %v2725
    %4123 = vmatprep.subr.mxu0 %v2724
    %4124 = vmatpush1.msra.mxu0 %v2723
    %4125 = vmatprep.subr.mxu0 %v2722
    %4126 = vmatpush1.msra.mxu0 %v2721
    %4127 = vmatprep.subr.mxu0 %v2720
    %4128 = vmatpush1.msra.mxu0 %v2719
    %4129 = vmatprep.subr.mxu0 %v2718
    %4130 = vmatpush1.msra.mxu0 %v2717
    %4131 = vmatprep.subr.mxu0 %v2716
    %4132 = vmatpush1.msra.mxu0 %v2715
    %4133 = vmatprep.subr.mxu0 %v2714
    %4134 = vmatpush1.msra.mxu0 %v2713
    %4135 = vmatprep.subr.mxu0 0.0
    %4136 = vmatpush2.msra.mxu0 0.0
    %4137 = vmatprep.subr.mxu0 0.0
    %4138 = vmatpush2.msra.mxu0 0.0
    %4139 = vmatprep.subr.mxu0 0.0
    %4140 = vmatpush2.msra.mxu0 0.0
    %4141 = vmatprep.subr.mxu0 0.0
    %4142 = vmatpush2.msra.mxu0 0.0
    %4143 = vmatprep.subr.mxu0 0.0
    %4144 = vmatpush2.msra.mxu0 0.0
    %4145 = vmatprep.subr.mxu0 0.0
    %4146 = vmatpush2.msra.mxu0 0.0
    %4147 = vmatprep.subr.mxu0 0.0
    %4148 = vmatpush2.msra.mxu0 0.0
    %4149 = vmatprep.subr.mxu0 0.0
    %4150 = vmatpush2.msra.mxu0 0.0
    %4151 = vmatprep.subr.mxu0 0.0
    %4152 = vmatpush2.msra.mxu0 0.0
    %4153 = vmatprep.subr.mxu0 0.0
    %4154 = vmatpush2.msra.mxu0 0.0
    %4155 = vmatprep.subr.mxu0 0.0
    %4156 = vmatpush2.msra.mxu0 0.0
    %4157 = vmatprep.subr.mxu0 0.0
    %4158 = vmatpush2.msra.mxu0 0.0
    %4159 = vmatprep.subr.mxu0 0.0
    %4160 = vmatpush2.msra.mxu0 0.0
    %4161 = vmatprep.subr.mxu0 0.0
    %4162 = vmatpush2.msra.mxu0 0.0
    %4163 = vmatprep.subr.mxu0 0.0
    %4164 = vmatpush2.msra.mxu0 0.0
    %4165 = vmatprep.subr.mxu0 0.0
    %4166 = vmatpush2.msra.mxu0 0.0
    %4167 = vmatprep.mubr.f32.mxu0 0.0
    %4168 = vmatmul.mubr.f32.gmra.mxu0 %v3825
    %v4169 = vpop.f32.mrf.mxu0
    %v4170 = vadd.f32 0.0, %v4169
    %v4171 = vpop.f32.mrf.mxu0
    %v4172 = vadd.f32 0.0, %v4171
    %4173 = vdwg.mxu0
    %v4175 = vsel %vm368, %v4102, 0
    %4177 = vmatprep.subr.mxu0 0.0
    %4178 = vmatpush1.msra.mxu0 0.0
    %4179 = vmatprep.subr.mxu0 0.0
    %4180 = vmatpush1.msra.mxu0 0.0
    %4181 = vmatprep.subr.mxu0 0.0
    %4182 = vmatpush1.msra.mxu0 0.0
    %4183 = vmatprep.subr.mxu0 0.0
    %4184 = vmatpush1.msra.mxu0 0.0
    %4185 = vmatprep.subr.mxu0 0.0
    %4186 = vmatpush1.msra.mxu0 0.0
    %4187 = vmatprep.subr.mxu0 0.0
    %4188 = vmatpush1.msra.mxu0 0.0
    %4189 = vmatprep.subr.mxu0 0.0
    %4190 = vmatpush1.msra.mxu0 0.0
    %4191 = vmatprep.subr.mxu0 0.0
    %4192 = vmatpush1.msra.mxu0 0.0
    %4193 = vmatprep.subr.mxu0 %v2712
    %4194 = vmatpush1.msra.mxu0 %v2711
    %4195 = vmatprep.subr.mxu0 %v2710
    %4196 = vmatpush1.msra.mxu0 %v2709
    %4197 = vmatprep.subr.mxu0 %v2708
    %4198 = vmatpush1.msra.mxu0 %v2707
    %4199 = vmatprep.subr.mxu0 %v2706
    %4200 = vmatpush1.msra.mxu0 %v2705
    %4201 = vmatprep.subr.mxu0 %v2704
    %4202 = vmatpush1.msra.mxu0 %v2703
    %4203 = vmatprep.subr.mxu0 %v2702
    %4204 = vmatpush1.msra.mxu0 %v2701
    %4205 = vmatprep.subr.mxu0 %v2700
    %4206 = vmatpush1.msra.mxu0 %v2699
    %4207 = vmatprep.subr.mxu0 %v2698
    %4208 = vmatpush1.msra.mxu0 %v2697
    %4209 = vmatprep.subr.mxu0 0.0
    %4210 = vmatpush2.msra.mxu0 0.0
    %4211 = vmatprep.subr.mxu0 0.0
    %4212 = vmatpush2.msra.mxu0 0.0
    %4213 = vmatprep.subr.mxu0 0.0
    %4214 = vmatpush2.msra.mxu0 0.0
    %4215 = vmatprep.subr.mxu0 0.0
    %4216 = vmatpush2.msra.mxu0 0.0
    %4217 = vmatprep.subr.mxu0 0.0
    %4218 = vmatpush2.msra.mxu0 0.0
    %4219 = vmatprep.subr.mxu0 0.0
    %4220 = vmatpush2.msra.mxu0 0.0
    %4221 = vmatprep.subr.mxu0 0.0
    %4222 = vmatpush2.msra.mxu0 0.0
    %4223 = vmatprep.subr.mxu0 0.0
    %4224 = vmatpush2.msra.mxu0 0.0
    %4225 = vmatprep.subr.mxu0 0.0
    %4226 = vmatpush2.msra.mxu0 0.0
    %4227 = vmatprep.subr.mxu0 0.0
    %4228 = vmatpush2.msra.mxu0 0.0
    %4229 = vmatprep.subr.mxu0 0.0
    %4230 = vmatpush2.msra.mxu0 0.0
    %4231 = vmatprep.subr.mxu0 0.0
    %4232 = vmatpush2.msra.mxu0 0.0
    %4233 = vmatprep.subr.mxu0 0.0
    %4234 = vmatpush2.msra.mxu0 0.0
    %4235 = vmatprep.subr.mxu0 0.0
    %4236 = vmatpush2.msra.mxu0 0.0
    %4237 = vmatprep.subr.mxu0 0.0
    %4238 = vmatpush2.msra.mxu0 0.0
    %4239 = vmatprep.subr.mxu0 0.0
    %4240 = vmatpush2.msra.mxu0 0.0
    %4241 = vmatprep.mubr.f32.mxu0 0.0
    %4242 = vmatmul.mubr.f32.gmra.mxu0 %v4175
    %v4243 = vpop.f32.mrf.mxu0
    %v4244 = vadd.f32 %v4170, %v4243
    %v4245 = vpop.f32.mrf.mxu0
    %v4246 = vadd.f32 %v4172, %v4245
    %4247 = vdwg.mxu0
    %v4248 = vadd.f32 %v4244, %v335
    %v4249 = vadd.f32 %v4246, %v339
    %v4250 = vtanh.pop %v4248
    %v4251 = vtanh.pop %v4249
    %v4252 = vmul.f32 %v4250, 0.5
    %v4253 = vmul.f32 %v4251, 0.5
    %v4254 = vadd.f32 %v4252, 0.5
    %v4255 = vadd.f32 %v4253, 0.5
    %v4256 = vmul.f32 %v4254, %v3817
    %4258 = vrot.lane.b32.xlu0 %v4251, 64
    %v4259 = vpop.permute.xlu0 %4258
    %v4261 = vmul.f32 %v4254, %v4259
    %4263 = vrot.lane.b32.xlu0 %v4261, 64
    %v4264 = vpop.permute.xlu0 %4263
    %v4266 = vadd.f32 %v4256, %v4264
    %v4267 = vtanh.pop %v4266
    %4269 = vrot.lane.b32.xlu0 %v4267, 64
    %v4270 = vpop.permute.xlu0 %4269
    %v4272 = vmul.f32 %v4255, %v4270
    %v4274 = vsel %vm368, %v4272, 0
    %4276 = vmatprep.subr.mxu0 0.0
    %4277 = vmatpush1.msra.mxu0 0.0
    %4278 = vmatprep.subr.mxu0 0.0
    %4279 = vmatpush1.msra.mxu0 0.0
    %4280 = vmatprep.subr.mxu0 0.0
    %4281 = vmatpush1.msra.mxu0 0.0
    %4282 = vmatprep.subr.mxu0 0.0
    %4283 = vmatpush1.msra.mxu0 0.0
    %4284 = vmatprep.subr.mxu0 0.0
    %4285 = vmatpush1.msra.mxu0 0.0
    %4286 = vmatprep.subr.mxu0 0.0
    %4287 = vmatpush1.msra.mxu0 0.0
    %4288 = vmatprep.subr.mxu0 0.0
    %4289 = vmatpush1.msra.mxu0 0.0
    %4290 = vmatprep.subr.mxu0 0.0
    %4291 = vmatpush1.msra.mxu0 0.0
    %4292 = vmatprep.subr.mxu0 0.0
    %4293 = vmatpush1.msra.mxu0 %v2906
    %4294 = vmatprep.subr.mxu0 0.0
    %4295 = vmatpush1.msra.mxu0 %v2905
    %4296 = vmatprep.subr.mxu0 0.0
    %4297 = vmatpush1.msra.mxu0 %v2904
    %4298 = vmatprep.subr.mxu0 0.0
    %4299 = vmatpush1.msra.mxu0 %v2903
    %4300 = vmatprep.subr.mxu0 0.0
    %4301 = vmatpush1.msra.mxu0 %v2902
    %4302 = vmatprep.subr.mxu0 0.0
    %4303 = vmatpush1.msra.mxu0 %v2901
    %4304 = vmatprep.subr.mxu0 0.0
    %4305 = vmatpush1.msra.mxu0 %v2900
    %4306 = vmatprep.subr.mxu0 0.0
    %4307 = vmatpush1.msra.mxu0 %v2899
    %4308 = vmatprep.subr.mxu0 0.0
    %4309 = vmatpush2.msra.mxu0 0.0
    %4310 = vmatprep.subr.mxu0 0.0
    %4311 = vmatpush2.msra.mxu0 0.0
    %4312 = vmatprep.subr.mxu0 0.0
    %4313 = vmatpush2.msra.mxu0 0.0
    %4314 = vmatprep.subr.mxu0 0.0
    %4315 = vmatpush2.msra.mxu0 0.0
    %4316 = vmatprep.subr.mxu0 0.0
    %4317 = vmatpush2.msra.mxu0 0.0
    %4318 = vmatprep.subr.mxu0 0.0
    %4319 = vmatpush2.msra.mxu0 0.0
    %4320 = vmatprep.subr.mxu0 0.0
    %4321 = vmatpush2.msra.mxu0 0.0
    %4322 = vmatprep.subr.mxu0 0.0
    %4323 = vmatpush2.msra.mxu0 0.0
    %4324 = vmatprep.subr.mxu0 0.0
    %4325 = vmatpush2.msra.mxu0 0.0
    %4326 = vmatprep.subr.mxu0 0.0
    %4327 = vmatpush2.msra.mxu0 0.0
    %4328 = vmatprep.subr.mxu0 0.0
    %4329 = vmatpush2.msra.mxu0 0.0
    %4330 = vmatprep.subr.mxu0 0.0
    %4331 = vmatpush2.msra.mxu0 0.0
    %4332 = vmatprep.subr.mxu0 0.0
    %4333 = vmatpush2.msra.mxu0 0.0
    %4334 = vmatprep.subr.mxu0 0.0
    %4335 = vmatpush2.msra.mxu0 0.0
    %4336 = vmatprep.subr.mxu0 0.0
    %4337 = vmatpush2.msra.mxu0 0.0
    %4338 = vmatprep.subr.mxu0 0.0
    %4339 = vmatpush2.msra.mxu0 0.0
    %4340 = vmatprep.mubr.f32.mxu0 0.0
    %4341 = vmatmul.mubr.f32.gmra.mxu0 %v4274
    %v4342 = vpop.f32.mrf.mxu0
    %v4343 = vadd.f32 %v347, %v4342
    %v4344 = vpop.f32.mrf.mxu0
    %4345 = vdwg.mxu0
    %v4346 = vsel %vm164, %v4343, -inf
    %4347 = vmax.xlane.f32.xlu0 %v4346
    %v4348 = vpop.xlane.xlu0 %4347
    %vm4349 = vcmp.eq.f32.partialorder %v4343, %v4348
    %v4350 = vsel %vm4349, %v2568, 32
    %v4351 = vsel %vm164, %v4350, 2147483647
    %v4352 = vand.u32 %v4351, 65535
    %v4353 = vshra.s32 %v4351, 16
    %v4354 = vcvt.s32.f32 %v4352
    %v4355 = vcvt.s32.f32 %v4353
    %4356 = vmin.xlane.f32.xlu0 %v4355
    %v4357 = vpop.xlane.xlu0 %4356
    %vm4358 = vcmp.eq.f32.partialorder %v4355, %v4357
    %v4359 = vsel %vm4358, %v4354, inf
    %4360 = vmin.xlane.f32.xlu0 %v4359
    %v4361 = vpop.xlane.xlu0 %4360
    %v4362 = vcvt.f32.s32 %v4361
    %v4363 = vcvt.f32.s32 %v4357
    %v4364 = vshll.u32 %v4363, 16
    %v4365 = vadd.s32 %v4364, %v4362
    %vm4366 = vcmp.eq.s32.totalorder %v2568, %v4365
    %vm4367 = vmand %vm4366, %vm2571
    %v4368 = vsel %vm4367, 1.0, 0.0
    %v4369 = vsel %vm164, %v4368, -inf
    %v4370 = vrot.slane %v4369, 4
    %v4371 = vmax.f32 %v4369, %v4370
    %v4372 = vrot.slane %v4371, 2
    %v4373 = vmax.f32 %v4371, %v4372
    %v4374 = vrot.slane %v4373, 1
    %v4375 = vmax.f32 %v4373, %v4374
    %v4377 = vsel %vm164, %v4375, 0
    %4379 = vmatprep.subr.mxu0 0.0
    %4380 = vmatpush1.msra.mxu0 0.0
    %4381 = vmatprep.subr.mxu0 0.0
    %4382 = vmatpush1.msra.mxu0 0.0
    %4383 = vmatprep.subr.mxu0 0.0
    %4384 = vmatpush1.msra.mxu0 0.0
    %4385 = vmatprep.subr.mxu0 0.0
    %4386 = vmatpush1.msra.mxu0 0.0
    %4387 = vmatprep.subr.mxu0 0.0
    %4388 = vmatpush1.msra.mxu0 0.0
    %4389 = vmatprep.subr.mxu0 0.0
    %4390 = vmatpush1.msra.mxu0 0.0
    %4391 = vmatprep.subr.mxu0 0.0
    %4392 = vmatpush1.msra.mxu0 0.0
    %4393 = vmatprep.subr.mxu0 0.0
    %4394 = vmatpush1.msra.mxu0 0.0
    %4395 = vmatprep.subr.mxu0 0.0
    %4396 = vmatpush1.msra.mxu0 0.0
    %4397 = vmatprep.subr.mxu0 0.0
    %4398 = vmatpush1.msra.mxu0 0.0
    %4399 = vmatprep.subr.mxu0 0.0
    %4400 = vmatpush1.msra.mxu0 0.0
    %4401 = vmatprep.subr.mxu0 0.0
    %4402 = vmatpush1.msra.mxu0 0.0
    %4403 = vmatprep.subr.mxu0 %v3017
    %4404 = vmatpush1.msra.mxu0 %v3016
    %4405 = vmatprep.subr.mxu0 %v3015
    %4406 = vmatpush1.msra.mxu0 %v3014
    %4407 = vmatprep.subr.mxu0 %v3013
    %4408 = vmatpush1.msra.mxu0 %v3012
    %4409 = vmatprep.subr.mxu0 %v3011
    %4410 = vmatpush1.msra.mxu0 %v3010
    %4411 = vmatprep.subr.mxu0 0.0
    %4412 = vmatpush2.msra.mxu0 0.0
    %4413 = vmatprep.subr.mxu0 0.0
    %4414 = vmatpush2.msra.mxu0 0.0
    %4415 = vmatprep.subr.mxu0 0.0
    %4416 = vmatpush2.msra.mxu0 0.0
    %4417 = vmatprep.subr.mxu0 0.0
    %4418 = vmatpush2.msra.mxu0 0.0
    %4419 = vmatprep.subr.mxu0 0.0
    %4420 = vmatpush2.msra.mxu0 0.0
    %4421 = vmatprep.subr.mxu0 0.0
    %4422 = vmatpush2.msra.mxu0 0.0
    %4423 = vmatprep.subr.mxu0 0.0
    %4424 = vmatpush2.msra.mxu0 0.0
    %4425 = vmatprep.subr.mxu0 0.0
    %4426 = vmatpush2.msra.mxu0 0.0
    %4427 = vmatprep.subr.mxu0 0.0
    %4428 = vmatpush2.msra.mxu0 0.0
    %4429 = vmatprep.subr.mxu0 0.0
    %4430 = vmatpush2.msra.mxu0 0.0
    %4431 = vmatprep.subr.mxu0 0.0
    %4432 = vmatpush2.msra.mxu0 0.0
    %4433 = vmatprep.subr.mxu0 0.0
    %4434 = vmatpush2.msra.mxu0 0.0
    %4435 = vmatprep.subr.mxu0 0.0
    %4436 = vmatpush2.msra.mxu0 0.0
    %4437 = vmatprep.subr.mxu0 0.0
    %4438 = vmatpush2.msra.mxu0 0.0
    %4439 = vmatprep.subr.mxu0 0.0
    %4440 = vmatpush2.msra.mxu0 0.0
    %4441 = vmatprep.subr.mxu0 0.0
    %4442 = vmatpush2.msra.mxu0 0.0
    %4443 = vmatprep.mubr.f32.mxu0 0.0
    %4444 = vmatmul.mubr.f32.gmra.mxu0 %v4377
    %v4445 = vpop.f32.mrf.mxu0
    %v4446 = vadd.f32 %v3022, %v4445
    %v4447 = vpop.f32.mrf.mxu0
    %v4448 = vadd.f32 %v3026, %v4447
    %4449 = vdwg.mxu0
    %v4450 = vlaneseq
    %v4451 = vshrl.u32 %v4450, 7
    %v4452 = vsub.s32 0, %v4451
    %v4453 = vrot.slane %v4446, %v4452
    %v4454 = vlaneseq
    %v4455 = vshrl.u32 %v4454, 7
    %v4456 = vsub.s32 0, %v4455
    %v4457 = vrot.slane %v4448, %v4456
    %4458 = vmatprep.subr.mxu0 0.0
    %4459 = vmatpush1.msra.mxu0 0.0
    %4460 = vmatprep.subr.mxu0 0.0
    %4461 = vmatpush1.msra.mxu0 0.0
    %4462 = vmatprep.subr.mxu0 0.0
    %4463 = vmatpush1.msra.mxu0 0.0
    %4464 = vmatprep.subr.mxu0 0.0
    %4465 = vmatpush1.msra.mxu0 0.0
    %4466 = vmatprep.subr.mxu0 0.0
    %4467 = vmatpush1.msra.mxu0 0.0
    %4468 = vmatprep.subr.mxu0 0.0
    %4469 = vmatpush1.msra.mxu0 0.0
    %4470 = vmatprep.subr.mxu0 0.0
    %4471 = vmatpush1.msra.mxu0 0.0
    %4472 = vmatprep.subr.mxu0 0.0
    %4473 = vmatpush1.msra.mxu0 0.0
    %4474 = vmatprep.subr.mxu0 %v2588
    %4475 = vmatpush1.msra.mxu0 %v2587
    %4476 = vmatprep.subr.mxu0 %v2586
    %4477 = vmatpush1.msra.mxu0 %v2585
    %4478 = vmatprep.subr.mxu0 %v2584
    %4479 = vmatpush1.msra.mxu0 %v2583
    %4480 = vmatprep.subr.mxu0 %v2582
    %4481 = vmatpush1.msra.mxu0 %v2581
    %4482 = vmatprep.subr.mxu0 %v2580
    %4483 = vmatpush1.msra.mxu0 %v2579
    %4484 = vmatprep.subr.mxu0 %v2578
    %4485 = vmatpush1.msra.mxu0 %v2577
    %4486 = vmatprep.subr.mxu0 %v2576
    %4487 = vmatpush1.msra.mxu0 %v2575
    %4488 = vmatprep.subr.mxu0 %v2574
    %4489 = vmatpush1.msra.mxu0 %v2573
    %4490 = vmatprep.subr.mxu0 0.0
    %4491 = vmatpush2.msra.mxu0 0.0
    %4492 = vmatprep.subr.mxu0 0.0
    %4493 = vmatpush2.msra.mxu0 0.0
    %4494 = vmatprep.subr.mxu0 0.0
    %4495 = vmatpush2.msra.mxu0 0.0
    %4496 = vmatprep.subr.mxu0 0.0
    %4497 = vmatpush2.msra.mxu0 0.0
    %4498 = vmatprep.subr.mxu0 0.0
    %4499 = vmatpush2.msra.mxu0 0.0
    %4500 = vmatprep.subr.mxu0 0.0
    %4501 = vmatpush2.msra.mxu0 0.0
    %4502 = vmatprep.subr.mxu0 0.0
    %4503 = vmatpush2.msra.mxu0 0.0
    %4504 = vmatprep.subr.mxu0 0.0
    %4505 = vmatpush2.msra.mxu0 0.0
    %4506 = vmatprep.subr.mxu0 0.0
    %4507 = vmatpush2.msra.mxu0 0.0
    %4508 = vmatprep.subr.mxu0 0.0
    %4509 = vmatpush2.msra.mxu0 0.0
    %4510 = vmatprep.subr.mxu0 0.0
    %4511 = vmatpush2.msra.mxu0 0.0
    %4512 = vmatprep.subr.mxu0 0.0
    %4513 = vmatpush2.msra.mxu0 0.0
    %4514 = vmatprep.subr.mxu0 0.0
    %4515 = vmatpush2.msra.mxu0 0.0
    %4516 = vmatprep.subr.mxu0 0.0
    %4517 = vmatpush2.msra.mxu0 0.0
    %4518 = vmatprep.subr.mxu0 0.0
    %4519 = vmatpush2.msra.mxu0 0.0
    %4520 = vmatprep.subr.mxu0 0.0
    %4521 = vmatpush2.msra.mxu0 0.0
    %4522 = vmatprep.mubr.f32.mxu0 0.0
    %4523 = vmatmul.mubr.f32.gmra.mxu0 %v4175
    %v4524 = vpop.f32.mrf.mxu0
    %v4525 = vadd.f32 %v4453, %v4524
    %v4526 = vpop.f32.mrf.mxu0
    %v4527 = vadd.f32 %v4457, %v4526
    %4528 = vdwg.mxu0
    %v4529 = vtanh.pop %v4525
    %v4530 = vtanh.pop %v4527
    %v4531 = vmul.f32 %v4529, 0.5
    %v4532 = vmul.f32 %v4530, 0.5
    %v4533 = vadd.f32 %v4531, 0.5
    %v4534 = vadd.f32 %v4532, 0.5
    %v4535 = vmul.f32 %v4533, %v4096
    %4537 = vrot.lane.b32.xlu0 %v4530, 64
    %v4538 = vpop.permute.xlu0 %4537
    %v4540 = vmul.f32 %v4533, %v4538
    %4542 = vrot.lane.b32.xlu0 %v4540, 64
    %v4543 = vpop.permute.xlu0 %4542
    %v4545 = vadd.f32 %v4535, %v4543
    %v4546 = vtanh.pop %v4545
    %4548 = vrot.lane.b32.xlu0 %v4546, 64
    %v4549 = vpop.permute.xlu0 %4548
    %v4551 = vmul.f32 %v4534, %v4549
    %4552 = vmatprep.subr.mxu0 0.0
    %4553 = vmatpush1.msra.mxu0 0.0
    %4554 = vmatprep.subr.mxu0 0.0
    %4555 = vmatpush1.msra.mxu0 0.0
    %4556 = vmatprep.subr.mxu0 0.0
    %4557 = vmatpush1.msra.mxu0 0.0
    %4558 = vmatprep.subr.mxu0 0.0
    %4559 = vmatpush1.msra.mxu0 0.0
    %4560 = vmatprep.subr.mxu0 0.0
    %4561 = vmatpush1.msra.mxu0 0.0
    %4562 = vmatprep.subr.mxu0 0.0
    %4563 = vmatpush1.msra.mxu0 0.0
    %4564 = vmatprep.subr.mxu0 0.0
    %4565 = vmatpush1.msra.mxu0 0.0
    %4566 = vmatprep.subr.mxu0 0.0
    %4567 = vmatpush1.msra.mxu0 0.0
    %4568 = vmatprep.subr.mxu0 %v2728
    %4569 = vmatpush1.msra.mxu0 %v2727
    %4570 = vmatprep.subr.mxu0 %v2726
    %4571 = vmatpush1.msra.mxu0 %v2725
    %4572 = vmatprep.subr.mxu0 %v2724
    %4573 = vmatpush1.msra.mxu0 %v2723
    %4574 = vmatprep.subr.mxu0 %v2722
    %4575 = vmatpush1.msra.mxu0 %v2721
    %4576 = vmatprep.subr.mxu0 %v2720
    %4577 = vmatpush1.msra.mxu0 %v2719
    %4578 = vmatprep.subr.mxu0 %v2718
    %4579 = vmatpush1.msra.mxu0 %v2717
    %4580 = vmatprep.subr.mxu0 %v2716
    %4581 = vmatpush1.msra.mxu0 %v2715
    %4582 = vmatprep.subr.mxu0 %v2714
    %4583 = vmatpush1.msra.mxu0 %v2713
    %4584 = vmatprep.subr.mxu0 0.0
    %4585 = vmatpush2.msra.mxu0 0.0
    %4586 = vmatprep.subr.mxu0 0.0
    %4587 = vmatpush2.msra.mxu0 0.0
    %4588 = vmatprep.subr.mxu0 0.0
    %4589 = vmatpush2.msra.mxu0 0.0
    %4590 = vmatprep.subr.mxu0 0.0
    %4591 = vmatpush2.msra.mxu0 0.0
    %4592 = vmatprep.subr.mxu0 0.0
    %4593 = vmatpush2.msra.mxu0 0.0
    %4594 = vmatprep.subr.mxu0 0.0
    %4595 = vmatpush2.msra.mxu0 0.0
    %4596 = vmatprep.subr.mxu0 0.0
    %4597 = vmatpush2.msra.mxu0 0.0
    %4598 = vmatprep.subr.mxu0 0.0
    %4599 = vmatpush2.msra.mxu0 0.0
    %4600 = vmatprep.subr.mxu0 0.0
    %4601 = vmatpush2.msra.mxu0 0.0
    %4602 = vmatprep.subr.mxu0 0.0
    %4603 = vmatpush2.msra.mxu0 0.0
    %4604 = vmatprep.subr.mxu0 0.0
    %4605 = vmatpush2.msra.mxu0 0.0
    %4606 = vmatprep.subr.mxu0 0.0
    %4607 = vmatpush2.msra.mxu0 0.0
    %4608 = vmatprep.subr.mxu0 0.0
    %4609 = vmatpush2.msra.mxu0 0.0
    %4610 = vmatprep.subr.mxu0 0.0
    %4611 = vmatpush2.msra.mxu0 0.0
    %4612 = vmatprep.subr.mxu0 0.0
    %4613 = vmatpush2.msra.mxu0 0.0
    %4614 = vmatprep.subr.mxu0 0.0
    %4615 = vmatpush2.msra.mxu0 0.0
    %4616 = vmatprep.mubr.f32.mxu0 0.0
    %4617 = vmatmul.mubr.f32.gmra.mxu0 %v4274
    %v4618 = vpop.f32.mrf.mxu0
    %v4619 = vadd.f32 0.0, %v4618
    %v4620 = vpop.f32.mrf.mxu0
    %v4621 = vadd.f32 0.0, %v4620
    %4622 = vdwg.mxu0
    %v4624 = vsel %vm368, %v4551, 0
    %4626 = vmatprep.subr.mxu0 0.0
    %4627 = vmatpush1.msra.mxu0 0.0
    %4628 = vmatprep.subr.mxu0 0.0
    %4629 = vmatpush1.msra.mxu0 0.0
    %4630 = vmatprep.subr.mxu0 0.0
    %4631 = vmatpush1.msra.mxu0 0.0
    %4632 = vmatprep.subr.mxu0 0.0
    %4633 = vmatpush1.msra.mxu0 0.0
    %4634 = vmatprep.subr.mxu0 0.0
    %4635 = vmatpush1.msra.mxu0 0.0
    %4636 = vmatprep.subr.mxu0 0.0
    %4637 = vmatpush1.msra.mxu0 0.0
    %4638 = vmatprep.subr.mxu0 0.0
    %4639 = vmatpush1.msra.mxu0 0.0
    %4640 = vmatprep.subr.mxu0 0.0
    %4641 = vmatpush1.msra.mxu0 0.0
    %4642 = vmatprep.subr.mxu0 %v2712
    %4643 = vmatpush1.msra.mxu0 %v2711
    %4644 = vmatprep.subr.mxu0 %v2710
    %4645 = vmatpush1.msra.mxu0 %v2709
    %4646 = vmatprep.subr.mxu0 %v2708
    %4647 = vmatpush1.msra.mxu0 %v2707
    %4648 = vmatprep.subr.mxu0 %v2706
    %4649 = vmatpush1.msra.mxu0 %v2705
    %4650 = vmatprep.subr.mxu0 %v2704
    %4651 = vmatpush1.msra.mxu0 %v2703
    %4652 = vmatprep.subr.mxu0 %v2702
    %4653 = vmatpush1.msra.mxu0 %v2701
    %4654 = vmatprep.subr.mxu0 %v2700
    %4655 = vmatpush1.msra.mxu0 %v2699
    %4656 = vmatprep.subr.mxu0 %v2698
    %4657 = vmatpush1.msra.mxu0 %v2697
    %4658 = vmatprep.subr.mxu0 0.0
    %4659 = vmatpush2.msra.mxu0 0.0
    %4660 = vmatprep.subr.mxu0 0.0
    %4661 = vmatpush2.msra.mxu0 0.0
    %4662 = vmatprep.subr.mxu0 0.0
    %4663 = vmatpush2.msra.mxu0 0.0
    %4664 = vmatprep.subr.mxu0 0.0
    %4665 = vmatpush2.msra.mxu0 0.0
    %4666 = vmatprep.subr.mxu0 0.0
    %4667 = vmatpush2.msra.mxu0 0.0
    %4668 = vmatprep.subr.mxu0 0.0
    %4669 = vmatpush2.msra.mxu0 0.0
    %4670 = vmatprep.subr.mxu0 0.0
    %4671 = vmatpush2.msra.mxu0 0.0
    %4672 = vmatprep.subr.mxu0 0.0
    %4673 = vmatpush2.msra.mxu0 0.0
    %4674 = vmatprep.subr.mxu0 0.0
    %4675 = vmatpush2.msra.mxu0 0.0
    %4676 = vmatprep.subr.mxu0 0.0
    %4677 = vmatpush2.msra.mxu0 0.0
    %4678 = vmatprep.subr.mxu0 0.0
    %4679 = vmatpush2.msra.mxu0 0.0
    %4680 = vmatprep.subr.mxu0 0.0
    %4681 = vmatpush2.msra.mxu0 0.0
    %4682 = vmatprep.subr.mxu0 0.0
    %4683 = vmatpush2.msra.mxu0 0.0
    %4684 = vmatprep.subr.mxu0 0.0
    %4685 = vmatpush2.msra.mxu0 0.0
    %4686 = vmatprep.subr.mxu0 0.0
    %4687 = vmatpush2.msra.mxu0 0.0
    %4688 = vmatprep.subr.mxu0 0.0
    %4689 = vmatpush2.msra.mxu0 0.0
    %4690 = vmatprep.mubr.f32.mxu0 0.0
    %4691 = vmatmul.mubr.f32.gmra.mxu0 %v4624
    %v4692 = vpop.f32.mrf.mxu0
    %v4693 = vadd.f32 %v4619, %v4692
    %v4694 = vpop.f32.mrf.mxu0
    %v4695 = vadd.f32 %v4621, %v4694
    %4696 = vdwg.mxu0
    %v4697 = vadd.f32 %v4693, %v335
    %v4698 = vadd.f32 %v4695, %v339
    %v4699 = vtanh.pop %v4697
    %v4700 = vtanh.pop %v4698
    %v4701 = vmul.f32 %v4699, 0.5
    %v4702 = vmul.f32 %v4700, 0.5
    %v4703 = vadd.f32 %v4701, 0.5
    %v4704 = vadd.f32 %v4702, 0.5
    %v4705 = vmul.f32 %v4703, %v4266
    %4707 = vrot.lane.b32.xlu0 %v4700, 64
    %v4708 = vpop.permute.xlu0 %4707
    %v4710 = vmul.f32 %v4703, %v4708
    %4712 = vrot.lane.b32.xlu0 %v4710, 64
    %v4713 = vpop.permute.xlu0 %4712
    %v4715 = vadd.f32 %v4705, %v4713
    %v4716 = vtanh.pop %v4715
    %4718 = vrot.lane.b32.xlu0 %v4716, 64
    %v4719 = vpop.permute.xlu0 %4718
    %v4721 = vmul.f32 %v4704, %v4719
    %v4723 = vsel %vm368, %v4721, 0
    %4725 = vmatprep.subr.mxu0 0.0
    %4726 = vmatpush1.msra.mxu0 0.0
    %4727 = vmatprep.subr.mxu0 0.0
    %4728 = vmatpush1.msra.mxu0 0.0
    %4729 = vmatprep.subr.mxu0 0.0
    %4730 = vmatpush1.msra.mxu0 0.0
    %4731 = vmatprep.subr.mxu0 0.0
    %4732 = vmatpush1.msra.mxu0 0.0
    %4733 = vmatprep.subr.mxu0 0.0
    %4734 = vmatpush1.msra.mxu0 0.0
    %4735 = vmatprep.subr.mxu0 0.0
    %4736 = vmatpush1.msra.mxu0 0.0
    %4737 = vmatprep.subr.mxu0 0.0
    %4738 = vmatpush1.msra.mxu0 0.0
    %4739 = vmatprep.subr.mxu0 0.0
    %4740 = vmatpush1.msra.mxu0 0.0
    %4741 = vmatprep.subr.mxu0 0.0
    %4742 = vmatpush1.msra.mxu0 %v2906
    %4743 = vmatprep.subr.mxu0 0.0
    %4744 = vmatpush1.msra.mxu0 %v2905
    %4745 = vmatprep.subr.mxu0 0.0
    %4746 = vmatpush1.msra.mxu0 %v2904
    %4747 = vmatprep.subr.mxu0 0.0
    %4748 = vmatpush1.msra.mxu0 %v2903
    %4749 = vmatprep.subr.mxu0 0.0
    %4750 = vmatpush1.msra.mxu0 %v2902
    %4751 = vmatprep.subr.mxu0 0.0
    %4752 = vmatpush1.msra.mxu0 %v2901
    %4753 = vmatprep.subr.mxu0 0.0
    %4754 = vmatpush1.msra.mxu0 %v2900
    %4755 = vmatprep.subr.mxu0 0.0
    %4756 = vmatpush1.msra.mxu0 %v2899
    %4757 = vmatprep.subr.mxu0 0.0
    %4758 = vmatpush2.msra.mxu0 0.0
    %4759 = vmatprep.subr.mxu0 0.0
    %4760 = vmatpush2.msra.mxu0 0.0
    %4761 = vmatprep.subr.mxu0 0.0
    %4762 = vmatpush2.msra.mxu0 0.0
    %4763 = vmatprep.subr.mxu0 0.0
    %4764 = vmatpush2.msra.mxu0 0.0
    %4765 = vmatprep.subr.mxu0 0.0
    %4766 = vmatpush2.msra.mxu0 0.0
    %4767 = vmatprep.subr.mxu0 0.0
    %4768 = vmatpush2.msra.mxu0 0.0
    %4769 = vmatprep.subr.mxu0 0.0
    %4770 = vmatpush2.msra.mxu0 0.0
    %4771 = vmatprep.subr.mxu0 0.0
    %4772 = vmatpush2.msra.mxu0 0.0
    %4773 = vmatprep.subr.mxu0 0.0
    %4774 = vmatpush2.msra.mxu0 0.0
    %4775 = vmatprep.subr.mxu0 0.0
    %4776 = vmatpush2.msra.mxu0 0.0
    %4777 = vmatprep.subr.mxu0 0.0
    %4778 = vmatpush2.msra.mxu0 0.0
    %4779 = vmatprep.subr.mxu0 0.0
    %4780 = vmatpush2.msra.mxu0 0.0
    %4781 = vmatprep.subr.mxu0 0.0
    %4782 = vmatpush2.msra.mxu0 0.0
    %4783 = vmatprep.subr.mxu0 0.0
    %4784 = vmatpush2.msra.mxu0 0.0
    %4785 = vmatprep.subr.mxu0 0.0
    %4786 = vmatpush2.msra.mxu0 0.0
    %4787 = vmatprep.subr.mxu0 0.0
    %4788 = vmatpush2.msra.mxu0 0.0
    %4789 = vmatprep.mubr.f32.mxu0 0.0
    %4790 = vmatmul.mubr.f32.gmra.mxu0 %v4723
    %v4791 = vpop.f32.mrf.mxu0
    %v4792 = vadd.f32 %v347, %v4791
    %v4793 = vpop.f32.mrf.mxu0
    %4794 = vdwg.mxu0
    %v4795 = vsel %vm164, %v4792, -inf
    %4796 = vmax.xlane.f32.xlu0 %v4795
    %v4797 = vpop.xlane.xlu0 %4796
    %vm4798 = vcmp.eq.f32.partialorder %v4792, %v4797
    %v4799 = vsel %vm4798, %v2568, 32
    %v4800 = vsel %vm164, %v4799, 2147483647
    %v4801 = vand.u32 %v4800, 65535
    %v4802 = vshra.s32 %v4800, 16
    %v4803 = vcvt.s32.f32 %v4801
    %v4804 = vcvt.s32.f32 %v4802
    %4805 = vmin.xlane.f32.xlu0 %v4804
    %v4806 = vpop.xlane.xlu0 %4805
    %vm4807 = vcmp.eq.f32.partialorder %v4804, %v4806
    %v4808 = vsel %vm4807, %v4803, inf
    %4809 = vmin.xlane.f32.xlu0 %v4808
    %v4810 = vpop.xlane.xlu0 %4809
    %v4811 = vcvt.f32.s32 %v4810
    %v4812 = vcvt.f32.s32 %v4806
    %v4813 = vshll.u32 %v4812, 16
    %v4814 = vadd.s32 %v4813, %v4811
    %vm4815 = vcmp.eq.s32.totalorder %v2568, %v4814
    %vm4816 = vmand %vm4815, %vm2571
    %v4817 = vsel %vm4816, 1.0, 0.0
    %v4818 = vsel %vm164, %v4817, -inf
    %v4819 = vrot.slane %v4818, 4
    %v4820 = vmax.f32 %v4818, %v4819
    %v4821 = vrot.slane %v4820, 2
    %v4822 = vmax.f32 %v4820, %v4821
    %v4823 = vrot.slane %v4822, 1
    %v4824 = vmax.f32 %v4822, %v4823
    %v4826 = vsel %vm164, %v4824, 0
    %4828 = vmatprep.subr.mxu0 0.0
    %4829 = vmatpush1.msra.mxu0 0.0
    %4830 = vmatprep.subr.mxu0 0.0
    %4831 = vmatpush1.msra.mxu0 0.0
    %4832 = vmatprep.subr.mxu0 0.0
    %4833 = vmatpush1.msra.mxu0 0.0
    %4834 = vmatprep.subr.mxu0 0.0
    %4835 = vmatpush1.msra.mxu0 0.0
    %4836 = vmatprep.subr.mxu0 0.0
    %4837 = vmatpush1.msra.mxu0 0.0
    %4838 = vmatprep.subr.mxu0 0.0
    %4839 = vmatpush1.msra.mxu0 0.0
    %4840 = vmatprep.subr.mxu0 0.0
    %4841 = vmatpush1.msra.mxu0 0.0
    %4842 = vmatprep.subr.mxu0 0.0
    %4843 = vmatpush1.msra.mxu0 0.0
    %4844 = vmatprep.subr.mxu0 0.0
    %4845 = vmatpush1.msra.mxu0 0.0
    %4846 = vmatprep.subr.mxu0 0.0
    %4847 = vmatpush1.msra.mxu0 0.0
    %4848 = vmatprep.subr.mxu0 0.0
    %4849 = vmatpush1.msra.mxu0 0.0
    %4850 = vmatprep.subr.mxu0 0.0
    %4851 = vmatpush1.msra.mxu0 0.0
    %4852 = vmatprep.subr.mxu0 %v3017
    %4853 = vmatpush1.msra.mxu0 %v3016
    %4854 = vmatprep.subr.mxu0 %v3015
    %4855 = vmatpush1.msra.mxu0 %v3014
    %4856 = vmatprep.subr.mxu0 %v3013
    %4857 = vmatpush1.msra.mxu0 %v3012
    %4858 = vmatprep.subr.mxu0 %v3011
    %4859 = vmatpush1.msra.mxu0 %v3010
    %4860 = vmatprep.subr.mxu0 0.0
    %4861 = vmatpush2.msra.mxu0 0.0
    %4862 = vmatprep.subr.mxu0 0.0
    %4863 = vmatpush2.msra.mxu0 0.0
    %4864 = vmatprep.subr.mxu0 0.0
    %4865 = vmatpush2.msra.mxu0 0.0
    %4866 = vmatprep.subr.mxu0 0.0
    %4867 = vmatpush2.msra.mxu0 0.0
    %4868 = vmatprep.subr.mxu0 0.0
    %4869 = vmatpush2.msra.mxu0 0.0
    %4870 = vmatprep.subr.mxu0 0.0
    %4871 = vmatpush2.msra.mxu0 0.0
    %4872 = vmatprep.subr.mxu0 0.0
    %4873 = vmatpush2.msra.mxu0 0.0
    %4874 = vmatprep.subr.mxu0 0.0
    %4875 = vmatpush2.msra.mxu0 0.0
    %4876 = vmatprep.subr.mxu0 0.0
    %4877 = vmatpush2.msra.mxu0 0.0
    %4878 = vmatprep.subr.mxu0 0.0
    %4879 = vmatpush2.msra.mxu0 0.0
    %4880 = vmatprep.subr.mxu0 0.0
    %4881 = vmatpush2.msra.mxu0 0.0
    %4882 = vmatprep.subr.mxu0 0.0
    %4883 = vmatpush2.msra.mxu0 0.0
    %4884 = vmatprep.subr.mxu0 0.0
    %4885 = vmatpush2.msra.mxu0 0.0
    %4886 = vmatprep.subr.mxu0 0.0
    %4887 = vmatpush2.msra.mxu0 0.0
    %4888 = vmatprep.subr.mxu0 0.0
    %4889 = vmatpush2.msra.mxu0 0.0
    %4890 = vmatprep.subr.mxu0 0.0
    %4891 = vmatpush2.msra.mxu0 0.0
    %4892 = vmatprep.mubr.f32.mxu0 0.0
    %4893 = vmatmul.mubr.f32.gmra.mxu0 %v4826
    %v4894 = vpop.f32.mrf.mxu0
    %v4895 = vadd.f32 %v3022, %v4894
    %v4896 = vpop.f32.mrf.mxu0
    %v4897 = vadd.f32 %v3026, %v4896
    %4898 = vdwg.mxu0
    %v4899 = vlaneseq
    %v4900 = vshrl.u32 %v4899, 7
    %v4901 = vsub.s32 0, %v4900
    %v4902 = vrot.slane %v4895, %v4901
    %v4903 = vlaneseq
    %v4904 = vshrl.u32 %v4903, 7
    %v4905 = vsub.s32 0, %v4904
    %v4906 = vrot.slane %v4897, %v4905
    %4907 = vmatprep.subr.mxu0 0.0
    %4908 = vmatpush1.msra.mxu0 0.0
    %4909 = vmatprep.subr.mxu0 0.0
    %4910 = vmatpush1.msra.mxu0 0.0
    %4911 = vmatprep.subr.mxu0 0.0
    %4912 = vmatpush1.msra.mxu0 0.0
    %4913 = vmatprep.subr.mxu0 0.0
    %4914 = vmatpush1.msra.mxu0 0.0
    %4915 = vmatprep.subr.mxu0 0.0
    %4916 = vmatpush1.msra.mxu0 0.0
    %4917 = vmatprep.subr.mxu0 0.0
    %4918 = vmatpush1.msra.mxu0 0.0
    %4919 = vmatprep.subr.mxu0 0.0
    %4920 = vmatpush1.msra.mxu0 0.0
    %4921 = vmatprep.subr.mxu0 0.0
    %4922 = vmatpush1.msra.mxu0 0.0
    %4923 = vmatprep.subr.mxu0 %v2588
    %4924 = vmatpush1.msra.mxu0 %v2587
    %4925 = vmatprep.subr.mxu0 %v2586
    %4926 = vmatpush1.msra.mxu0 %v2585
    %4927 = vmatprep.subr.mxu0 %v2584
    %4928 = vmatpush1.msra.mxu0 %v2583
    %4929 = vmatprep.subr.mxu0 %v2582
    %4930 = vmatpush1.msra.mxu0 %v2581
    %4931 = vmatprep.subr.mxu0 %v2580
    %4932 = vmatpush1.msra.mxu0 %v2579
    %4933 = vmatprep.subr.mxu0 %v2578
    %4934 = vmatpush1.msra.mxu0 %v2577
    %4935 = vmatprep.subr.mxu0 %v2576
    %4936 = vmatpush1.msra.mxu0 %v2575
    %4937 = vmatprep.subr.mxu0 %v2574
    %4938 = vmatpush1.msra.mxu0 %v2573
    %4939 = vmatprep.subr.mxu0 0.0
    %4940 = vmatpush2.msra.mxu0 0.0
    %4941 = vmatprep.subr.mxu0 0.0
    %4942 = vmatpush2.msra.mxu0 0.0
    %4943 = vmatprep.subr.mxu0 0.0
    %4944 = vmatpush2.msra.mxu0 0.0
    %4945 = vmatprep.subr.mxu0 0.0
    %4946 = vmatpush2.msra.mxu0 0.0
    %4947 = vmatprep.subr.mxu0 0.0
    %4948 = vmatpush2.msra.mxu0 0.0
    %4949 = vmatprep.subr.mxu0 0.0
    %4950 = vmatpush2.msra.mxu0 0.0
    %4951 = vmatprep.subr.mxu0 0.0
    %4952 = vmatpush2.msra.mxu0 0.0
    %4953 = vmatprep.subr.mxu0 0.0
    %4954 = vmatpush2.msra.mxu0 0.0
    %4955 = vmatprep.subr.mxu0 0.0
    %4956 = vmatpush2.msra.mxu0 0.0
    %4957 = vmatprep.subr.mxu0 0.0
    %4958 = vmatpush2.msra.mxu0 0.0
    %4959 = vmatprep.subr.mxu0 0.0
    %4960 = vmatpush2.msra.mxu0 0.0
    %4961 = vmatprep.subr.mxu0 0.0
    %4962 = vmatpush2.msra.mxu0 0.0
    %4963 = vmatprep.subr.mxu0 0.0
    %4964 = vmatpush2.msra.mxu0 0.0
    %4965 = vmatprep.subr.mxu0 0.0
    %4966 = vmatpush2.msra.mxu0 0.0
    %4967 = vmatprep.subr.mxu0 0.0
    %4968 = vmatpush2.msra.mxu0 0.0
    %4969 = vmatprep.subr.mxu0 0.0
    %4970 = vmatpush2.msra.mxu0 0.0
    %4971 = vmatprep.mubr.f32.mxu0 0.0
    %4972 = vmatmul.mubr.f32.gmra.mxu0 %v4624
    %v4973 = vpop.f32.mrf.mxu0
    %v4974 = vadd.f32 %v4902, %v4973
    %v4975 = vpop.f32.mrf.mxu0
    %v4976 = vadd.f32 %v4906, %v4975
    %4977 = vdwg.mxu0
    %v4978 = vtanh.pop %v4974
    %v4979 = vtanh.pop %v4976
    %v4980 = vmul.f32 %v4978, 0.5
    %v4981 = vmul.f32 %v4979, 0.5
    %v4982 = vadd.f32 %v4980, 0.5
    %v4983 = vadd.f32 %v4981, 0.5
    %v4984 = vmul.f32 %v4982, %v4545
    %4986 = vrot.lane.b32.xlu0 %v4979, 64
    %v4987 = vpop.permute.xlu0 %4986
    %v4989 = vmul.f32 %v4982, %v4987
    %4991 = vrot.lane.b32.xlu0 %v4989, 64
    %v4992 = vpop.permute.xlu0 %4991
    %v4994 = vadd.f32 %v4984, %v4992
    %v4995 = vtanh.pop %v4994
    %4997 = vrot.lane.b32.xlu0 %v4995, 64
    %v4998 = vpop.permute.xlu0 %4997
    %v5000 = vmul.f32 %v4983, %v4998
    %5001 = vmatprep.subr.mxu0 0.0
    %5002 = vmatpush1.msra.mxu0 0.0
    %5003 = vmatprep.subr.mxu0 0.0
    %5004 = vmatpush1.msra.mxu0 0.0
    %5005 = vmatprep.subr.mxu0 0.0
    %5006 = vmatpush1.msra.mxu0 0.0
    %5007 = vmatprep.subr.mxu0 0.0
    %5008 = vmatpush1.msra.mxu0 0.0
    %5009 = vmatprep.subr.mxu0 0.0
    %5010 = vmatpush1.msra.mxu0 0.0
    %5011 = vmatprep.subr.mxu0 0.0
    %5012 = vmatpush1.msra.mxu0 0.0
    %5013 = vmatprep.subr.mxu0 0.0
    %5014 = vmatpush1.msra.mxu0 0.0
    %5015 = vmatprep.subr.mxu0 0.0
    %5016 = vmatpush1.msra.mxu0 0.0
    %5017 = vmatprep.subr.mxu0 %v2728
    %5018 = vmatpush1.msra.mxu0 %v2727
    %5019 = vmatprep.subr.mxu0 %v2726
    %5020 = vmatpush1.msra.mxu0 %v2725
    %5021 = vmatprep.subr.mxu0 %v2724
    %5022 = vmatpush1.msra.mxu0 %v2723
    %5023 = vmatprep.subr.mxu0 %v2722
    %5024 = vmatpush1.msra.mxu0 %v2721
    %5025 = vmatprep.subr.mxu0 %v2720
    %5026 = vmatpush1.msra.mxu0 %v2719
    %5027 = vmatprep.subr.mxu0 %v2718
    %5028 = vmatpush1.msra.mxu0 %v2717
    %5029 = vmatprep.subr.mxu0 %v2716
    %5030 = vmatpush1.msra.mxu0 %v2715
    %5031 = vmatprep.subr.mxu0 %v2714
    %5032 = vmatpush1.msra.mxu0 %v2713
    %5033 = vmatprep.subr.mxu0 0.0
    %5034 = vmatpush2.msra.mxu0 0.0
    %5035 = vmatprep.subr.mxu0 0.0
    %5036 = vmatpush2.msra.mxu0 0.0
    %5037 = vmatprep.subr.mxu0 0.0
    %5038 = vmatpush2.msra.mxu0 0.0
    %5039 = vmatprep.subr.mxu0 0.0
    %5040 = vmatpush2.msra.mxu0 0.0
    %5041 = vmatprep.subr.mxu0 0.0
    %5042 = vmatpush2.msra.mxu0 0.0
    %5043 = vmatprep.subr.mxu0 0.0
    %5044 = vmatpush2.msra.mxu0 0.0
    %5045 = vmatprep.subr.mxu0 0.0
    %5046 = vmatpush2.msra.mxu0 0.0
    %5047 = vmatprep.subr.mxu0 0.0
    %5048 = vmatpush2.msra.mxu0 0.0
    %5049 = vmatprep.subr.mxu0 0.0
    %5050 = vmatpush2.msra.mxu0 0.0
    %5051 = vmatprep.subr.mxu0 0.0
    %5052 = vmatpush2.msra.mxu0 0.0
    %5053 = vmatprep.subr.mxu0 0.0
    %5054 = vmatpush2.msra.mxu0 0.0
    %5055 = vmatprep.subr.mxu0 0.0
    %5056 = vmatpush2.msra.mxu0 0.0
    %5057 = vmatprep.subr.mxu0 0.0
    %5058 = vmatpush2.msra.mxu0 0.0
    %5059 = vmatprep.subr.mxu0 0.0
    %5060 = vmatpush2.msra.mxu0 0.0
    %5061 = vmatprep.subr.mxu0 0.0
    %5062 = vmatpush2.msra.mxu0 0.0
    %5063 = vmatprep.subr.mxu0 0.0
    %5064 = vmatpush2.msra.mxu0 0.0
    %5065 = vmatprep.mubr.f32.mxu0 0.0
    %5066 = vmatmul.mubr.f32.gmra.mxu0 %v4723
    %v5067 = vpop.f32.mrf.mxu0
    %v5068 = vadd.f32 0.0, %v5067
    %v5069 = vpop.f32.mrf.mxu0
    %v5070 = vadd.f32 0.0, %v5069
    %5071 = vdwg.mxu0
    %v5073 = vsel %vm368, %v5000, 0
    %5075 = vmatprep.subr.mxu0 0.0
    %5076 = vmatpush1.msra.mxu0 0.0
    %5077 = vmatprep.subr.mxu0 0.0
    %5078 = vmatpush1.msra.mxu0 0.0
    %5079 = vmatprep.subr.mxu0 0.0
    %5080 = vmatpush1.msra.mxu0 0.0
    %5081 = vmatprep.subr.mxu0 0.0
    %5082 = vmatpush1.msra.mxu0 0.0
    %5083 = vmatprep.subr.mxu0 0.0
    %5084 = vmatpush1.msra.mxu0 0.0
    %5085 = vmatprep.subr.mxu0 0.0
    %5086 = vmatpush1.msra.mxu0 0.0
    %5087 = vmatprep.subr.mxu0 0.0
    %5088 = vmatpush1.msra.mxu0 0.0
    %5089 = vmatprep.subr.mxu0 0.0
    %5090 = vmatpush1.msra.mxu0 0.0
    %5091 = vmatprep.subr.mxu0 %v2712
    %5092 = vmatpush1.msra.mxu0 %v2711
    %5093 = vmatprep.subr.mxu0 %v2710
    %5094 = vmatpush1.msra.mxu0 %v2709
    %5095 = vmatprep.subr.mxu0 %v2708
    %5096 = vmatpush1.msra.mxu0 %v2707
    %5097 = vmatprep.subr.mxu0 %v2706
    %5098 = vmatpush1.msra.mxu0 %v2705
    %5099 = vmatprep.subr.mxu0 %v2704
    %5100 = vmatpush1.msra.mxu0 %v2703
    %5101 = vmatprep.subr.mxu0 %v2702
    %5102 = vmatpush1.msra.mxu0 %v2701
    %5103 = vmatprep.subr.mxu0 %v2700
    %5104 = vmatpush1.msra.mxu0 %v2699
    %5105 = vmatprep.subr.mxu0 %v2698
    %5106 = vmatpush1.msra.mxu0 %v2697
    %5107 = vmatprep.subr.mxu0 0.0
    %5108 = vmatpush2.msra.mxu0 0.0
    %5109 = vmatprep.subr.mxu0 0.0
    %5110 = vmatpush2.msra.mxu0 0.0
    %5111 = vmatprep.subr.mxu0 0.0
    %5112 = vmatpush2.msra.mxu0 0.0
    %5113 = vmatprep.subr.mxu0 0.0
    %5114 = vmatpush2.msra.mxu0 0.0
    %5115 = vmatprep.subr.mxu0 0.0
    %5116 = vmatpush2.msra.mxu0 0.0
    %5117 = vmatprep.subr.mxu0 0.0
    %5118 = vmatpush2.msra.mxu0 0.0
    %5119 = vmatprep.subr.mxu0 0.0
    %5120 = vmatpush2.msra.mxu0 0.0
    %5121 = vmatprep.subr.mxu0 0.0
    %5122 = vmatpush2.msra.mxu0 0.0
    %5123 = vmatprep.subr.mxu0 0.0
    %5124 = vmatpush2.msra.mxu0 0.0
    %5125 = vmatprep.subr.mxu0 0.0
    %5126 = vmatpush2.msra.mxu0 0.0
    %5127 = vmatprep.subr.mxu0 0.0
    %5128 = vmatpush2.msra.mxu0 0.0
    %5129 = vmatprep.subr.mxu0 0.0
    %5130 = vmatpush2.msra.mxu0 0.0
    %5131 = vmatprep.subr.mxu0 0.0
    %5132 = vmatpush2.msra.mxu0 0.0
    %5133 = vmatprep.subr.mxu0 0.0
    %5134 = vmatpush2.msra.mxu0 0.0
    %5135 = vmatprep.subr.mxu0 0.0
    %5136 = vmatpush2.msra.mxu0 0.0
    %5137 = vmatprep.subr.mxu0 0.0
    %5138 = vmatpush2.msra.mxu0 0.0
    %5139 = vmatprep.mubr.f32.mxu0 0.0
    %5140 = vmatmul.mubr.f32.gmra.mxu0 %v5073
    %v5141 = vpop.f32.mrf.mxu0
    %v5142 = vadd.f32 %v5068, %v5141
    %v5143 = vpop.f32.mrf.mxu0
    %v5144 = vadd.f32 %v5070, %v5143
    %5145 = vdwg.mxu0
    %v5146 = vadd.f32 %v5142, %v335
    %v5147 = vadd.f32 %v5144, %v339
    %v5148 = vtanh.pop %v5146
    %v5149 = vtanh.pop %v5147
    %v5150 = vmul.f32 %v5148, 0.5
    %v5151 = vmul.f32 %v5149, 0.5
    %v5152 = vadd.f32 %v5150, 0.5
    %v5153 = vadd.f32 %v5151, 0.5
    %v5154 = vmul.f32 %v5152, %v4715
    %5156 = vrot.lane.b32.xlu0 %v5149, 64
    %v5157 = vpop.permute.xlu0 %5156
    %v5159 = vmul.f32 %v5152, %v5157
    %5161 = vrot.lane.b32.xlu0 %v5159, 64
    %v5162 = vpop.permute.xlu0 %5161
    %v5164 = vadd.f32 %v5154, %v5162
    %v5165 = vtanh.pop %v5164
    %5167 = vrot.lane.b32.xlu0 %v5165, 64
    %v5168 = vpop.permute.xlu0 %5167
    %v5170 = vmul.f32 %v5153, %v5168
    %v5172 = vsel %vm368, %v5170, 0
    %5174 = vmatprep.subr.mxu0 0.0
    %5175 = vmatpush1.msra.mxu0 0.0
    %5176 = vmatprep.subr.mxu0 0.0
    %5177 = vmatpush1.msra.mxu0 0.0
    %5178 = vmatprep.subr.mxu0 0.0
    %5179 = vmatpush1.msra.mxu0 0.0
    %5180 = vmatprep.subr.mxu0 0.0
    %5181 = vmatpush1.msra.mxu0 0.0
    %5182 = vmatprep.subr.mxu0 0.0
    %5183 = vmatpush1.msra.mxu0 0.0
    %5184 = vmatprep.subr.mxu0 0.0
    %5185 = vmatpush1.msra.mxu0 0.0
    %5186 = vmatprep.subr.mxu0 0.0
    %5187 = vmatpush1.msra.mxu0 0.0
    %5188 = vmatprep.subr.mxu0 0.0
    %5189 = vmatpush1.msra.mxu0 0.0
    %5190 = vmatprep.subr.mxu0 0.0
    %5191 = vmatpush1.msra.mxu0 %v2906
    %5192 = vmatprep.subr.mxu0 0.0
    %5193 = vmatpush1.msra.mxu0 %v2905
    %5194 = vmatprep.subr.mxu0 0.0
    %5195 = vmatpush1.msra.mxu0 %v2904
    %5196 = vmatprep.subr.mxu0 0.0
    %5197 = vmatpush1.msra.mxu0 %v2903
    %5198 = vmatprep.subr.mxu0 0.0
    %5199 = vmatpush1.msra.mxu0 %v2902
    %5200 = vmatprep.subr.mxu0 0.0
    %5201 = vmatpush1.msra.mxu0 %v2901
    %5202 = vmatprep.subr.mxu0 0.0
    %5203 = vmatpush1.msra.mxu0 %v2900
    %5204 = vmatprep.subr.mxu0 0.0
    %5205 = vmatpush1.msra.mxu0 %v2899
    %5206 = vmatprep.subr.mxu0 0.0
    %5207 = vmatpush2.msra.mxu0 0.0
    %5208 = vmatprep.subr.mxu0 0.0
    %5209 = vmatpush2.msra.mxu0 0.0
    %5210 = vmatprep.subr.mxu0 0.0
    %5211 = vmatpush2.msra.mxu0 0.0
    %5212 = vmatprep.subr.mxu0 0.0
    %5213 = vmatpush2.msra.mxu0 0.0
    %5214 = vmatprep.subr.mxu0 0.0
    %5215 = vmatpush2.msra.mxu0 0.0
    %5216 = vmatprep.subr.mxu0 0.0
    %5217 = vmatpush2.msra.mxu0 0.0
    %5218 = vmatprep.subr.mxu0 0.0
    %5219 = vmatpush2.msra.mxu0 0.0
    %5220 = vmatprep.subr.mxu0 0.0
    %5221 = vmatpush2.msra.mxu0 0.0
    %5222 = vmatprep.subr.mxu0 0.0
    %5223 = vmatpush2.msra.mxu0 0.0
    %5224 = vmatprep.subr.mxu0 0.0
    %5225 = vmatpush2.msra.mxu0 0.0
    %5226 = vmatprep.subr.mxu0 0.0
    %5227 = vmatpush2.msra.mxu0 0.0
    %5228 = vmatprep.subr.mxu0 0.0
    %5229 = vmatpush2.msra.mxu0 0.0
    %5230 = vmatprep.subr.mxu0 0.0
    %5231 = vmatpush2.msra.mxu0 0.0
    %5232 = vmatprep.subr.mxu0 0.0
    %5233 = vmatpush2.msra.mxu0 0.0
    %5234 = vmatprep.subr.mxu0 0.0
    %5235 = vmatpush2.msra.mxu0 0.0
    %5236 = vmatprep.subr.mxu0 0.0
    %5237 = vmatpush2.msra.mxu0 0.0
    %5238 = vmatprep.mubr.f32.mxu0 0.0
    %5239 = vmatmul.mubr.f32.gmra.mxu0 %v5172
    %v5240 = vpop.f32.mrf.mxu0
    %v5241 = vadd.f32 %v347, %v5240
    %v5242 = vpop.f32.mrf.mxu0
    %5243 = vdwg.mxu0
    %v5244 = vsel %vm164, %v5241, -inf
    %5245 = vmax.xlane.f32.xlu0 %v5244
    %v5246 = vpop.xlane.xlu0 %5245
    %vm5247 = vcmp.eq.f32.partialorder %v5241, %v5246
    %v5248 = vsel %vm5247, %v2568, 32
    %v5249 = vsel %vm164, %v5248, 2147483647
    %v5250 = vand.u32 %v5249, 65535
    %v5251 = vshra.s32 %v5249, 16
    %v5252 = vcvt.s32.f32 %v5250
    %v5253 = vcvt.s32.f32 %v5251
    %5254 = vmin.xlane.f32.xlu0 %v5253
    %v5255 = vpop.xlane.xlu0 %5254
    %vm5256 = vcmp.eq.f32.partialorder %v5253, %v5255
    %v5257 = vsel %vm5256, %v5252, inf
    %5258 = vmin.xlane.f32.xlu0 %v5257
    %v5259 = vpop.xlane.xlu0 %5258
    %v5260 = vcvt.f32.s32 %v5259
    %v5261 = vcvt.f32.s32 %v5255
    %v5262 = vshll.u32 %v5261, 16
    %v5263 = vadd.s32 %v5262, %v5260
    %vm5264 = vcmp.eq.s32.totalorder %v2568, %v5263
    %vm5265 = vmand %vm5264, %vm2571
    %v5266 = vsel %vm5265, 1.0, 0.0
    %v5267 = vsel %vm164, %v5266, -inf
    %v5268 = vrot.slane %v5267, 4
    %v5269 = vmax.f32 %v5267, %v5268
    %v5270 = vrot.slane %v5269, 2
    %v5271 = vmax.f32 %v5269, %v5270
    %v5272 = vrot.slane %v5271, 1
    %v5273 = vmax.f32 %v5271, %v5272
    %v5275 = vsel %vm164, %v5273, 0
    %5277 = vmatprep.subr.mxu0 0.0
    %5278 = vmatpush1.msra.mxu0 0.0
    %5279 = vmatprep.subr.mxu0 0.0
    %5280 = vmatpush1.msra.mxu0 0.0
    %5281 = vmatprep.subr.mxu0 0.0
    %5282 = vmatpush1.msra.mxu0 0.0
    %5283 = vmatprep.subr.mxu0 0.0
    %5284 = vmatpush1.msra.mxu0 0.0
    %5285 = vmatprep.subr.mxu0 0.0
    %5286 = vmatpush1.msra.mxu0 0.0
    %5287 = vmatprep.subr.mxu0 0.0
    %5288 = vmatpush1.msra.mxu0 0.0
    %5289 = vmatprep.subr.mxu0 0.0
    %5290 = vmatpush1.msra.mxu0 0.0
    %5291 = vmatprep.subr.mxu0 0.0
    %5292 = vmatpush1.msra.mxu0 0.0
    %5293 = vmatprep.subr.mxu0 0.0
    %5294 = vmatpush1.msra.mxu0 0.0
    %5295 = vmatprep.subr.mxu0 0.0
    %5296 = vmatpush1.msra.mxu0 0.0
    %5297 = vmatprep.subr.mxu0 0.0
    %5298 = vmatpush1.msra.mxu0 0.0
    %5299 = vmatprep.subr.mxu0 0.0
    %5300 = vmatpush1.msra.mxu0 0.0
    %5301 = vmatprep.subr.mxu0 %v3017
    %5302 = vmatpush1.msra.mxu0 %v3016
    %5303 = vmatprep.subr.mxu0 %v3015
    %5304 = vmatpush1.msra.mxu0 %v3014
    %5305 = vmatprep.subr.mxu0 %v3013
    %5306 = vmatpush1.msra.mxu0 %v3012
    %5307 = vmatprep.subr.mxu0 %v3011
    %5308 = vmatpush1.msra.mxu0 %v3010
    %5309 = vmatprep.subr.mxu0 0.0
    %5310 = vmatpush2.msra.mxu0 0.0
    %5311 = vmatprep.subr.mxu0 0.0
    %5312 = vmatpush2.msra.mxu0 0.0
    %5313 = vmatprep.subr.mxu0 0.0
    %5314 = vmatpush2.msra.mxu0 0.0
    %5315 = vmatprep.subr.mxu0 0.0
    %5316 = vmatpush2.msra.mxu0 0.0
    %5317 = vmatprep.subr.mxu0 0.0
    %5318 = vmatpush2.msra.mxu0 0.0
    %5319 = vmatprep.subr.mxu0 0.0
    %5320 = vmatpush2.msra.mxu0 0.0
    %5321 = vmatprep.subr.mxu0 0.0
    %5322 = vmatpush2.msra.mxu0 0.0
    %5323 = vmatprep.subr.mxu0 0.0
    %5324 = vmatpush2.msra.mxu0 0.0
    %5325 = vmatprep.subr.mxu0 0.0
    %5326 = vmatpush2.msra.mxu0 0.0
    %5327 = vmatprep.subr.mxu0 0.0
    %5328 = vmatpush2.msra.mxu0 0.0
    %5329 = vmatprep.subr.mxu0 0.0
    %5330 = vmatpush2.msra.mxu0 0.0
    %5331 = vmatprep.subr.mxu0 0.0
    %5332 = vmatpush2.msra.mxu0 0.0
    %5333 = vmatprep.subr.mxu0 0.0
    %5334 = vmatpush2.msra.mxu0 0.0
    %5335 = vmatprep.subr.mxu0 0.0
    %5336 = vmatpush2.msra.mxu0 0.0
    %5337 = vmatprep.subr.mxu0 0.0
    %5338 = vmatpush2.msra.mxu0 0.0
    %5339 = vmatprep.subr.mxu0 0.0
    %5340 = vmatpush2.msra.mxu0 0.0
    %5341 = vmatprep.mubr.f32.mxu0 0.0
    %5342 = vmatmul.mubr.f32.gmra.mxu0 %v5275
    %v5343 = vpop.f32.mrf.mxu0
    %v5344 = vadd.f32 %v3022, %v5343
    %v5345 = vpop.f32.mrf.mxu0
    %v5346 = vadd.f32 %v3026, %v5345
    %5347 = vdwg.mxu0
    %v5348 = vlaneseq
    %v5349 = vshrl.u32 %v5348, 7
    %v5350 = vsub.s32 0, %v5349
    %v5351 = vrot.slane %v5344, %v5350
    %v5352 = vlaneseq
    %v5353 = vshrl.u32 %v5352, 7
    %v5354 = vsub.s32 0, %v5353
    %v5355 = vrot.slane %v5346, %v5354
    %5356 = vmatprep.subr.mxu0 0.0
    %5357 = vmatpush1.msra.mxu0 0.0
    %5358 = vmatprep.subr.mxu0 0.0
    %5359 = vmatpush1.msra.mxu0 0.0
    %5360 = vmatprep.subr.mxu0 0.0
    %5361 = vmatpush1.msra.mxu0 0.0
    %5362 = vmatprep.subr.mxu0 0.0
    %5363 = vmatpush1.msra.mxu0 0.0
    %5364 = vmatprep.subr.mxu0 0.0
    %5365 = vmatpush1.msra.mxu0 0.0
    %5366 = vmatprep.subr.mxu0 0.0
    %5367 = vmatpush1.msra.mxu0 0.0
    %5368 = vmatprep.subr.mxu0 0.0
    %5369 = vmatpush1.msra.mxu0 0.0
    %5370 = vmatprep.subr.mxu0 0.0
    %5371 = vmatpush1.msra.mxu0 0.0
    %5372 = vmatprep.subr.mxu0 %v2588
    %5373 = vmatpush1.msra.mxu0 %v2587
    %5374 = vmatprep.subr.mxu0 %v2586
    %5375 = vmatpush1.msra.mxu0 %v2585
    %5376 = vmatprep.subr.mxu0 %v2584
    %5377 = vmatpush1.msra.mxu0 %v2583
    %5378 = vmatprep.subr.mxu0 %v2582
    %5379 = vmatpush1.msra.mxu0 %v2581
    %5380 = vmatprep.subr.mxu0 %v2580
    %5381 = vmatpush1.msra.mxu0 %v2579
    %5382 = vmatprep.subr.mxu0 %v2578
    %5383 = vmatpush1.msra.mxu0 %v2577
    %5384 = vmatprep.subr.mxu0 %v2576
    %5385 = vmatpush1.msra.mxu0 %v2575
    %5386 = vmatprep.subr.mxu0 %v2574
    %5387 = vmatpush1.msra.mxu0 %v2573
    %5388 = vmatprep.subr.mxu0 0.0
    %5389 = vmatpush2.msra.mxu0 0.0
    %5390 = vmatprep.subr.mxu0 0.0
    %5391 = vmatpush2.msra.mxu0 0.0
    %5392 = vmatprep.subr.mxu0 0.0
    %5393 = vmatpush2.msra.mxu0 0.0
    %5394 = vmatprep.subr.mxu0 0.0
    %5395 = vmatpush2.msra.mxu0 0.0
    %5396 = vmatprep.subr.mxu0 0.0
    %5397 = vmatpush2.msra.mxu0 0.0
    %5398 = vmatprep.subr.mxu0 0.0
    %5399 = vmatpush2.msra.mxu0 0.0
    %5400 = vmatprep.subr.mxu0 0.0
    %5401 = vmatpush2.msra.mxu0 0.0
    %5402 = vmatprep.subr.mxu0 0.0
    %5403 = vmatpush2.msra.mxu0 0.0
    %5404 = vmatprep.subr.mxu0 0.0
    %5405 = vmatpush2.msra.mxu0 0.0
    %5406 = vmatprep.subr.mxu0 0.0
    %5407 = vmatpush2.msra.mxu0 0.0
    %5408 = vmatprep.subr.mxu0 0.0
    %5409 = vmatpush2.msra.mxu0 0.0
    %5410 = vmatprep.subr.mxu0 0.0
    %5411 = vmatpush2.msra.mxu0 0.0
    %5412 = vmatprep.subr.mxu0 0.0
    %5413 = vmatpush2.msra.mxu0 0.0
    %5414 = vmatprep.subr.mxu0 0.0
    %5415 = vmatpush2.msra.mxu0 0.0
    %5416 = vmatprep.subr.mxu0 0.0
    %5417 = vmatpush2.msra.mxu0 0.0
    %5418 = vmatprep.subr.mxu0 0.0
    %5419 = vmatpush2.msra.mxu0 0.0
    %5420 = vmatprep.mubr.f32.mxu0 0.0
    %5421 = vmatmul.mubr.f32.gmra.mxu0 %v5073
    %v5422 = vpop.f32.mrf.mxu0
    %v5423 = vadd.f32 %v5351, %v5422
    %v5424 = vpop.f32.mrf.mxu0
    %v5425 = vadd.f32 %v5355, %v5424
    %5426 = vdwg.mxu0
    %v5427 = vtanh.pop %v5423
    %v5428 = vtanh.pop %v5425
    %v5429 = vmul.f32 %v5427, 0.5
    %v5430 = vmul.f32 %v5428, 0.5
    %v5431 = vadd.f32 %v5429, 0.5
    %v5432 = vadd.f32 %v5430, 0.5
    %v5433 = vmul.f32 %v5431, %v4994
    %5435 = vrot.lane.b32.xlu0 %v5428, 64
    %v5436 = vpop.permute.xlu0 %5435
    %v5438 = vmul.f32 %v5431, %v5436
    %5440 = vrot.lane.b32.xlu0 %v5438, 64
    %v5441 = vpop.permute.xlu0 %5440
    %v5443 = vadd.f32 %v5433, %v5441
    %v5444 = vtanh.pop %v5443
    %5446 = vrot.lane.b32.xlu0 %v5444, 64
    %v5447 = vpop.permute.xlu0 %5446
    %v5449 = vmul.f32 %v5432, %v5447
    %5450 = vmatprep.subr.mxu0 0.0
    %5451 = vmatpush1.msra.mxu0 0.0
    %5452 = vmatprep.subr.mxu0 0.0
    %5453 = vmatpush1.msra.mxu0 0.0
    %5454 = vmatprep.subr.mxu0 0.0
    %5455 = vmatpush1.msra.mxu0 0.0
    %5456 = vmatprep.subr.mxu0 0.0
    %5457 = vmatpush1.msra.mxu0 0.0
    %5458 = vmatprep.subr.mxu0 0.0
    %5459 = vmatpush1.msra.mxu0 0.0
    %5460 = vmatprep.subr.mxu0 0.0
    %5461 = vmatpush1.msra.mxu0 0.0
    %5462 = vmatprep.subr.mxu0 0.0
    %5463 = vmatpush1.msra.mxu0 0.0
    %5464 = vmatprep.subr.mxu0 0.0
    %5465 = vmatpush1.msra.mxu0 0.0
    %5466 = vmatprep.subr.mxu0 %v2728
    %5467 = vmatpush1.msra.mxu0 %v2727
    %5468 = vmatprep.subr.mxu0 %v2726
    %5469 = vmatpush1.msra.mxu0 %v2725
    %5470 = vmatprep.subr.mxu0 %v2724
    %5471 = vmatpush1.msra.mxu0 %v2723
    %5472 = vmatprep.subr.mxu0 %v2722
    %5473 = vmatpush1.msra.mxu0 %v2721
    %5474 = vmatprep.subr.mxu0 %v2720
    %5475 = vmatpush1.msra.mxu0 %v2719
    %5476 = vmatprep.subr.mxu0 %v2718
    %5477 = vmatpush1.msra.mxu0 %v2717
    %5478 = vmatprep.subr.mxu0 %v2716
    %5479 = vmatpush1.msra.mxu0 %v2715
    %5480 = vmatprep.subr.mxu0 %v2714
    %5481 = vmatpush1.msra.mxu0 %v2713
    %5482 = vmatprep.subr.mxu0 0.0
    %5483 = vmatpush2.msra.mxu0 0.0
    %5484 = vmatprep.subr.mxu0 0.0
    %5485 = vmatpush2.msra.mxu0 0.0
    %5486 = vmatprep.subr.mxu0 0.0
    %5487 = vmatpush2.msra.mxu0 0.0
    %5488 = vmatprep.subr.mxu0 0.0
    %5489 = vmatpush2.msra.mxu0 0.0
    %5490 = vmatprep.subr.mxu0 0.0
    %5491 = vmatpush2.msra.mxu0 0.0
    %5492 = vmatprep.subr.mxu0 0.0
    %5493 = vmatpush2.msra.mxu0 0.0
    %5494 = vmatprep.subr.mxu0 0.0
    %5495 = vmatpush2.msra.mxu0 0.0
    %5496 = vmatprep.subr.mxu0 0.0
    %5497 = vmatpush2.msra.mxu0 0.0
    %5498 = vmatprep.subr.mxu0 0.0
    %5499 = vmatpush2.msra.mxu0 0.0
    %5500 = vmatprep.subr.mxu0 0.0
    %5501 = vmatpush2.msra.mxu0 0.0
    %5502 = vmatprep.subr.mxu0 0.0
    %5503 = vmatpush2.msra.mxu0 0.0
    %5504 = vmatprep.subr.mxu0 0.0
    %5505 = vmatpush2.msra.mxu0 0.0
    %5506 = vmatprep.subr.mxu0 0.0
    %5507 = vmatpush2.msra.mxu0 0.0
    %5508 = vmatprep.subr.mxu0 0.0
    %5509 = vmatpush2.msra.mxu0 0.0
    %5510 = vmatprep.subr.mxu0 0.0
    %5511 = vmatpush2.msra.mxu0 0.0
    %5512 = vmatprep.subr.mxu0 0.0
    %5513 = vmatpush2.msra.mxu0 0.0
    %5514 = vmatprep.mubr.f32.mxu0 0.0
    %5515 = vmatmul.mubr.f32.gmra.mxu0 %v5172
    %v5516 = vpop.f32.mrf.mxu0
    %v5517 = vadd.f32 0.0, %v5516
    %v5518 = vpop.f32.mrf.mxu0
    %v5519 = vadd.f32 0.0, %v5518
    %5520 = vdwg.mxu0
    %v5522 = vsel %vm368, %v5449, 0
    %5524 = vmatprep.subr.mxu0 0.0
    %5525 = vmatpush1.msra.mxu0 0.0
    %5526 = vmatprep.subr.mxu0 0.0
    %5527 = vmatpush1.msra.mxu0 0.0
    %5528 = vmatprep.subr.mxu0 0.0
    %5529 = vmatpush1.msra.mxu0 0.0
    %5530 = vmatprep.subr.mxu0 0.0
    %5531 = vmatpush1.msra.mxu0 0.0
    %5532 = vmatprep.subr.mxu0 0.0
    %5533 = vmatpush1.msra.mxu0 0.0
    %5534 = vmatprep.subr.mxu0 0.0
    %5535 = vmatpush1.msra.mxu0 0.0
    %5536 = vmatprep.subr.mxu0 0.0
    %5537 = vmatpush1.msra.mxu0 0.0
    %5538 = vmatprep.subr.mxu0 0.0
    %5539 = vmatpush1.msra.mxu0 0.0
    %5540 = vmatprep.subr.mxu0 %v2712
    %5541 = vmatpush1.msra.mxu0 %v2711
    %5542 = vmatprep.subr.mxu0 %v2710
    %5543 = vmatpush1.msra.mxu0 %v2709
    %5544 = vmatprep.subr.mxu0 %v2708
    %5545 = vmatpush1.msra.mxu0 %v2707
    %5546 = vmatprep.subr.mxu0 %v2706
    %5547 = vmatpush1.msra.mxu0 %v2705
    %5548 = vmatprep.subr.mxu0 %v2704
    %5549 = vmatpush1.msra.mxu0 %v2703
    %5550 = vmatprep.subr.mxu0 %v2702
    %5551 = vmatpush1.msra.mxu0 %v2701
    %5552 = vmatprep.subr.mxu0 %v2700
    %5553 = vmatpush1.msra.mxu0 %v2699
    %5554 = vmatprep.subr.mxu0 %v2698
    %5555 = vmatpush1.msra.mxu0 %v2697
    %5556 = vmatprep.subr.mxu0 0.0
    %5557 = vmatpush2.msra.mxu0 0.0
    %5558 = vmatprep.subr.mxu0 0.0
    %5559 = vmatpush2.msra.mxu0 0.0
    %5560 = vmatprep.subr.mxu0 0.0
    %5561 = vmatpush2.msra.mxu0 0.0
    %5562 = vmatprep.subr.mxu0 0.0
    %5563 = vmatpush2.msra.mxu0 0.0
    %5564 = vmatprep.subr.mxu0 0.0
    %5565 = vmatpush2.msra.mxu0 0.0
    %5566 = vmatprep.subr.mxu0 0.0
    %5567 = vmatpush2.msra.mxu0 0.0
    %5568 = vmatprep.subr.mxu0 0.0
    %5569 = vmatpush2.msra.mxu0 0.0
    %5570 = vmatprep.subr.mxu0 0.0
    %5571 = vmatpush2.msra.mxu0 0.0
    %5572 = vmatprep.subr.mxu0 0.0
    %5573 = vmatpush2.msra.mxu0 0.0
    %5574 = vmatprep.subr.mxu0 0.0
    %5575 = vmatpush2.msra.mxu0 0.0
    %5576 = vmatprep.subr.mxu0 0.0
    %5577 = vmatpush2.msra.mxu0 0.0
    %5578 = vmatprep.subr.mxu0 0.0
    %5579 = vmatpush2.msra.mxu0 0.0
    %5580 = vmatprep.subr.mxu0 0.0
    %5581 = vmatpush2.msra.mxu0 0.0
    %5582 = vmatprep.subr.mxu0 0.0
    %5583 = vmatpush2.msra.mxu0 0.0
    %5584 = vmatprep.subr.mxu0 0.0
    %5585 = vmatpush2.msra.mxu0 0.0
    %5586 = vmatprep.subr.mxu0 0.0
    %5587 = vmatpush2.msra.mxu0 0.0
    %5588 = vmatprep.mubr.f32.mxu0 0.0
    %5589 = vmatmul.mubr.f32.gmra.mxu0 %v5522
    %v5590 = vpop.f32.mrf.mxu0
    %v5591 = vadd.f32 %v5517, %v5590
    %v5592 = vpop.f32.mrf.mxu0
    %v5593 = vadd.f32 %v5519, %v5592
    %5594 = vdwg.mxu0
    %v5595 = vadd.f32 %v5591, %v335
    %v5596 = vadd.f32 %v5593, %v339
    %v5597 = vtanh.pop %v5595
    %v5598 = vtanh.pop %v5596
    %v5599 = vmul.f32 %v5597, 0.5
    %v5600 = vmul.f32 %v5598, 0.5
    %v5601 = vadd.f32 %v5599, 0.5
    %v5602 = vadd.f32 %v5600, 0.5
    %v5603 = vmul.f32 %v5601, %v5164
    %5605 = vrot.lane.b32.xlu0 %v5598, 64
    %v5606 = vpop.permute.xlu0 %5605
    %v5608 = vmul.f32 %v5601, %v5606
    %5610 = vrot.lane.b32.xlu0 %v5608, 64
    %v5611 = vpop.permute.xlu0 %5610
    %v5613 = vadd.f32 %v5603, %v5611
    %v5614 = vtanh.pop %v5613
    %5616 = vrot.lane.b32.xlu0 %v5614, 64
    %v5617 = vpop.permute.xlu0 %5616
    %v5619 = vmul.f32 %v5602, %v5617
    %v5621 = vsel %vm368, %v5619, 0
    %5623 = vmatprep.subr.mxu0 0.0
    %5624 = vmatpush1.msra.mxu0 0.0
    %5625 = vmatprep.subr.mxu0 0.0
    %5626 = vmatpush1.msra.mxu0 0.0
    %5627 = vmatprep.subr.mxu0 0.0
    %5628 = vmatpush1.msra.mxu0 0.0
    %5629 = vmatprep.subr.mxu0 0.0
    %5630 = vmatpush1.msra.mxu0 0.0
    %5631 = vmatprep.subr.mxu0 0.0
    %5632 = vmatpush1.msra.mxu0 0.0
    %5633 = vmatprep.subr.mxu0 0.0
    %5634 = vmatpush1.msra.mxu0 0.0
    %5635 = vmatprep.subr.mxu0 0.0
    %5636 = vmatpush1.msra.mxu0 0.0
    %5637 = vmatprep.subr.mxu0 0.0
    %5638 = vmatpush1.msra.mxu0 0.0
    %5639 = vmatprep.subr.mxu0 0.0
    %5640 = vmatpush1.msra.mxu0 %v2906
    %5641 = vmatprep.subr.mxu0 0.0
    %5642 = vmatpush1.msra.mxu0 %v2905
    %5643 = vmatprep.subr.mxu0 0.0
    %5644 = vmatpush1.msra.mxu0 %v2904
    %5645 = vmatprep.subr.mxu0 0.0
    %5646 = vmatpush1.msra.mxu0 %v2903
    %5647 = vmatprep.subr.mxu0 0.0
    %5648 = vmatpush1.msra.mxu0 %v2902
    %5649 = vmatprep.subr.mxu0 0.0
    %5650 = vmatpush1.msra.mxu0 %v2901
    %5651 = vmatprep.subr.mxu0 0.0
    %5652 = vmatpush1.msra.mxu0 %v2900
    %5653 = vmatprep.subr.mxu0 0.0
    %5654 = vmatpush1.msra.mxu0 %v2899
    %5655 = vmatprep.subr.mxu0 0.0
    %5656 = vmatpush2.msra.mxu0 0.0
    %5657 = vmatprep.subr.mxu0 0.0
    %5658 = vmatpush2.msra.mxu0 0.0
    %5659 = vmatprep.subr.mxu0 0.0
    %5660 = vmatpush2.msra.mxu0 0.0
    %5661 = vmatprep.subr.mxu0 0.0
    %5662 = vmatpush2.msra.mxu0 0.0
    %5663 = vmatprep.subr.mxu0 0.0
    %5664 = vmatpush2.msra.mxu0 0.0
    %5665 = vmatprep.subr.mxu0 0.0
    %5666 = vmatpush2.msra.mxu0 0.0
    %5667 = vmatprep.subr.mxu0 0.0
    %5668 = vmatpush2.msra.mxu0 0.0
    %5669 = vmatprep.subr.mxu0 0.0
    %5670 = vmatpush2.msra.mxu0 0.0
    %5671 = vmatprep.subr.mxu0 0.0
    %5672 = vmatpush2.msra.mxu0 0.0
    %5673 = vmatprep.subr.mxu0 0.0
    %5674 = vmatpush2.msra.mxu0 0.0
    %5675 = vmatprep.subr.mxu0 0.0
    %5676 = vmatpush2.msra.mxu0 0.0
    %5677 = vmatprep.subr.mxu0 0.0
    %5678 = vmatpush2.msra.mxu0 0.0
    %5679 = vmatprep.subr.mxu0 0.0
    %5680 = vmatpush2.msra.mxu0 0.0
    %5681 = vmatprep.subr.mxu0 0.0
    %5682 = vmatpush2.msra.mxu0 0.0
    %5683 = vmatprep.subr.mxu0 0.0
    %5684 = vmatpush2.msra.mxu0 0.0
    %5685 = vmatprep.subr.mxu0 0.0
    %5686 = vmatpush2.msra.mxu0 0.0
    %5687 = vmatprep.mubr.f32.mxu0 0.0
    %5688 = vmatmul.mubr.f32.gmra.mxu0 %v5621
    %v5689 = vpop.f32.mrf.mxu0
    %v5690 = vadd.f32 %v347, %v5689
    %v5691 = vpop.f32.mrf.mxu0
    %5692 = vdwg.mxu0
    %v5693 = vsel %vm164, %v5690, -inf
    %5694 = vmax.xlane.f32.xlu0 %v5693
    %v5695 = vpop.xlane.xlu0 %5694
    %vm5696 = vcmp.eq.f32.partialorder %v5690, %v5695
    %v5697 = vsel %vm5696, %v2568, 32
    %v5698 = vsel %vm164, %v5697, 2147483647
    %v5699 = vand.u32 %v5698, 65535
    %v5700 = vshra.s32 %v5698, 16
    %v5701 = vcvt.s32.f32 %v5699
    %v5702 = vcvt.s32.f32 %v5700
    %5703 = vmin.xlane.f32.xlu0 %v5702
    %v5704 = vpop.xlane.xlu0 %5703
    %vm5705 = vcmp.eq.f32.partialorder %v5702, %v5704
    %v5706 = vsel %vm5705, %v5701, inf
    %5707 = vmin.xlane.f32.xlu0 %v5706
    %v5708 = vpop.xlane.xlu0 %5707
    %v5709 = vcvt.f32.s32 %v5708
    %v5710 = vcvt.f32.s32 %v5704
    %v5711 = vshll.u32 %v5710, 16
    %v5712 = vadd.s32 %v5711, %v5709
    %vm5713 = vcmp.eq.s32.totalorder %v2568, %v5712
    %vm5714 = vmand %vm5713, %vm2571
    %v5715 = vsel %vm5714, 1.0, 0.0
    %v5716 = vsel %vm164, %v5715, -inf
    %v5717 = vrot.slane %v5716, 4
    %v5718 = vmax.f32 %v5716, %v5717
    %v5719 = vrot.slane %v5718, 2
    %v5720 = vmax.f32 %v5718, %v5719
    %v5721 = vrot.slane %v5720, 1
    %v5722 = vmax.f32 %v5720, %v5721
    %v5724 = vsel %vm164, %v5722, 0
    %5726 = vmatprep.subr.mxu0 0.0
    %5727 = vmatpush1.msra.mxu0 0.0
    %5728 = vmatprep.subr.mxu0 0.0
    %5729 = vmatpush1.msra.mxu0 0.0
    %5730 = vmatprep.subr.mxu0 0.0
    %5731 = vmatpush1.msra.mxu0 0.0
    %5732 = vmatprep.subr.mxu0 0.0
    %5733 = vmatpush1.msra.mxu0 0.0
    %5734 = vmatprep.subr.mxu0 0.0
    %5735 = vmatpush1.msra.mxu0 0.0
    %5736 = vmatprep.subr.mxu0 0.0
    %5737 = vmatpush1.msra.mxu0 0.0
    %5738 = vmatprep.subr.mxu0 0.0
    %5739 = vmatpush1.msra.mxu0 0.0
    %5740 = vmatprep.subr.mxu0 0.0
    %5741 = vmatpush1.msra.mxu0 0.0
    %5742 = vmatprep.subr.mxu0 0.0
    %5743 = vmatpush1.msra.mxu0 0.0
    %5744 = vmatprep.subr.mxu0 0.0
    %5745 = vmatpush1.msra.mxu0 0.0
    %5746 = vmatprep.subr.mxu0 0.0
    %5747 = vmatpush1.msra.mxu0 0.0
    %5748 = vmatprep.subr.mxu0 0.0
    %5749 = vmatpush1.msra.mxu0 0.0
    %5750 = vmatprep.subr.mxu0 %v3017
    %5751 = vmatpush1.msra.mxu0 %v3016
    %5752 = vmatprep.subr.mxu0 %v3015
    %5753 = vmatpush1.msra.mxu0 %v3014
    %5754 = vmatprep.subr.mxu0 %v3013
    %5755 = vmatpush1.msra.mxu0 %v3012
    %5756 = vmatprep.subr.mxu0 %v3011
    %5757 = vmatpush1.msra.mxu0 %v3010
    %5758 = vmatprep.subr.mxu0 0.0
    %5759 = vmatpush2.msra.mxu0 0.0
    %5760 = vmatprep.subr.mxu0 0.0
    %5761 = vmatpush2.msra.mxu0 0.0
    %5762 = vmatprep.subr.mxu0 0.0
    %5763 = vmatpush2.msra.mxu0 0.0
    %5764 = vmatprep.subr.mxu0 0.0
    %5765 = vmatpush2.msra.mxu0 0.0
    %5766 = vmatprep.subr.mxu0 0.0
    %5767 = vmatpush2.msra.mxu0 0.0
    %5768 = vmatprep.subr.mxu0 0.0
    %5769 = vmatpush2.msra.mxu0 0.0
    %5770 = vmatprep.subr.mxu0 0.0
    %5771 = vmatpush2.msra.mxu0 0.0
    %5772 = vmatprep.subr.mxu0 0.0
    %5773 = vmatpush2.msra.mxu0 0.0
    %5774 = vmatprep.subr.mxu0 0.0
    %5775 = vmatpush2.msra.mxu0 0.0
    %5776 = vmatprep.subr.mxu0 0.0
    %5777 = vmatpush2.msra.mxu0 0.0
    %5778 = vmatprep.subr.mxu0 0.0
    %5779 = vmatpush2.msra.mxu0 0.0
    %5780 = vmatprep.subr.mxu0 0.0
    %5781 = vmatpush2.msra.mxu0 0.0
    %5782 = vmatprep.subr.mxu0 0.0
    %5783 = vmatpush2.msra.mxu0 0.0
    %5784 = vmatprep.subr.mxu0 0.0
    %5785 = vmatpush2.msra.mxu0 0.0
    %5786 = vmatprep.subr.mxu0 0.0
    %5787 = vmatpush2.msra.mxu0 0.0
    %5788 = vmatprep.subr.mxu0 0.0
    %5789 = vmatpush2.msra.mxu0 0.0
    %5790 = vmatprep.mubr.f32.mxu0 0.0
    %5791 = vmatmul.mubr.f32.gmra.mxu0 %v5724
    %v5792 = vpop.f32.mrf.mxu0
    %v5793 = vadd.f32 %v3022, %v5792
    %v5794 = vpop.f32.mrf.mxu0
    %v5795 = vadd.f32 %v3026, %v5794
    %5796 = vdwg.mxu0
    %v5797 = vlaneseq
    %v5798 = vshrl.u32 %v5797, 7
    %v5799 = vsub.s32 0, %v5798
    %v5800 = vrot.slane %v5793, %v5799
    %v5801 = vlaneseq
    %v5802 = vshrl.u32 %v5801, 7
    %v5803 = vsub.s32 0, %v5802
    %v5804 = vrot.slane %v5795, %v5803
    %5805 = vmatprep.subr.mxu0 0.0
    %5806 = vmatpush1.msra.mxu0 0.0
    %5807 = vmatprep.subr.mxu0 0.0
    %5808 = vmatpush1.msra.mxu0 0.0
    %5809 = vmatprep.subr.mxu0 0.0
    %5810 = vmatpush1.msra.mxu0 0.0
    %5811 = vmatprep.subr.mxu0 0.0
    %5812 = vmatpush1.msra.mxu0 0.0
    %5813 = vmatprep.subr.mxu0 0.0
    %5814 = vmatpush1.msra.mxu0 0.0
    %5815 = vmatprep.subr.mxu0 0.0
    %5816 = vmatpush1.msra.mxu0 0.0
    %5817 = vmatprep.subr.mxu0 0.0
    %5818 = vmatpush1.msra.mxu0 0.0
    %5819 = vmatprep.subr.mxu0 0.0
    %5820 = vmatpush1.msra.mxu0 0.0
    %5821 = vmatprep.subr.mxu0 %v2588
    %5822 = vmatpush1.msra.mxu0 %v2587
    %5823 = vmatprep.subr.mxu0 %v2586
    %5824 = vmatpush1.msra.mxu0 %v2585
    %5825 = vmatprep.subr.mxu0 %v2584
    %5826 = vmatpush1.msra.mxu0 %v2583
    %5827 = vmatprep.subr.mxu0 %v2582
    %5828 = vmatpush1.msra.mxu0 %v2581
    %5829 = vmatprep.subr.mxu0 %v2580
    %5830 = vmatpush1.msra.mxu0 %v2579
    %5831 = vmatprep.subr.mxu0 %v2578
    %5832 = vmatpush1.msra.mxu0 %v2577
    %5833 = vmatprep.subr.mxu0 %v2576
    %5834 = vmatpush1.msra.mxu0 %v2575
    %5835 = vmatprep.subr.mxu0 %v2574
    %5836 = vmatpush1.msra.mxu0 %v2573
    %5837 = vmatprep.subr.mxu0 0.0
    %5838 = vmatpush2.msra.mxu0 0.0
    %5839 = vmatprep.subr.mxu0 0.0
    %5840 = vmatpush2.msra.mxu0 0.0
    %5841 = vmatprep.subr.mxu0 0.0
    %5842 = vmatpush2.msra.mxu0 0.0
    %5843 = vmatprep.subr.mxu0 0.0
    %5844 = vmatpush2.msra.mxu0 0.0
    %5845 = vmatprep.subr.mxu0 0.0
    %5846 = vmatpush2.msra.mxu0 0.0
    %5847 = vmatprep.subr.mxu0 0.0
    %5848 = vmatpush2.msra.mxu0 0.0
    %5849 = vmatprep.subr.mxu0 0.0
    %5850 = vmatpush2.msra.mxu0 0.0
    %5851 = vmatprep.subr.mxu0 0.0
    %5852 = vmatpush2.msra.mxu0 0.0
    %5853 = vmatprep.subr.mxu0 0.0
    %5854 = vmatpush2.msra.mxu0 0.0
    %5855 = vmatprep.subr.mxu0 0.0
    %5856 = vmatpush2.msra.mxu0 0.0
    %5857 = vmatprep.subr.mxu0 0.0
    %5858 = vmatpush2.msra.mxu0 0.0
    %5859 = vmatprep.subr.mxu0 0.0
    %5860 = vmatpush2.msra.mxu0 0.0
    %5861 = vmatprep.subr.mxu0 0.0
    %5862 = vmatpush2.msra.mxu0 0.0
    %5863 = vmatprep.subr.mxu0 0.0
    %5864 = vmatpush2.msra.mxu0 0.0
    %5865 = vmatprep.subr.mxu0 0.0
    %5866 = vmatpush2.msra.mxu0 0.0
    %5867 = vmatprep.subr.mxu0 0.0
    %5868 = vmatpush2.msra.mxu0 0.0
    %5869 = vmatprep.mubr.f32.mxu0 0.0
    %5870 = vmatmul.mubr.f32.gmra.mxu0 %v5522
    %v5871 = vpop.f32.mrf.mxu0
    %v5872 = vadd.f32 %v5800, %v5871
    %v5873 = vpop.f32.mrf.mxu0
    %v5874 = vadd.f32 %v5804, %v5873
    %5875 = vdwg.mxu0
    %v5876 = vtanh.pop %v5872
    %v5877 = vtanh.pop %v5874
    %v5878 = vmul.f32 %v5876, 0.5
    %v5879 = vmul.f32 %v5877, 0.5
    %v5880 = vadd.f32 %v5878, 0.5
    %v5881 = vadd.f32 %v5879, 0.5
    %v5882 = vmul.f32 %v5880, %v5443
    %5884 = vrot.lane.b32.xlu0 %v5877, 64
    %v5885 = vpop.permute.xlu0 %5884
    %v5887 = vmul.f32 %v5880, %v5885
    %5889 = vrot.lane.b32.xlu0 %v5887, 64
    %v5890 = vpop.permute.xlu0 %5889
    %v5892 = vadd.f32 %v5882, %v5890
    %v5893 = vtanh.pop %v5892
    %5895 = vrot.lane.b32.xlu0 %v5893, 64
    %v5896 = vpop.permute.xlu0 %5895
    %v5898 = vmul.f32 %v5881, %v5896
    %5899 = vmatprep.subr.mxu0 0.0
    %5900 = vmatpush1.msra.mxu0 0.0
    %5901 = vmatprep.subr.mxu0 0.0
    %5902 = vmatpush1.msra.mxu0 0.0
    %5903 = vmatprep.subr.mxu0 0.0
    %5904 = vmatpush1.msra.mxu0 0.0
    %5905 = vmatprep.subr.mxu0 0.0
    %5906 = vmatpush1.msra.mxu0 0.0
    %5907 = vmatprep.subr.mxu0 0.0
    %5908 = vmatpush1.msra.mxu0 0.0
    %5909 = vmatprep.subr.mxu0 0.0
    %5910 = vmatpush1.msra.mxu0 0.0
    %5911 = vmatprep.subr.mxu0 0.0
    %5912 = vmatpush1.msra.mxu0 0.0
    %5913 = vmatprep.subr.mxu0 0.0
    %5914 = vmatpush1.msra.mxu0 0.0
    %5915 = vmatprep.subr.mxu0 %v2728
    %5916 = vmatpush1.msra.mxu0 %v2727
    %5917 = vmatprep.subr.mxu0 %v2726
    %5918 = vmatpush1.msra.mxu0 %v2725
    %5919 = vmatprep.subr.mxu0 %v2724
    %5920 = vmatpush1.msra.mxu0 %v2723
    %5921 = vmatprep.subr.mxu0 %v2722
    %5922 = vmatpush1.msra.mxu0 %v2721
    %5923 = vmatprep.subr.mxu0 %v2720
    %5924 = vmatpush1.msra.mxu0 %v2719
    %5925 = vmatprep.subr.mxu0 %v2718
    %5926 = vmatpush1.msra.mxu0 %v2717
    %5927 = vmatprep.subr.mxu0 %v2716
    %5928 = vmatpush1.msra.mxu0 %v2715
    %5929 = vmatprep.subr.mxu0 %v2714
    %5930 = vmatpush1.msra.mxu0 %v2713
    %5931 = vmatprep.subr.mxu0 0.0
    %5932 = vmatpush2.msra.mxu0 0.0
    %5933 = vmatprep.subr.mxu0 0.0
    %5934 = vmatpush2.msra.mxu0 0.0
    %5935 = vmatprep.subr.mxu0 0.0
    %5936 = vmatpush2.msra.mxu0 0.0
    %5937 = vmatprep.subr.mxu0 0.0
    %5938 = vmatpush2.msra.mxu0 0.0
    %5939 = vmatprep.subr.mxu0 0.0
    %5940 = vmatpush2.msra.mxu0 0.0
    %5941 = vmatprep.subr.mxu0 0.0
    %5942 = vmatpush2.msra.mxu0 0.0
    %5943 = vmatprep.subr.mxu0 0.0
    %5944 = vmatpush2.msra.mxu0 0.0
    %5945 = vmatprep.subr.mxu0 0.0
    %5946 = vmatpush2.msra.mxu0 0.0
    %5947 = vmatprep.subr.mxu0 0.0
    %5948 = vmatpush2.msra.mxu0 0.0
    %5949 = vmatprep.subr.mxu0 0.0
    %5950 = vmatpush2.msra.mxu0 0.0
    %5951 = vmatprep.subr.mxu0 0.0
    %5952 = vmatpush2.msra.mxu0 0.0
    %5953 = vmatprep.subr.mxu0 0.0
    %5954 = vmatpush2.msra.mxu0 0.0
    %5955 = vmatprep.subr.mxu0 0.0
    %5956 = vmatpush2.msra.mxu0 0.0
    %5957 = vmatprep.subr.mxu0 0.0
    %5958 = vmatpush2.msra.mxu0 0.0
    %5959 = vmatprep.subr.mxu0 0.0
    %5960 = vmatpush2.msra.mxu0 0.0
    %5961 = vmatprep.subr.mxu0 0.0
    %5962 = vmatpush2.msra.mxu0 0.0
    %5963 = vmatprep.mubr.f32.mxu0 0.0
    %5964 = vmatmul.mubr.f32.gmra.mxu0 %v5621
    %v5965 = vpop.f32.mrf.mxu0
    %v5966 = vadd.f32 0.0, %v5965
    %v5967 = vpop.f32.mrf.mxu0
    %v5968 = vadd.f32 0.0, %v5967
    %5969 = vdwg.mxu0
    %v5971 = vsel %vm368, %v5898, 0
    %5973 = vmatprep.subr.mxu0 0.0
    %5974 = vmatpush1.msra.mxu0 0.0
    %5975 = vmatprep.subr.mxu0 0.0
    %5976 = vmatpush1.msra.mxu0 0.0
    %5977 = vmatprep.subr.mxu0 0.0
    %5978 = vmatpush1.msra.mxu0 0.0
    %5979 = vmatprep.subr.mxu0 0.0
    %5980 = vmatpush1.msra.mxu0 0.0
    %5981 = vmatprep.subr.mxu0 0.0
    %5982 = vmatpush1.msra.mxu0 0.0
    %5983 = vmatprep.subr.mxu0 0.0
    %5984 = vmatpush1.msra.mxu0 0.0
    %5985 = vmatprep.subr.mxu0 0.0
    %5986 = vmatpush1.msra.mxu0 0.0
    %5987 = vmatprep.subr.mxu0 0.0
    %5988 = vmatpush1.msra.mxu0 0.0
    %5989 = vmatprep.subr.mxu0 %v2712
    %5990 = vmatpush1.msra.mxu0 %v2711
    %5991 = vmatprep.subr.mxu0 %v2710
    %5992 = vmatpush1.msra.mxu0 %v2709
    %5993 = vmatprep.subr.mxu0 %v2708
    %5994 = vmatpush1.msra.mxu0 %v2707
    %5995 = vmatprep.subr.mxu0 %v2706
    %5996 = vmatpush1.msra.mxu0 %v2705
    %5997 = vmatprep.subr.mxu0 %v2704
    %5998 = vmatpush1.msra.mxu0 %v2703
    %5999 = vmatprep.subr.mxu0 %v2702
    %6000 = vmatpush1.msra.mxu0 %v2701
    %6001 = vmatprep.subr.mxu0 %v2700
    %6002 = vmatpush1.msra.mxu0 %v2699
    %6003 = vmatprep.subr.mxu0 %v2698
    %6004 = vmatpush1.msra.mxu0 %v2697
    %6005 = vmatprep.subr.mxu0 0.0
    %6006 = vmatpush2.msra.mxu0 0.0
    %6007 = vmatprep.subr.mxu0 0.0
    %6008 = vmatpush2.msra.mxu0 0.0
    %6009 = vmatprep.subr.mxu0 0.0
    %6010 = vmatpush2.msra.mxu0 0.0
    %6011 = vmatprep.subr.mxu0 0.0
    %6012 = vmatpush2.msra.mxu0 0.0
    %6013 = vmatprep.subr.mxu0 0.0
    %6014 = vmatpush2.msra.mxu0 0.0
    %6015 = vmatprep.subr.mxu0 0.0
    %6016 = vmatpush2.msra.mxu0 0.0
    %6017 = vmatprep.subr.mxu0 0.0
    %6018 = vmatpush2.msra.mxu0 0.0
    %6019 = vmatprep.subr.mxu0 0.0
    %6020 = vmatpush2.msra.mxu0 0.0
    %6021 = vmatprep.subr.mxu0 0.0
    %6022 = vmatpush2.msra.mxu0 0.0
    %6023 = vmatprep.subr.mxu0 0.0
    %6024 = vmatpush2.msra.mxu0 0.0
    %6025 = vmatprep.subr.mxu0 0.0
    %6026 = vmatpush2.msra.mxu0 0.0
    %6027 = vmatprep.subr.mxu0 0.0
    %6028 = vmatpush2.msra.mxu0 0.0
    %6029 = vmatprep.subr.mxu0 0.0
    %6030 = vmatpush2.msra.mxu0 0.0
    %6031 = vmatprep.subr.mxu0 0.0
    %6032 = vmatpush2.msra.mxu0 0.0
    %6033 = vmatprep.subr.mxu0 0.0
    %6034 = vmatpush2.msra.mxu0 0.0
    %6035 = vmatprep.subr.mxu0 0.0
    %6036 = vmatpush2.msra.mxu0 0.0
    %6037 = vmatprep.mubr.f32.mxu0 0.0
    %6038 = vmatmul.mubr.f32.gmra.mxu0 %v5971
    %v6039 = vpop.f32.mrf.mxu0
    %v6040 = vadd.f32 %v5966, %v6039
    %v6041 = vpop.f32.mrf.mxu0
    %v6042 = vadd.f32 %v5968, %v6041
    %6043 = vdwg.mxu0
    %v6044 = vadd.f32 %v6040, %v335
    %v6045 = vadd.f32 %v6042, %v339
    %v6046 = vtanh.pop %v6044
    %v6047 = vtanh.pop %v6045
    %v6048 = vmul.f32 %v6046, 0.5
    %v6049 = vmul.f32 %v6047, 0.5
    %v6050 = vadd.f32 %v6048, 0.5
    %v6051 = vadd.f32 %v6049, 0.5
    %v6052 = vmul.f32 %v6050, %v5613
    %6054 = vrot.lane.b32.xlu0 %v6047, 64
    %v6055 = vpop.permute.xlu0 %6054
    %v6057 = vmul.f32 %v6050, %v6055
    %6059 = vrot.lane.b32.xlu0 %v6057, 64
    %v6060 = vpop.permute.xlu0 %6059
    %v6062 = vadd.f32 %v6052, %v6060
    %v6063 = vtanh.pop %v6062
    %6065 = vrot.lane.b32.xlu0 %v6063, 64
    %v6066 = vpop.permute.xlu0 %6065
    %v6068 = vmul.f32 %v6051, %v6066
    %v6070 = vsel %vm368, %v6068, 0
    %6072 = vmatprep.subr.mxu0 0.0
    %6073 = vmatpush1.msra.mxu0 0.0
    %6074 = vmatprep.subr.mxu0 0.0
    %6075 = vmatpush1.msra.mxu0 0.0
    %6076 = vmatprep.subr.mxu0 0.0
    %6077 = vmatpush1.msra.mxu0 0.0
    %6078 = vmatprep.subr.mxu0 0.0
    %6079 = vmatpush1.msra.mxu0 0.0
    %6080 = vmatprep.subr.mxu0 0.0
    %6081 = vmatpush1.msra.mxu0 0.0
    %6082 = vmatprep.subr.mxu0 0.0
    %6083 = vmatpush1.msra.mxu0 0.0
    %6084 = vmatprep.subr.mxu0 0.0
    %6085 = vmatpush1.msra.mxu0 0.0
    %6086 = vmatprep.subr.mxu0 0.0
    %6087 = vmatpush1.msra.mxu0 0.0
    %6088 = vmatprep.subr.mxu0 0.0
    %6089 = vmatpush1.msra.mxu0 %v2906
    %6090 = vmatprep.subr.mxu0 0.0
    %6091 = vmatpush1.msra.mxu0 %v2905
    %6092 = vmatprep.subr.mxu0 0.0
    %6093 = vmatpush1.msra.mxu0 %v2904
    %6094 = vmatprep.subr.mxu0 0.0
    %6095 = vmatpush1.msra.mxu0 %v2903
    %6096 = vmatprep.subr.mxu0 0.0
    %6097 = vmatpush1.msra.mxu0 %v2902
    %6098 = vmatprep.subr.mxu0 0.0
    %6099 = vmatpush1.msra.mxu0 %v2901
    %6100 = vmatprep.subr.mxu0 0.0
    %6101 = vmatpush1.msra.mxu0 %v2900
    %6102 = vmatprep.subr.mxu0 0.0
    %6103 = vmatpush1.msra.mxu0 %v2899
    %6104 = vmatprep.subr.mxu0 0.0
    %6105 = vmatpush2.msra.mxu0 0.0
    %6106 = vmatprep.subr.mxu0 0.0
    %6107 = vmatpush2.msra.mxu0 0.0
    %6108 = vmatprep.subr.mxu0 0.0
    %6109 = vmatpush2.msra.mxu0 0.0
    %6110 = vmatprep.subr.mxu0 0.0
    %6111 = vmatpush2.msra.mxu0 0.0
    %6112 = vmatprep.subr.mxu0 0.0
    %6113 = vmatpush2.msra.mxu0 0.0
    %6114 = vmatprep.subr.mxu0 0.0
    %6115 = vmatpush2.msra.mxu0 0.0
    %6116 = vmatprep.subr.mxu0 0.0
    %6117 = vmatpush2.msra.mxu0 0.0
    %6118 = vmatprep.subr.mxu0 0.0
    %6119 = vmatpush2.msra.mxu0 0.0
    %6120 = vmatprep.subr.mxu0 0.0
    %6121 = vmatpush2.msra.mxu0 0.0
    %6122 = vmatprep.subr.mxu0 0.0
    %6123 = vmatpush2.msra.mxu0 0.0
    %6124 = vmatprep.subr.mxu0 0.0
    %6125 = vmatpush2.msra.mxu0 0.0
    %6126 = vmatprep.subr.mxu0 0.0
    %6127 = vmatpush2.msra.mxu0 0.0
    %6128 = vmatprep.subr.mxu0 0.0
    %6129 = vmatpush2.msra.mxu0 0.0
    %6130 = vmatprep.subr.mxu0 0.0
    %6131 = vmatpush2.msra.mxu0 0.0
    %6132 = vmatprep.subr.mxu0 0.0
    %6133 = vmatpush2.msra.mxu0 0.0
    %6134 = vmatprep.subr.mxu0 0.0
    %6135 = vmatpush2.msra.mxu0 0.0
    %6136 = vmatprep.mubr.f32.mxu0 0.0
    %6137 = vmatmul.mubr.f32.gmra.mxu0 %v6070
    %v6138 = vpop.f32.mrf.mxu0
    %v6139 = vadd.f32 %v347, %v6138
    %v6140 = vpop.f32.mrf.mxu0
    %6141 = vdwg.mxu0
    %6143 = vrot.lane.b32.xlu0 %v3445, 32
    %v6144 = vpop.permute.xlu0 %6143
    %6147 = vrot.lane.b32.xlu0 %v3894, 64
    %v6148 = vpop.permute.xlu0 %6147
    %6151 = vrot.lane.b32.xlu0 %v4343, 96
    %v6152 = vpop.permute.xlu0 %6151
    %6155 = vrot.lane.b32.xlu0 %v5241, 32
    %v6156 = vpop.permute.xlu0 %6155
    %6159 = vrot.lane.b32.xlu0 %v5690, 64
    %v6160 = vpop.permute.xlu0 %6159
    %6163 = vrot.lane.b32.xlu0 %v6139, 96
    %v6164 = vpop.permute.xlu0 %6163
    %v6166 = vsel %vm164, %v2977, %v6144
    %v6167 = vsel %vm368, %v6166, %v6148
    %vm6168 = vcmask 785408
    %v6169 = vsel %vm6168, %v6167, %v6152
    %v6170 = vsel %vm164, %v4792, %v6156
    %v6171 = vsel %vm368, %v6170, %v6160
    %v6172 = vsel %vm6168, %v6171, %v6164
    %6173 = vst [vmem:[#allocation14] sm:$0xff] %v6169
    %6174 = vst [vmem:[#allocation14 + $0x8] sm:$0xff] %v6172
    // Predicated region
    $region90: #{tpu_custom_call.1} parent=1 // pred_check
      _
    $region91: #{tpu_custom_call.1} parent=1 // pred_check_branch
      %6176 = sbr.rel (0) target = $region93
    $region92: #{tpu_custom_call.1} parent=1 // pred_region
      %s6178 = ssub.s32 256, 256
      %6179 = vsyncadd [#allocation5], %s6178
      %s6181 = sshll.u32 [#allocation14], 4
      %s6182 = int_to_ptr.vmem [resolvable:$true] %s6181
      %6184 = dma.vmem_to_hbm [thread:$0]  %s6182, 256, %s16, [#allocation5]
    $region93: #{tpu_custom_call.1} parent=1 // pred_fallthru
      _
    // Predicated region
    $region94: #{tpu_custom_call.1} parent=1 // pred_check
      _
    $region95: #{tpu_custom_call.1} parent=1 // pred_check_branch
      %6186 = sbr.rel (0) target = $region97
    $region96: #{tpu_custom_call.1} parent=1 // pred_region
      %6187 = dma.done [#allocation5], 256
    $region97: #{tpu_custom_call.1} parent=1 // pred_fallthru
      _
    %6188 = vsyncpa [#allocation4], 1
    %6189 = vsyncpa [#allocation7], 1
    %6190 = vsyncpa [#allocation10], 1
    %6191 = vsyncpa [#allocation13], 1
    %6192 = vsyncpa [#allocation5], 1

</llo_original>
